<compile_context>
chip_gen: v7x
topology: tpu7x:2x2x1
jax: 0.10.0
libtpu: 0.0.40
codegen_flags: <defaults>
</compile_context>

<pallas_src>
import math

import numpy as np
import jax
import jax.numpy as jnp
from jax.experimental import pallas as pl
from jax.experimental.pallas import tpu as pltpu

# ----------------------- model hyper-parameters -----------------------------
NC_DET = 1                 # Detect nc (YOLOP uses 1)
NA = 3                     # anchors per level
NO = NC_DET + 5            # outputs per anchor
ANCHORS = [[10.0, 13.0, 16.0, 30.0, 33.0, 23.0],
           [30.0, 61.0, 62.0, 45.0, 59.0, 119.0]]
ANCHORS_WH = tuple(
    tuple((ANCHORS[l][2 * a], ANCHORS[l][2 * a + 1]) for a in range(NA))
    for l in range(len(ANCHORS)))
# Strides derived structurally (same as MCnet's dummy forward at s=128):
# detect level 0 sees layer-1 (H/4), level 1 sees layer-3 (H/8).
STRIDES = [4.0, 8.0]
_K0_PAD = 32               # conv0 K = 3*3*3 = 27 padded for clean bf16 tiling


# --------------------------- fused Pallas kernel ------------------------------
def _mcnet_kernel(a0_ref, w0_ref, b0_ref,
                  w1_ref, b1_ref, s1_ref,
                  w2_ref, b2_ref, s2_ref,
                  w3_ref, b3_ref,
                  wd0_ref, bd0_ref, wd1_ref, bd1_ref,
                  wsa_ref, bsa_ref, ssa_ref,
                  wsl_ref, bsl_ref, ssl_ref,
                  p0a_ref, p1a_ref, p2a_ref,
                  p0b_ref, p1b_ref, p2b_ref,
                  raw0_ref, dec0_ref, raw1_ref, dec1_ref,
                  segda_ref, segll_ref):
    """Whole MCnet forward for one batch element (grid axis = batch)."""
    f32, bf16 = jnp.float32, jnp.bfloat16

    def sigmoid(v):
        # exact EUP reciprocal (review correctness note); exp is EUP too.
        return pl.reciprocal(1.0 + jnp.exp(-v), approx=False)

    def conv1x1(x_bf, w_ref, b_ref):
        return jnp.dot(w_ref[...], x_bf, preferred_element_type=f32) + b_ref[...]

    def conv3x3(x_bf, w_ref, b_ref, s_ref):
        """3x3 conv via 9 per-tap one-hot gathers (exact) + small MXU dots.

        x_bf:  (Cin, Min)  bf16 activation, flat row-major spatial.
        w_ref: (9, Cout, Cin)  tap-major weights.
        s_ref: (9, Min, Mout)  one-hot gather (encodes padding + stride)."""
        acc = b_ref[...]                                    # (Cout, 1) f32
        for t in range(9):
            a_t = jnp.dot(x_bf, s_ref[t],
                          preferred_element_type=f32).astype(bf16)   # exact gather
            acc = acc + jnp.dot(w_ref[t], a_t, preferred_element_type=f32)
        return acc                                          # (Cout, Mout) f32

    # ----------------------------- backbone ---------------------------------
    x0 = (jnp.dot(w0_ref[...], a0_ref[...], preferred_element_type=f32)
          + b0_ref[...]).astype(bf16)                       # (8,  H/2*W/2)
    x1 = conv3x3(x0, w1_ref, b1_ref, s1_ref).astype(bf16)   # (16, H/4*W/4)
    x2 = conv3x3(x1, w2_ref, b2_ref, s2_ref).astype(bf16)   # (32, H/8*W/8)
    x3 = conv1x1(x2, w3_ref, b3_ref).astype(bf16)           # (16, H/8*W/8)

    # ------------- Detect heads: 1x1 conv + fused eval decode ---------------
    def detect(x_bf, w_ref, b_ref, p0_ref, p1_ref, p2_ref, raw_ref, dec_ref):
        acc = conv1x1(x_bf, w_ref, b_ref)                   # (NA*NO, M) f32
        raw_ref[...] = acc
        s = sigmoid(acc)
        # dec = P0 + s*(P1 + s*P2) reproduces:
        #   xy  rows: (2s - 0.5 + grid) * stride
        #   wh  rows: (2s)^2 * anchor
        #   obj/cls : s
        dec_ref[...] = p0_ref[...] + s * (p1_ref[...] + s * p2_ref[...])

    detect(x1, wd0_ref, bd0_ref, p0a_ref, p1a_ref, p2a_ref, raw0_ref, dec0_ref)
    detect(x3, wd1_ref, bd1_ref, p0b_ref, p1b_ref, p2b_ref, raw1_ref, dec1_ref)

    # --------------- segmentation heads with fused nn.Sigmoid() -------------
    segda_ref[...] = sigmoid(conv3x3(x1, wsa_ref, bsa_ref, ssa_ref))
    segll_ref[...] = sigmoid(conv3x3(x3, wsl_ref, bsl_ref, ssl_ref))


# ---------------------- trace-time constant builders -------------------------
def _tap_gather(h, w, oh, ow, stride, pad):
    """One-hot (9, h*w, oh*ow): [t, iy*w+ix, oy*ow+ox] = 1 where 3x3 tap t of
    output (oy,ox) reads input (iy,ix); zero column when the tap falls inside
    the zero-padding ring (so padding + stride-subsample become a matmul)."""
    s = np.zeros((9, h * w, oh * ow), np.float32)
    for t in range(9):
        dy, dx = t // 3, t % 3
        for oy in range(oh):
            iy = stride * oy + dy - pad
            if iy < 0 or iy >= h:
                continue
            for ox in range(ow):
                ix = stride * ox + dx - pad
                if 0 <= ix < w:
                    s[t, iy * w + ix, oy * ow + ox] = 1.0
    return s


def _decode_consts(ny, nx, stride, anchors_wh):
    """Coefficients for dec = P0 + sig*(P1 + sig*P2); row r = a*NO+o,
    column m = y*nx + x (matches the kernel's flat spatial layout)."""
    m = ny * nx
    p0 = np.zeros((NA * NO, m), np.float32)
    p1 = np.zeros((NA * NO, 1), np.float32)
    p2 = np.zeros((NA * NO, 1), np.float32)
    gx = np.tile(np.arange(nx, dtype=np.float32), ny)
    gy = np.repeat(np.arange(ny, dtype=np.float32), nx)
    for a in range(NA):
        for o in range(NO):
            r = a * NO + o
            if o < 2:                                  # x, y
                p1[r, 0] = 2.0 * stride
                p0[r] = ((gx if o == 0 else gy) - 0.5) * stride
            elif o < 4:                                # w, h
                p2[r, 0] = 4.0 * anchors_wh[a][o - 2]
            else:                                      # obj / cls
                p1[r, 0] = 1.0
    return p0, p1, p2


# ----------------------------- operand prep -----------------------------------
def _w3x3_taps(w):            # (Cout, Cin, 3, 3) -> (9, Cout, Cin) tap-major
    cout, cin = w.shape[0], w.shape[1]
    return jnp.transpose(w, (2, 3, 0, 1)).reshape(9, cout, cin).astype(jnp.bfloat16)


def _w1x1(w):                 # (Cout, Cin, 1, 1) -> (Cout, Cin)
    return w.reshape(w.shape[0], w.shape[1]).astype(jnp.bfloat16)


def _bias(b):
    return b.reshape(-1, 1).astype(jnp.float32)


def _conv0_operands(x_nchw, w0, pad_k=_K0_PAD):
    """First-layer im2col in XLA (input must be read from HBM anyway)."""
    n, c, h, w = x_nchw.shape
    oh, ow = (h + 2 - 3) // 2 + 1, (w + 2 - 3) // 2 + 1
    xp = jnp.pad(x_nchw, ((0, 0), (0, 0), (1, 1), (1, 1)))
    taps = [xp[:, :, i:i + 2 * oh:2, j:j + 2 * ow:2]
            for i in range(3) for j in range(3)]
    a0 = jnp.stack(taps, axis=1).reshape(n, 9 * c, oh * ow)      # tap-major K
    k = 9 * c
    a0 = jnp.pad(a0, ((0, 0), (0, pad_k - k), (0, 0))).astype(jnp.bfloat16)
    w0f = jnp.transpose(w0, (0, 2, 3, 1)).reshape(w0.shape[0], k)
    w0f = jnp.pad(w0f, ((0, 0), (0, pad_k - k))).astype(jnp.bfloat16)
    return a0, w0f, oh, ow


# ------------------------- deterministic parameters --------------------------
def init_params(key):
    def conv_p(k, cout, cin, kh, kw, scale=0.05):
        w = jax.random.normal(k, (cout, cin, kh, kw), jnp.float32) * scale
        return {"w": w, "b": jnp.zeros((cout,), jnp.float32)}

    keys = jax.random.split(key, 8)
    params = {
        "conv0": conv_p(keys[0], 8, 3, 3, 3),
        "conv1": conv_p(keys[1], 16, 8, 3, 3),
        "conv2": conv_p(keys[2], 32, 16, 3, 3),
        "conv3": conv_p(keys[3], 16, 32, 1, 1),
        "seg_da": conv_p(keys[6], 2, 16, 3, 3),
        "seg_ll": conv_p(keys[7], 2, 16, 3, 3),
    }
    det = []
    for k, s in zip(keys[4:6], STRIDES):
        p = conv_p(k, NO * NA, 16, 1, 1)
        # MCnet._initialize_biases (starting from zero bias):
        b = p["b"].reshape(NA, NO)
        b = b.at[:, 4].add(math.log(8.0 / (640.0 / s) ** 2))
        b = b.at[:, 5:].add(math.log(0.6 / (NC_DET - 0.99)))
        p["b"] = b.reshape(-1)
        det.append(p)
    params["det"] = det
    return params


# ------------------------------ MCnet forward --------------------------------
def mcnet_forward(params, x_nchw):
    n = x_nchw.shape[0]

    # conv0 im2col (XLA, fused under jit) + spatial sizes through the net.
    a0, w0f, oh0, ow0 = _conv0_operands(x_nchw, params["conv0"]["w"])
    oh1, ow1 = oh0 // 2, ow0 // 2          # conv1 (3x3 s2 p1)
    oh2, ow2 = oh1 // 2, ow1 // 2          # conv2 (3x3 s2 p1)
    m0, m1, m2 = oh0 * ow0, oh1 * ow1, oh2 * ow2

    # one-hot gather matrices (trace-time numpy constants, per image)
    s1 = jnp.asarray(_tap_gather(oh0, ow0, oh1, ow1, 2, 1), jnp.bfloat16)
    s2 = jnp.asarray(_tap_gather(oh1, ow1, oh2, ow2, 2, 1), jnp.bfloat16)
    ssa = jnp.asarray(_tap_gather(oh1, ow1, oh1, ow1, 1, 1), jnp.bfloat16)
    ssl = jnp.asarray(_tap_gather(oh2, ow2, oh2, ow2, 1, 1), jnp.bfloat16)

    # detect decode coefficients (per level)
    p0a, p1a, p2a = map(jnp.asarray, _decode_consts(oh1, ow1, STRIDES[0], ANCHORS_WH[0]))
    p0b, p1b, p2b = map(jnp.asarray, _decode_consts(oh2, ow2, STRIDES[1], ANCHORS_WH[1]))

    # weights / biases in kernel layout
    b0 = _bias(params["conv0"]["b"])
    w1 = _w3x3_taps(params["conv1"]["w"]);    b1 = _bias(params["conv1"]["b"])
    w2 = _w3x3_taps(params["conv2"]["w"]);    b2 = _bias(params["conv2"]["b"])
    w3 = _w1x1(params["conv3"]["w"]);         b3 = _bias(params["conv3"]["b"])
    wd0 = _w1x1(params["det"][0]["w"]);       bd0 = _bias(params["det"][0]["b"])
    wd1 = _w1x1(params["det"][1]["w"]);       bd1 = _bias(params["det"][1]["b"])
    wsa = _w3x3_taps(params["seg_da"]["w"]);  bsa = _bias(params["seg_da"]["b"])
    wsl = _w3x3_taps(params["seg_ll"]["w"]);  bsl = _bias(params["seg_ll"]["b"])

    consts = (w0f, b0, w1, b1, s1, w2, b2, s2, w3, b3,
              wd0, bd0, wd1, bd1, wsa, bsa, ssa, wsl, bsl, ssl,
              p0a, p1a, p2a, p0b, p1b, p2b)

    def cspec(a):                       # batch-invariant operand, one block
        shp = a.shape
        if len(shp) == 2:
            return pl.BlockSpec(shp, lambda b: (0, 0))
        return pl.BlockSpec(shp, lambda b: (0, 0, 0))

    def bspec(rows, cols):              # batch-blocked operand / output
        return pl.BlockSpec((None, rows, cols), lambda b: (b, 0, 0))

    out_shape = (
        jax.ShapeDtypeStruct((n, NA * NO, m1), jnp.float32),   # raw logits L0
        jax.ShapeDtypeStruct((n, NA * NO, m1), jnp.float32),   # decoded   L0
        jax.ShapeDtypeStruct((n, NA * NO, m2), jnp.float32),   # raw logits L1
        jax.ShapeDtypeStruct((n, NA * NO, m2), jnp.float32),   # decoded   L1
        jax.ShapeDtypeStruct((n, 2, m1), jnp.float32),         # seg_da (sigmoid)
        jax.ShapeDtypeStruct((n, 2, m2), jnp.float32),         # seg_ll (sigmoid)
    )
    out_specs = (bspec(NA * NO, m1), bspec(NA * NO, m1),
                 bspec(NA * NO, m2), bspec(NA * NO, m2),
                 bspec(2, m1), bspec(2, m2))
    in_specs = [bspec(_K0_PAD, m0)] + [cspec(a) for a in consts]

    raw0, dec0, raw1, dec1, segda, segll = pl.pallas_call(
        _mcnet_kernel,
        out_shape=out_shape,
        grid=(n,),                                    # batch-parallel grid
        in_specs=in_specs,
        out_specs=out_specs,
        compiler_params=pltpu.CompilerParams(
            dimension_semantics=("parallel",)),
    )(a0, *consts)

    # ----------------- output assembly (pure reshapes, fused) ---------------
    def det_level(raw, dec, ny, nx):
        raw5 = raw.reshape(n, NA, NO, ny, nx).transpose(0, 1, 3, 4, 2)
        z = dec.reshape(n, NA, NO, ny * nx).transpose(0, 1, 3, 2)
        return raw5, z.reshape(n, NA * ny * nx, NO)

    x_det0, z0 = det_level(raw0, dec0, oh1, ow1)
    x_det1, z1 = det_level(raw1, dec1, oh2, ow2)
    det_out = (jnp.concatenate([z0, z1], axis=1), [x_det0, x_det1])

    seg_da = segda.reshape(n, 2, oh1, ow1)
    seg_ll = segll.reshape(n, 2, oh2, ow2)

    # out.insert(0, det_out)
    return [det_out, seg_da, seg_ll]


# ----------------------------------- main ------------------------------------
if __name__ == "__main__":
    key = jax.random.PRNGKey(0)
    pkey, xkey = jax.random.split(key)
    params = init_params(pkey)
    x = jax.random.normal(xkey, (2, 3, 32, 32), jnp.float32)   # NCHW like PyTorch

    forward = jax.jit(mcnet_forward)
    out = forward(params, x)
    for leaf in jax.tree_util.tree_leaves(out):
        jax.block_until_ready(leaf)

    det_z, det_x = out[0]
    assert det_z.shape == (2, NA * (8 * 8 + 4 * 4), NO)        # (2, 240, 6)
    assert det_x[0].shape == (2, NA, 8, 8, NO)
    assert det_x[1].shape == (2, NA, 4, 4, NO)
    assert out[1].shape == (2, 2, 8, 8) and out[2].shape == (2, 2, 4, 4)
    print("KERNEL_OK")
</pallas_src>

<mosaic_0001>
module attributes {stable_mosaic.version = 11 : i64} {
  func.func @_mcnet_kernel(%arg0: i32, %arg1: memref<1x32x256xbf16, #tpu.memory_space<vmem>>, %arg2: memref<8x32xbf16, #tpu.memory_space<vmem>>, %arg3: memref<8x1xf32, #tpu.memory_space<vmem>>, %arg4: memref<9x16x8xbf16, #tpu.memory_space<vmem>>, %arg5: memref<16x1xf32, #tpu.memory_space<vmem>>, %arg6: memref<9x256x64xbf16, #tpu.memory_space<vmem>>, %arg7: memref<9x32x16xbf16, #tpu.memory_space<vmem>>, %arg8: memref<32x1xf32, #tpu.memory_space<vmem>>, %arg9: memref<9x64x16xbf16, #tpu.memory_space<vmem>>, %arg10: memref<16x32xbf16, #tpu.memory_space<vmem>>, %arg11: memref<16x1xf32, #tpu.memory_space<vmem>>, %arg12: memref<18x16xbf16, #tpu.memory_space<vmem>>, %arg13: memref<18x1xf32, #tpu.memory_space<vmem>>, %arg14: memref<18x16xbf16, #tpu.memory_space<vmem>>, %arg15: memref<18x1xf32, #tpu.memory_space<vmem>>, %arg16: memref<9x2x16xbf16, #tpu.memory_space<vmem>>, %arg17: memref<2x1xf32, #tpu.memory_space<vmem>>, %arg18: memref<9x64x64xbf16, #tpu.memory_space<vmem>>, %arg19: memref<9x2x16xbf16, #tpu.memory_space<vmem>>, %arg20: memref<2x1xf32, #tpu.memory_space<vmem>>, %arg21: memref<9x16x16xbf16, #tpu.memory_space<vmem>>, %arg22: memref<18x64xf32, #tpu.memory_space<vmem>>, %arg23: memref<18x1xf32, #tpu.memory_space<vmem>>, %arg24: memref<18x1xf32, #tpu.memory_space<vmem>>, %arg25: memref<18x16xf32, #tpu.memory_space<vmem>>, %arg26: memref<18x1xf32, #tpu.memory_space<vmem>>, %arg27: memref<18x1xf32, #tpu.memory_space<vmem>>, %arg28: memref<1x18x64xf32, #tpu.memory_space<vmem>>, %arg29: memref<1x18x64xf32, #tpu.memory_space<vmem>>, %arg30: memref<1x18x16xf32, #tpu.memory_space<vmem>>, %arg31: memref<1x18x16xf32, #tpu.memory_space<vmem>>, %arg32: memref<1x2x64xf32, #tpu.memory_space<vmem>>, %arg33: memref<1x2x16xf32, #tpu.memory_space<vmem>>) attributes {dimension_semantics = [#tpu.dimension_semantics<parallel>], iteration_bounds = array<i64: 2>, scalar_prefetch = 0 : i64, scratch_operands = 0 : i64, tpu.core_type = #tpu.core_type<tc>, window_params = [{transform_indices = @transform_0, window_bounds = array<i64: 1, 32, 256>}, {pipeline_mode = #tpu.pipeline_mode<synchronous>, transform_indices = @transform_1, window_bounds = array<i64: 8, 32>}, {pipeline_mode = #tpu.pipeline_mode<synchronous>, transform_indices = @transform_2, window_bounds = array<i64: 8, 1>}, {pipeline_mode = #tpu.pipeline_mode<synchronous>, transform_indices = @transform_3, window_bounds = array<i64: 9, 16, 8>}, {pipeline_mode = #tpu.pipeline_mode<synchronous>, transform_indices = @transform_4, window_bounds = array<i64: 16, 1>}, {pipeline_mode = #tpu.pipeline_mode<synchronous>, transform_indices = @transform_5, window_bounds = array<i64: 9, 256, 64>}, {pipeline_mode = #tpu.pipeline_mode<synchronous>, transform_indices = @transform_6, window_bounds = array<i64: 9, 32, 16>}, {pipeline_mode = #tpu.pipeline_mode<synchronous>, transform_indices = @transform_7, window_bounds = array<i64: 32, 1>}, {pipeline_mode = #tpu.pipeline_mode<synchronous>, transform_indices = @transform_8, window_bounds = array<i64: 9, 64, 16>}, {pipeline_mode = #tpu.pipeline_mode<synchronous>, transform_indices = @transform_9, window_bounds = array<i64: 16, 32>}, {pipeline_mode = #tpu.pipeline_mode<synchronous>, transform_indices = @transform_10, window_bounds = array<i64: 16, 1>}, {pipeline_mode = #tpu.pipeline_mode<synchronous>, transform_indices = @transform_11, window_bounds = array<i64: 18, 16>}, {pipeline_mode = #tpu.pipeline_mode<synchronous>, transform_indices = @transform_12, window_bounds = array<i64: 18, 1>}, {pipeline_mode = #tpu.pipeline_mode<synchronous>, transform_indices = @transform_13, window_bounds = array<i64: 18, 16>}, {pipeline_mode = #tpu.pipeline_mode<synchronous>, transform_indices = @transform_14, window_bounds = array<i64: 18, 1>}, {pipeline_mode = #tpu.pipeline_mode<synchronous>, transform_indices = @transform_15, window_bounds = array<i64: 9, 2, 16>}, {pipeline_mode = #tpu.pipeline_mode<synchronous>, transform_indices = @transform_16, window_bounds = array<i64: 2, 1>}, {pipeline_mode = #tpu.pipeline_mode<synchronous>, transform_indices = @transform_17, window_bounds = array<i64: 9, 64, 64>}, {pipeline_mode = #tpu.pipeline_mode<synchronous>, transform_indices = @transform_18, window_bounds = array<i64: 9, 2, 16>}, {pipeline_mode = #tpu.pipeline_mode<synchronous>, transform_indices = @transform_19, window_bounds = array<i64: 2, 1>}, {pipeline_mode = #tpu.pipeline_mode<synchronous>, transform_indices = @transform_20, window_bounds = array<i64: 9, 16, 16>}, {pipeline_mode = #tpu.pipeline_mode<synchronous>, transform_indices = @transform_21, window_bounds = array<i64: 18, 64>}, {pipeline_mode = #tpu.pipeline_mode<synchronous>, transform_indices = @transform_22, window_bounds = array<i64: 18, 1>}, {pipeline_mode = #tpu.pipeline_mode<synchronous>, transform_indices = @transform_23, window_bounds = array<i64: 18, 1>}, {pipeline_mode = #tpu.pipeline_mode<synchronous>, transform_indices = @transform_24, window_bounds = array<i64: 18, 16>}, {pipeline_mode = #tpu.pipeline_mode<synchronous>, transform_indices = @transform_25, window_bounds = array<i64: 18, 1>}, {pipeline_mode = #tpu.pipeline_mode<synchronous>, transform_indices = @transform_26, window_bounds = array<i64: 18, 1>}, {transform_indices = @transform_27, window_bounds = array<i64: 1, 18, 64>}, {transform_indices = @transform_28, window_bounds = array<i64: 1, 18, 64>}, {transform_indices = @transform_29, window_bounds = array<i64: 1, 18, 16>}, {transform_indices = @transform_30, window_bounds = array<i64: 1, 18, 16>}, {transform_indices = @transform_31, window_bounds = array<i64: 1, 2, 64>}, {transform_indices = @transform_32, window_bounds = array<i64: 1, 2, 16>}]} {
    %c0 = arith.constant 0 : index
    %c0_0 = arith.constant 0 : index
    %0 = vector.load %arg2[%c0, %c0_0] : memref<8x32xbf16, #tpu.memory_space<vmem>>, vector<8x32xbf16>
    %c0_1 = arith.constant 0 : index
    %c0_2 = arith.constant 0 : index
    %c0_3 = arith.constant 0 : index
    %1 = vector.load %arg1[%c0_1, %c0_2, %c0_3] : memref<1x32x256xbf16, #tpu.memory_space<vmem>>, vector<1x32x256xbf16>
    %2 = vector.shape_cast %1 : vector<1x32x256xbf16> to vector<32x256xbf16>
    %cst = arith.constant dense<0.000000e+00> : vector<8x256xf32>
    %3 = tpu.matmul %0, %2, %cst {dimension_numbers = #tpu.dot_dimension_numbers<[1], [0], [0], [1], [0, 0, 1, 1], [], []>} : vector<8x32xbf16>, vector<32x256xbf16>, vector<8x256xf32> -> vector<8x256xf32>
    %c0_4 = arith.constant 0 : index
    %c0_5 = arith.constant 0 : index
    %4 = vector.load %arg3[%c0_4, %c0_5] : memref<8x1xf32, #tpu.memory_space<vmem>>, vector<8x1xf32>
    %5 = vector.broadcast %4 : vector<8x1xf32> to vector<8x256xf32>
    %6 = arith.addf %3, %5 : vector<8x256xf32>
    %7 = arith.truncf %6 : vector<8x256xf32> to vector<8x256xbf16>
    %c0_6 = arith.constant 0 : index
    %c0_7 = arith.constant 0 : index
    %8 = vector.load %arg5[%c0_6, %c0_7] : memref<16x1xf32, #tpu.memory_space<vmem>>, vector<16x1xf32>
    %c0_8 = arith.constant 0 : index
    %c0_9 = arith.constant 0 : index
    %c0_10 = arith.constant 0 : index
    %9 = vector.load %arg6[%c0_8, %c0_9, %c0_10] : memref<9x256x64xbf16, #tpu.memory_space<vmem>>, vector<1x256x64xbf16>
    %10 = vector.shape_cast %9 : vector<1x256x64xbf16> to vector<256x64xbf16>
    %cst_11 = arith.constant dense<0.000000e+00> : vector<8x64xf32>
    %11 = tpu.matmul %7, %10, %cst_11 {dimension_numbers = #tpu.dot_dimension_numbers<[1], [0], [0], [1], [0, 0, 1, 1], [], []>} : vector<8x256xbf16>, vector<256x64xbf16>, vector<8x64xf32> -> vector<8x64xf32>
    %12 = arith.truncf %11 : vector<8x64xf32> to vector<8x64xbf16>
    %c0_12 = arith.constant 0 : index
    %c0_13 = arith.constant 0 : index
    %c0_14 = arith.constant 0 : index
    %13 = vector.load %arg4[%c0_12, %c0_13, %c0_14] : memref<9x16x8xbf16, #tpu.memory_space<vmem>>, vector<1x16x8xbf16>
    %14 = vector.shape_cast %13 : vector<1x16x8xbf16> to vector<16x8xbf16>
    %cst_15 = arith.constant dense<0.000000e+00> : vector<16x64xf32>
    %15 = tpu.matmul %14, %12, %cst_15 {dimension_numbers = #tpu.dot_dimension_numbers<[1], [0], [0], [1], [0, 0, 1, 1], [], []>} : vector<16x8xbf16>, vector<8x64xbf16>, vector<16x64xf32> -> vector<16x64xf32>
    %16 = vector.broadcast %8 : vector<16x1xf32> to vector<16x64xf32>
    %17 = arith.addf %16, %15 : vector<16x64xf32>
    %c1 = arith.constant 1 : index
    %c0_16 = arith.constant 0 : index
    %c0_17 = arith.constant 0 : index
    %18 = vector.load %arg6[%c1, %c0_16, %c0_17] : memref<9x256x64xbf16, #tpu.memory_space<vmem>>, vector<1x256x64xbf16>
    %19 = vector.shape_cast %18 : vector<1x256x64xbf16> to vector<256x64xbf16>
    %cst_18 = arith.constant dense<0.000000e+00> : vector<8x64xf32>
    %20 = tpu.matmul %7, %19, %cst_18 {dimension_numbers = #tpu.dot_dimension_numbers<[1], [0], [0], [1], [0, 0, 1, 1], [], []>} : vector<8x256xbf16>, vector<256x64xbf16>, vector<8x64xf32> -> vector<8x64xf32>
    %21 = arith.truncf %20 : vector<8x64xf32> to vector<8x64xbf16>
    %c1_19 = arith.constant 1 : index
    %c0_20 = arith.constant 0 : index
    %c0_21 = arith.constant 0 : index
    %22 = vector.load %arg4[%c1_19, %c0_20, %c0_21] : memref<9x16x8xbf16, #tpu.memory_space<vmem>>, vector<1x16x8xbf16>
    %23 = vector.shape_cast %22 : vector<1x16x8xbf16> to vector<16x8xbf16>
    %cst_22 = arith.constant dense<0.000000e+00> : vector<16x64xf32>
    %24 = tpu.matmul %23, %21, %cst_22 {dimension_numbers = #tpu.dot_dimension_numbers<[1], [0], [0], [1], [0, 0, 1, 1], [], []>} : vector<16x8xbf16>, vector<8x64xbf16>, vector<16x64xf32> -> vector<16x64xf32>
    %25 = arith.addf %17, %24 : vector<16x64xf32>
    %c2 = arith.constant 2 : index
    %c0_23 = arith.constant 0 : index
    %c0_24 = arith.constant 0 : index
    %26 = vector.load %arg6[%c2, %c0_23, %c0_24] : memref<9x256x64xbf16, #tpu.memory_space<vmem>>, vector<1x256x64xbf16>
    %27 = vector.shape_cast %26 : vector<1x256x64xbf16> to vector<256x64xbf16>
    %cst_25 = arith.constant dense<0.000000e+00> : vector<8x64xf32>
    %28 = tpu.matmul %7, %27, %cst_25 {dimension_numbers = #tpu.dot_dimension_numbers<[1], [0], [0], [1], [0, 0, 1, 1], [], []>} : vector<8x256xbf16>, vector<256x64xbf16>, vector<8x64xf32> -> vector<8x64xf32>
    %29 = arith.truncf %28 : vector<8x64xf32> to vector<8x64xbf16>
    %c2_26 = arith.constant 2 : index
    %c0_27 = arith.constant 0 : index
    %c0_28 = arith.constant 0 : index
    %30 = vector.load %arg4[%c2_26, %c0_27, %c0_28] : memref<9x16x8xbf16, #tpu.memory_space<vmem>>, vector<1x16x8xbf16>
    %31 = vector.shape_cast %30 : vector<1x16x8xbf16> to vector<16x8xbf16>
    %cst_29 = arith.constant dense<0.000000e+00> : vector<16x64xf32>
    %32 = tpu.matmul %31, %29, %cst_29 {dimension_numbers = #tpu.dot_dimension_numbers<[1], [0], [0], [1], [0, 0, 1, 1], [], []>} : vector<16x8xbf16>, vector<8x64xbf16>, vector<16x64xf32> -> vector<16x64xf32>
    %33 = arith.addf %25, %32 : vector<16x64xf32>
    %c3 = arith.constant 3 : index
    %c0_30 = arith.constant 0 : index
    %c0_31 = arith.constant 0 : index
    %34 = vector.load %arg6[%c3, %c0_30, %c0_31] : memref<9x256x64xbf16, #tpu.memory_space<vmem>>, vector<1x256x64xbf16>
    %35 = vector.shape_cast %34 : vector<1x256x64xbf16> to vector<256x64xbf16>
    %cst_32 = arith.constant dense<0.000000e+00> : vector<8x64xf32>
    %36 = tpu.matmul %7, %35, %cst_32 {dimension_numbers = #tpu.dot_dimension_numbers<[1], [0], [0], [1], [0, 0, 1, 1], [], []>} : vector<8x256xbf16>, vector<256x64xbf16>, vector<8x64xf32> -> vector<8x64xf32>
    %37 = arith.truncf %36 : vector<8x64xf32> to vector<8x64xbf16>
    %c3_33 = arith.constant 3 : index
    %c0_34 = arith.constant 0 : index
    %c0_35 = arith.constant 0 : index
    %38 = vector.load %arg4[%c3_33, %c0_34, %c0_35] : memref<9x16x8xbf16, #tpu.memory_space<vmem>>, vector<1x16x8xbf16>
    %39 = vector.shape_cast %38 : vector<1x16x8xbf16> to vector<16x8xbf16>
    %cst_36 = arith.constant dense<0.000000e+00> : vector<16x64xf32>
    %40 = tpu.matmul %39, %37, %cst_36 {dimension_numbers = #tpu.dot_dimension_numbers<[1], [0], [0], [1], [0, 0, 1, 1], [], []>} : vector<16x8xbf16>, vector<8x64xbf16>, vector<16x64xf32> -> vector<16x64xf32>
    %41 = arith.addf %33, %40 : vector<16x64xf32>
    %c4 = arith.constant 4 : index
    %c0_37 = arith.constant 0 : index
    %c0_38 = arith.constant 0 : index
    %42 = vector.load %arg6[%c4, %c0_37, %c0_38] : memref<9x256x64xbf16, #tpu.memory_space<vmem>>, vector<1x256x64xbf16>
    %43 = vector.shape_cast %42 : vector<1x256x64xbf16> to vector<256x64xbf16>
    %cst_39 = arith.constant dense<0.000000e+00> : vector<8x64xf32>
    %44 = tpu.matmul %7, %43, %cst_39 {dimension_numbers = #tpu.dot_dimension_numbers<[1], [0], [0], [1], [0, 0, 1, 1], [], []>} : vector<8x256xbf16>, vector<256x64xbf16>, vector<8x64xf32> -> vector<8x64xf32>
    %45 = arith.truncf %44 : vector<8x64xf32> to vector<8x64xbf16>
    %c4_40 = arith.constant 4 : index
    %c0_41 = arith.constant 0 : index
    %c0_42 = arith.constant 0 : index
    %46 = vector.load %arg4[%c4_40, %c0_41, %c0_42] : memref<9x16x8xbf16, #tpu.memory_space<vmem>>, vector<1x16x8xbf16>
    %47 = vector.shape_cast %46 : vector<1x16x8xbf16> to vector<16x8xbf16>
    %cst_43 = arith.constant dense<0.000000e+00> : vector<16x64xf32>
    %48 = tpu.matmul %47, %45, %cst_43 {dimension_numbers = #tpu.dot_dimension_numbers<[1], [0], [0], [1], [0, 0, 1, 1], [], []>} : vector<16x8xbf16>, vector<8x64xbf16>, vector<16x64xf32> -> vector<16x64xf32>
    %49 = arith.addf %41, %48 : vector<16x64xf32>
    %c5 = arith.constant 5 : index
    %c0_44 = arith.constant 0 : index
    %c0_45 = arith.constant 0 : index
    %50 = vector.load %arg6[%c5, %c0_44, %c0_45] : memref<9x256x64xbf16, #tpu.memory_space<vmem>>, vector<1x256x64xbf16>
    %51 = vector.shape_cast %50 : vector<1x256x64xbf16> to vector<256x64xbf16>
    %cst_46 = arith.constant dense<0.000000e+00> : vector<8x64xf32>
    %52 = tpu.matmul %7, %51, %cst_46 {dimension_numbers = #tpu.dot_dimension_numbers<[1], [0], [0], [1], [0, 0, 1, 1], [], []>} : vector<8x256xbf16>, vector<256x64xbf16>, vector<8x64xf32> -> vector<8x64xf32>
    %53 = arith.truncf %52 : vector<8x64xf32> to vector<8x64xbf16>
    %c5_47 = arith.constant 5 : index
    %c0_48 = arith.constant 0 : index
    %c0_49 = arith.constant 0 : index
    %54 = vector.load %arg4[%c5_47, %c0_48, %c0_49] : memref<9x16x8xbf16, #tpu.memory_space<vmem>>, vector<1x16x8xbf16>
    %55 = vector.shape_cast %54 : vector<1x16x8xbf16> to vector<16x8xbf16>
    %cst_50 = arith.constant dense<0.000000e+00> : vector<16x64xf32>
    %56 = tpu.matmul %55, %53, %cst_50 {dimension_numbers = #tpu.dot_dimension_numbers<[1], [0], [0], [1], [0, 0, 1, 1], [], []>} : vector<16x8xbf16>, vector<8x64xbf16>, vector<16x64xf32> -> vector<16x64xf32>
    %57 = arith.addf %49, %56 : vector<16x64xf32>
    %c6 = arith.constant 6 : index
    %c0_51 = arith.constant 0 : index
    %c0_52 = arith.constant 0 : index
    %58 = vector.load %arg6[%c6, %c0_51, %c0_52] : memref<9x256x64xbf16, #tpu.memory_space<vmem>>, vector<1x256x64xbf16>
    %59 = vector.shape_cast %58 : vector<1x256x64xbf16> to vector<256x64xbf16>
    %cst_53 = arith.constant dense<0.000000e+00> : vector<8x64xf32>
    %60 = tpu.matmul %7, %59, %cst_53 {dimension_numbers = #tpu.dot_dimension_numbers<[1], [0], [0], [1], [0, 0, 1, 1], [], []>} : vector<8x256xbf16>, vector<256x64xbf16>, vector<8x64xf32> -> vector<8x64xf32>
    %61 = arith.truncf %60 : vector<8x64xf32> to vector<8x64xbf16>
    %c6_54 = arith.constant 6 : index
    %c0_55 = arith.constant 0 : index
    %c0_56 = arith.constant 0 : index
    %62 = vector.load %arg4[%c6_54, %c0_55, %c0_56] : memref<9x16x8xbf16, #tpu.memory_space<vmem>>, vector<1x16x8xbf16>
    %63 = vector.shape_cast %62 : vector<1x16x8xbf16> to vector<16x8xbf16>
    %cst_57 = arith.constant dense<0.000000e+00> : vector<16x64xf32>
    %64 = tpu.matmul %63, %61, %cst_57 {dimension_numbers = #tpu.dot_dimension_numbers<[1], [0], [0], [1], [0, 0, 1, 1], [], []>} : vector<16x8xbf16>, vector<8x64xbf16>, vector<16x64xf32> -> vector<16x64xf32>
    %65 = arith.addf %57, %64 : vector<16x64xf32>
    %c7 = arith.constant 7 : index
    %c0_58 = arith.constant 0 : index
    %c0_59 = arith.constant 0 : index
    %66 = vector.load %arg6[%c7, %c0_58, %c0_59] : memref<9x256x64xbf16, #tpu.memory_space<vmem>>, vector<1x256x64xbf16>
    %67 = vector.shape_cast %66 : vector<1x256x64xbf16> to vector<256x64xbf16>
    %cst_60 = arith.constant dense<0.000000e+00> : vector<8x64xf32>
    %68 = tpu.matmul %7, %67, %cst_60 {dimension_numbers = #tpu.dot_dimension_numbers<[1], [0], [0], [1], [0, 0, 1, 1], [], []>} : vector<8x256xbf16>, vector<256x64xbf16>, vector<8x64xf32> -> vector<8x64xf32>
    %69 = arith.truncf %68 : vector<8x64xf32> to vector<8x64xbf16>
    %c7_61 = arith.constant 7 : index
    %c0_62 = arith.constant 0 : index
    %c0_63 = arith.constant 0 : index
    %70 = vector.load %arg4[%c7_61, %c0_62, %c0_63] : memref<9x16x8xbf16, #tpu.memory_space<vmem>>, vector<1x16x8xbf16>
    %71 = vector.shape_cast %70 : vector<1x16x8xbf16> to vector<16x8xbf16>
    %cst_64 = arith.constant dense<0.000000e+00> : vector<16x64xf32>
    %72 = tpu.matmul %71, %69, %cst_64 {dimension_numbers = #tpu.dot_dimension_numbers<[1], [0], [0], [1], [0, 0, 1, 1], [], []>} : vector<16x8xbf16>, vector<8x64xbf16>, vector<16x64xf32> -> vector<16x64xf32>
    %73 = arith.addf %65, %72 : vector<16x64xf32>
    %c8 = arith.constant 8 : index
    %c0_65 = arith.constant 0 : index
    %c0_66 = arith.constant 0 : index
    %74 = vector.load %arg6[%c8, %c0_65, %c0_66] : memref<9x256x64xbf16, #tpu.memory_space<vmem>>, vector<1x256x64xbf16>
    %75 = vector.shape_cast %74 : vector<1x256x64xbf16> to vector<256x64xbf16>
    %cst_67 = arith.constant dense<0.000000e+00> : vector<8x64xf32>
    %76 = tpu.matmul %7, %75, %cst_67 {dimension_numbers = #tpu.dot_dimension_numbers<[1], [0], [0], [1], [0, 0, 1, 1], [], []>} : vector<8x256xbf16>, vector<256x64xbf16>, vector<8x64xf32> -> vector<8x64xf32>
    %77 = arith.truncf %76 : vector<8x64xf32> to vector<8x64xbf16>
    %c8_68 = arith.constant 8 : index
    %c0_69 = arith.constant 0 : index
    %c0_70 = arith.constant 0 : index
    %78 = vector.load %arg4[%c8_68, %c0_69, %c0_70] : memref<9x16x8xbf16, #tpu.memory_space<vmem>>, vector<1x16x8xbf16>
    %79 = vector.shape_cast %78 : vector<1x16x8xbf16> to vector<16x8xbf16>
    %cst_71 = arith.constant dense<0.000000e+00> : vector<16x64xf32>
    %80 = tpu.matmul %79, %77, %cst_71 {dimension_numbers = #tpu.dot_dimension_numbers<[1], [0], [0], [1], [0, 0, 1, 1], [], []>} : vector<16x8xbf16>, vector<8x64xbf16>, vector<16x64xf32> -> vector<16x64xf32>
    %81 = arith.addf %73, %80 : vector<16x64xf32>
    %82 = arith.truncf %81 : vector<16x64xf32> to vector<16x64xbf16>
    %c0_72 = arith.constant 0 : index
    %c0_73 = arith.constant 0 : index
    %83 = vector.load %arg8[%c0_72, %c0_73] : memref<32x1xf32, #tpu.memory_space<vmem>>, vector<32x1xf32>
    %c0_74 = arith.constant 0 : index
    %c0_75 = arith.constant 0 : index
    %c0_76 = arith.constant 0 : index
    %84 = vector.load %arg9[%c0_74, %c0_75, %c0_76] : memref<9x64x16xbf16, #tpu.memory_space<vmem>>, vector<1x64x16xbf16>
    %85 = vector.shape_cast %84 : vector<1x64x16xbf16> to vector<64x16xbf16>
    %cst_77 = arith.constant dense<0.000000e+00> : vector<16x16xf32>
    %86 = tpu.matmul %82, %85, %cst_77 {dimension_numbers = #tpu.dot_dimension_numbers<[1], [0], [0], [1], [0, 0, 1, 1], [], []>} : vector<16x64xbf16>, vector<64x16xbf16>, vector<16x16xf32> -> vector<16x16xf32>
    %87 = arith.truncf %86 : vector<16x16xf32> to vector<16x16xbf16>
    %c0_78 = arith.constant 0 : index
    %c0_79 = arith.constant 0 : index
    %c0_80 = arith.constant 0 : index
    %88 = vector.load %arg7[%c0_78, %c0_79, %c0_80] : memref<9x32x16xbf16, #tpu.memory_space<vmem>>, vector<1x32x16xbf16>
    %89 = vector.shape_cast %88 : vector<1x32x16xbf16> to vector<32x16xbf16>
    %cst_81 = arith.constant dense<0.000000e+00> : vector<32x16xf32>
    %90 = tpu.matmul %89, %87, %cst_81 {dimension_numbers = #tpu.dot_dimension_numbers<[1], [0], [0], [1], [0, 0, 1, 1], [], []>} : vector<32x16xbf16>, vector<16x16xbf16>, vector<32x16xf32> -> vector<32x16xf32>
    %91 = vector.broadcast %83 : vector<32x1xf32> to vector<32x16xf32>
    %92 = arith.addf %91, %90 : vector<32x16xf32>
    %c1_82 = arith.constant 1 : index
    %c0_83 = arith.constant 0 : index
    %c0_84 = arith.constant 0 : index
    %93 = vector.load %arg9[%c1_82, %c0_83, %c0_84] : memref<9x64x16xbf16, #tpu.memory_space<vmem>>, vector<1x64x16xbf16>
    %94 = vector.shape_cast %93 : vector<1x64x16xbf16> to vector<64x16xbf16>
    %cst_85 = arith.constant dense<0.000000e+00> : vector<16x16xf32>
    %95 = tpu.matmul %82, %94, %cst_85 {dimension_numbers = #tpu.dot_dimension_numbers<[1], [0], [0], [1], [0, 0, 1, 1], [], []>} : vector<16x64xbf16>, vector<64x16xbf16>, vector<16x16xf32> -> vector<16x16xf32>
    %96 = arith.truncf %95 : vector<16x16xf32> to vector<16x16xbf16>
    %c1_86 = arith.constant 1 : index
    %c0_87 = arith.constant 0 : index
    %c0_88 = arith.constant 0 : index
    %97 = vector.load %arg7[%c1_86, %c0_87, %c0_88] : memref<9x32x16xbf16, #tpu.memory_space<vmem>>, vector<1x32x16xbf16>
    %98 = vector.shape_cast %97 : vector<1x32x16xbf16> to vector<32x16xbf16>
    %cst_89 = arith.constant dense<0.000000e+00> : vector<32x16xf32>
    %99 = tpu.matmul %98, %96, %cst_89 {dimension_numbers = #tpu.dot_dimension_numbers<[1], [0], [0], [1], [0, 0, 1, 1], [], []>} : vector<32x16xbf16>, vector<16x16xbf16>, vector<32x16xf32> -> vector<32x16xf32>
    %100 = arith.addf %92, %99 : vector<32x16xf32>
    %c2_90 = arith.constant 2 : index
    %c0_91 = arith.constant 0 : index
    %c0_92 = arith.constant 0 : index
    %101 = vector.load %arg9[%c2_90, %c0_91, %c0_92] : memref<9x64x16xbf16, #tpu.memory_space<vmem>>, vector<1x64x16xbf16>
    %102 = vector.shape_cast %101 : vector<1x64x16xbf16> to vector<64x16xbf16>
    %cst_93 = arith.constant dense<0.000000e+00> : vector<16x16xf32>
    %103 = tpu.matmul %82, %102, %cst_93 {dimension_numbers = #tpu.dot_dimension_numbers<[1], [0], [0], [1], [0, 0, 1, 1], [], []>} : vector<16x64xbf16>, vector<64x16xbf16>, vector<16x16xf32> -> vector<16x16xf32>
    %104 = arith.truncf %103 : vector<16x16xf32> to vector<16x16xbf16>
    %c2_94 = arith.constant 2 : index
    %c0_95 = arith.constant 0 : index
    %c0_96 = arith.constant 0 : index
    %105 = vector.load %arg7[%c2_94, %c0_95, %c0_96] : memref<9x32x16xbf16, #tpu.memory_space<vmem>>, vector<1x32x16xbf16>
    %106 = vector.shape_cast %105 : vector<1x32x16xbf16> to vector<32x16xbf16>
    %cst_97 = arith.constant dense<0.000000e+00> : vector<32x16xf32>
    %107 = tpu.matmul %106, %104, %cst_97 {dimension_numbers = #tpu.dot_dimension_numbers<[1], [0], [0], [1], [0, 0, 1, 1], [], []>} : vector<32x16xbf16>, vector<16x16xbf16>, vector<32x16xf32> -> vector<32x16xf32>
    %108 = arith.addf %100, %107 : vector<32x16xf32>
    %c3_98 = arith.constant 3 : index
    %c0_99 = arith.constant 0 : index
    %c0_100 = arith.constant 0 : index
    %109 = vector.load %arg9[%c3_98, %c0_99, %c0_100] : memref<9x64x16xbf16, #tpu.memory_space<vmem>>, vector<1x64x16xbf16>
    %110 = vector.shape_cast %109 : vector<1x64x16xbf16> to vector<64x16xbf16>
    %cst_101 = arith.constant dense<0.000000e+00> : vector<16x16xf32>
    %111 = tpu.matmul %82, %110, %cst_101 {dimension_numbers = #tpu.dot_dimension_numbers<[1], [0], [0], [1], [0, 0, 1, 1], [], []>} : vector<16x64xbf16>, vector<64x16xbf16>, vector<16x16xf32> -> vector<16x16xf32>
    %112 = arith.truncf %111 : vector<16x16xf32> to vector<16x16xbf16>
    %c3_102 = arith.constant 3 : index
    %c0_103 = arith.constant 0 : index
    %c0_104 = arith.constant 0 : index
    %113 = vector.load %arg7[%c3_102, %c0_103, %c0_104] : memref<9x32x16xbf16, #tpu.memory_space<vmem>>, vector<1x32x16xbf16>
    %114 = vector.shape_cast %113 : vector<1x32x16xbf16> to vector<32x16xbf16>
    %cst_105 = arith.constant dense<0.000000e+00> : vector<32x16xf32>
    %115 = tpu.matmul %114, %112, %cst_105 {dimension_numbers = #tpu.dot_dimension_numbers<[1], [0], [0], [1], [0, 0, 1, 1], [], []>} : vector<32x16xbf16>, vector<16x16xbf16>, vector<32x16xf32> -> vector<32x16xf32>
    %116 = arith.addf %108, %115 : vector<32x16xf32>
    %c4_106 = arith.constant 4 : index
    %c0_107 = arith.constant 0 : index
    %c0_108 = arith.constant 0 : index
    %117 = vector.load %arg9[%c4_106, %c0_107, %c0_108] : memref<9x64x16xbf16, #tpu.memory_space<vmem>>, vector<1x64x16xbf16>
    %118 = vector.shape_cast %117 : vector<1x64x16xbf16> to vector<64x16xbf16>
    %cst_109 = arith.constant dense<0.000000e+00> : vector<16x16xf32>
    %119 = tpu.matmul %82, %118, %cst_109 {dimension_numbers = #tpu.dot_dimension_numbers<[1], [0], [0], [1], [0, 0, 1, 1], [], []>} : vector<16x64xbf16>, vector<64x16xbf16>, vector<16x16xf32> -> vector<16x16xf32>
    %120 = arith.truncf %119 : vector<16x16xf32> to vector<16x16xbf16>
    %c4_110 = arith.constant 4 : index
    %c0_111 = arith.constant 0 : index
    %c0_112 = arith.constant 0 : index
    %121 = vector.load %arg7[%c4_110, %c0_111, %c0_112] : memref<9x32x16xbf16, #tpu.memory_space<vmem>>, vector<1x32x16xbf16>
    %122 = vector.shape_cast %121 : vector<1x32x16xbf16> to vector<32x16xbf16>
    %cst_113 = arith.constant dense<0.000000e+00> : vector<32x16xf32>
    %123 = tpu.matmul %122, %120, %cst_113 {dimension_numbers = #tpu.dot_dimension_numbers<[1], [0], [0], [1], [0, 0, 1, 1], [], []>} : vector<32x16xbf16>, vector<16x16xbf16>, vector<32x16xf32> -> vector<32x16xf32>
    %124 = arith.addf %116, %123 : vector<32x16xf32>
    %c5_114 = arith.constant 5 : index
    %c0_115 = arith.constant 0 : index
    %c0_116 = arith.constant 0 : index
    %125 = vector.load %arg9[%c5_114, %c0_115, %c0_116] : memref<9x64x16xbf16, #tpu.memory_space<vmem>>, vector<1x64x16xbf16>
    %126 = vector.shape_cast %125 : vector<1x64x16xbf16> to vector<64x16xbf16>
    %cst_117 = arith.constant dense<0.000000e+00> : vector<16x16xf32>
    %127 = tpu.matmul %82, %126, %cst_117 {dimension_numbers = #tpu.dot_dimension_numbers<[1], [0], [0], [1], [0, 0, 1, 1], [], []>} : vector<16x64xbf16>, vector<64x16xbf16>, vector<16x16xf32> -> vector<16x16xf32>
    %128 = arith.truncf %127 : vector<16x16xf32> to vector<16x16xbf16>
    %c5_118 = arith.constant 5 : index
    %c0_119 = arith.constant 0 : index
    %c0_120 = arith.constant 0 : index
    %129 = vector.load %arg7[%c5_118, %c0_119, %c0_120] : memref<9x32x16xbf16, #tpu.memory_space<vmem>>, vector<1x32x16xbf16>
    %130 = vector.shape_cast %129 : vector<1x32x16xbf16> to vector<32x16xbf16>
    %cst_121 = arith.constant dense<0.000000e+00> : vector<32x16xf32>
    %131 = tpu.matmul %130, %128, %cst_121 {dimension_numbers = #tpu.dot_dimension_numbers<[1], [0], [0], [1], [0, 0, 1, 1], [], []>} : vector<32x16xbf16>, vector<16x16xbf16>, vector<32x16xf32> -> vector<32x16xf32>
    %132 = arith.addf %124, %131 : vector<32x16xf32>
    %c6_122 = arith.constant 6 : index
    %c0_123 = arith.constant 0 : index
    %c0_124 = arith.constant 0 : index
    %133 = vector.load %arg9[%c6_122, %c0_123, %c0_124] : memref<9x64x16xbf16, #tpu.memory_space<vmem>>, vector<1x64x16xbf16>
    %134 = vector.shape_cast %133 : vector<1x64x16xbf16> to vector<64x16xbf16>
    %cst_125 = arith.constant dense<0.000000e+00> : vector<16x16xf32>
    %135 = tpu.matmul %82, %134, %cst_125 {dimension_numbers = #tpu.dot_dimension_numbers<[1], [0], [0], [1], [0, 0, 1, 1], [], []>} : vector<16x64xbf16>, vector<64x16xbf16>, vector<16x16xf32> -> vector<16x16xf32>
    %136 = arith.truncf %135 : vector<16x16xf32> to vector<16x16xbf16>
    %c6_126 = arith.constant 6 : index
    %c0_127 = arith.constant 0 : index
    %c0_128 = arith.constant 0 : index
    %137 = vector.load %arg7[%c6_126, %c0_127, %c0_128] : memref<9x32x16xbf16, #tpu.memory_space<vmem>>, vector<1x32x16xbf16>
    %138 = vector.shape_cast %137 : vector<1x32x16xbf16> to vector<32x16xbf16>
    %cst_129 = arith.constant dense<0.000000e+00> : vector<32x16xf32>
    %139 = tpu.matmul %138, %136, %cst_129 {dimension_numbers = #tpu.dot_dimension_numbers<[1], [0], [0], [1], [0, 0, 1, 1], [], []>} : vector<32x16xbf16>, vector<16x16xbf16>, vector<32x16xf32> -> vector<32x16xf32>
    %140 = arith.addf %132, %139 : vector<32x16xf32>
    %c7_130 = arith.constant 7 : index
    %c0_131 = arith.constant 0 : index
    %c0_132 = arith.constant 0 : index
    %141 = vector.load %arg9[%c7_130, %c0_131, %c0_132] : memref<9x64x16xbf16, #tpu.memory_space<vmem>>, vector<1x64x16xbf16>
    %142 = vector.shape_cast %141 : vector<1x64x16xbf16> to vector<64x16xbf16>
    %cst_133 = arith.constant dense<0.000000e+00> : vector<16x16xf32>
    %143 = tpu.matmul %82, %142, %cst_133 {dimension_numbers = #tpu.dot_dimension_numbers<[1], [0], [0], [1], [0, 0, 1, 1], [], []>} : vector<16x64xbf16>, vector<64x16xbf16>, vector<16x16xf32> -> vector<16x16xf32>
    %144 = arith.truncf %143 : vector<16x16xf32> to vector<16x16xbf16>
    %c7_134 = arith.constant 7 : index
    %c0_135 = arith.constant 0 : index
    %c0_136 = arith.constant 0 : index
    %145 = vector.load %arg7[%c7_134, %c0_135, %c0_136] : memref<9x32x16xbf16, #tpu.memory_space<vmem>>, vector<1x32x16xbf16>
    %146 = vector.shape_cast %145 : vector<1x32x16xbf16> to vector<32x16xbf16>
    %cst_137 = arith.constant dense<0.000000e+00> : vector<32x16xf32>
    %147 = tpu.matmul %146, %144, %cst_137 {dimension_numbers = #tpu.dot_dimension_numbers<[1], [0], [0], [1], [0, 0, 1, 1], [], []>} : vector<32x16xbf16>, vector<16x16xbf16>, vector<32x16xf32> -> vector<32x16xf32>
    %148 = arith.addf %140, %147 : vector<32x16xf32>
    %c8_138 = arith.constant 8 : index
    %c0_139 = arith.constant 0 : index
    %c0_140 = arith.constant 0 : index
    %149 = vector.load %arg9[%c8_138, %c0_139, %c0_140] : memref<9x64x16xbf16, #tpu.memory_space<vmem>>, vector<1x64x16xbf16>
    %150 = vector.shape_cast %149 : vector<1x64x16xbf16> to vector<64x16xbf16>
    %cst_141 = arith.constant dense<0.000000e+00> : vector<16x16xf32>
    %151 = tpu.matmul %82, %150, %cst_141 {dimension_numbers = #tpu.dot_dimension_numbers<[1], [0], [0], [1], [0, 0, 1, 1], [], []>} : vector<16x64xbf16>, vector<64x16xbf16>, vector<16x16xf32> -> vector<16x16xf32>
    %152 = arith.truncf %151 : vector<16x16xf32> to vector<16x16xbf16>
    %c8_142 = arith.constant 8 : index
    %c0_143 = arith.constant 0 : index
    %c0_144 = arith.constant 0 : index
    %153 = vector.load %arg7[%c8_142, %c0_143, %c0_144] : memref<9x32x16xbf16, #tpu.memory_space<vmem>>, vector<1x32x16xbf16>
    %154 = vector.shape_cast %153 : vector<1x32x16xbf16> to vector<32x16xbf16>
    %cst_145 = arith.constant dense<0.000000e+00> : vector<32x16xf32>
    %155 = tpu.matmul %154, %152, %cst_145 {dimension_numbers = #tpu.dot_dimension_numbers<[1], [0], [0], [1], [0, 0, 1, 1], [], []>} : vector<32x16xbf16>, vector<16x16xbf16>, vector<32x16xf32> -> vector<32x16xf32>
    %156 = arith.addf %148, %155 : vector<32x16xf32>
    %157 = arith.truncf %156 : vector<32x16xf32> to vector<32x16xbf16>
    %c0_146 = arith.constant 0 : index
    %c0_147 = arith.constant 0 : index
    %158 = vector.load %arg10[%c0_146, %c0_147] : memref<16x32xbf16, #tpu.memory_space<vmem>>, vector<16x32xbf16>
    %cst_148 = arith.constant dense<0.000000e+00> : vector<16x16xf32>
    %159 = tpu.matmul %158, %157, %cst_148 {dimension_numbers = #tpu.dot_dimension_numbers<[1], [0], [0], [1], [0, 0, 1, 1], [], []>} : vector<16x32xbf16>, vector<32x16xbf16>, vector<16x16xf32> -> vector<16x16xf32>
    %c0_149 = arith.constant 0 : index
    %c0_150 = arith.constant 0 : index
    %160 = vector.load %arg11[%c0_149, %c0_150] : memref<16x1xf32, #tpu.memory_space<vmem>>, vector<16x1xf32>
    %161 = vector.broadcast %160 : vector<16x1xf32> to vector<16x16xf32>
    %162 = arith.addf %159, %161 : vector<16x16xf32>
    %163 = arith.truncf %162 : vector<16x16xf32> to vector<16x16xbf16>
    %c0_151 = arith.constant 0 : index
    %c0_152 = arith.constant 0 : index
    %164 = vector.load %arg12[%c0_151, %c0_152] : memref<18x16xbf16, #tpu.memory_space<vmem>>, vector<18x16xbf16>
    %cst_153 = arith.constant dense<0.000000e+00> : vector<18x64xf32>
    %165 = tpu.matmul %164, %82, %cst_153 {dimension_numbers = #tpu.dot_dimension_numbers<[1], [0], [0], [1], [0, 0, 1, 1], [], []>} : vector<18x16xbf16>, vector<16x64xbf16>, vector<18x64xf32> -> vector<18x64xf32>
    %c0_154 = arith.constant 0 : index
    %c0_155 = arith.constant 0 : index
    %166 = vector.load %arg13[%c0_154, %c0_155] : memref<18x1xf32, #tpu.memory_space<vmem>>, vector<18x1xf32>
    %167 = vector.broadcast %166 : vector<18x1xf32> to vector<18x64xf32>
    %168 = arith.addf %165, %167 : vector<18x64xf32>
    %c0_156 = arith.constant 0 : index
    %c0_157 = arith.constant 0 : index
    %c0_158 = arith.constant 0 : index
    %169 = vector.load %arg28[%c0_156, %c0_157, %c0_158] : memref<1x18x64xf32, #tpu.memory_space<vmem>>, vector<1x18x64xf32>
    %170 = vector.shape_cast %169 : vector<1x18x64xf32> to vector<18x64xf32>
    %171 = vector.shape_cast %168 : vector<18x64xf32> to vector<1x18x64xf32>
    tpu.vector_store %arg28[%c0_156, %c0_157, %c0_158], %171 {strides = array<i32>} : memref<1x18x64xf32, #tpu.memory_space<vmem>>, vector<1x18x64xf32>,
    %cst_159 = arith.constant 0.000000e+00 : f32
    %172 = vector.broadcast %cst_159 : f32 to vector<18x64xf32>
    %173 = arith.subf %172, %168 : vector<18x64xf32>
    %174 = math.exp %173 : vector<18x64xf32>
    %cst_160 = arith.constant 1.000000e+00 : f32
    %175 = vector.broadcast %cst_160 : f32 to vector<18x64xf32>
    %176 = arith.addf %175, %174 : vector<18x64xf32>
    %177 = tpu.reciprocal %176 : vector<18x64xf32> -> vector<18x64xf32>
    %c0_161 = arith.constant 0 : index
    %c0_162 = arith.constant 0 : index
    %178 = vector.load %arg22[%c0_161, %c0_162] : memref<18x64xf32, #tpu.memory_space<vmem>>, vector<18x64xf32>
    %c0_163 = arith.constant 0 : index
    %c0_164 = arith.constant 0 : index
    %179 = vector.load %arg23[%c0_163, %c0_164] : memref<18x1xf32, #tpu.memory_space<vmem>>, vector<18x1xf32>
    %c0_165 = arith.constant 0 : index
    %c0_166 = arith.constant 0 : index
    %180 = vector.load %arg24[%c0_165, %c0_166] : memref<18x1xf32, #tpu.memory_space<vmem>>, vector<18x1xf32>
    %181 = vector.broadcast %180 : vector<18x1xf32> to vector<18x64xf32>
    %182 = arith.mulf %177, %181 : vector<18x64xf32>
    %183 = vector.broadcast %179 : vector<18x1xf32> to vector<18x64xf32>
    %184 = arith.addf %183, %182 : vector<18x64xf32>
    %185 = arith.mulf %177, %184 : vector<18x64xf32>
    %186 = arith.addf %178, %185 : vector<18x64xf32>
    %c0_167 = arith.constant 0 : index
    %c0_168 = arith.constant 0 : index
    %c0_169 = arith.constant 0 : index
    %187 = vector.load %arg29[%c0_167, %c0_168, %c0_169] : memref<1x18x64xf32, #tpu.memory_space<vmem>>, vector<1x18x64xf32>
    %188 = vector.shape_cast %187 : vector<1x18x64xf32> to vector<18x64xf32>
    %189 = vector.shape_cast %186 : vector<18x64xf32> to vector<1x18x64xf32>
    tpu.vector_store %arg29[%c0_167, %c0_168, %c0_169], %189 {strides = array<i32>} : memref<1x18x64xf32, #tpu.memory_space<vmem>>, vector<1x18x64xf32>,
    %c0_170 = arith.constant 0 : index
    %c0_171 = arith.constant 0 : index
    %190 = vector.load %arg14[%c0_170, %c0_171] : memref<18x16xbf16, #tpu.memory_space<vmem>>, vector<18x16xbf16>
    %cst_172 = arith.constant dense<0.000000e+00> : vector<18x16xf32>
    %191 = tpu.matmul %190, %163, %cst_172 {dimension_numbers = #tpu.dot_dimension_numbers<[1], [0], [0], [1], [0, 0, 1, 1], [], []>} : vector<18x16xbf16>, vector<16x16xbf16>, vector<18x16xf32> -> vector<18x16xf32>
    %c0_173 = arith.constant 0 : index
    %c0_174 = arith.constant 0 : index
    %192 = vector.load %arg15[%c0_173, %c0_174] : memref<18x1xf32, #tpu.memory_space<vmem>>, vector<18x1xf32>
    %193 = vector.broadcast %192 : vector<18x1xf32> to vector<18x16xf32>
    %194 = arith.addf %191, %193 : vector<18x16xf32>
    %c0_175 = arith.constant 0 : index
    %c0_176 = arith.constant 0 : index
    %c0_177 = arith.constant 0 : index
    %195 = vector.load %arg30[%c0_175, %c0_176, %c0_177] : memref<1x18x16xf32, #tpu.memory_space<vmem>>, vector<1x18x16xf32>
    %196 = vector.shape_cast %195 : vector<1x18x16xf32> to vector<18x16xf32>
    %197 = vector.shape_cast %194 : vector<18x16xf32> to vector<1x18x16xf32>
    tpu.vector_store %arg30[%c0_175, %c0_176, %c0_177], %197 {strides = array<i32>} : memref<1x18x16xf32, #tpu.memory_space<vmem>>, vector<1x18x16xf32>,
    %cst_178 = arith.constant 0.000000e+00 : f32
    %198 = vector.broadcast %cst_178 : f32 to vector<18x16xf32>
    %199 = arith.subf %198, %194 : vector<18x16xf32>
    %200 = math.exp %199 : vector<18x16xf32>
    %cst_179 = arith.constant 1.000000e+00 : f32
    %201 = vector.broadcast %cst_179 : f32 to vector<18x16xf32>
    %202 = arith.addf %201, %200 : vector<18x16xf32>
    %203 = tpu.reciprocal %202 : vector<18x16xf32> -> vector<18x16xf32>
    %c0_180 = arith.constant 0 : index
    %c0_181 = arith.constant 0 : index
    %204 = vector.load %arg25[%c0_180, %c0_181] : memref<18x16xf32, #tpu.memory_space<vmem>>, vector<18x16xf32>
    %c0_182 = arith.constant 0 : index
    %c0_183 = arith.constant 0 : index
    %205 = vector.load %arg26[%c0_182, %c0_183] : memref<18x1xf32, #tpu.memory_space<vmem>>, vector<18x1xf32>
    %c0_184 = arith.constant 0 : index
    %c0_185 = arith.constant 0 : index
    %206 = vector.load %arg27[%c0_184, %c0_185] : memref<18x1xf32, #tpu.memory_space<vmem>>, vector<18x1xf32>
    %207 = vector.broadcast %206 : vector<18x1xf32> to vector<18x16xf32>
    %208 = arith.mulf %203, %207 : vector<18x16xf32>
    %209 = vector.broadcast %205 : vector<18x1xf32> to vector<18x16xf32>
    %210 = arith.addf %209, %208 : vector<18x16xf32>
    %211 = arith.mulf %203, %210 : vector<18x16xf32>
    %212 = arith.addf %204, %211 : vector<18x16xf32>
    %c0_186 = arith.constant 0 : index
    %c0_187 = arith.constant 0 : index
    %c0_188 = arith.constant 0 : index
    %213 = vector.load %arg31[%c0_186, %c0_187, %c0_188] : memref<1x18x16xf32, #tpu.memory_space<vmem>>, vector<1x18x16xf32>
    %214 = vector.shape_cast %213 : vector<1x18x16xf32> to vector<18x16xf32>
    %215 = vector.shape_cast %212 : vector<18x16xf32> to vector<1x18x16xf32>
    tpu.vector_store %arg31[%c0_186, %c0_187, %c0_188], %215 {strides = array<i32>} : memref<1x18x16xf32, #tpu.memory_space<vmem>>, vector<1x18x16xf32>,
    %c0_189 = arith.constant 0 : index
    %c0_190 = arith.constant 0 : index
    %216 = vector.load %arg17[%c0_189, %c0_190] : memref<2x1xf32, #tpu.memory_space<vmem>>, vector<2x1xf32>
    %c0_191 = arith.constant 0 : index
    %c0_192 = arith.constant 0 : index
    %c0_193 = arith.constant 0 : index
    %217 = vector.load %arg18[%c0_191, %c0_192, %c0_193] : memref<9x64x64xbf16, #tpu.memory_space<vmem>>, vector<1x64x64xbf16>
    %218 = vector.shape_cast %217 : vector<1x64x64xbf16> to vector<64x64xbf16>
    %cst_194 = arith.constant dense<0.000000e+00> : vector<16x64xf32>
    %219 = tpu.matmul %82, %218, %cst_194 {dimension_numbers = #tpu.dot_dimension_numbers<[1], [0], [0], [1], [0, 0, 1, 1], [], []>} : vector<16x64xbf16>, vector<64x64xbf16>, vector<16x64xf32> -> vector<16x64xf32>
    %220 = arith.truncf %219 : vector<16x64xf32> to vector<16x64xbf16>
    %c0_195 = arith.constant 0 : index
    %c0_196 = arith.constant 0 : index
    %c0_197 = arith.constant 0 : index
    %221 = vector.load %arg16[%c0_195, %c0_196, %c0_197] : memref<9x2x16xbf16, #tpu.memory_space<vmem>>, vector<1x2x16xbf16>
    %222 = vector.shape_cast %221 : vector<1x2x16xbf16> to vector<2x16xbf16>
    %cst_198 = arith.constant dense<0.000000e+00> : vector<2x64xf32>
    %223 = tpu.matmul %222, %220, %cst_198 {dimension_numbers = #tpu.dot_dimension_numbers<[1], [0], [0], [1], [0, 0, 1, 1], [], []>} : vector<2x16xbf16>, vector<16x64xbf16>, vector<2x64xf32> -> vector<2x64xf32>
    %224 = vector.broadcast %216 : vector<2x1xf32> to vector<2x64xf32>
    %225 = arith.addf %224, %223 : vector<2x64xf32>
    %c1_199 = arith.constant 1 : index
    %c0_200 = arith.constant 0 : index
    %c0_201 = arith.constant 0 : index
    %226 = vector.load %arg18[%c1_199, %c0_200, %c0_201] : memref<9x64x64xbf16, #tpu.memory_space<vmem>>, vector<1x64x64xbf16>
    %227 = vector.shape_cast %226 : vector<1x64x64xbf16> to vector<64x64xbf16>
    %cst_202 = arith.constant dense<0.000000e+00> : vector<16x64xf32>
    %228 = tpu.matmul %82, %227, %cst_202 {dimension_numbers = #tpu.dot_dimension_numbers<[1], [0], [0], [1], [0, 0, 1, 1], [], []>} : vector<16x64xbf16>, vector<64x64xbf16>, vector<16x64xf32> -> vector<16x64xf32>
    %229 = arith.truncf %228 : vector<16x64xf32> to vector<16x64xbf16>
    %c1_203 = arith.constant 1 : index
    %c0_204 = arith.constant 0 : index
    %c0_205 = arith.constant 0 : index
    %230 = vector.load %arg16[%c1_203, %c0_204, %c0_205] : memref<9x2x16xbf16, #tpu.memory_space<vmem>>, vector<1x2x16xbf16>
    %231 = vector.shape_cast %230 : vector<1x2x16xbf16> to vector<2x16xbf16>
    %cst_206 = arith.constant dense<0.000000e+00> : vector<2x64xf32>
    %232 = tpu.matmul %231, %229, %cst_206 {dimension_numbers = #tpu.dot_dimension_numbers<[1], [0], [0], [1], [0, 0, 1, 1], [], []>} : vector<2x16xbf16>, vector<16x64xbf16>, vector<2x64xf32> -> vector<2x64xf32>
    %233 = arith.addf %225, %232 : vector<2x64xf32>
    %c2_207 = arith.constant 2 : index
    %c0_208 = arith.constant 0 : index
    %c0_209 = arith.constant 0 : index
    %234 = vector.load %arg18[%c2_207, %c0_208, %c0_209] : memref<9x64x64xbf16, #tpu.memory_space<vmem>>, vector<1x64x64xbf16>
    %235 = vector.shape_cast %234 : vector<1x64x64xbf16> to vector<64x64xbf16>
    %cst_210 = arith.constant dense<0.000000e+00> : vector<16x64xf32>
    %236 = tpu.matmul %82, %235, %cst_210 {dimension_numbers = #tpu.dot_dimension_numbers<[1], [0], [0], [1], [0, 0, 1, 1], [], []>} : vector<16x64xbf16>, vector<64x64xbf16>, vector<16x64xf32> -> vector<16x64xf32>
    %237 = arith.truncf %236 : vector<16x64xf32> to vector<16x64xbf16>
    %c2_211 = arith.constant 2 : index
    %c0_212 = arith.constant 0 : index
    %c0_213 = arith.constant 0 : index
    %238 = vector.load %arg16[%c2_211, %c0_212, %c0_213] : memref<9x2x16xbf16, #tpu.memory_space<vmem>>, vector<1x2x16xbf16>
    %239 = vector.shape_cast %238 : vector<1x2x16xbf16> to vector<2x16xbf16>
    %cst_214 = arith.constant dense<0.000000e+00> : vector<2x64xf32>
    %240 = tpu.matmul %239, %237, %cst_214 {dimension_numbers = #tpu.dot_dimension_numbers<[1], [0], [0], [1], [0, 0, 1, 1], [], []>} : vector<2x16xbf16>, vector<16x64xbf16>, vector<2x64xf32> -> vector<2x64xf32>
    %241 = arith.addf %233, %240 : vector<2x64xf32>
    %c3_215 = arith.constant 3 : index
    %c0_216 = arith.constant 0 : index
    %c0_217 = arith.constant 0 : index
    %242 = vector.load %arg18[%c3_215, %c0_216, %c0_217] : memref<9x64x64xbf16, #tpu.memory_space<vmem>>, vector<1x64x64xbf16>
    %243 = vector.shape_cast %242 : vector<1x64x64xbf16> to vector<64x64xbf16>
    %cst_218 = arith.constant dense<0.000000e+00> : vector<16x64xf32>
    %244 = tpu.matmul %82, %243, %cst_218 {dimension_numbers = #tpu.dot_dimension_numbers<[1], [0], [0], [1], [0, 0, 1, 1], [], []>} : vector<16x64xbf16>, vector<64x64xbf16>, vector<16x64xf32> -> vector<16x64xf32>
    %245 = arith.truncf %244 : vector<16x64xf32> to vector<16x64xbf16>
    %c3_219 = arith.constant 3 : index
    %c0_220 = arith.constant 0 : index
    %c0_221 = arith.constant 0 : index
    %246 = vector.load %arg16[%c3_219, %c0_220, %c0_221] : memref<9x2x16xbf16, #tpu.memory_space<vmem>>, vector<1x2x16xbf16>
    %247 = vector.shape_cast %246 : vector<1x2x16xbf16> to vector<2x16xbf16>
    %cst_222 = arith.constant dense<0.000000e+00> : vector<2x64xf32>
    %248 = tpu.matmul %247, %245, %cst_222 {dimension_numbers = #tpu.dot_dimension_numbers<[1], [0], [0], [1], [0, 0, 1, 1], [], []>} : vector<2x16xbf16>, vector<16x64xbf16>, vector<2x64xf32> -> vector<2x64xf32>
    %249 = arith.addf %241, %248 : vector<2x64xf32>
    %c4_223 = arith.constant 4 : index
    %c0_224 = arith.constant 0 : index
    %c0_225 = arith.constant 0 : index
    %250 = vector.load %arg18[%c4_223, %c0_224, %c0_225] : memref<9x64x64xbf16, #tpu.memory_space<vmem>>, vector<1x64x64xbf16>
    %251 = vector.shape_cast %250 : vector<1x64x64xbf16> to vector<64x64xbf16>
    %cst_226 = arith.constant dense<0.000000e+00> : vector<16x64xf32>
    %252 = tpu.matmul %82, %251, %cst_226 {dimension_numbers = #tpu.dot_dimension_numbers<[1], [0], [0], [1], [0, 0, 1, 1], [], []>} : vector<16x64xbf16>, vector<64x64xbf16>, vector<16x64xf32> -> vector<16x64xf32>
    %253 = arith.truncf %252 : vector<16x64xf32> to vector<16x64xbf16>
    %c4_227 = arith.constant 4 : index
    %c0_228 = arith.constant 0 : index
    %c0_229 = arith.constant 0 : index
    %254 = vector.load %arg16[%c4_227, %c0_228, %c0_229] : memref<9x2x16xbf16, #tpu.memory_space<vmem>>, vector<1x2x16xbf16>
    %255 = vector.shape_cast %254 : vector<1x2x16xbf16> to vector<2x16xbf16>
    %cst_230 = arith.constant dense<0.000000e+00> : vector<2x64xf32>
    %256 = tpu.matmul %255, %253, %cst_230 {dimension_numbers = #tpu.dot_dimension_numbers<[1], [0], [0], [1], [0, 0, 1, 1], [], []>} : vector<2x16xbf16>, vector<16x64xbf16>, vector<2x64xf32> -> vector<2x64xf32>
    %257 = arith.addf %249, %256 : vector<2x64xf32>
    %c5_231 = arith.constant 5 : index
    %c0_232 = arith.constant 0 : index
    %c0_233 = arith.constant 0 : index
    %258 = vector.load %arg18[%c5_231, %c0_232, %c0_233] : memref<9x64x64xbf16, #tpu.memory_space<vmem>>, vector<1x64x64xbf16>
    %259 = vector.shape_cast %258 : vector<1x64x64xbf16> to vector<64x64xbf16>
    %cst_234 = arith.constant dense<0.000000e+00> : vector<16x64xf32>
    %260 = tpu.matmul %82, %259, %cst_234 {dimension_numbers = #tpu.dot_dimension_numbers<[1], [0], [0], [1], [0, 0, 1, 1], [], []>} : vector<16x64xbf16>, vector<64x64xbf16>, vector<16x64xf32> -> vector<16x64xf32>
    %261 = arith.truncf %260 : vector<16x64xf32> to vector<16x64xbf16>
    %c5_235 = arith.constant 5 : index
    %c0_236 = arith.constant 0 : index
    %c0_237 = arith.constant 0 : index
    %262 = vector.load %arg16[%c5_235, %c0_236, %c0_237] : memref<9x2x16xbf16, #tpu.memory_space<vmem>>, vector<1x2x16xbf16>
    %263 = vector.shape_cast %262 : vector<1x2x16xbf16> to vector<2x16xbf16>
    %cst_238 = arith.constant dense<0.000000e+00> : vector<2x64xf32>
    %264 = tpu.matmul %263, %261, %cst_238 {dimension_numbers = #tpu.dot_dimension_numbers<[1], [0], [0], [1], [0, 0, 1, 1], [], []>} : vector<2x16xbf16>, vector<16x64xbf16>, vector<2x64xf32> -> vector<2x64xf32>
    %265 = arith.addf %257, %264 : vector<2x64xf32>
    %c6_239 = arith.constant 6 : index
    %c0_240 = arith.constant 0 : index
    %c0_241 = arith.constant 0 : index
    %266 = vector.load %arg18[%c6_239, %c0_240, %c0_241] : memref<9x64x64xbf16, #tpu.memory_space<vmem>>, vector<1x64x64xbf16>
    %267 = vector.shape_cast %266 : vector<1x64x64xbf16> to vector<64x64xbf16>
    %cst_242 = arith.constant dense<0.000000e+00> : vector<16x64xf32>
    %268 = tpu.matmul %82, %267, %cst_242 {dimension_numbers = #tpu.dot_dimension_numbers<[1], [0], [0], [1], [0, 0, 1, 1], [], []>} : vector<16x64xbf16>, vector<64x64xbf16>, vector<16x64xf32> -> vector<16x64xf32>
    %269 = arith.truncf %268 : vector<16x64xf32> to vector<16x64xbf16>
    %c6_243 = arith.constant 6 : index
    %c0_244 = arith.constant 0 : index
    %c0_245 = arith.constant 0 : index
    %270 = vector.load %arg16[%c6_243, %c0_244, %c0_245] : memref<9x2x16xbf16, #tpu.memory_space<vmem>>, vector<1x2x16xbf16>
    %271 = vector.shape_cast %270 : vector<1x2x16xbf16> to vector<2x16xbf16>
    %cst_246 = arith.constant dense<0.000000e+00> : vector<2x64xf32>
    %272 = tpu.matmul %271, %269, %cst_246 {dimension_numbers = #tpu.dot_dimension_numbers<[1], [0], [0], [1], [0, 0, 1, 1], [], []>} : vector<2x16xbf16>, vector<16x64xbf16>, vector<2x64xf32> -> vector<2x64xf32>
    %273 = arith.addf %265, %272 : vector<2x64xf32>
    %c7_247 = arith.constant 7 : index
    %c0_248 = arith.constant 0 : index
    %c0_249 = arith.constant 0 : index
    %274 = vector.load %arg18[%c7_247, %c0_248, %c0_249] : memref<9x64x64xbf16, #tpu.memory_space<vmem>>, vector<1x64x64xbf16>
    %275 = vector.shape_cast %274 : vector<1x64x64xbf16> to vector<64x64xbf16>
    %cst_250 = arith.constant dense<0.000000e+00> : vector<16x64xf32>
    %276 = tpu.matmul %82, %275, %cst_250 {dimension_numbers = #tpu.dot_dimension_numbers<[1], [0], [0], [1], [0, 0, 1, 1], [], []>} : vector<16x64xbf16>, vector<64x64xbf16>, vector<16x64xf32> -> vector<16x64xf32>
    %277 = arith.truncf %276 : vector<16x64xf32> to vector<16x64xbf16>
    %c7_251 = arith.constant 7 : index
    %c0_252 = arith.constant 0 : index
    %c0_253 = arith.constant 0 : index
    %278 = vector.load %arg16[%c7_251, %c0_252, %c0_253] : memref<9x2x16xbf16, #tpu.memory_space<vmem>>, vector<1x2x16xbf16>
    %279 = vector.shape_cast %278 : vector<1x2x16xbf16> to vector<2x16xbf16>
    %cst_254 = arith.constant dense<0.000000e+00> : vector<2x64xf32>
    %280 = tpu.matmul %279, %277, %cst_254 {dimension_numbers = #tpu.dot_dimension_numbers<[1], [0], [0], [1], [0, 0, 1, 1], [], []>} : vector<2x16xbf16>, vector<16x64xbf16>, vector<2x64xf32> -> vector<2x64xf32>
    %281 = arith.addf %273, %280 : vector<2x64xf32>
    %c8_255 = arith.constant 8 : index
    %c0_256 = arith.constant 0 : index
    %c0_257 = arith.constant 0 : index
    %282 = vector.load %arg18[%c8_255, %c0_256, %c0_257] : memref<9x64x64xbf16, #tpu.memory_space<vmem>>, vector<1x64x64xbf16>
    %283 = vector.shape_cast %282 : vector<1x64x64xbf16> to vector<64x64xbf16>
    %cst_258 = arith.constant dense<0.000000e+00> : vector<16x64xf32>
    %284 = tpu.matmul %82, %283, %cst_258 {dimension_numbers = #tpu.dot_dimension_numbers<[1], [0], [0], [1], [0, 0, 1, 1], [], []>} : vector<16x64xbf16>, vector<64x64xbf16>, vector<16x64xf32> -> vector<16x64xf32>
    %285 = arith.truncf %284 : vector<16x64xf32> to vector<16x64xbf16>
    %c8_259 = arith.constant 8 : index
    %c0_260 = arith.constant 0 : index
    %c0_261 = arith.constant 0 : index
    %286 = vector.load %arg16[%c8_259, %c0_260, %c0_261] : memref<9x2x16xbf16, #tpu.memory_space<vmem>>, vector<1x2x16xbf16>
    %287 = vector.shape_cast %286 : vector<1x2x16xbf16> to vector<2x16xbf16>
    %cst_262 = arith.constant dense<0.000000e+00> : vector<2x64xf32>
    %288 = tpu.matmul %287, %285, %cst_262 {dimension_numbers = #tpu.dot_dimension_numbers<[1], [0], [0], [1], [0, 0, 1, 1], [], []>} : vector<2x16xbf16>, vector<16x64xbf16>, vector<2x64xf32> -> vector<2x64xf32>
    %289 = arith.addf %281, %288 : vector<2x64xf32>
    %cst_263 = arith.constant 0.000000e+00 : f32
    %290 = vector.broadcast %cst_263 : f32 to vector<2x64xf32>
    %291 = arith.subf %290, %289 : vector<2x64xf32>
    %292 = math.exp %291 : vector<2x64xf32>
    %cst_264 = arith.constant 1.000000e+00 : f32
    %293 = vector.broadcast %cst_264 : f32 to vector<2x64xf32>
    %294 = arith.addf %293, %292 : vector<2x64xf32>
    %295 = tpu.reciprocal %294 : vector<2x64xf32> -> vector<2x64xf32>
    %c0_265 = arith.constant 0 : index
    %c0_266 = arith.constant 0 : index
    %c0_267 = arith.constant 0 : index
    %296 = vector.load %arg32[%c0_265, %c0_266, %c0_267] : memref<1x2x64xf32, #tpu.memory_space<vmem>>, vector<1x2x64xf32>
    %297 = vector.shape_cast %296 : vector<1x2x64xf32> to vector<2x64xf32>
    %298 = vector.shape_cast %295 : vector<2x64xf32> to vector<1x2x64xf32>
    tpu.vector_store %arg32[%c0_265, %c0_266, %c0_267], %298 {strides = array<i32>} : memref<1x2x64xf32, #tpu.memory_space<vmem>>, vector<1x2x64xf32>,
    %c0_268 = arith.constant 0 : index
    %c0_269 = arith.constant 0 : index
    %299 = vector.load %arg20[%c0_268, %c0_269] : memref<2x1xf32, #tpu.memory_space<vmem>>, vector<2x1xf32>
    %c0_270 = arith.constant 0 : index
    %c0_271 = arith.constant 0 : index
    %c0_272 = arith.constant 0 : index
    %300 = vector.load %arg21[%c0_270, %c0_271, %c0_272] : memref<9x16x16xbf16, #tpu.memory_space<vmem>>, vector<1x16x16xbf16>
    %301 = vector.shape_cast %300 : vector<1x16x16xbf16> to vector<16x16xbf16>
    %cst_273 = arith.constant dense<0.000000e+00> : vector<16x16xf32>
    %302 = tpu.matmul %163, %301, %cst_273 {dimension_numbers = #tpu.dot_dimension_numbers<[1], [0], [0], [1], [0, 0, 1, 1], [], []>} : vector<16x16xbf16>, vector<16x16xbf16>, vector<16x16xf32> -> vector<16x16xf32>
    %303 = arith.truncf %302 : vector<16x16xf32> to vector<16x16xbf16>
    %c0_274 = arith.constant 0 : index
    %c0_275 = arith.constant 0 : index
    %c0_276 = arith.constant 0 : index
    %304 = vector.load %arg19[%c0_274, %c0_275, %c0_276] : memref<9x2x16xbf16, #tpu.memory_space<vmem>>, vector<1x2x16xbf16>
    %305 = vector.shape_cast %304 : vector<1x2x16xbf16> to vector<2x16xbf16>
    %cst_277 = arith.constant dense<0.000000e+00> : vector<2x16xf32>
    %306 = tpu.matmul %305, %303, %cst_277 {dimension_numbers = #tpu.dot_dimension_numbers<[1], [0], [0], [1], [0, 0, 1, 1], [], []>} : vector<2x16xbf16>, vector<16x16xbf16>, vector<2x16xf32> -> vector<2x16xf32>
    %307 = vector.broadcast %299 : vector<2x1xf32> to vector<2x16xf32>
    %308 = arith.addf %307, %306 : vector<2x16xf32>
    %c1_278 = arith.constant 1 : index
    %c0_279 = arith.constant 0 : index
    %c0_280 = arith.constant 0 : index
    %309 = vector.load %arg21[%c1_278, %c0_279, %c0_280] : memref<9x16x16xbf16, #tpu.memory_space<vmem>>, vector<1x16x16xbf16>
    %310 = vector.shape_cast %309 : vector<1x16x16xbf16> to vector<16x16xbf16>
    %cst_281 = arith.constant dense<0.000000e+00> : vector<16x16xf32>
    %311 = tpu.matmul %163, %310, %cst_281 {dimension_numbers = #tpu.dot_dimension_numbers<[1], [0], [0], [1], [0, 0, 1, 1], [], []>} : vector<16x16xbf16>, vector<16x16xbf16>, vector<16x16xf32> -> vector<16x16xf32>
    %312 = arith.truncf %311 : vector<16x16xf32> to vector<16x16xbf16>
    %c1_282 = arith.constant 1 : index
    %c0_283 = arith.constant 0 : index
    %c0_284 = arith.constant 0 : index
    %313 = vector.load %arg19[%c1_282, %c0_283, %c0_284] : memref<9x2x16xbf16, #tpu.memory_space<vmem>>, vector<1x2x16xbf16>
    %314 = vector.shape_cast %313 : vector<1x2x16xbf16> to vector<2x16xbf16>
    %cst_285 = arith.constant dense<0.000000e+00> : vector<2x16xf32>
    %315 = tpu.matmul %314, %312, %cst_285 {dimension_numbers = #tpu.dot_dimension_numbers<[1], [0], [0], [1], [0, 0, 1, 1], [], []>} : vector<2x16xbf16>, vector<16x16xbf16>, vector<2x16xf32> -> vector<2x16xf32>
    %316 = arith.addf %308, %315 : vector<2x16xf32>
    %c2_286 = arith.constant 2 : index
    %c0_287 = arith.constant 0 : index
    %c0_288 = arith.constant 0 : index
    %317 = vector.load %arg21[%c2_286, %c0_287, %c0_288] : memref<9x16x16xbf16, #tpu.memory_space<vmem>>, vector<1x16x16xbf16>
    %318 = vector.shape_cast %317 : vector<1x16x16xbf16> to vector<16x16xbf16>
    %cst_289 = arith.constant dense<0.000000e+00> : vector<16x16xf32>
    %319 = tpu.matmul %163, %318, %cst_289 {dimension_numbers = #tpu.dot_dimension_numbers<[1], [0], [0], [1], [0, 0, 1, 1], [], []>} : vector<16x16xbf16>, vector<16x16xbf16>, vector<16x16xf32> -> vector<16x16xf32>
    %320 = arith.truncf %319 : vector<16x16xf32> to vector<16x16xbf16>
    %c2_290 = arith.constant 2 : index
    %c0_291 = arith.constant 0 : index
    %c0_292 = arith.constant 0 : index
    %321 = vector.load %arg19[%c2_290, %c0_291, %c0_292] : memref<9x2x16xbf16, #tpu.memory_space<vmem>>, vector<1x2x16xbf16>
    %322 = vector.shape_cast %321 : vector<1x2x16xbf16> to vector<2x16xbf16>
    %cst_293 = arith.constant dense<0.000000e+00> : vector<2x16xf32>
    %323 = tpu.matmul %322, %320, %cst_293 {dimension_numbers = #tpu.dot_dimension_numbers<[1], [0], [0], [1], [0, 0, 1, 1], [], []>} : vector<2x16xbf16>, vector<16x16xbf16>, vector<2x16xf32> -> vector<2x16xf32>
    %324 = arith.addf %316, %323 : vector<2x16xf32>
    %c3_294 = arith.constant 3 : index
    %c0_295 = arith.constant 0 : index
    %c0_296 = arith.constant 0 : index
    %325 = vector.load %arg21[%c3_294, %c0_295, %c0_296] : memref<9x16x16xbf16, #tpu.memory_space<vmem>>, vector<1x16x16xbf16>
    %326 = vector.shape_cast %325 : vector<1x16x16xbf16> to vector<16x16xbf16>
    %cst_297 = arith.constant dense<0.000000e+00> : vector<16x16xf32>
    %327 = tpu.matmul %163, %326, %cst_297 {dimension_numbers = #tpu.dot_dimension_numbers<[1], [0], [0], [1], [0, 0, 1, 1], [], []>} : vector<16x16xbf16>, vector<16x16xbf16>, vector<16x16xf32> -> vector<16x16xf32>
    %328 = arith.truncf %327 : vector<16x16xf32> to vector<16x16xbf16>
    %c3_298 = arith.constant 3 : index
    %c0_299 = arith.constant 0 : index
    %c0_300 = arith.constant 0 : index
    %329 = vector.load %arg19[%c3_298, %c0_299, %c0_300] : memref<9x2x16xbf16, #tpu.memory_space<vmem>>, vector<1x2x16xbf16>
    %330 = vector.shape_cast %329 : vector<1x2x16xbf16> to vector<2x16xbf16>
    %cst_301 = arith.constant dense<0.000000e+00> : vector<2x16xf32>
    %331 = tpu.matmul %330, %328, %cst_301 {dimension_numbers = #tpu.dot_dimension_numbers<[1], [0], [0], [1], [0, 0, 1, 1], [], []>} : vector<2x16xbf16>, vector<16x16xbf16>, vector<2x16xf32> -> vector<2x16xf32>
    %332 = arith.addf %324, %331 : vector<2x16xf32>
    %c4_302 = arith.constant 4 : index
    %c0_303 = arith.constant 0 : index
    %c0_304 = arith.constant 0 : index
    %333 = vector.load %arg21[%c4_302, %c0_303, %c0_304] : memref<9x16x16xbf16, #tpu.memory_space<vmem>>, vector<1x16x16xbf16>
    %334 = vector.shape_cast %333 : vector<1x16x16xbf16> to vector<16x16xbf16>
    %cst_305 = arith.constant dense<0.000000e+00> : vector<16x16xf32>
    %335 = tpu.matmul %163, %334, %cst_305 {dimension_numbers = #tpu.dot_dimension_numbers<[1], [0], [0], [1], [0, 0, 1, 1], [], []>} : vector<16x16xbf16>, vector<16x16xbf16>, vector<16x16xf32> -> vector<16x16xf32>
    %336 = arith.truncf %335 : vector<16x16xf32> to vector<16x16xbf16>
    %c4_306 = arith.constant 4 : index
    %c0_307 = arith.constant 0 : index
    %c0_308 = arith.constant 0 : index
    %337 = vector.load %arg19[%c4_306, %c0_307, %c0_308] : memref<9x2x16xbf16, #tpu.memory_space<vmem>>, vector<1x2x16xbf16>
    %338 = vector.shape_cast %337 : vector<1x2x16xbf16> to vector<2x16xbf16>
    %cst_309 = arith.constant dense<0.000000e+00> : vector<2x16xf32>
    %339 = tpu.matmul %338, %336, %cst_309 {dimension_numbers = #tpu.dot_dimension_numbers<[1], [0], [0], [1], [0, 0, 1, 1], [], []>} : vector<2x16xbf16>, vector<16x16xbf16>, vector<2x16xf32> -> vector<2x16xf32>
    %340 = arith.addf %332, %339 : vector<2x16xf32>
    %c5_310 = arith.constant 5 : index
    %c0_311 = arith.constant 0 : index
    %c0_312 = arith.constant 0 : index
    %341 = vector.load %arg21[%c5_310, %c0_311, %c0_312] : memref<9x16x16xbf16, #tpu.memory_space<vmem>>, vector<1x16x16xbf16>
    %342 = vector.shape_cast %341 : vector<1x16x16xbf16> to vector<16x16xbf16>
    %cst_313 = arith.constant dense<0.000000e+00> : vector<16x16xf32>
    %343 = tpu.matmul %163, %342, %cst_313 {dimension_numbers = #tpu.dot_dimension_numbers<[1], [0], [0], [1], [0, 0, 1, 1], [], []>} : vector<16x16xbf16>, vector<16x16xbf16>, vector<16x16xf32> -> vector<16x16xf32>
    %344 = arith.truncf %343 : vector<16x16xf32> to vector<16x16xbf16>
    %c5_314 = arith.constant 5 : index
    %c0_315 = arith.constant 0 : index
    %c0_316 = arith.constant 0 : index
    %345 = vector.load %arg19[%c5_314, %c0_315, %c0_316] : memref<9x2x16xbf16, #tpu.memory_space<vmem>>, vector<1x2x16xbf16>
    %346 = vector.shape_cast %345 : vector<1x2x16xbf16> to vector<2x16xbf16>
    %cst_317 = arith.constant dense<0.000000e+00> : vector<2x16xf32>
    %347 = tpu.matmul %346, %344, %cst_317 {dimension_numbers = #tpu.dot_dimension_numbers<[1], [0], [0], [1], [0, 0, 1, 1], [], []>} : vector<2x16xbf16>, vector<16x16xbf16>, vector<2x16xf32> -> vector<2x16xf32>
    %348 = arith.addf %340, %347 : vector<2x16xf32>
    %c6_318 = arith.constant 6 : index
    %c0_319 = arith.constant 0 : index
    %c0_320 = arith.constant 0 : index
    %349 = vector.load %arg21[%c6_318, %c0_319, %c0_320] : memref<9x16x16xbf16, #tpu.memory_space<vmem>>, vector<1x16x16xbf16>
    %350 = vector.shape_cast %349 : vector<1x16x16xbf16> to vector<16x16xbf16>
    %cst_321 = arith.constant dense<0.000000e+00> : vector<16x16xf32>
    %351 = tpu.matmul %163, %350, %cst_321 {dimension_numbers = #tpu.dot_dimension_numbers<[1], [0], [0], [1], [0, 0, 1, 1], [], []>} : vector<16x16xbf16>, vector<16x16xbf16>, vector<16x16xf32> -> vector<16x16xf32>
    %352 = arith.truncf %351 : vector<16x16xf32> to vector<16x16xbf16>
    %c6_322 = arith.constant 6 : index
    %c0_323 = arith.constant 0 : index
    %c0_324 = arith.constant 0 : index
    %353 = vector.load %arg19[%c6_322, %c0_323, %c0_324] : memref<9x2x16xbf16, #tpu.memory_space<vmem>>, vector<1x2x16xbf16>
    %354 = vector.shape_cast %353 : vector<1x2x16xbf16> to vector<2x16xbf16>
    %cst_325 = arith.constant dense<0.000000e+00> : vector<2x16xf32>
    %355 = tpu.matmul %354, %352, %cst_325 {dimension_numbers = #tpu.dot_dimension_numbers<[1], [0], [0], [1], [0, 0, 1, 1], [], []>} : vector<2x16xbf16>, vector<16x16xbf16>, vector<2x16xf32> -> vector<2x16xf32>
    %356 = arith.addf %348, %355 : vector<2x16xf32>
    %c7_326 = arith.constant 7 : index
    %c0_327 = arith.constant 0 : index
    %c0_328 = arith.constant 0 : index
    %357 = vector.load %arg21[%c7_326, %c0_327, %c0_328] : memref<9x16x16xbf16, #tpu.memory_space<vmem>>, vector<1x16x16xbf16>
    %358 = vector.shape_cast %357 : vector<1x16x16xbf16> to vector<16x16xbf16>
    %cst_329 = arith.constant dense<0.000000e+00> : vector<16x16xf32>
    %359 = tpu.matmul %163, %358, %cst_329 {dimension_numbers = #tpu.dot_dimension_numbers<[1], [0], [0], [1], [0, 0, 1, 1], [], []>} : vector<16x16xbf16>, vector<16x16xbf16>, vector<16x16xf32> -> vector<16x16xf32>
    %360 = arith.truncf %359 : vector<16x16xf32> to vector<16x16xbf16>
    %c7_330 = arith.constant 7 : index
    %c0_331 = arith.constant 0 : index
    %c0_332 = arith.constant 0 : index
    %361 = vector.load %arg19[%c7_330, %c0_331, %c0_332] : memref<9x2x16xbf16, #tpu.memory_space<vmem>>, vector<1x2x16xbf16>
    %362 = vector.shape_cast %361 : vector<1x2x16xbf16> to vector<2x16xbf16>
    %cst_333 = arith.constant dense<0.000000e+00> : vector<2x16xf32>
    %363 = tpu.matmul %362, %360, %cst_333 {dimension_numbers = #tpu.dot_dimension_numbers<[1], [0], [0], [1], [0, 0, 1, 1], [], []>} : vector<2x16xbf16>, vector<16x16xbf16>, vector<2x16xf32> -> vector<2x16xf32>
    %364 = arith.addf %356, %363 : vector<2x16xf32>
    %c8_334 = arith.constant 8 : index
    %c0_335 = arith.constant 0 : index
    %c0_336 = arith.constant 0 : index
    %365 = vector.load %arg21[%c8_334, %c0_335, %c0_336] : memref<9x16x16xbf16, #tpu.memory_space<vmem>>, vector<1x16x16xbf16>
    %366 = vector.shape_cast %365 : vector<1x16x16xbf16> to vector<16x16xbf16>
    %cst_337 = arith.constant dense<0.000000e+00> : vector<16x16xf32>
    %367 = tpu.matmul %163, %366, %cst_337 {dimension_numbers = #tpu.dot_dimension_numbers<[1], [0], [0], [1], [0, 0, 1, 1], [], []>} : vector<16x16xbf16>, vector<16x16xbf16>, vector<16x16xf32> -> vector<16x16xf32>
    %368 = arith.truncf %367 : vector<16x16xf32> to vector<16x16xbf16>
    %c8_338 = arith.constant 8 : index
    %c0_339 = arith.constant 0 : index
    %c0_340 = arith.constant 0 : index
    %369 = vector.load %arg19[%c8_338, %c0_339, %c0_340] : memref<9x2x16xbf16, #tpu.memory_space<vmem>>, vector<1x2x16xbf16>
    %370 = vector.shape_cast %369 : vector<1x2x16xbf16> to vector<2x16xbf16>
    %cst_341 = arith.constant dense<0.000000e+00> : vector<2x16xf32>
    %371 = tpu.matmul %370, %368, %cst_341 {dimension_numbers = #tpu.dot_dimension_numbers<[1], [0], [0], [1], [0, 0, 1, 1], [], []>} : vector<2x16xbf16>, vector<16x16xbf16>, vector<2x16xf32> -> vector<2x16xf32>
    %372 = arith.addf %364, %371 : vector<2x16xf32>
    %cst_342 = arith.constant 0.000000e+00 : f32
    %373 = vector.broadcast %cst_342 : f32 to vector<2x16xf32>
    %374 = arith.subf %373, %372 : vector<2x16xf32>
    %375 = math.exp %374 : vector<2x16xf32>
    %cst_343 = arith.constant 1.000000e+00 : f32
    %376 = vector.broadcast %cst_343 : f32 to vector<2x16xf32>
    %377 = arith.addf %376, %375 : vector<2x16xf32>
    %378 = tpu.reciprocal %377 : vector<2x16xf32> -> vector<2x16xf32>
    %c0_344 = arith.constant 0 : index
    %c0_345 = arith.constant 0 : index
    %c0_346 = arith.constant 0 : index
    %379 = vector.load %arg33[%c0_344, %c0_345, %c0_346] : memref<1x2x16xf32, #tpu.memory_space<vmem>>, vector<1x2x16xf32>
    %380 = vector.shape_cast %379 : vector<1x2x16xf32> to vector<2x16xf32>
    %381 = vector.shape_cast %378 : vector<2x16xf32> to vector<1x2x16xf32>
    tpu.vector_store %arg33[%c0_344, %c0_345, %c0_346], %381 {strides = array<i32>} : memref<1x2x16xf32, #tpu.memory_space<vmem>>, vector<1x2x16xf32>,
    return
  }
  func.func @transform_0(%arg0: i32) -> (i32, i32, i32) {
    %c0_i32 = arith.constant 0 : i32
    %c0_i32_0 = arith.constant 0 : i32
    %c0_i32_1 = arith.constant 0 : i32
    return %arg0, %c0_i32, %c0_i32_0 : i32, i32, i32
  }
  func.func @transform_1(%arg0: i32) -> (i32, i32) {
    %c0_i32 = arith.constant 0 : i32
    %c0_i32_0 = arith.constant 0 : i32
    %c0_i32_1 = arith.constant 0 : i32
    return %c0_i32, %c0_i32_0 : i32, i32
  }
  func.func @transform_2(%arg0: i32) -> (i32, i32) {
    %c0_i32 = arith.constant 0 : i32
    %c0_i32_0 = arith.constant 0 : i32
    %c0_i32_1 = arith.constant 0 : i32
    return %c0_i32, %c0_i32_0 : i32, i32
  }
  func.func @transform_3(%arg0: i32) -> (i32, i32, i32) {
    %c0_i32 = arith.constant 0 : i32
    %c0_i32_0 = arith.constant 0 : i32
    %c0_i32_1 = arith.constant 0 : i32
    %c0_i32_2 = arith.constant 0 : i32
    return %c0_i32, %c0_i32_0, %c0_i32_1 : i32, i32, i32
  }
  func.func @transform_4(%arg0: i32) -> (i32, i32) {
    %c0_i32 = arith.constant 0 : i32
    %c0_i32_0 = arith.constant 0 : i32
    %c0_i32_1 = arith.constant 0 : i32
    return %c0_i32, %c0_i32_0 : i32, i32
  }
  func.func @transform_5(%arg0: i32) -> (i32, i32, i32) {
    %c0_i32 = arith.constant 0 : i32
    %c0_i32_0 = arith.constant 0 : i32
    %c0_i32_1 = arith.constant 0 : i32
    %c0_i32_2 = arith.constant 0 : i32
    return %c0_i32, %c0_i32_0, %c0_i32_1 : i32, i32, i32
  }
  func.func @transform_6(%arg0: i32) -> (i32, i32, i32) {
    %c0_i32 = arith.constant 0 : i32
    %c0_i32_0 = arith.constant 0 : i32
    %c0_i32_1 = arith.constant 0 : i32
    %c0_i32_2 = arith.constant 0 : i32
    return %c0_i32, %c0_i32_0, %c0_i32_1 : i32, i32, i32
  }
  func.func @transform_7(%arg0: i32) -> (i32, i32) {
    %c0_i32 = arith.constant 0 : i32
    %c0_i32_0 = arith.constant 0 : i32
    %c0_i32_1 = arith.constant 0 : i32
    return %c0_i32, %c0_i32_0 : i32, i32
  }
  func.func @transform_8(%arg0: i32) -> (i32, i32, i32) {
    %c0_i32 = arith.constant 0 : i32
    %c0_i32_0 = arith.constant 0 : i32
    %c0_i32_1 = arith.constant 0 : i32
    %c0_i32_2 = arith.constant 0 : i32
    return %c0_i32, %c0_i32_0, %c0_i32_1 : i32, i32, i32
  }
  func.func @transform_9(%arg0: i32) -> (i32, i32) {
    %c0_i32 = arith.constant 0 : i32
    %c0_i32_0 = arith.constant 0 : i32
    %c0_i32_1 = arith.constant 0 : i32
    return %c0_i32, %c0_i32_0 : i32, i32
  }
  func.func @transform_10(%arg0: i32) -> (i32, i32) {
    %c0_i32 = arith.constant 0 : i32
    %c0_i32_0 = arith.constant 0 : i32
    %c0_i32_1 = arith.constant 0 : i32
    return %c0_i32, %c0_i32_0 : i32, i32
  }
  func.func @transform_11(%arg0: i32) -> (i32, i32) {
    %c0_i32 = arith.constant 0 : i32
    %c0_i32_0 = arith.constant 0 : i32
    %c0_i32_1 = arith.constant 0 : i32
    return %c0_i32, %c0_i32_0 : i32, i32
  }
  func.func @transform_12(%arg0: i32) -> (i32, i32) {
    %c0_i32 = arith.constant 0 : i32
    %c0_i32_0 = arith.constant 0 : i32
    %c0_i32_1 = arith.constant 0 : i32
    return %c0_i32, %c0_i32_0 : i32, i32
  }
  func.func @transform_13(%arg0: i32) -> (i32, i32) {
    %c0_i32 = arith.constant 0 : i32
    %c0_i32_0 = arith.constant 0 : i32
    %c0_i32_1 = arith.constant 0 : i32
    return %c0_i32, %c0_i32_0 : i32, i32
  }
  func.func @transform_14(%arg0: i32) -> (i32, i32) {
    %c0_i32 = arith.constant 0 : i32
    %c0_i32_0 = arith.constant 0 : i32
    %c0_i32_1 = arith.constant 0 : i32
    return %c0_i32, %c0_i32_0 : i32, i32
  }
  func.func @transform_15(%arg0: i32) -> (i32, i32, i32) {
    %c0_i32 = arith.constant 0 : i32
    %c0_i32_0 = arith.constant 0 : i32
    %c0_i32_1 = arith.constant 0 : i32
    %c0_i32_2 = arith.constant 0 : i32
    return %c0_i32, %c0_i32_0, %c0_i32_1 : i32, i32, i32
  }
  func.func @transform_16(%arg0: i32) -> (i32, i32) {
    %c0_i32 = arith.constant 0 : i32
    %c0_i32_0 = arith.constant 0 : i32
    %c0_i32_1 = arith.constant 0 : i32
    return %c0_i32, %c0_i32_0 : i32, i32
  }
  func.func @transform_17(%arg0: i32) -> (i32, i32, i32) {
    %c0_i32 = arith.constant 0 : i32
    %c0_i32_0 = arith.constant 0 : i32
    %c0_i32_1 = arith.constant 0 : i32
    %c0_i32_2 = arith.constant 0 : i32
    return %c0_i32, %c0_i32_0, %c0_i32_1 : i32, i32, i32
  }
  func.func @transform_18(%arg0: i32) -> (i32, i32, i32) {
    %c0_i32 = arith.constant 0 : i32
    %c0_i32_0 = arith.constant 0 : i32
    %c0_i32_1 = arith.constant 0 : i32
    %c0_i32_2 = arith.constant 0 : i32
    return %c0_i32, %c0_i32_0, %c0_i32_1 : i32, i32, i32
  }
  func.func @transform_19(%arg0: i32) -> (i32, i32) {
    %c0_i32 = arith.constant 0 : i32
    %c0_i32_0 = arith.constant 0 : i32
    %c0_i32_1 = arith.constant 0 : i32
    return %c0_i32, %c0_i32_0 : i32, i32
  }
  func.func @transform_20(%arg0: i32) -> (i32, i32, i32) {
    %c0_i32 = arith.constant 0 : i32
    %c0_i32_0 = arith.constant 0 : i32
    %c0_i32_1 = arith.constant 0 : i32
    %c0_i32_2 = arith.constant 0 : i32
    return %c0_i32, %c0_i32_0, %c0_i32_1 : i32, i32, i32
  }
  func.func @transform_21(%arg0: i32) -> (i32, i32) {
    %c0_i32 = arith.constant 0 : i32
    %c0_i32_0 = arith.constant 0 : i32
    %c0_i32_1 = arith.constant 0 : i32
    return %c0_i32, %c0_i32_0 : i32, i32
  }
  func.func @transform_22(%arg0: i32) -> (i32, i32) {
    %c0_i32 = arith.constant 0 : i32
    %c0_i32_0 = arith.constant 0 : i32
    %c0_i32_1 = arith.constant 0 : i32
    return %c0_i32, %c0_i32_0 : i32, i32
  }
  func.func @transform_23(%arg0: i32) -> (i32, i32) {
    %c0_i32 = arith.constant 0 : i32
    %c0_i32_0 = arith.constant 0 : i32
    %c0_i32_1 = arith.constant 0 : i32
    return %c0_i32, %c0_i32_0 : i32, i32
  }
  func.func @transform_24(%arg0: i32) -> (i32, i32) {
    %c0_i32 = arith.constant 0 : i32
    %c0_i32_0 = arith.constant 0 : i32
    %c0_i32_1 = arith.constant 0 : i32
    return %c0_i32, %c0_i32_0 : i32, i32
  }
  func.func @transform_25(%arg0: i32) -> (i32, i32) {
    %c0_i32 = arith.constant 0 : i32
    %c0_i32_0 = arith.constant 0 : i32
    %c0_i32_1 = arith.constant 0 : i32
    return %c0_i32, %c0_i32_0 : i32, i32
  }
  func.func @transform_26(%arg0: i32) -> (i32, i32) {
    %c0_i32 = arith.constant 0 : i32
    %c0_i32_0 = arith.constant 0 : i32
    %c0_i32_1 = arith.constant 0 : i32
    return %c0_i32, %c0_i32_0 : i32, i32
  }
  func.func @transform_27(%arg0: i32) -> (i32, i32, i32) {
    %c0_i32 = arith.constant 0 : i32
    %c0_i32_0 = arith.constant 0 : i32
    %c0_i32_1 = arith.constant 0 : i32
    return %arg0, %c0_i32, %c0_i32_0 : i32, i32, i32
  }
  func.func @transform_28(%arg0: i32) -> (i32, i32, i32) {
    %c0_i32 = arith.constant 0 : i32
    %c0_i32_0 = arith.constant 0 : i32
    %c0_i32_1 = arith.constant 0 : i32
    return %arg0, %c0_i32, %c0_i32_0 : i32, i32, i32
  }
  func.func @transform_29(%arg0: i32) -> (i32, i32, i32) {
    %c0_i32 = arith.constant 0 : i32
    %c0_i32_0 = arith.constant 0 : i32
    %c0_i32_1 = arith.constant 0 : i32
    return %arg0, %c0_i32, %c0_i32_0 : i32, i32, i32
  }
  func.func @transform_30(%arg0: i32) -> (i32, i32, i32) {
    %c0_i32 = arith.constant 0 : i32
    %c0_i32_0 = arith.constant 0 : i32
    %c0_i32_1 = arith.constant 0 : i32
    return %arg0, %c0_i32, %c0_i32_0 : i32, i32, i32
  }
  func.func @transform_31(%arg0: i32) -> (i32, i32, i32) {
    %c0_i32 = arith.constant 0 : i32
    %c0_i32_0 = arith.constant 0 : i32
    %c0_i32_1 = arith.constant 0 : i32
    return %arg0, %c0_i32, %c0_i32_0 : i32, i32, i32
  }
  func.func @transform_32(%arg0: i32) -> (i32, i32, i32) {
    %c0_i32 = arith.constant 0 : i32
    %c0_i32_0 = arith.constant 0 : i32
    %c0_i32_1 = arith.constant 0 : i32
    return %arg0, %c0_i32, %c0_i32_0 : i32, i32, i32
  }
}

</mosaic_0001>

<llo_original>
// kernel: mcnet_forward.1
$region0: #{mcnet_forward.1}
  #allocation0 [shape = 'u32[]', space=smem, size = 0x4, offset = 0x4, fixed_abs, tag = 'smem constant byte address 0x4 - core index']
  #allocation1 [shape = 'u32[144,128]{1,0:T(1,128)}', space=vmem, size = 0x12000, scoped, tag = 'internal scratch']
  %s0 = inlined_call_operand.smem [shape: u32[33], index: -1, kind: input, shape index: {}]
  %s1 = sld [smem:[%s0]]
  %s2 = scalar_lea.smem %s0, 1
  %s3 = sld [smem:[%s2]]
  %s4 = scalar_lea.smem %s0, 2
  %s5 = sld [smem:[%s4]]
  %s6 = scalar_lea.smem %s0, 3
  %s7 = sld [smem:[%s6]]
  %s8 = scalar_lea.smem %s0, 4
  %s9 = sld [smem:[%s8]]
  %s10 = scalar_lea.smem %s0, 5
  %s11 = sld [smem:[%s10]]
  %s12 = scalar_lea.smem %s0, 6
  %s13 = sld [smem:[%s12]]
  %s14 = scalar_lea.smem %s0, 7
  %s15 = sld [smem:[%s14]]
  %s16 = scalar_lea.smem %s0, 8
  %s17 = sld [smem:[%s16]]
  %s18 = scalar_lea.smem %s0, 9
  %s19 = sld [smem:[%s18]]
  %s20 = scalar_lea.smem %s0, 10
  %s21 = sld [smem:[%s20]]
  %s22 = scalar_lea.smem %s0, 11
  %s23 = sld [smem:[%s22]]
  %s24 = scalar_lea.smem %s0, 12
  %s25 = sld [smem:[%s24]]
  %s26 = scalar_lea.smem %s0, 13
  %s27 = sld [smem:[%s26]]
  %s28 = scalar_lea.smem %s0, 14
  %s29 = sld [smem:[%s28]]
  %s30 = scalar_lea.smem %s0, 15
  %s31 = sld [smem:[%s30]]
  %s32 = scalar_lea.smem %s0, 16
  %s33 = sld [smem:[%s32]]
  %s34 = scalar_lea.smem %s0, 17
  %s35 = sld [smem:[%s34]]
  %s36 = scalar_lea.smem %s0, 18
  %s37 = sld [smem:[%s36]]
  %s38 = scalar_lea.smem %s0, 19
  %s39 = sld [smem:[%s38]]
  %s40 = scalar_lea.smem %s0, 20
  %s41 = sld [smem:[%s40]]
  %s42 = scalar_lea.smem %s0, 21
  %s43 = sld [smem:[%s42]]
  %s44 = scalar_lea.smem %s0, 22
  %s45 = sld [smem:[%s44]]
  %s46 = scalar_lea.smem %s0, 23
  %s47 = sld [smem:[%s46]]
  %s48 = scalar_lea.smem %s0, 24
  %s49 = sld [smem:[%s48]]
  %s50 = scalar_lea.smem %s0, 25
  %s51 = sld [smem:[%s50]]
  %s52 = scalar_lea.smem %s0, 26
  %s53 = sld [smem:[%s52]]
  %s54 = scalar_lea.smem %s0, 27
  %s55 = sld [smem:[%s54]]
  %s56 = scalar_lea.smem %s0, 28
  %s57 = sld [smem:[%s56]]
  %s58 = scalar_lea.smem %s0, 29
  %s59 = sld [smem:[%s58]]
  %s60 = scalar_lea.smem %s0, 30
  %s61 = sld [smem:[%s60]]
  %s62 = scalar_lea.smem %s0, 31
  %s63 = sld [smem:[%s62]]
  %s64 = scalar_lea.smem %s0, 32
  %s65 = sld [smem:[%s64]]
  %66 = xla_tuple %s55, %s57, %s59, %s61, %s63, %s65
  %s67 = sld [smem:[#allocation0]]
  $region181: #{mcnet_forward.1} parent=0
    _
  %s69 = ssub.s32 1, %s67
  %s70 = scalar_select 0, %s69, %s67
  loop: start=0, step=1, limit=4
  $region2: #{mcnet_forward.1} parent=0 // loop_pre_header
    _
  $region3: #{mcnet_forward.1} parent=0 // loop_header
    %s72 = sphi 0, %s76
    %p73 = scmp.ge.s32.totalorder %s72, 4
    %s82 = sphi 0, %s84
    %s85 = sphi 0, %s82
    %s86 = sphi 0, %s85
    %s102 = sphi 0, %s86
    %s106 = sphi 0, %s106
    %s108 = sphi 0, %s106
    %s109 = sphi 0, %s108
    %s123 = sphi 0, %s109
    %s127 = sphi 0, %s127
    %s129 = sphi 0, %s127
    %s130 = sphi 0, %s129
    %s144 = sphi 0, %s130
    %s148 = sphi 0, %s148
    %s150 = sphi 0, %s148
    %s151 = sphi 0, %s150
    %s165 = sphi 0, %s151
    %s169 = sphi 0, %s169
    %s171 = sphi 0, %s169
    %s172 = sphi 0, %s171
    %s186 = sphi 0, %s172
    %s190 = sphi 0, %s190
    %s192 = sphi 0, %s190
    %s193 = sphi 0, %s192
    %s207 = sphi 0, %s193
    %s211 = sphi 0, %s211
    %s213 = sphi 0, %s211
    %s214 = sphi 0, %s213
    %s228 = sphi 0, %s214
    %s232 = sphi 0, %s232
    %s234 = sphi 0, %s232
    %s235 = sphi 0, %s234
    %s249 = sphi 0, %s235
    %s253 = sphi 0, %s253
    %s255 = sphi 0, %s253
    %s256 = sphi 0, %s255
    %s270 = sphi 0, %s256
    %s274 = sphi 0, %s274
    %s276 = sphi 0, %s274
    %s277 = sphi 0, %s276
    %s291 = sphi 0, %s277
    %s295 = sphi 0, %s295
    %s297 = sphi 0, %s295
    %s298 = sphi 0, %s297
    %s312 = sphi 0, %s298
    %s316 = sphi 0, %s316
    %s318 = sphi 0, %s316
    %s319 = sphi 0, %s318
    %s333 = sphi 0, %s319
    %s337 = sphi 0, %s337
    %s339 = sphi 0, %s337
    %s340 = sphi 0, %s339
    %s354 = sphi 0, %s340
    %s358 = sphi 0, %s358
    %s360 = sphi 0, %s358
    %s361 = sphi 0, %s360
    %s375 = sphi 0, %s361
    %s379 = sphi 0, %s379
    %s381 = sphi 0, %s379
    %s382 = sphi 0, %s381
    %s396 = sphi 0, %s382
    %s400 = sphi 0, %s400
    %s402 = sphi 0, %s400
    %s403 = sphi 0, %s402
    %s417 = sphi 0, %s403
    %s421 = sphi 0, %s421
    %s423 = sphi 0, %s421
    %s424 = sphi 0, %s423
    %s438 = sphi 0, %s424
    %s442 = sphi 0, %s442
    %s444 = sphi 0, %s442
    %s445 = sphi 0, %s444
    %s459 = sphi 0, %s445
    %s463 = sphi 0, %s463
    %s465 = sphi 0, %s463
    %s466 = sphi 0, %s465
    %s480 = sphi 0, %s466
    %s484 = sphi 0, %s484
    %s486 = sphi 0, %s484
    %s487 = sphi 0, %s486
    %s501 = sphi 0, %s487
    %s505 = sphi 0, %s505
    %s507 = sphi 0, %s505
    %s508 = sphi 0, %s507
    %s522 = sphi 0, %s508
    %s526 = sphi 0, %s526
    %s528 = sphi 0, %s526
    %s529 = sphi 0, %s528
    %s543 = sphi 0, %s529
    %s547 = sphi 0, %s547
    %s549 = sphi 0, %s547
    %s550 = sphi 0, %s549
    %s564 = sphi 0, %s550
    %s568 = sphi 0, %s568
    %s570 = sphi 0, %s568
    %s571 = sphi 0, %s570
    %s585 = sphi 0, %s571
    %s589 = sphi 0, %s589
    %s591 = sphi 0, %s589
    %s592 = sphi 0, %s591
    %s606 = sphi 0, %s592
    %s610 = sphi 0, %s610
    %s612 = sphi 0, %s610
    %s613 = sphi 0, %s612
    %s627 = sphi 0, %s613
    %s631 = sphi 0, %s631
    %s633 = sphi 0, %s631
    %s634 = sphi 0, %s633
    %s648 = sphi 0, %s634
    %s654 = sphi 0, %s656
    %s657 = sphi 0, %s654
    %s658 = sphi 0, %s657
    %s674 = sphi 0, %s658
    %s680 = sphi 0, %s682
    %s683 = sphi 0, %s680
    %s684 = sphi 0, %s683
    %s700 = sphi 0, %s684
    %s706 = sphi 0, %s708
    %s709 = sphi 0, %s706
    %s710 = sphi 0, %s709
    %s726 = sphi 0, %s710
    %s732 = sphi 0, %s734
    %s735 = sphi 0, %s732
    %s736 = sphi 0, %s735
    %s752 = sphi 0, %s736
    %s758 = sphi 0, %s760
    %s761 = sphi 0, %s758
    %s762 = sphi 0, %s761
    %s778 = sphi 0, %s762
    %s784 = sphi 0, %s786
    %s787 = sphi 0, %s784
    %s788 = sphi 0, %s787
    %s804 = sphi 0, %s788
  $region4: #{mcnet_forward.1} parent=0 // loop_header_branch
    %75 = sbr.rel (%p73) target = $region8
  $region5: #{mcnet_forward.1} parent=0 // loop_body
    %s77 = ssub.s32 %s72, 1
    %s78 = ssub.s32 %s72, 2
    %s79 = sadd.s32 %s72, 1
    %s80 = ssub.s32 %s72, %s79
    %p81 = scmp.eq.s32.totalorder %s80, 0
    %s83 = sadd.s32 %s82, 1
    %s84 = scalar_select %p81, %s82, %s83
    %p87 = pneg %p81
    %p88 = scmp.eq.s32.totalorder %s72, 1
    %p89 = por %p87, %p88
    %p90 = scmp.ne.s32.totalorder %s82, %s85
    %p91 = scmp.eq.s32.totalorder %s72, 0
    %p92 = por %p90, %p91
    %p93 = scmp.ne.s32.totalorder %s82, %s85
    %p94 = scmp.eq.s32.totalorder %s77, 1
    %p95 = por %p93, %p94
    %p96 = scmp.ne.s32.totalorder %s85, %s86
    %p97 = scmp.eq.s32.totalorder %s77, 0
    %p98 = por %p96, %p97
    %p99 = scmp.ne.s32.totalorder %s85, %s86
    %p100 = scmp.eq.s32.totalorder %s78, 1
    %p101 = por %p99, %p100
    %p103 = scmp.ne.s32.totalorder %s86, %s102
    %p104 = scmp.eq.s32.totalorder %s78, 0
    %p105 = por %p103, %p104
    %s107 = sadd.s32 %s106, 1
    %p110 = scmp.eq.s32.totalorder %s72, 1
    %p111 = scmp.ne.s32.totalorder %s106, %s108
    %p112 = scmp.eq.s32.totalorder %s72, 0
    %p113 = por %p111, %p112
    %p114 = scmp.ne.s32.totalorder %s106, %s108
    %p115 = scmp.eq.s32.totalorder %s77, 1
    %p116 = por %p114, %p115
    %p117 = scmp.ne.s32.totalorder %s108, %s109
    %p118 = scmp.eq.s32.totalorder %s77, 0
    %p119 = por %p117, %p118
    %p120 = scmp.ne.s32.totalorder %s108, %s109
    %p121 = scmp.eq.s32.totalorder %s78, 1
    %p122 = por %p120, %p121
    %p124 = scmp.ne.s32.totalorder %s109, %s123
    %p125 = scmp.eq.s32.totalorder %s78, 0
    %p126 = por %p124, %p125
    %s128 = sadd.s32 %s127, 1
    %p131 = scmp.eq.s32.totalorder %s72, 1
    %p132 = scmp.ne.s32.totalorder %s127, %s129
    %p133 = scmp.eq.s32.totalorder %s72, 0
    %p134 = por %p132, %p133
    %p135 = scmp.ne.s32.totalorder %s127, %s129
    %p136 = scmp.eq.s32.totalorder %s77, 1
    %p137 = por %p135, %p136
    %p138 = scmp.ne.s32.totalorder %s129, %s130
    %p139 = scmp.eq.s32.totalorder %s77, 0
    %p140 = por %p138, %p139
    %p141 = scmp.ne.s32.totalorder %s129, %s130
    %p142 = scmp.eq.s32.totalorder %s78, 1
    %p143 = por %p141, %p142
    %p145 = scmp.ne.s32.totalorder %s130, %s144
    %p146 = scmp.eq.s32.totalorder %s78, 0
    %p147 = por %p145, %p146
    %s149 = sadd.s32 %s148, 1
    %p152 = scmp.eq.s32.totalorder %s72, 1
    %p153 = scmp.ne.s32.totalorder %s148, %s150
    %p154 = scmp.eq.s32.totalorder %s72, 0
    %p155 = por %p153, %p154
    %p156 = scmp.ne.s32.totalorder %s148, %s150
    %p157 = scmp.eq.s32.totalorder %s77, 1
    %p158 = por %p156, %p157
    %p159 = scmp.ne.s32.totalorder %s150, %s151
    %p160 = scmp.eq.s32.totalorder %s77, 0
    %p161 = por %p159, %p160
    %p162 = scmp.ne.s32.totalorder %s150, %s151
    %p163 = scmp.eq.s32.totalorder %s78, 1
    %p164 = por %p162, %p163
    %p166 = scmp.ne.s32.totalorder %s151, %s165
    %p167 = scmp.eq.s32.totalorder %s78, 0
    %p168 = por %p166, %p167
    %s170 = sadd.s32 %s169, 1
    %p173 = scmp.eq.s32.totalorder %s72, 1
    %p174 = scmp.ne.s32.totalorder %s169, %s171
    %p175 = scmp.eq.s32.totalorder %s72, 0
    %p176 = por %p174, %p175
    %p177 = scmp.ne.s32.totalorder %s169, %s171
    %p178 = scmp.eq.s32.totalorder %s77, 1
    %p179 = por %p177, %p178
    %p180 = scmp.ne.s32.totalorder %s171, %s172
    %p181 = scmp.eq.s32.totalorder %s77, 0
    %p182 = por %p180, %p181
    %p183 = scmp.ne.s32.totalorder %s171, %s172
    %p184 = scmp.eq.s32.totalorder %s78, 1
    %p185 = por %p183, %p184
    %p187 = scmp.ne.s32.totalorder %s172, %s186
    %p188 = scmp.eq.s32.totalorder %s78, 0
    %p189 = por %p187, %p188
    %s191 = sadd.s32 %s190, 1
    %p194 = scmp.eq.s32.totalorder %s72, 1
    %p195 = scmp.ne.s32.totalorder %s190, %s192
    %p196 = scmp.eq.s32.totalorder %s72, 0
    %p197 = por %p195, %p196
    %p198 = scmp.ne.s32.totalorder %s190, %s192
    %p199 = scmp.eq.s32.totalorder %s77, 1
    %p200 = por %p198, %p199
    %p201 = scmp.ne.s32.totalorder %s192, %s193
    %p202 = scmp.eq.s32.totalorder %s77, 0
    %p203 = por %p201, %p202
    %p204 = scmp.ne.s32.totalorder %s192, %s193
    %p205 = scmp.eq.s32.totalorder %s78, 1
    %p206 = por %p204, %p205
    %p208 = scmp.ne.s32.totalorder %s193, %s207
    %p209 = scmp.eq.s32.totalorder %s78, 0
    %p210 = por %p208, %p209
    %s212 = sadd.s32 %s211, 1
    %p215 = scmp.eq.s32.totalorder %s72, 1
    %p216 = scmp.ne.s32.totalorder %s211, %s213
    %p217 = scmp.eq.s32.totalorder %s72, 0
    %p218 = por %p216, %p217
    %p219 = scmp.ne.s32.totalorder %s211, %s213
    %p220 = scmp.eq.s32.totalorder %s77, 1
    %p221 = por %p219, %p220
    %p222 = scmp.ne.s32.totalorder %s213, %s214
    %p223 = scmp.eq.s32.totalorder %s77, 0
    %p224 = por %p222, %p223
    %p225 = scmp.ne.s32.totalorder %s213, %s214
    %p226 = scmp.eq.s32.totalorder %s78, 1
    %p227 = por %p225, %p226
    %p229 = scmp.ne.s32.totalorder %s214, %s228
    %p230 = scmp.eq.s32.totalorder %s78, 0
    %p231 = por %p229, %p230
    %s233 = sadd.s32 %s232, 1
    %p236 = scmp.eq.s32.totalorder %s72, 1
    %p237 = scmp.ne.s32.totalorder %s232, %s234
    %p238 = scmp.eq.s32.totalorder %s72, 0
    %p239 = por %p237, %p238
    %p240 = scmp.ne.s32.totalorder %s232, %s234
    %p241 = scmp.eq.s32.totalorder %s77, 1
    %p242 = por %p240, %p241
    %p243 = scmp.ne.s32.totalorder %s234, %s235
    %p244 = scmp.eq.s32.totalorder %s77, 0
    %p245 = por %p243, %p244
    %p246 = scmp.ne.s32.totalorder %s234, %s235
    %p247 = scmp.eq.s32.totalorder %s78, 1
    %p248 = por %p246, %p247
    %p250 = scmp.ne.s32.totalorder %s235, %s249
    %p251 = scmp.eq.s32.totalorder %s78, 0
    %p252 = por %p250, %p251
    %s254 = sadd.s32 %s253, 1
    %p257 = scmp.eq.s32.totalorder %s72, 1
    %p258 = scmp.ne.s32.totalorder %s253, %s255
    %p259 = scmp.eq.s32.totalorder %s72, 0
    %p260 = por %p258, %p259
    %p261 = scmp.ne.s32.totalorder %s253, %s255
    %p262 = scmp.eq.s32.totalorder %s77, 1
    %p263 = por %p261, %p262
    %p264 = scmp.ne.s32.totalorder %s255, %s256
    %p265 = scmp.eq.s32.totalorder %s77, 0
    %p266 = por %p264, %p265
    %p267 = scmp.ne.s32.totalorder %s255, %s256
    %p268 = scmp.eq.s32.totalorder %s78, 1
    %p269 = por %p267, %p268
    %p271 = scmp.ne.s32.totalorder %s256, %s270
    %p272 = scmp.eq.s32.totalorder %s78, 0
    %p273 = por %p271, %p272
    %s275 = sadd.s32 %s274, 1
    %p278 = scmp.eq.s32.totalorder %s72, 1
    %p279 = scmp.ne.s32.totalorder %s274, %s276
    %p280 = scmp.eq.s32.totalorder %s72, 0
    %p281 = por %p279, %p280
    %p282 = scmp.ne.s32.totalorder %s274, %s276
    %p283 = scmp.eq.s32.totalorder %s77, 1
    %p284 = por %p282, %p283
    %p285 = scmp.ne.s32.totalorder %s276, %s277
    %p286 = scmp.eq.s32.totalorder %s77, 0
    %p287 = por %p285, %p286
    %p288 = scmp.ne.s32.totalorder %s276, %s277
    %p289 = scmp.eq.s32.totalorder %s78, 1
    %p290 = por %p288, %p289
    %p292 = scmp.ne.s32.totalorder %s277, %s291
    %p293 = scmp.eq.s32.totalorder %s78, 0
    %p294 = por %p292, %p293
    %s296 = sadd.s32 %s295, 1
    %p299 = scmp.eq.s32.totalorder %s72, 1
    %p300 = scmp.ne.s32.totalorder %s295, %s297
    %p301 = scmp.eq.s32.totalorder %s72, 0
    %p302 = por %p300, %p301
    %p303 = scmp.ne.s32.totalorder %s295, %s297
    %p304 = scmp.eq.s32.totalorder %s77, 1
    %p305 = por %p303, %p304
    %p306 = scmp.ne.s32.totalorder %s297, %s298
    %p307 = scmp.eq.s32.totalorder %s77, 0
    %p308 = por %p306, %p307
    %p309 = scmp.ne.s32.totalorder %s297, %s298
    %p310 = scmp.eq.s32.totalorder %s78, 1
    %p311 = por %p309, %p310
    %p313 = scmp.ne.s32.totalorder %s298, %s312
    %p314 = scmp.eq.s32.totalorder %s78, 0
    %p315 = por %p313, %p314
    %s317 = sadd.s32 %s316, 1
    %p320 = scmp.eq.s32.totalorder %s72, 1
    %p321 = scmp.ne.s32.totalorder %s316, %s318
    %p322 = scmp.eq.s32.totalorder %s72, 0
    %p323 = por %p321, %p322
    %p324 = scmp.ne.s32.totalorder %s316, %s318
    %p325 = scmp.eq.s32.totalorder %s77, 1
    %p326 = por %p324, %p325
    %p327 = scmp.ne.s32.totalorder %s318, %s319
    %p328 = scmp.eq.s32.totalorder %s77, 0
    %p329 = por %p327, %p328
    %p330 = scmp.ne.s32.totalorder %s318, %s319
    %p331 = scmp.eq.s32.totalorder %s78, 1
    %p332 = por %p330, %p331
    %p334 = scmp.ne.s32.totalorder %s319, %s333
    %p335 = scmp.eq.s32.totalorder %s78, 0
    %p336 = por %p334, %p335
    %s338 = sadd.s32 %s337, 1
    %p341 = scmp.eq.s32.totalorder %s72, 1
    %p342 = scmp.ne.s32.totalorder %s337, %s339
    %p343 = scmp.eq.s32.totalorder %s72, 0
    %p344 = por %p342, %p343
    %p345 = scmp.ne.s32.totalorder %s337, %s339
    %p346 = scmp.eq.s32.totalorder %s77, 1
    %p347 = por %p345, %p346
    %p348 = scmp.ne.s32.totalorder %s339, %s340
    %p349 = scmp.eq.s32.totalorder %s77, 0
    %p350 = por %p348, %p349
    %p351 = scmp.ne.s32.totalorder %s339, %s340
    %p352 = scmp.eq.s32.totalorder %s78, 1
    %p353 = por %p351, %p352
    %p355 = scmp.ne.s32.totalorder %s340, %s354
    %p356 = scmp.eq.s32.totalorder %s78, 0
    %p357 = por %p355, %p356
    %s359 = sadd.s32 %s358, 1
    %p362 = scmp.eq.s32.totalorder %s72, 1
    %p363 = scmp.ne.s32.totalorder %s358, %s360
    %p364 = scmp.eq.s32.totalorder %s72, 0
    %p365 = por %p363, %p364
    %p366 = scmp.ne.s32.totalorder %s358, %s360
    %p367 = scmp.eq.s32.totalorder %s77, 1
    %p368 = por %p366, %p367
    %p369 = scmp.ne.s32.totalorder %s360, %s361
    %p370 = scmp.eq.s32.totalorder %s77, 0
    %p371 = por %p369, %p370
    %p372 = scmp.ne.s32.totalorder %s360, %s361
    %p373 = scmp.eq.s32.totalorder %s78, 1
    %p374 = por %p372, %p373
    %p376 = scmp.ne.s32.totalorder %s361, %s375
    %p377 = scmp.eq.s32.totalorder %s78, 0
    %p378 = por %p376, %p377
    %s380 = sadd.s32 %s379, 1
    %p383 = scmp.eq.s32.totalorder %s72, 1
    %p384 = scmp.ne.s32.totalorder %s379, %s381
    %p385 = scmp.eq.s32.totalorder %s72, 0
    %p386 = por %p384, %p385
    %p387 = scmp.ne.s32.totalorder %s379, %s381
    %p388 = scmp.eq.s32.totalorder %s77, 1
    %p389 = por %p387, %p388
    %p390 = scmp.ne.s32.totalorder %s381, %s382
    %p391 = scmp.eq.s32.totalorder %s77, 0
    %p392 = por %p390, %p391
    %p393 = scmp.ne.s32.totalorder %s381, %s382
    %p394 = scmp.eq.s32.totalorder %s78, 1
    %p395 = por %p393, %p394
    %p397 = scmp.ne.s32.totalorder %s382, %s396
    %p398 = scmp.eq.s32.totalorder %s78, 0
    %p399 = por %p397, %p398
    %s401 = sadd.s32 %s400, 1
    %p404 = scmp.eq.s32.totalorder %s72, 1
    %p405 = scmp.ne.s32.totalorder %s400, %s402
    %p406 = scmp.eq.s32.totalorder %s72, 0
    %p407 = por %p405, %p406
    %p408 = scmp.ne.s32.totalorder %s400, %s402
    %p409 = scmp.eq.s32.totalorder %s77, 1
    %p410 = por %p408, %p409
    %p411 = scmp.ne.s32.totalorder %s402, %s403
    %p412 = scmp.eq.s32.totalorder %s77, 0
    %p413 = por %p411, %p412
    %p414 = scmp.ne.s32.totalorder %s402, %s403
    %p415 = scmp.eq.s32.totalorder %s78, 1
    %p416 = por %p414, %p415
    %p418 = scmp.ne.s32.totalorder %s403, %s417
    %p419 = scmp.eq.s32.totalorder %s78, 0
    %p420 = por %p418, %p419
    %s422 = sadd.s32 %s421, 1
    %p425 = scmp.eq.s32.totalorder %s72, 1
    %p426 = scmp.ne.s32.totalorder %s421, %s423
    %p427 = scmp.eq.s32.totalorder %s72, 0
    %p428 = por %p426, %p427
    %p429 = scmp.ne.s32.totalorder %s421, %s423
    %p430 = scmp.eq.s32.totalorder %s77, 1
    %p431 = por %p429, %p430
    %p432 = scmp.ne.s32.totalorder %s423, %s424
    %p433 = scmp.eq.s32.totalorder %s77, 0
    %p434 = por %p432, %p433
    %p435 = scmp.ne.s32.totalorder %s423, %s424
    %p436 = scmp.eq.s32.totalorder %s78, 1
    %p437 = por %p435, %p436
    %p439 = scmp.ne.s32.totalorder %s424, %s438
    %p440 = scmp.eq.s32.totalorder %s78, 0
    %p441 = por %p439, %p440
    %s443 = sadd.s32 %s442, 1
    %p446 = scmp.eq.s32.totalorder %s72, 1
    %p447 = scmp.ne.s32.totalorder %s442, %s444
    %p448 = scmp.eq.s32.totalorder %s72, 0
    %p449 = por %p447, %p448
    %p450 = scmp.ne.s32.totalorder %s442, %s444
    %p451 = scmp.eq.s32.totalorder %s77, 1
    %p452 = por %p450, %p451
    %p453 = scmp.ne.s32.totalorder %s444, %s445
    %p454 = scmp.eq.s32.totalorder %s77, 0
    %p455 = por %p453, %p454
    %p456 = scmp.ne.s32.totalorder %s444, %s445
    %p457 = scmp.eq.s32.totalorder %s78, 1
    %p458 = por %p456, %p457
    %p460 = scmp.ne.s32.totalorder %s445, %s459
    %p461 = scmp.eq.s32.totalorder %s78, 0
    %p462 = por %p460, %p461
    %s464 = sadd.s32 %s463, 1
    %p467 = scmp.eq.s32.totalorder %s72, 1
    %p468 = scmp.ne.s32.totalorder %s463, %s465
    %p469 = scmp.eq.s32.totalorder %s72, 0
    %p470 = por %p468, %p469
    %p471 = scmp.ne.s32.totalorder %s463, %s465
    %p472 = scmp.eq.s32.totalorder %s77, 1
    %p473 = por %p471, %p472
    %p474 = scmp.ne.s32.totalorder %s465, %s466
    %p475 = scmp.eq.s32.totalorder %s77, 0
    %p476 = por %p474, %p475
    %p477 = scmp.ne.s32.totalorder %s465, %s466
    %p478 = scmp.eq.s32.totalorder %s78, 1
    %p479 = por %p477, %p478
    %p481 = scmp.ne.s32.totalorder %s466, %s480
    %p482 = scmp.eq.s32.totalorder %s78, 0
    %p483 = por %p481, %p482
    %s485 = sadd.s32 %s484, 1
    %p488 = scmp.eq.s32.totalorder %s72, 1
    %p489 = scmp.ne.s32.totalorder %s484, %s486
    %p490 = scmp.eq.s32.totalorder %s72, 0
    %p491 = por %p489, %p490
    %p492 = scmp.ne.s32.totalorder %s484, %s486
    %p493 = scmp.eq.s32.totalorder %s77, 1
    %p494 = por %p492, %p493
    %p495 = scmp.ne.s32.totalorder %s486, %s487
    %p496 = scmp.eq.s32.totalorder %s77, 0
    %p497 = por %p495, %p496
    %p498 = scmp.ne.s32.totalorder %s486, %s487
    %p499 = scmp.eq.s32.totalorder %s78, 1
    %p500 = por %p498, %p499
    %p502 = scmp.ne.s32.totalorder %s487, %s501
    %p503 = scmp.eq.s32.totalorder %s78, 0
    %p504 = por %p502, %p503
    %s506 = sadd.s32 %s505, 1
    %p509 = scmp.eq.s32.totalorder %s72, 1
    %p510 = scmp.ne.s32.totalorder %s505, %s507
    %p511 = scmp.eq.s32.totalorder %s72, 0
    %p512 = por %p510, %p511
    %p513 = scmp.ne.s32.totalorder %s505, %s507
    %p514 = scmp.eq.s32.totalorder %s77, 1
    %p515 = por %p513, %p514
    %p516 = scmp.ne.s32.totalorder %s507, %s508
    %p517 = scmp.eq.s32.totalorder %s77, 0
    %p518 = por %p516, %p517
    %p519 = scmp.ne.s32.totalorder %s507, %s508
    %p520 = scmp.eq.s32.totalorder %s78, 1
    %p521 = por %p519, %p520
    %p523 = scmp.ne.s32.totalorder %s508, %s522
    %p524 = scmp.eq.s32.totalorder %s78, 0
    %p525 = por %p523, %p524
    %s527 = sadd.s32 %s526, 1
    %p530 = scmp.eq.s32.totalorder %s72, 1
    %p531 = scmp.ne.s32.totalorder %s526, %s528
    %p532 = scmp.eq.s32.totalorder %s72, 0
    %p533 = por %p531, %p532
    %p534 = scmp.ne.s32.totalorder %s526, %s528
    %p535 = scmp.eq.s32.totalorder %s77, 1
    %p536 = por %p534, %p535
    %p537 = scmp.ne.s32.totalorder %s528, %s529
    %p538 = scmp.eq.s32.totalorder %s77, 0
    %p539 = por %p537, %p538
    %p540 = scmp.ne.s32.totalorder %s528, %s529
    %p541 = scmp.eq.s32.totalorder %s78, 1
    %p542 = por %p540, %p541
    %p544 = scmp.ne.s32.totalorder %s529, %s543
    %p545 = scmp.eq.s32.totalorder %s78, 0
    %p546 = por %p544, %p545
    %s548 = sadd.s32 %s547, 1
    %p551 = scmp.eq.s32.totalorder %s72, 1
    %p552 = scmp.ne.s32.totalorder %s547, %s549
    %p553 = scmp.eq.s32.totalorder %s72, 0
    %p554 = por %p552, %p553
    %p555 = scmp.ne.s32.totalorder %s547, %s549
    %p556 = scmp.eq.s32.totalorder %s77, 1
    %p557 = por %p555, %p556
    %p558 = scmp.ne.s32.totalorder %s549, %s550
    %p559 = scmp.eq.s32.totalorder %s77, 0
    %p560 = por %p558, %p559
    %p561 = scmp.ne.s32.totalorder %s549, %s550
    %p562 = scmp.eq.s32.totalorder %s78, 1
    %p563 = por %p561, %p562
    %p565 = scmp.ne.s32.totalorder %s550, %s564
    %p566 = scmp.eq.s32.totalorder %s78, 0
    %p567 = por %p565, %p566
    %s569 = sadd.s32 %s568, 1
    %p572 = scmp.eq.s32.totalorder %s72, 1
    %p573 = scmp.ne.s32.totalorder %s568, %s570
    %p574 = scmp.eq.s32.totalorder %s72, 0
    %p575 = por %p573, %p574
    %p576 = scmp.ne.s32.totalorder %s568, %s570
    %p577 = scmp.eq.s32.totalorder %s77, 1
    %p578 = por %p576, %p577
    %p579 = scmp.ne.s32.totalorder %s570, %s571
    %p580 = scmp.eq.s32.totalorder %s77, 0
    %p581 = por %p579, %p580
    %p582 = scmp.ne.s32.totalorder %s570, %s571
    %p583 = scmp.eq.s32.totalorder %s78, 1
    %p584 = por %p582, %p583
    %p586 = scmp.ne.s32.totalorder %s571, %s585
    %p587 = scmp.eq.s32.totalorder %s78, 0
    %p588 = por %p586, %p587
    %s590 = sadd.s32 %s589, 1
    %p593 = scmp.eq.s32.totalorder %s72, 1
    %p594 = scmp.ne.s32.totalorder %s589, %s591
    %p595 = scmp.eq.s32.totalorder %s72, 0
    %p596 = por %p594, %p595
    %p597 = scmp.ne.s32.totalorder %s589, %s591
    %p598 = scmp.eq.s32.totalorder %s77, 1
    %p599 = por %p597, %p598
    %p600 = scmp.ne.s32.totalorder %s591, %s592
    %p601 = scmp.eq.s32.totalorder %s77, 0
    %p602 = por %p600, %p601
    %p603 = scmp.ne.s32.totalorder %s591, %s592
    %p604 = scmp.eq.s32.totalorder %s78, 1
    %p605 = por %p603, %p604
    %p607 = scmp.ne.s32.totalorder %s592, %s606
    %p608 = scmp.eq.s32.totalorder %s78, 0
    %p609 = por %p607, %p608
    %s611 = sadd.s32 %s610, 1
    %p614 = scmp.eq.s32.totalorder %s72, 1
    %p615 = scmp.ne.s32.totalorder %s610, %s612
    %p616 = scmp.eq.s32.totalorder %s72, 0
    %p617 = por %p615, %p616
    %p618 = scmp.ne.s32.totalorder %s610, %s612
    %p619 = scmp.eq.s32.totalorder %s77, 1
    %p620 = por %p618, %p619
    %p621 = scmp.ne.s32.totalorder %s612, %s613
    %p622 = scmp.eq.s32.totalorder %s77, 0
    %p623 = por %p621, %p622
    %p624 = scmp.ne.s32.totalorder %s612, %s613
    %p625 = scmp.eq.s32.totalorder %s78, 1
    %p626 = por %p624, %p625
    %p628 = scmp.ne.s32.totalorder %s613, %s627
    %p629 = scmp.eq.s32.totalorder %s78, 0
    %p630 = por %p628, %p629
    %s632 = sadd.s32 %s631, 1
    %p635 = scmp.eq.s32.totalorder %s72, 1
    %p636 = scmp.ne.s32.totalorder %s631, %s633
    %p637 = scmp.eq.s32.totalorder %s72, 0
    %p638 = por %p636, %p637
    %p639 = scmp.ne.s32.totalorder %s631, %s633
    %p640 = scmp.eq.s32.totalorder %s77, 1
    %p641 = por %p639, %p640
    %p642 = scmp.ne.s32.totalorder %s633, %s634
    %p643 = scmp.eq.s32.totalorder %s77, 0
    %p644 = por %p642, %p643
    %p645 = scmp.ne.s32.totalorder %s633, %s634
    %p646 = scmp.eq.s32.totalorder %s78, 1
    %p647 = por %p645, %p646
    %p649 = scmp.ne.s32.totalorder %s634, %s648
    %p650 = scmp.eq.s32.totalorder %s78, 0
    %p651 = por %p649, %p650
    %s652 = ssub.s32 %s72, %s79
    %p653 = scmp.eq.s32.totalorder %s652, 0
    %s655 = sadd.s32 %s654, 1
    %s656 = scalar_select %p653, %s654, %s655
    %p659 = pneg %p653
    %p660 = scmp.eq.s32.totalorder %s72, 1
    %p661 = por %p659, %p660
    %p662 = scmp.ne.s32.totalorder %s654, %s657
    %p663 = scmp.eq.s32.totalorder %s72, 0
    %p664 = por %p662, %p663
    %p665 = scmp.ne.s32.totalorder %s654, %s657
    %p666 = scmp.eq.s32.totalorder %s77, 1
    %p667 = por %p665, %p666
    %p668 = scmp.ne.s32.totalorder %s657, %s658
    %p669 = scmp.eq.s32.totalorder %s77, 0
    %p670 = por %p668, %p669
    %p671 = scmp.ne.s32.totalorder %s657, %s658
    %p672 = scmp.eq.s32.totalorder %s78, 1
    %p673 = por %p671, %p672
    %p675 = scmp.ne.s32.totalorder %s658, %s674
    %p676 = scmp.eq.s32.totalorder %s78, 0
    %p677 = por %p675, %p676
    %s678 = ssub.s32 %s72, %s79
    %p679 = scmp.eq.s32.totalorder %s678, 0
    %s681 = sadd.s32 %s680, 1
    %s682 = scalar_select %p679, %s680, %s681
    %p685 = pneg %p679
    %p686 = scmp.eq.s32.totalorder %s72, 1
    %p687 = por %p685, %p686
    %p688 = scmp.ne.s32.totalorder %s680, %s683
    %p689 = scmp.eq.s32.totalorder %s72, 0
    %p690 = por %p688, %p689
    %p691 = scmp.ne.s32.totalorder %s680, %s683
    %p692 = scmp.eq.s32.totalorder %s77, 1
    %p693 = por %p691, %p692
    %p694 = scmp.ne.s32.totalorder %s683, %s684
    %p695 = scmp.eq.s32.totalorder %s77, 0
    %p696 = por %p694, %p695
    %p697 = scmp.ne.s32.totalorder %s683, %s684
    %p698 = scmp.eq.s32.totalorder %s78, 1
    %p699 = por %p697, %p698
    %p701 = scmp.ne.s32.totalorder %s684, %s700
    %p702 = scmp.eq.s32.totalorder %s78, 0
    %p703 = por %p701, %p702
    %s704 = ssub.s32 %s72, %s79
    %p705 = scmp.eq.s32.totalorder %s704, 0
    %s707 = sadd.s32 %s706, 1
    %s708 = scalar_select %p705, %s706, %s707
    %p711 = pneg %p705
    %p712 = scmp.eq.s32.totalorder %s72, 1
    %p713 = por %p711, %p712
    %p714 = scmp.ne.s32.totalorder %s706, %s709
    %p715 = scmp.eq.s32.totalorder %s72, 0
    %p716 = por %p714, %p715
    %p717 = scmp.ne.s32.totalorder %s706, %s709
    %p718 = scmp.eq.s32.totalorder %s77, 1
    %p719 = por %p717, %p718
    %p720 = scmp.ne.s32.totalorder %s709, %s710
    %p721 = scmp.eq.s32.totalorder %s77, 0
    %p722 = por %p720, %p721
    %p723 = scmp.ne.s32.totalorder %s709, %s710
    %p724 = scmp.eq.s32.totalorder %s78, 1
    %p725 = por %p723, %p724
    %p727 = scmp.ne.s32.totalorder %s710, %s726
    %p728 = scmp.eq.s32.totalorder %s78, 0
    %p729 = por %p727, %p728
    %s730 = ssub.s32 %s72, %s79
    %p731 = scmp.eq.s32.totalorder %s730, 0
    %s733 = sadd.s32 %s732, 1
    %s734 = scalar_select %p731, %s732, %s733
    %p737 = pneg %p731
    %p738 = scmp.eq.s32.totalorder %s72, 1
    %p739 = por %p737, %p738
    %p740 = scmp.ne.s32.totalorder %s732, %s735
    %p741 = scmp.eq.s32.totalorder %s72, 0
    %p742 = por %p740, %p741
    %p743 = scmp.ne.s32.totalorder %s732, %s735
    %p744 = scmp.eq.s32.totalorder %s77, 1
    %p745 = por %p743, %p744
    %p746 = scmp.ne.s32.totalorder %s735, %s736
    %p747 = scmp.eq.s32.totalorder %s77, 0
    %p748 = por %p746, %p747
    %p749 = scmp.ne.s32.totalorder %s735, %s736
    %p750 = scmp.eq.s32.totalorder %s78, 1
    %p751 = por %p749, %p750
    %p753 = scmp.ne.s32.totalorder %s736, %s752
    %p754 = scmp.eq.s32.totalorder %s78, 0
    %p755 = por %p753, %p754
    %s756 = ssub.s32 %s72, %s79
    %p757 = scmp.eq.s32.totalorder %s756, 0
    %s759 = sadd.s32 %s758, 1
    %s760 = scalar_select %p757, %s758, %s759
    %p763 = pneg %p757
    %p764 = scmp.eq.s32.totalorder %s72, 1
    %p765 = por %p763, %p764
    %p766 = scmp.ne.s32.totalorder %s758, %s761
    %p767 = scmp.eq.s32.totalorder %s72, 0
    %p768 = por %p766, %p767
    %p769 = scmp.ne.s32.totalorder %s758, %s761
    %p770 = scmp.eq.s32.totalorder %s77, 1
    %p771 = por %p769, %p770
    %p772 = scmp.ne.s32.totalorder %s761, %s762
    %p773 = scmp.eq.s32.totalorder %s77, 0
    %p774 = por %p772, %p773
    %p775 = scmp.ne.s32.totalorder %s761, %s762
    %p776 = scmp.eq.s32.totalorder %s78, 1
    %p777 = por %p775, %p776
    %p779 = scmp.ne.s32.totalorder %s762, %s778
    %p780 = scmp.eq.s32.totalorder %s78, 0
    %p781 = por %p779, %p780
    %s782 = ssub.s32 %s72, %s79
    %p783 = scmp.eq.s32.totalorder %s782, 0
    %s785 = sadd.s32 %s784, 1
    %s786 = scalar_select %p783, %s784, %s785
    %p789 = pneg %p783
    %p790 = scmp.eq.s32.totalorder %s72, 1
    %p791 = por %p789, %p790
    %p792 = scmp.ne.s32.totalorder %s784, %s787
    %p793 = scmp.eq.s32.totalorder %s72, 0
    %p794 = por %p792, %p793
    %p795 = scmp.ne.s32.totalorder %s784, %s787
    %p796 = scmp.eq.s32.totalorder %s77, 1
    %p797 = por %p795, %p796
    %p798 = scmp.ne.s32.totalorder %s787, %s788
    %p799 = scmp.eq.s32.totalorder %s77, 0
    %p800 = por %p798, %p799
    %p801 = scmp.ne.s32.totalorder %s787, %s788
    %p802 = scmp.eq.s32.totalorder %s78, 1
    %p803 = por %p801, %p802
    %p805 = scmp.ne.s32.totalorder %s788, %s804
    %p806 = scmp.eq.s32.totalorder %s78, 0
    %p807 = por %p805, %p806
    %p808 = scmp.le.s32.totalorder 1, %s72
    %p809 = scmp.lt.s32.totalorder %s72, 3
    %p810 = pnand %p808, %p809
    %p811 = pneg %p810
    // Predicated region
    $region9: #{mcnet_forward.1} parent=5 // pred_check
      _
    $region10: #{mcnet_forward.1} parent=5 // pred_check_branch
      %813 = sbr.rel (%p810) target = $region12
    $region11: #{mcnet_forward.1} parent=5 // pred_region
      %s814 = ssub.s32 %s72, 1
      // Predicated region
      $region13: #{mcnet_forward.1} parent=11 // pred_check
        %p815 = pneg %p119
      $region14: #{mcnet_forward.1} parent=11 // pred_check_branch
        %817 = sbr.rel (%p815) target = $region16
      $region15: #{mcnet_forward.1} parent=11 // pred_region
        _
      $region16: #{mcnet_forward.1} parent=11 // pred_fallthru
        _
      // Predicated region
      $region17: #{mcnet_forward.1} parent=11 // pred_check
        %p818 = pneg %p140
      $region18: #{mcnet_forward.1} parent=11 // pred_check_branch
        %820 = sbr.rel (%p818) target = $region20
      $region19: #{mcnet_forward.1} parent=11 // pred_region
        _
      $region20: #{mcnet_forward.1} parent=11 // pred_fallthru
        _
      // Predicated region
      $region21: #{mcnet_forward.1} parent=11 // pred_check
        %p821 = pneg %p161
      $region22: #{mcnet_forward.1} parent=11 // pred_check_branch
        %823 = sbr.rel (%p821) target = $region24
      $region23: #{mcnet_forward.1} parent=11 // pred_region
        _
      $region24: #{mcnet_forward.1} parent=11 // pred_fallthru
        _
      // Predicated region
      $region25: #{mcnet_forward.1} parent=11 // pred_check
        %p824 = pneg %p182
      $region26: #{mcnet_forward.1} parent=11 // pred_check_branch
        %826 = sbr.rel (%p824) target = $region28
      $region27: #{mcnet_forward.1} parent=11 // pred_region
        _
      $region28: #{mcnet_forward.1} parent=11 // pred_fallthru
        _
      // Predicated region
      $region29: #{mcnet_forward.1} parent=11 // pred_check
        %p827 = pneg %p203
      $region30: #{mcnet_forward.1} parent=11 // pred_check_branch
        %829 = sbr.rel (%p827) target = $region32
      $region31: #{mcnet_forward.1} parent=11 // pred_region
        _
      $region32: #{mcnet_forward.1} parent=11 // pred_fallthru
        _
      // Predicated region
      $region33: #{mcnet_forward.1} parent=11 // pred_check
        %p830 = pneg %p224
      $region34: #{mcnet_forward.1} parent=11 // pred_check_branch
        %832 = sbr.rel (%p830) target = $region36
      $region35: #{mcnet_forward.1} parent=11 // pred_region
        _
      $region36: #{mcnet_forward.1} parent=11 // pred_fallthru
        _
      // Predicated region
      $region37: #{mcnet_forward.1} parent=11 // pred_check
        %p833 = pneg %p245
      $region38: #{mcnet_forward.1} parent=11 // pred_check_branch
        %835 = sbr.rel (%p833) target = $region40
      $region39: #{mcnet_forward.1} parent=11 // pred_region
        _
      $region40: #{mcnet_forward.1} parent=11 // pred_fallthru
        _
      // Predicated region
      $region41: #{mcnet_forward.1} parent=11 // pred_check
        %p836 = pneg %p266
      $region42: #{mcnet_forward.1} parent=11 // pred_check_branch
        %838 = sbr.rel (%p836) target = $region44
      $region43: #{mcnet_forward.1} parent=11 // pred_region
        _
      $region44: #{mcnet_forward.1} parent=11 // pred_fallthru
        _
      // Predicated region
      $region45: #{mcnet_forward.1} parent=11 // pred_check
        %p839 = pneg %p287
      $region46: #{mcnet_forward.1} parent=11 // pred_check_branch
        %841 = sbr.rel (%p839) target = $region48
      $region47: #{mcnet_forward.1} parent=11 // pred_region
        _
      $region48: #{mcnet_forward.1} parent=11 // pred_fallthru
        _
      // Predicated region
      $region49: #{mcnet_forward.1} parent=11 // pred_check
        %p842 = pneg %p308
      $region50: #{mcnet_forward.1} parent=11 // pred_check_branch
        %844 = sbr.rel (%p842) target = $region52
      $region51: #{mcnet_forward.1} parent=11 // pred_region
        _
      $region52: #{mcnet_forward.1} parent=11 // pred_fallthru
        _
      // Predicated region
      $region53: #{mcnet_forward.1} parent=11 // pred_check
        %p845 = pneg %p329
      $region54: #{mcnet_forward.1} parent=11 // pred_check_branch
        %847 = sbr.rel (%p845) target = $region56
      $region55: #{mcnet_forward.1} parent=11 // pred_region
        _
      $region56: #{mcnet_forward.1} parent=11 // pred_fallthru
        _
      // Predicated region
      $region57: #{mcnet_forward.1} parent=11 // pred_check
        %p848 = pneg %p350
      $region58: #{mcnet_forward.1} parent=11 // pred_check_branch
        %850 = sbr.rel (%p848) target = $region60
      $region59: #{mcnet_forward.1} parent=11 // pred_region
        _
      $region60: #{mcnet_forward.1} parent=11 // pred_fallthru
        _
      // Predicated region
      $region61: #{mcnet_forward.1} parent=11 // pred_check
        %p851 = pneg %p371
      $region62: #{mcnet_forward.1} parent=11 // pred_check_branch
        %853 = sbr.rel (%p851) target = $region64
      $region63: #{mcnet_forward.1} parent=11 // pred_region
        _
      $region64: #{mcnet_forward.1} parent=11 // pred_fallthru
        _
      // Predicated region
      $region65: #{mcnet_forward.1} parent=11 // pred_check
        %p854 = pneg %p392
      $region66: #{mcnet_forward.1} parent=11 // pred_check_branch
        %856 = sbr.rel (%p854) target = $region68
      $region67: #{mcnet_forward.1} parent=11 // pred_region
        _
      $region68: #{mcnet_forward.1} parent=11 // pred_fallthru
        _
      // Predicated region
      $region69: #{mcnet_forward.1} parent=11 // pred_check
        %p857 = pneg %p413
      $region70: #{mcnet_forward.1} parent=11 // pred_check_branch
        %859 = sbr.rel (%p857) target = $region72
      $region71: #{mcnet_forward.1} parent=11 // pred_region
        _
      $region72: #{mcnet_forward.1} parent=11 // pred_fallthru
        _
      // Predicated region
      $region73: #{mcnet_forward.1} parent=11 // pred_check
        %p860 = pneg %p434
      $region74: #{mcnet_forward.1} parent=11 // pred_check_branch
        %862 = sbr.rel (%p860) target = $region76
      $region75: #{mcnet_forward.1} parent=11 // pred_region
        _
      $region76: #{mcnet_forward.1} parent=11 // pred_fallthru
        _
      // Predicated region
      $region77: #{mcnet_forward.1} parent=11 // pred_check
        %p863 = pneg %p455
      $region78: #{mcnet_forward.1} parent=11 // pred_check_branch
        %865 = sbr.rel (%p863) target = $region80
      $region79: #{mcnet_forward.1} parent=11 // pred_region
        _
      $region80: #{mcnet_forward.1} parent=11 // pred_fallthru
        _
      // Predicated region
      $region81: #{mcnet_forward.1} parent=11 // pred_check
        %p866 = pneg %p476
      $region82: #{mcnet_forward.1} parent=11 // pred_check_branch
        %868 = sbr.rel (%p866) target = $region84
      $region83: #{mcnet_forward.1} parent=11 // pred_region
        _
      $region84: #{mcnet_forward.1} parent=11 // pred_fallthru
        _
      // Predicated region
      $region85: #{mcnet_forward.1} parent=11 // pred_check
        %p869 = pneg %p497
      $region86: #{mcnet_forward.1} parent=11 // pred_check_branch
        %871 = sbr.rel (%p869) target = $region88
      $region87: #{mcnet_forward.1} parent=11 // pred_region
        _
      $region88: #{mcnet_forward.1} parent=11 // pred_fallthru
        _
      // Predicated region
      $region89: #{mcnet_forward.1} parent=11 // pred_check
        %p872 = pneg %p518
      $region90: #{mcnet_forward.1} parent=11 // pred_check_branch
        %874 = sbr.rel (%p872) target = $region92
      $region91: #{mcnet_forward.1} parent=11 // pred_region
        _
      $region92: #{mcnet_forward.1} parent=11 // pred_fallthru
        _
      // Predicated region
      $region93: #{mcnet_forward.1} parent=11 // pred_check
        %p875 = pneg %p539
      $region94: #{mcnet_forward.1} parent=11 // pred_check_branch
        %877 = sbr.rel (%p875) target = $region96
      $region95: #{mcnet_forward.1} parent=11 // pred_region
        _
      $region96: #{mcnet_forward.1} parent=11 // pred_fallthru
        _
      // Predicated region
      $region97: #{mcnet_forward.1} parent=11 // pred_check
        %p878 = pneg %p560
      $region98: #{mcnet_forward.1} parent=11 // pred_check_branch
        %880 = sbr.rel (%p878) target = $region100
      $region99: #{mcnet_forward.1} parent=11 // pred_region
        _
      $region100: #{mcnet_forward.1} parent=11 // pred_fallthru
        _
      // Predicated region
      $region101: #{mcnet_forward.1} parent=11 // pred_check
        %p881 = pneg %p581
      $region102: #{mcnet_forward.1} parent=11 // pred_check_branch
        %883 = sbr.rel (%p881) target = $region104
      $region103: #{mcnet_forward.1} parent=11 // pred_region
        _
      $region104: #{mcnet_forward.1} parent=11 // pred_fallthru
        _
      // Predicated region
      $region105: #{mcnet_forward.1} parent=11 // pred_check
        %p884 = pneg %p602
      $region106: #{mcnet_forward.1} parent=11 // pred_check_branch
        %886 = sbr.rel (%p884) target = $region108
      $region107: #{mcnet_forward.1} parent=11 // pred_region
        _
      $region108: #{mcnet_forward.1} parent=11 // pred_fallthru
        _
      // Predicated region
      $region109: #{mcnet_forward.1} parent=11 // pred_check
        %p887 = pneg %p623
      $region110: #{mcnet_forward.1} parent=11 // pred_check_branch
        %889 = sbr.rel (%p887) target = $region112
      $region111: #{mcnet_forward.1} parent=11 // pred_region
        _
      $region112: #{mcnet_forward.1} parent=11 // pred_fallthru
        _
      // Predicated region
      $region113: #{mcnet_forward.1} parent=11 // pred_check
        %p890 = pneg %p644
      $region114: #{mcnet_forward.1} parent=11 // pred_check_branch
        %892 = sbr.rel (%p890) target = $region116
      $region115: #{mcnet_forward.1} parent=11 // pred_region
        _
      $region116: #{mcnet_forward.1} parent=11 // pred_fallthru
        _
    $region12: #{mcnet_forward.1} parent=5 // pred_fallthru
      _
    %p893 = scmp.lt.s32.totalorder %s72, 2
    // Predicated region
    $region117: #{mcnet_forward.1} parent=5 // pred_check
      %p894 = pneg %p893
    $region118: #{mcnet_forward.1} parent=5 // pred_check_branch
      %896 = sbr.rel (%p894) target = $region120
    $region119: #{mcnet_forward.1} parent=5 // pred_region
      // Predicated region
      $region121: #{mcnet_forward.1} parent=119 // pred_check
        %p897 = pneg %p92
      $region122: #{mcnet_forward.1} parent=119 // pred_check_branch
        %899 = sbr.rel (%p897) target = $region124
      $region123: #{mcnet_forward.1} parent=119 // pred_region
        %p900 = scmp.lt.s32.totalorder %s72, 1
        %s901 = scalar_select %p900, %s72, 1
        %s902 = smul.addr %s901, 8
        %s903 = smul.addr %s902, 4
        %s904 = scalar_lea.vmem %s1, %s903
      $region124: #{mcnet_forward.1} parent=119 // pred_fallthru
        _
    $region120: #{mcnet_forward.1} parent=5 // pred_fallthru
      _
    %p905 = scmp.le.s32.totalorder 1, %s72
    %p906 = scmp.lt.s32.totalorder %s72, 3
    %p907 = pnand %p905, %p906
    %p908 = pneg %p907
    // Predicated region
    $region125: #{mcnet_forward.1} parent=5 // pred_check
      _
    $region126: #{mcnet_forward.1} parent=5 // pred_check_branch
      %910 = sbr.rel (%p907) target = $region128
    $region127: #{mcnet_forward.1} parent=5 // pred_region
      %s911 = ssub.s32 %s72, 1
      %p912 = scmp.lt.s32.totalorder %s77, 1
      %s913 = scalar_select %p912, %s77, 1
      %s914 = smul.addr %s913, 8
      %s915 = smul.addr %s914, 4
      %s916 = scalar_lea.vmem %s1, %s915
      %p917 = pneg %p98
      %p918 = pneg %p95
      %p919 = pneg %p119
      %p920 = pneg %p116
      %p921 = pneg %p140
      %p922 = pneg %p137
      %p923 = pneg %p161
      %p924 = pneg %p158
      %p925 = pneg %p182
      %p926 = pneg %p179
      %p927 = pneg %p203
      %p928 = pneg %p200
      %p929 = pneg %p224
      %p930 = pneg %p221
      %p931 = pneg %p245
      %p932 = pneg %p242
      %p933 = pneg %p266
      %p934 = pneg %p263
      %p935 = pneg %p287
      %p936 = pneg %p284
      %p937 = pneg %p308
      %p938 = pneg %p305
      %p939 = pneg %p329
      %p940 = pneg %p326
      %p941 = pneg %p350
      %p942 = pneg %p347
      %p943 = pneg %p371
      %p944 = pneg %p368
      %p945 = pneg %p392
      %p946 = pneg %p389
      %p947 = pneg %p413
      %p948 = pneg %p410
      %p949 = pneg %p434
      %p950 = pneg %p431
      %p951 = pneg %p455
      %p952 = pneg %p452
      %p953 = pneg %p476
      %p954 = pneg %p473
      %p955 = pneg %p497
      %p956 = pneg %p494
      %p957 = pneg %p518
      %p958 = pneg %p515
      %p959 = pneg %p539
      %p960 = pneg %p536
      %p961 = pneg %p560
      %p962 = pneg %p557
      %p963 = pneg %p581
      %p964 = pneg %p578
      %p965 = pneg %p602
      %p966 = pneg %p599
      %p967 = pneg %p623
      %p968 = pneg %p620
      %p969 = pneg %p644
      %p970 = pneg %p641
      %p971 = pneg %p670
      %p972 = pneg %p667
      %p973 = scmp.lt.s32.totalorder %s77, 1
      %s974 = scalar_select %p973, %s77, 1
      %s975 = smul.addr %s974, 3
      %s976 = smul.addr %s975, 8
      %s977 = scalar_lea.vmem %s55, %s976
      %p978 = pneg %p696
      %p979 = pneg %p693
      %p980 = scmp.lt.s32.totalorder %s77, 1
      %s981 = scalar_select %p980, %s77, 1
      %s982 = smul.addr %s981, 3
      %s983 = smul.addr %s982, 8
      %s984 = scalar_lea.vmem %s57, %s983
      %p985 = pneg %p722
      %p986 = pneg %p719
      %p987 = scmp.lt.s32.totalorder %s77, 1
      %s988 = scalar_select %p987, %s77, 1
      %s989 = smul.addr %s988, 3
      %s990 = smul.addr %s989, 8
      %s991 = scalar_lea.vmem %s59, %s990
      %p992 = pneg %p748
      %p993 = pneg %p745
      %p994 = scmp.lt.s32.totalorder %s77, 1
      %s995 = scalar_select %p994, %s77, 1
      %s996 = smul.addr %s995, 3
      %s997 = smul.addr %s996, 8
      %s998 = scalar_lea.vmem %s61, %s997
      %p999 = pneg %p774
      %p1000 = pneg %p771
      %p1001 = scmp.lt.s32.totalorder %s77, 1
      %s1002 = scalar_select %p1001, %s77, 1
      %s1003 = smul.addr %s1002, 2
      %s1004 = scalar_lea.vmem %s63, %s1003
      %p1005 = pneg %p800
      %p1006 = pneg %p797
      %p1007 = scmp.lt.s32.totalorder %s77, 1
      %s1008 = scalar_select %p1007, %s77, 1
      %s1009 = smul.addr %s1008, 2
      %s1010 = scalar_lea.vmem %s65, %s1009
      %p1011 = scmp.lt.s32.totalorder %s77, 1
      %s1012 = scalar_select %p1011, %s77, 1
      %s1013 = smul.addr %s1012, 8
      %s1014 = smul.addr %s1013, 4
      %s1015 = scalar_lea.vmem %s1, %s1014
      %p1016 = scmp.lt.s32.totalorder %s77, 1
      %s1017 = scalar_select %p1016, %s77, 1
      %s1018 = smul.addr %s1017, 3
      %s1019 = smul.addr %s1018, 8
      %s1020 = scalar_lea.vmem %s55, %s1019
      %p1021 = scmp.lt.s32.totalorder %s77, 1
      %s1022 = scalar_select %p1021, %s77, 1
      %s1023 = smul.addr %s1022, 3
      %s1024 = smul.addr %s1023, 8
      %s1025 = scalar_lea.vmem %s57, %s1024
      %p1026 = scmp.lt.s32.totalorder %s77, 1
      %s1027 = scalar_select %p1026, %s77, 1
      %s1028 = smul.addr %s1027, 3
      %s1029 = smul.addr %s1028, 8
      %s1030 = scalar_lea.vmem %s59, %s1029
      %p1031 = scmp.lt.s32.totalorder %s77, 1
      %s1032 = scalar_select %p1031, %s77, 1
      %s1033 = smul.addr %s1032, 3
      %s1034 = smul.addr %s1033, 8
      %s1035 = scalar_lea.vmem %s61, %s1034
      %p1036 = scmp.lt.s32.totalorder %s77, 1
      %s1037 = scalar_select %p1036, %s77, 1
      %s1038 = smul.addr %s1037, 2
      %s1039 = scalar_lea.vmem %s63, %s1038
      %p1040 = scmp.lt.s32.totalorder %s77, 1
      %s1041 = scalar_select %p1040, %s77, 1
      %s1042 = smul.addr %s1041, 2
      %s1043 = scalar_lea.vmem %s65, %s1042
      %v1045 = vld [vmem:[%s3] sm:$0xf]
      %v1046 = vld [vmem:[%s1015] sm:$0xff]
      %v1047 = vld [vmem:[%s1015 + $0x8] sm:$0xff]
      %v1048 = vld [vmem:[%s1015 + $0x10] sm:$0xff]
      %v1049 = vld [vmem:[%s1015 + $0x18] sm:$0xff]
      %v1050 = vld [vmem:[%s5] sm:$0xff]
      %1052 = vset.pattern.permute.xlu0 0
      %1053 = vperm.xlu0 %1052, %v1050
      %v1054 = vpop.permute.xlu0 %1053
      %v1060 = vunpack.c.l.b16 %v1046
      %v1061 = vunpack.c.h.b16 %v1046
      %v1062 = vunpack.c.l.b16 %v1047
      %v1063 = vunpack.c.h.b16 %v1047
      %v1064 = vunpack.c.l.b16 %v1048
      %v1065 = vunpack.c.h.b16 %v1048
      %v1066 = vunpack.c.l.b16 %v1049
      %v1067 = vunpack.c.h.b16 %v1049
      %v1068 = vpack.c.b16 %v1062, %v1060
      %v1069 = vpack.c.b16 %v1063, %v1061
      %v1070 = vpack.c.b16 %v1066, %v1064
      %v1071 = vpack.c.b16 %v1067, %v1065
      %vm1076 = vcmask 261120
      %v1078 = vsel %vm1076, %v1045, 0
      %1080 = vmatprep.subr.bf16.mxu0 %v1069
      %1081 = vmatpush1.bf16.msra.mxu0 %v1068
      %1082 = vmatprep.subr.bf16.mxu0 %v1071
      %1083 = vmatpush1.bf16.msra.mxu0 %v1070
      %1084 = vmatprep.subr.bf16.mxu0 0
      %1085 = vmatpush1.bf16.msra.mxu0 0
      %1086 = vmatprep.subr.bf16.mxu0 0
      %1087 = vmatpush1.bf16.msra.mxu0 0
      %1088 = vmatprep.subr.bf16.mxu0 0
      %1089 = vmatpush1.bf16.msra.mxu0 0
      %1090 = vmatprep.subr.bf16.mxu0 0
      %1091 = vmatpush1.bf16.msra.mxu0 0
      %1092 = vmatprep.subr.bf16.mxu0 0
      %1093 = vmatpush1.bf16.msra.mxu0 0
      %1094 = vmatprep.subr.bf16.mxu0 0
      %1095 = vmatpush1.bf16.msra.mxu0 0
      %1096 = vmatprep.subr.bf16.mxu0 0
      %1097 = vmatpush1.bf16.msra.mxu0 0
      %1098 = vmatprep.subr.bf16.mxu0 0
      %1099 = vmatpush1.bf16.msra.mxu0 0
      %1100 = vmatprep.subr.bf16.mxu0 0
      %1101 = vmatpush1.bf16.msra.mxu0 0
      %1102 = vmatprep.subr.bf16.mxu0 0
      %1103 = vmatpush1.bf16.msra.mxu0 0
      %1104 = vmatprep.subr.bf16.mxu0 0
      %1105 = vmatpush1.bf16.msra.mxu0 0
      %1106 = vmatprep.subr.bf16.mxu0 0
      %1107 = vmatpush1.bf16.msra.mxu0 0
      %1108 = vmatprep.subr.bf16.mxu0 0
      %1109 = vmatpush1.bf16.msra.mxu0 0
      %1110 = vmatprep.subr.bf16.mxu0 0
      %1111 = vmatpush1.bf16.msra.mxu0 0
      %1112 = vmatprep.mubr.bf16.mxu0 0
      %1113 = vmatmul.mubr.bf16.gmra.mrb[0].mxu0 %v1078
      %v1114 = vpop.f32.mrb[0].mxu0
      %v1115 = vadd.f32 %v1054, %v1114
      %v1116 = vpop.f32.mrb[0].mxu0
      %v1117 = vadd.f32 %v1054, %v1116
      %v1118 = vpop.f32.mrb[0].mxu0
      %v1119 = vpop.f32.mrb[0].mxu0
      %1120 = vdwg.mxu0
      %v1121 = vpack.c.bf16 %v1115, %v1115
      %v1122 = vpack.c.bf16 %v1117, %v1117
      %v1123 = vld [vmem:[%s9] sm:$0xff]
      %v1124 = vld [vmem:[%s9 + $0x8] sm:$0xff]
      %v1125 = vld [vmem:[%s11] sm:$0xf]
      %v1126 = vld [vmem:[%s11 + $0x4] sm:$0xf]
      %v1127 = vld [vmem:[%s11 + $0x8] sm:$0xf]
      %v1128 = vld [vmem:[%s11 + $0xc] sm:$0xf]
      %v1129 = vld [vmem:[%s11 + $0x10] sm:$0xf]
      %v1130 = vld [vmem:[%s11 + $0x14] sm:$0xf]
      %v1131 = vld [vmem:[%s11 + $0x18] sm:$0xf]
      %v1132 = vld [vmem:[%s11 + $0x1c] sm:$0xf]
      %v1133 = vld [vmem:[%s11 + $0x20] sm:$0xf]
      %v1134 = vld [vmem:[%s11 + $0x24] sm:$0xf]
      %v1135 = vld [vmem:[%s11 + $0x28] sm:$0xf]
      %v1136 = vld [vmem:[%s11 + $0x2c] sm:$0xf]
      %v1137 = vld [vmem:[%s11 + $0x30] sm:$0xf]
      %v1138 = vld [vmem:[%s11 + $0x34] sm:$0xf]
      %v1139 = vld [vmem:[%s11 + $0x38] sm:$0xf]
      %v1140 = vld [vmem:[%s11 + $0x3c] sm:$0xf]
      %v1141 = vld [vmem:[%s11 + $0x40] sm:$0xf]
      %v1142 = vld [vmem:[%s11 + $0x44] sm:$0xf]
      %v1143 = vld [vmem:[%s11 + $0x48] sm:$0xf]
      %v1144 = vld [vmem:[%s11 + $0x4c] sm:$0xf]
      %v1145 = vld [vmem:[%s11 + $0x50] sm:$0xf]
      %v1146 = vld [vmem:[%s11 + $0x54] sm:$0xf]
      %v1147 = vld [vmem:[%s11 + $0x58] sm:$0xf]
      %v1148 = vld [vmem:[%s11 + $0x5c] sm:$0xf]
      %v1149 = vld [vmem:[%s11 + $0x60] sm:$0xf]
      %v1150 = vld [vmem:[%s11 + $0x64] sm:$0xf]
      %v1151 = vld [vmem:[%s11 + $0x68] sm:$0xf]
      %v1152 = vld [vmem:[%s11 + $0x6c] sm:$0xf]
      %v1153 = vld [vmem:[%s11 + $0x70] sm:$0xf]
      %v1154 = vld [vmem:[%s11 + $0x74] sm:$0xf]
      %v1155 = vld [vmem:[%s11 + $0x78] sm:$0xf]
      %v1156 = vld [vmem:[%s11 + $0x7c] sm:$0xf]
      %v1189 = vunpack.c.l.b16 %v1125
      %v1190 = vunpack.c.l.b16 %v1126
      %v1191 = vunpack.c.l.b16 %v1127
      %v1192 = vunpack.c.l.b16 %v1128
      %v1193 = vunpack.c.l.b16 %v1129
      %v1194 = vunpack.c.l.b16 %v1130
      %v1195 = vunpack.c.l.b16 %v1131
      %v1196 = vunpack.c.l.b16 %v1132
      %v1197 = vunpack.c.l.b16 %v1133
      %v1198 = vunpack.c.l.b16 %v1134
      %v1199 = vunpack.c.l.b16 %v1135
      %v1200 = vunpack.c.l.b16 %v1136
      %v1201 = vunpack.c.l.b16 %v1137
      %v1202 = vunpack.c.l.b16 %v1138
      %v1203 = vunpack.c.l.b16 %v1139
      %v1204 = vunpack.c.l.b16 %v1140
      %v1205 = vunpack.c.l.b16 %v1141
      %v1206 = vunpack.c.l.b16 %v1142
      %v1207 = vunpack.c.l.b16 %v1143
      %v1208 = vunpack.c.l.b16 %v1144
      %v1209 = vunpack.c.l.b16 %v1145
      %v1210 = vunpack.c.l.b16 %v1146
      %v1211 = vunpack.c.l.b16 %v1147
      %v1212 = vunpack.c.l.b16 %v1148
      %v1213 = vunpack.c.l.b16 %v1149
      %v1214 = vunpack.c.l.b16 %v1150
      %v1215 = vunpack.c.l.b16 %v1151
      %v1216 = vunpack.c.l.b16 %v1152
      %v1217 = vunpack.c.l.b16 %v1153
      %v1218 = vunpack.c.l.b16 %v1154
      %v1219 = vunpack.c.l.b16 %v1155
      %v1220 = vunpack.c.l.b16 %v1156
      %v1221 = vpack.c.b16 %v1190, %v1189
      %v1222 = vpack.c.b16 %v1192, %v1191
      %v1223 = vpack.c.b16 %v1194, %v1193
      %v1224 = vpack.c.b16 %v1196, %v1195
      %v1225 = vpack.c.b16 %v1198, %v1197
      %v1226 = vpack.c.b16 %v1200, %v1199
      %v1227 = vpack.c.b16 %v1202, %v1201
      %v1228 = vpack.c.b16 %v1204, %v1203
      %v1229 = vpack.c.b16 %v1206, %v1205
      %v1230 = vpack.c.b16 %v1208, %v1207
      %v1231 = vpack.c.b16 %v1210, %v1209
      %v1232 = vpack.c.b16 %v1212, %v1211
      %v1233 = vpack.c.b16 %v1214, %v1213
      %v1234 = vpack.c.b16 %v1216, %v1215
      %v1235 = vpack.c.b16 %v1218, %v1217
      %v1236 = vpack.c.b16 %v1220, %v1219
      %1253 = vmatprep.subr.bf16.mxu0 0
      %1254 = vmatpush1.bf16.msra.mxu0 %v1221
      %1255 = vmatprep.subr.bf16.mxu0 0
      %1256 = vmatpush1.bf16.msra.mxu0 %v1222
      %1257 = vmatprep.subr.bf16.mxu0 0
      %1258 = vmatpush1.bf16.msra.mxu0 %v1223
      %1259 = vmatprep.subr.bf16.mxu0 0
      %1260 = vmatpush1.bf16.msra.mxu0 %v1224
      %1261 = vmatprep.subr.bf16.mxu0 0
      %1262 = vmatpush1.bf16.msra.mxu0 %v1225
      %1263 = vmatprep.subr.bf16.mxu0 0
      %1264 = vmatpush1.bf16.msra.mxu0 %v1226
      %1265 = vmatprep.subr.bf16.mxu0 0
      %1266 = vmatpush1.bf16.msra.mxu0 %v1227
      %1267 = vmatprep.subr.bf16.mxu0 0
      %1268 = vmatpush1.bf16.msra.mxu0 %v1228
      %1269 = vmatprep.subr.bf16.mxu0 0
      %1270 = vmatpush1.bf16.msra.mxu0 %v1229
      %1271 = vmatprep.subr.bf16.mxu0 0
      %1272 = vmatpush1.bf16.msra.mxu0 %v1230
      %1273 = vmatprep.subr.bf16.mxu0 0
      %1274 = vmatpush1.bf16.msra.mxu0 %v1231
      %1275 = vmatprep.subr.bf16.mxu0 0
      %1276 = vmatpush1.bf16.msra.mxu0 %v1232
      %1277 = vmatprep.subr.bf16.mxu0 0
      %1278 = vmatpush1.bf16.msra.mxu0 %v1233
      %1279 = vmatprep.subr.bf16.mxu0 0
      %1280 = vmatpush1.bf16.msra.mxu0 %v1234
      %1281 = vmatprep.subr.bf16.mxu0 0
      %1282 = vmatpush1.bf16.msra.mxu0 %v1235
      %1283 = vmatprep.subr.bf16.mxu0 0
      %1284 = vmatpush1.bf16.msra.mxu0 %v1236
      %1285 = vmatprep.mubr.bf16.mxu0 %v1122
      %1286 = vmatmul.mubr.bf16.gmra.mrb[0].mxu0 %v1121
      %v1287 = vpop.f32.mrb[0].mxu0
      %v1288 = vadd.f32 0.0, %v1287
      %v1289 = vpop.f32.mrb[0].mxu0
      %v1290 = vpop.f32.mrb[0].mxu0
      %v1291 = vpop.f32.mrb[0].mxu0
      %1292 = vdwg.mxu0
      %v1293 = vpack.c.bf16 %v1288, %v1288
      %v1294 = vld [vmem:[%s7] sm:$0xf]
      %v1295 = vld [vmem:[%s7 + $0x4] sm:$0xf]
      %v1298 = vunpack.c.l.b16 %v1294
      %v1299 = vunpack.c.l.b16 %v1295
      %v1300 = vpack.c.b16 %v1299, %v1298
      %vm1301 = vcmask 64512
      %v1303 = vsel %vm1301, %v1300, 0
      %vm1305 = vcmask 1043456
      %v1307 = vsel %vm1305, %v1293, 0
      %1309 = vmatprep.subr.bf16.mxu0 0
      %1310 = vmatpush1.bf16.msra.mxu0 %v1307
      %1311 = vmatprep.subr.bf16.mxu0 0
      %1312 = vmatpush1.bf16.msra.mxu0 0
      %1313 = vmatprep.subr.bf16.mxu0 0
      %1314 = vmatpush1.bf16.msra.mxu0 0
      %1315 = vmatprep.subr.bf16.mxu0 0
      %1316 = vmatpush1.bf16.msra.mxu0 0
      %1317 = vmatprep.subr.bf16.mxu0 0
      %1318 = vmatpush1.bf16.msra.mxu0 0
      %1319 = vmatprep.subr.bf16.mxu0 0
      %1320 = vmatpush1.bf16.msra.mxu0 0
      %1321 = vmatprep.subr.bf16.mxu0 0
      %1322 = vmatpush1.bf16.msra.mxu0 0
      %1323 = vmatprep.subr.bf16.mxu0 0
      %1324 = vmatpush1.bf16.msra.mxu0 0
      %1325 = vmatprep.subr.bf16.mxu0 0
      %1326 = vmatpush1.bf16.msra.mxu0 0
      %1327 = vmatprep.subr.bf16.mxu0 0
      %1328 = vmatpush1.bf16.msra.mxu0 0
      %1329 = vmatprep.subr.bf16.mxu0 0
      %1330 = vmatpush1.bf16.msra.mxu0 0
      %1331 = vmatprep.subr.bf16.mxu0 0
      %1332 = vmatpush1.bf16.msra.mxu0 0
      %1333 = vmatprep.subr.bf16.mxu0 0
      %1334 = vmatpush1.bf16.msra.mxu0 0
      %1335 = vmatprep.subr.bf16.mxu0 0
      %1336 = vmatpush1.bf16.msra.mxu0 0
      %1337 = vmatprep.subr.bf16.mxu0 0
      %1338 = vmatpush1.bf16.msra.mxu0 0
      %1339 = vmatprep.subr.bf16.mxu0 0
      %1340 = vmatpush1.bf16.msra.mxu0 0
      %1341 = vmatprep.mubr.bf16.mxu0 0
      %1342 = vmatmul.mubr.bf16.gmra.mrb[0].mxu0 %v1303
      %v1343 = vpop.f32.mrb[0].mxu0
      %v1344 = vadd.f32 0.0, %v1343
      %v1345 = vpop.f32.mrb[0].mxu0
      %v1346 = vpop.f32.mrb[0].mxu0
      %v1347 = vadd.f32 0.0, %v1346
      %v1348 = vpop.f32.mrb[0].mxu0
      %1349 = vdwg.mxu0
      %1351 = vset.pattern.permute.xlu0 0
      %1352 = vperm.xlu0 %1351, %v1123
      %v1353 = vpop.permute.xlu0 %1352
      %1356 = vset.pattern.permute.xlu0 0
      %1357 = vperm.xlu0 %1356, %v1124
      %v1358 = vpop.permute.xlu0 %1357
      %v1360 = vadd.f32 %v1353, %v1344
      %v1361 = vadd.f32 %v1358, %v1347
      %s1362 = scalar_lea.vmem %s11, 128
      %v1363 = vld [vmem:[%s1362] sm:$0xf]
      %v1364 = vld [vmem:[%s1362 + $0x4] sm:$0xf]
      %v1365 = vld [vmem:[%s1362 + $0x8] sm:$0xf]
      %v1366 = vld [vmem:[%s1362 + $0xc] sm:$0xf]
      %v1367 = vld [vmem:[%s1362 + $0x10] sm:$0xf]
      %v1368 = vld [vmem:[%s1362 + $0x14] sm:$0xf]
      %v1369 = vld [vmem:[%s1362 + $0x18] sm:$0xf]
      %v1370 = vld [vmem:[%s1362 + $0x1c] sm:$0xf]
      %v1371 = vld [vmem:[%s1362 + $0x20] sm:$0xf]
      %v1372 = vld [vmem:[%s1362 + $0x24] sm:$0xf]
      %v1373 = vld [vmem:[%s1362 + $0x28] sm:$0xf]
      %v1374 = vld [vmem:[%s1362 + $0x2c] sm:$0xf]
      %v1375 = vld [vmem:[%s1362 + $0x30] sm:$0xf]
      %v1376 = vld [vmem:[%s1362 + $0x34] sm:$0xf]
      %v1377 = vld [vmem:[%s1362 + $0x38] sm:$0xf]
      %v1378 = vld [vmem:[%s1362 + $0x3c] sm:$0xf]
      %v1379 = vld [vmem:[%s1362 + $0x40] sm:$0xf]
      %v1380 = vld [vmem:[%s1362 + $0x44] sm:$0xf]
      %v1381 = vld [vmem:[%s1362 + $0x48] sm:$0xf]
      %v1382 = vld [vmem:[%s1362 + $0x4c] sm:$0xf]
      %v1383 = vld [vmem:[%s1362 + $0x50] sm:$0xf]
      %v1384 = vld [vmem:[%s1362 + $0x54] sm:$0xf]
      %v1385 = vld [vmem:[%s1362 + $0x58] sm:$0xf]
      %v1386 = vld [vmem:[%s1362 + $0x5c] sm:$0xf]
      %v1387 = vld [vmem:[%s1362 + $0x60] sm:$0xf]
      %v1388 = vld [vmem:[%s1362 + $0x64] sm:$0xf]
      %v1389 = vld [vmem:[%s1362 + $0x68] sm:$0xf]
      %v1390 = vld [vmem:[%s1362 + $0x6c] sm:$0xf]
      %v1391 = vld [vmem:[%s1362 + $0x70] sm:$0xf]
      %v1392 = vld [vmem:[%s1362 + $0x74] sm:$0xf]
      %v1393 = vld [vmem:[%s1362 + $0x78] sm:$0xf]
      %v1394 = vld [vmem:[%s1362 + $0x7c] sm:$0xf]
      %v1427 = vunpack.c.l.b16 %v1363
      %v1428 = vunpack.c.l.b16 %v1364
      %v1429 = vunpack.c.l.b16 %v1365
      %v1430 = vunpack.c.l.b16 %v1366
      %v1431 = vunpack.c.l.b16 %v1367
      %v1432 = vunpack.c.l.b16 %v1368
      %v1433 = vunpack.c.l.b16 %v1369
      %v1434 = vunpack.c.l.b16 %v1370
      %v1435 = vunpack.c.l.b16 %v1371
      %v1436 = vunpack.c.l.b16 %v1372
      %v1437 = vunpack.c.l.b16 %v1373
      %v1438 = vunpack.c.l.b16 %v1374
      %v1439 = vunpack.c.l.b16 %v1375
      %v1440 = vunpack.c.l.b16 %v1376
      %v1441 = vunpack.c.l.b16 %v1377
      %v1442 = vunpack.c.l.b16 %v1378
      %v1443 = vunpack.c.l.b16 %v1379
      %v1444 = vunpack.c.l.b16 %v1380
      %v1445 = vunpack.c.l.b16 %v1381
      %v1446 = vunpack.c.l.b16 %v1382
      %v1447 = vunpack.c.l.b16 %v1383
      %v1448 = vunpack.c.l.b16 %v1384
      %v1449 = vunpack.c.l.b16 %v1385
      %v1450 = vunpack.c.l.b16 %v1386
      %v1451 = vunpack.c.l.b16 %v1387
      %v1452 = vunpack.c.l.b16 %v1388
      %v1453 = vunpack.c.l.b16 %v1389
      %v1454 = vunpack.c.l.b16 %v1390
      %v1455 = vunpack.c.l.b16 %v1391
      %v1456 = vunpack.c.l.b16 %v1392
      %v1457 = vunpack.c.l.b16 %v1393
      %v1458 = vunpack.c.l.b16 %v1394
      %v1459 = vpack.c.b16 %v1428, %v1427
      %v1460 = vpack.c.b16 %v1430, %v1429
      %v1461 = vpack.c.b16 %v1432, %v1431
      %v1462 = vpack.c.b16 %v1434, %v1433
      %v1463 = vpack.c.b16 %v1436, %v1435
      %v1464 = vpack.c.b16 %v1438, %v1437
      %v1465 = vpack.c.b16 %v1440, %v1439
      %v1466 = vpack.c.b16 %v1442, %v1441
      %v1467 = vpack.c.b16 %v1444, %v1443
      %v1468 = vpack.c.b16 %v1446, %v1445
      %v1469 = vpack.c.b16 %v1448, %v1447
      %v1470 = vpack.c.b16 %v1450, %v1449
      %v1471 = vpack.c.b16 %v1452, %v1451
      %v1472 = vpack.c.b16 %v1454, %v1453
      %v1473 = vpack.c.b16 %v1456, %v1455
      %v1474 = vpack.c.b16 %v1458, %v1457
      %1491 = vmatprep.subr.bf16.mxu0 0
      %1492 = vmatpush1.bf16.msra.mxu0 %v1459
      %1493 = vmatprep.subr.bf16.mxu0 0
      %1494 = vmatpush1.bf16.msra.mxu0 %v1460
      %1495 = vmatprep.subr.bf16.mxu0 0
      %1496 = vmatpush1.bf16.msra.mxu0 %v1461
      %1497 = vmatprep.subr.bf16.mxu0 0
      %1498 = vmatpush1.bf16.msra.mxu0 %v1462
      %1499 = vmatprep.subr.bf16.mxu0 0
      %1500 = vmatpush1.bf16.msra.mxu0 %v1463
      %1501 = vmatprep.subr.bf16.mxu0 0
      %1502 = vmatpush1.bf16.msra.mxu0 %v1464
      %1503 = vmatprep.subr.bf16.mxu0 0
      %1504 = vmatpush1.bf16.msra.mxu0 %v1465
      %1505 = vmatprep.subr.bf16.mxu0 0
      %1506 = vmatpush1.bf16.msra.mxu0 %v1466
      %1507 = vmatprep.subr.bf16.mxu0 0
      %1508 = vmatpush1.bf16.msra.mxu0 %v1467
      %1509 = vmatprep.subr.bf16.mxu0 0
      %1510 = vmatpush1.bf16.msra.mxu0 %v1468
      %1511 = vmatprep.subr.bf16.mxu0 0
      %1512 = vmatpush1.bf16.msra.mxu0 %v1469
      %1513 = vmatprep.subr.bf16.mxu0 0
      %1514 = vmatpush1.bf16.msra.mxu0 %v1470
      %1515 = vmatprep.subr.bf16.mxu0 0
      %1516 = vmatpush1.bf16.msra.mxu0 %v1471
      %1517 = vmatprep.subr.bf16.mxu0 0
      %1518 = vmatpush1.bf16.msra.mxu0 %v1472
      %1519 = vmatprep.subr.bf16.mxu0 0
      %1520 = vmatpush1.bf16.msra.mxu0 %v1473
      %1521 = vmatprep.subr.bf16.mxu0 0
      %1522 = vmatpush1.bf16.msra.mxu0 %v1474
      %1523 = vmatprep.mubr.bf16.mxu0 %v1122
      %1524 = vmatmul.mubr.bf16.gmra.mrb[0].mxu0 %v1121
      %v1525 = vpop.f32.mrb[0].mxu0
      %v1526 = vadd.f32 0.0, %v1525
      %v1527 = vpop.f32.mrb[0].mxu0
      %v1528 = vpop.f32.mrb[0].mxu0
      %v1529 = vpop.f32.mrb[0].mxu0
      %1530 = vdwg.mxu0
      %v1531 = vpack.c.bf16 %v1526, %v1526
      %s1532 = scalar_lea.vmem %s7, 8
      %v1533 = vld [vmem:[%s1532] sm:$0xf]
      %v1534 = vld [vmem:[%s1532 + $0x4] sm:$0xf]
      %v1537 = vunpack.c.l.b16 %v1533
      %v1538 = vunpack.c.l.b16 %v1534
      %v1539 = vpack.c.b16 %v1538, %v1537
      %v1541 = vsel %vm1301, %v1539, 0
      %v1544 = vsel %vm1305, %v1531, 0
      %1546 = vmatprep.subr.bf16.mxu0 0
      %1547 = vmatpush1.bf16.msra.mxu0 %v1544
      %1548 = vmatprep.subr.bf16.mxu0 0
      %1549 = vmatpush1.bf16.msra.mxu0 0
      %1550 = vmatprep.subr.bf16.mxu0 0
      %1551 = vmatpush1.bf16.msra.mxu0 0
      %1552 = vmatprep.subr.bf16.mxu0 0
      %1553 = vmatpush1.bf16.msra.mxu0 0
      %1554 = vmatprep.subr.bf16.mxu0 0
      %1555 = vmatpush1.bf16.msra.mxu0 0
      %1556 = vmatprep.subr.bf16.mxu0 0
      %1557 = vmatpush1.bf16.msra.mxu0 0
      %1558 = vmatprep.subr.bf16.mxu0 0
      %1559 = vmatpush1.bf16.msra.mxu0 0
      %1560 = vmatprep.subr.bf16.mxu0 0
      %1561 = vmatpush1.bf16.msra.mxu0 0
      %1562 = vmatprep.subr.bf16.mxu0 0
      %1563 = vmatpush1.bf16.msra.mxu0 0
      %1564 = vmatprep.subr.bf16.mxu0 0
      %1565 = vmatpush1.bf16.msra.mxu0 0
      %1566 = vmatprep.subr.bf16.mxu0 0
      %1567 = vmatpush1.bf16.msra.mxu0 0
      %1568 = vmatprep.subr.bf16.mxu0 0
      %1569 = vmatpush1.bf16.msra.mxu0 0
      %1570 = vmatprep.subr.bf16.mxu0 0
      %1571 = vmatpush1.bf16.msra.mxu0 0
      %1572 = vmatprep.subr.bf16.mxu0 0
      %1573 = vmatpush1.bf16.msra.mxu0 0
      %1574 = vmatprep.subr.bf16.mxu0 0
      %1575 = vmatpush1.bf16.msra.mxu0 0
      %1576 = vmatprep.subr.bf16.mxu0 0
      %1577 = vmatpush1.bf16.msra.mxu0 0
      %1578 = vmatprep.mubr.bf16.mxu0 0
      %1579 = vmatmul.mubr.bf16.gmra.mrb[0].mxu0 %v1541
      %v1580 = vpop.f32.mrb[0].mxu0
      %v1581 = vadd.f32 0.0, %v1580
      %v1582 = vpop.f32.mrb[0].mxu0
      %v1583 = vpop.f32.mrb[0].mxu0
      %v1584 = vadd.f32 0.0, %v1583
      %v1585 = vpop.f32.mrb[0].mxu0
      %1586 = vdwg.mxu0
      %v1587 = vadd.f32 %v1360, %v1581
      %v1588 = vadd.f32 %v1361, %v1584
      %s1589 = scalar_lea.vmem %s11, 256
      %v1590 = vld [vmem:[%s1589] sm:$0xf]
      %v1591 = vld [vmem:[%s1589 + $0x4] sm:$0xf]
      %v1592 = vld [vmem:[%s1589 + $0x8] sm:$0xf]
      %v1593 = vld [vmem:[%s1589 + $0xc] sm:$0xf]
      %v1594 = vld [vmem:[%s1589 + $0x10] sm:$0xf]
      %v1595 = vld [vmem:[%s1589 + $0x14] sm:$0xf]
      %v1596 = vld [vmem:[%s1589 + $0x18] sm:$0xf]
      %v1597 = vld [vmem:[%s1589 + $0x1c] sm:$0xf]
      %v1598 = vld [vmem:[%s1589 + $0x20] sm:$0xf]
      %v1599 = vld [vmem:[%s1589 + $0x24] sm:$0xf]
      %v1600 = vld [vmem:[%s1589 + $0x28] sm:$0xf]
      %v1601 = vld [vmem:[%s1589 + $0x2c] sm:$0xf]
      %v1602 = vld [vmem:[%s1589 + $0x30] sm:$0xf]
      %v1603 = vld [vmem:[%s1589 + $0x34] sm:$0xf]
      %v1604 = vld [vmem:[%s1589 + $0x38] sm:$0xf]
      %v1605 = vld [vmem:[%s1589 + $0x3c] sm:$0xf]
      %v1606 = vld [vmem:[%s1589 + $0x40] sm:$0xf]
      %v1607 = vld [vmem:[%s1589 + $0x44] sm:$0xf]
      %v1608 = vld [vmem:[%s1589 + $0x48] sm:$0xf]
      %v1609 = vld [vmem:[%s1589 + $0x4c] sm:$0xf]
      %v1610 = vld [vmem:[%s1589 + $0x50] sm:$0xf]
      %v1611 = vld [vmem:[%s1589 + $0x54] sm:$0xf]
      %v1612 = vld [vmem:[%s1589 + $0x58] sm:$0xf]
      %v1613 = vld [vmem:[%s1589 + $0x5c] sm:$0xf]
      %v1614 = vld [vmem:[%s1589 + $0x60] sm:$0xf]
      %v1615 = vld [vmem:[%s1589 + $0x64] sm:$0xf]
      %v1616 = vld [vmem:[%s1589 + $0x68] sm:$0xf]
      %v1617 = vld [vmem:[%s1589 + $0x6c] sm:$0xf]
      %v1618 = vld [vmem:[%s1589 + $0x70] sm:$0xf]
      %v1619 = vld [vmem:[%s1589 + $0x74] sm:$0xf]
      %v1620 = vld [vmem:[%s1589 + $0x78] sm:$0xf]
      %v1621 = vld [vmem:[%s1589 + $0x7c] sm:$0xf]
      %v1654 = vunpack.c.l.b16 %v1590
      %v1655 = vunpack.c.l.b16 %v1591
      %v1656 = vunpack.c.l.b16 %v1592
      %v1657 = vunpack.c.l.b16 %v1593
      %v1658 = vunpack.c.l.b16 %v1594
      %v1659 = vunpack.c.l.b16 %v1595
      %v1660 = vunpack.c.l.b16 %v1596
      %v1661 = vunpack.c.l.b16 %v1597
      %v1662 = vunpack.c.l.b16 %v1598
      %v1663 = vunpack.c.l.b16 %v1599
      %v1664 = vunpack.c.l.b16 %v1600
      %v1665 = vunpack.c.l.b16 %v1601
      %v1666 = vunpack.c.l.b16 %v1602
      %v1667 = vunpack.c.l.b16 %v1603
      %v1668 = vunpack.c.l.b16 %v1604
      %v1669 = vunpack.c.l.b16 %v1605
      %v1670 = vunpack.c.l.b16 %v1606
      %v1671 = vunpack.c.l.b16 %v1607
      %v1672 = vunpack.c.l.b16 %v1608
      %v1673 = vunpack.c.l.b16 %v1609
      %v1674 = vunpack.c.l.b16 %v1610
      %v1675 = vunpack.c.l.b16 %v1611
      %v1676 = vunpack.c.l.b16 %v1612
      %v1677 = vunpack.c.l.b16 %v1613
      %v1678 = vunpack.c.l.b16 %v1614
      %v1679 = vunpack.c.l.b16 %v1615
      %v1680 = vunpack.c.l.b16 %v1616
      %v1681 = vunpack.c.l.b16 %v1617
      %v1682 = vunpack.c.l.b16 %v1618
      %v1683 = vunpack.c.l.b16 %v1619
      %v1684 = vunpack.c.l.b16 %v1620
      %v1685 = vunpack.c.l.b16 %v1621
      %v1686 = vpack.c.b16 %v1655, %v1654
      %v1687 = vpack.c.b16 %v1657, %v1656
      %v1688 = vpack.c.b16 %v1659, %v1658
      %v1689 = vpack.c.b16 %v1661, %v1660
      %v1690 = vpack.c.b16 %v1663, %v1662
      %v1691 = vpack.c.b16 %v1665, %v1664
      %v1692 = vpack.c.b16 %v1667, %v1666
      %v1693 = vpack.c.b16 %v1669, %v1668
      %v1694 = vpack.c.b16 %v1671, %v1670
      %v1695 = vpack.c.b16 %v1673, %v1672
      %v1696 = vpack.c.b16 %v1675, %v1674
      %v1697 = vpack.c.b16 %v1677, %v1676
      %v1698 = vpack.c.b16 %v1679, %v1678
      %v1699 = vpack.c.b16 %v1681, %v1680
      %v1700 = vpack.c.b16 %v1683, %v1682
      %v1701 = vpack.c.b16 %v1685, %v1684
      %1718 = vmatprep.subr.bf16.mxu0 0
      %1719 = vmatpush1.bf16.msra.mxu0 %v1686
      %1720 = vmatprep.subr.bf16.mxu0 0
      %1721 = vmatpush1.bf16.msra.mxu0 %v1687
      %1722 = vmatprep.subr.bf16.mxu0 0
      %1723 = vmatpush1.bf16.msra.mxu0 %v1688
      %1724 = vmatprep.subr.bf16.mxu0 0
      %1725 = vmatpush1.bf16.msra.mxu0 %v1689
      %1726 = vmatprep.subr.bf16.mxu0 0
      %1727 = vmatpush1.bf16.msra.mxu0 %v1690
      %1728 = vmatprep.subr.bf16.mxu0 0
      %1729 = vmatpush1.bf16.msra.mxu0 %v1691
      %1730 = vmatprep.subr.bf16.mxu0 0
      %1731 = vmatpush1.bf16.msra.mxu0 %v1692
      %1732 = vmatprep.subr.bf16.mxu0 0
      %1733 = vmatpush1.bf16.msra.mxu0 %v1693
      %1734 = vmatprep.subr.bf16.mxu0 0
      %1735 = vmatpush1.bf16.msra.mxu0 %v1694
      %1736 = vmatprep.subr.bf16.mxu0 0
      %1737 = vmatpush1.bf16.msra.mxu0 %v1695
      %1738 = vmatprep.subr.bf16.mxu0 0
      %1739 = vmatpush1.bf16.msra.mxu0 %v1696
      %1740 = vmatprep.subr.bf16.mxu0 0
      %1741 = vmatpush1.bf16.msra.mxu0 %v1697
      %1742 = vmatprep.subr.bf16.mxu0 0
      %1743 = vmatpush1.bf16.msra.mxu0 %v1698
      %1744 = vmatprep.subr.bf16.mxu0 0
      %1745 = vmatpush1.bf16.msra.mxu0 %v1699
      %1746 = vmatprep.subr.bf16.mxu0 0
      %1747 = vmatpush1.bf16.msra.mxu0 %v1700
      %1748 = vmatprep.subr.bf16.mxu0 0
      %1749 = vmatpush1.bf16.msra.mxu0 %v1701
      %1750 = vmatprep.mubr.bf16.mxu0 %v1122
      %1751 = vmatmul.mubr.bf16.gmra.mrb[0].mxu0 %v1121
      %v1752 = vpop.f32.mrb[0].mxu0
      %v1753 = vadd.f32 0.0, %v1752
      %v1754 = vpop.f32.mrb[0].mxu0
      %v1755 = vpop.f32.mrb[0].mxu0
      %v1756 = vpop.f32.mrb[0].mxu0
      %1757 = vdwg.mxu0
      %v1758 = vpack.c.bf16 %v1753, %v1753
      %s1759 = scalar_lea.vmem %s7, 16
      %v1760 = vld [vmem:[%s1759] sm:$0xf]
      %v1761 = vld [vmem:[%s1759 + $0x4] sm:$0xf]
      %v1764 = vunpack.c.l.b16 %v1760
      %v1765 = vunpack.c.l.b16 %v1761
      %v1766 = vpack.c.b16 %v1765, %v1764
      %v1768 = vsel %vm1301, %v1766, 0
      %v1771 = vsel %vm1305, %v1758, 0
      %1773 = vmatprep.subr.bf16.mxu0 0
      %1774 = vmatpush1.bf16.msra.mxu0 %v1771
      %1775 = vmatprep.subr.bf16.mxu0 0
      %1776 = vmatpush1.bf16.msra.mxu0 0
      %1777 = vmatprep.subr.bf16.mxu0 0
      %1778 = vmatpush1.bf16.msra.mxu0 0
      %1779 = vmatprep.subr.bf16.mxu0 0
      %1780 = vmatpush1.bf16.msra.mxu0 0
      %1781 = vmatprep.subr.bf16.mxu0 0
      %1782 = vmatpush1.bf16.msra.mxu0 0
      %1783 = vmatprep.subr.bf16.mxu0 0
      %1784 = vmatpush1.bf16.msra.mxu0 0
      %1785 = vmatprep.subr.bf16.mxu0 0
      %1786 = vmatpush1.bf16.msra.mxu0 0
      %1787 = vmatprep.subr.bf16.mxu0 0
      %1788 = vmatpush1.bf16.msra.mxu0 0
      %1789 = vmatprep.subr.bf16.mxu0 0
      %1790 = vmatpush1.bf16.msra.mxu0 0
      %1791 = vmatprep.subr.bf16.mxu0 0
      %1792 = vmatpush1.bf16.msra.mxu0 0
      %1793 = vmatprep.subr.bf16.mxu0 0
      %1794 = vmatpush1.bf16.msra.mxu0 0
      %1795 = vmatprep.subr.bf16.mxu0 0
      %1796 = vmatpush1.bf16.msra.mxu0 0
      %1797 = vmatprep.subr.bf16.mxu0 0
      %1798 = vmatpush1.bf16.msra.mxu0 0
      %1799 = vmatprep.subr.bf16.mxu0 0
      %1800 = vmatpush1.bf16.msra.mxu0 0
      %1801 = vmatprep.subr.bf16.mxu0 0
      %1802 = vmatpush1.bf16.msra.mxu0 0
      %1803 = vmatprep.subr.bf16.mxu0 0
      %1804 = vmatpush1.bf16.msra.mxu0 0
      %1805 = vmatprep.mubr.bf16.mxu0 0
      %1806 = vmatmul.mubr.bf16.gmra.mrb[0].mxu0 %v1768
      %v1807 = vpop.f32.mrb[0].mxu0
      %v1808 = vadd.f32 0.0, %v1807
      %v1809 = vpop.f32.mrb[0].mxu0
      %v1810 = vpop.f32.mrb[0].mxu0
      %v1811 = vadd.f32 0.0, %v1810
      %v1812 = vpop.f32.mrb[0].mxu0
      %1813 = vdwg.mxu0
      %v1814 = vadd.f32 %v1587, %v1808
      %v1815 = vadd.f32 %v1588, %v1811
      %s1816 = scalar_lea.vmem %s11, 384
      %v1817 = vld [vmem:[%s1816] sm:$0xf]
      %v1818 = vld [vmem:[%s1816 + $0x4] sm:$0xf]
      %v1819 = vld [vmem:[%s1816 + $0x8] sm:$0xf]
      %v1820 = vld [vmem:[%s1816 + $0xc] sm:$0xf]
      %v1821 = vld [vmem:[%s1816 + $0x10] sm:$0xf]
      %v1822 = vld [vmem:[%s1816 + $0x14] sm:$0xf]
      %v1823 = vld [vmem:[%s1816 + $0x18] sm:$0xf]
      %v1824 = vld [vmem:[%s1816 + $0x1c] sm:$0xf]
      %v1825 = vld [vmem:[%s1816 + $0x20] sm:$0xf]
      %v1826 = vld [vmem:[%s1816 + $0x24] sm:$0xf]
      %v1827 = vld [vmem:[%s1816 + $0x28] sm:$0xf]
      %v1828 = vld [vmem:[%s1816 + $0x2c] sm:$0xf]
      %v1829 = vld [vmem:[%s1816 + $0x30] sm:$0xf]
      %v1830 = vld [vmem:[%s1816 + $0x34] sm:$0xf]
      %v1831 = vld [vmem:[%s1816 + $0x38] sm:$0xf]
      %v1832 = vld [vmem:[%s1816 + $0x3c] sm:$0xf]
      %v1833 = vld [vmem:[%s1816 + $0x40] sm:$0xf]
      %v1834 = vld [vmem:[%s1816 + $0x44] sm:$0xf]
      %v1835 = vld [vmem:[%s1816 + $0x48] sm:$0xf]
      %v1836 = vld [vmem:[%s1816 + $0x4c] sm:$0xf]
      %v1837 = vld [vmem:[%s1816 + $0x50] sm:$0xf]
      %v1838 = vld [vmem:[%s1816 + $0x54] sm:$0xf]
      %v1839 = vld [vmem:[%s1816 + $0x58] sm:$0xf]
      %v1840 = vld [vmem:[%s1816 + $0x5c] sm:$0xf]
      %v1841 = vld [vmem:[%s1816 + $0x60] sm:$0xf]
      %v1842 = vld [vmem:[%s1816 + $0x64] sm:$0xf]
      %v1843 = vld [vmem:[%s1816 + $0x68] sm:$0xf]
      %v1844 = vld [vmem:[%s1816 + $0x6c] sm:$0xf]
      %v1845 = vld [vmem:[%s1816 + $0x70] sm:$0xf]
      %v1846 = vld [vmem:[%s1816 + $0x74] sm:$0xf]
      %v1847 = vld [vmem:[%s1816 + $0x78] sm:$0xf]
      %v1848 = vld [vmem:[%s1816 + $0x7c] sm:$0xf]
      %v1881 = vunpack.c.l.b16 %v1817
      %v1882 = vunpack.c.l.b16 %v1818
      %v1883 = vunpack.c.l.b16 %v1819
      %v1884 = vunpack.c.l.b16 %v1820
      %v1885 = vunpack.c.l.b16 %v1821
      %v1886 = vunpack.c.l.b16 %v1822
      %v1887 = vunpack.c.l.b16 %v1823
      %v1888 = vunpack.c.l.b16 %v1824
      %v1889 = vunpack.c.l.b16 %v1825
      %v1890 = vunpack.c.l.b16 %v1826
      %v1891 = vunpack.c.l.b16 %v1827
      %v1892 = vunpack.c.l.b16 %v1828
      %v1893 = vunpack.c.l.b16 %v1829
      %v1894 = vunpack.c.l.b16 %v1830
      %v1895 = vunpack.c.l.b16 %v1831
      %v1896 = vunpack.c.l.b16 %v1832
      %v1897 = vunpack.c.l.b16 %v1833
      %v1898 = vunpack.c.l.b16 %v1834
      %v1899 = vunpack.c.l.b16 %v1835
      %v1900 = vunpack.c.l.b16 %v1836
      %v1901 = vunpack.c.l.b16 %v1837
      %v1902 = vunpack.c.l.b16 %v1838
      %v1903 = vunpack.c.l.b16 %v1839
      %v1904 = vunpack.c.l.b16 %v1840
      %v1905 = vunpack.c.l.b16 %v1841
      %v1906 = vunpack.c.l.b16 %v1842
      %v1907 = vunpack.c.l.b16 %v1843
      %v1908 = vunpack.c.l.b16 %v1844
      %v1909 = vunpack.c.l.b16 %v1845
      %v1910 = vunpack.c.l.b16 %v1846
      %v1911 = vunpack.c.l.b16 %v1847
      %v1912 = vunpack.c.l.b16 %v1848
      %v1913 = vpack.c.b16 %v1882, %v1881
      %v1914 = vpack.c.b16 %v1884, %v1883
      %v1915 = vpack.c.b16 %v1886, %v1885
      %v1916 = vpack.c.b16 %v1888, %v1887
      %v1917 = vpack.c.b16 %v1890, %v1889
      %v1918 = vpack.c.b16 %v1892, %v1891
      %v1919 = vpack.c.b16 %v1894, %v1893
      %v1920 = vpack.c.b16 %v1896, %v1895
      %v1921 = vpack.c.b16 %v1898, %v1897
      %v1922 = vpack.c.b16 %v1900, %v1899
      %v1923 = vpack.c.b16 %v1902, %v1901
      %v1924 = vpack.c.b16 %v1904, %v1903
      %v1925 = vpack.c.b16 %v1906, %v1905
      %v1926 = vpack.c.b16 %v1908, %v1907
      %v1927 = vpack.c.b16 %v1910, %v1909
      %v1928 = vpack.c.b16 %v1912, %v1911
      %1945 = vmatprep.subr.bf16.mxu0 0
      %1946 = vmatpush1.bf16.msra.mxu0 %v1913
      %1947 = vmatprep.subr.bf16.mxu0 0
      %1948 = vmatpush1.bf16.msra.mxu0 %v1914
      %1949 = vmatprep.subr.bf16.mxu0 0
      %1950 = vmatpush1.bf16.msra.mxu0 %v1915
      %1951 = vmatprep.subr.bf16.mxu0 0
      %1952 = vmatpush1.bf16.msra.mxu0 %v1916
      %1953 = vmatprep.subr.bf16.mxu0 0
      %1954 = vmatpush1.bf16.msra.mxu0 %v1917
      %1955 = vmatprep.subr.bf16.mxu0 0
      %1956 = vmatpush1.bf16.msra.mxu0 %v1918
      %1957 = vmatprep.subr.bf16.mxu0 0
      %1958 = vmatpush1.bf16.msra.mxu0 %v1919
      %1959 = vmatprep.subr.bf16.mxu0 0
      %1960 = vmatpush1.bf16.msra.mxu0 %v1920
      %1961 = vmatprep.subr.bf16.mxu0 0
      %1962 = vmatpush1.bf16.msra.mxu0 %v1921
      %1963 = vmatprep.subr.bf16.mxu0 0
      %1964 = vmatpush1.bf16.msra.mxu0 %v1922
      %1965 = vmatprep.subr.bf16.mxu0 0
      %1966 = vmatpush1.bf16.msra.mxu0 %v1923
      %1967 = vmatprep.subr.bf16.mxu0 0
      %1968 = vmatpush1.bf16.msra.mxu0 %v1924
      %1969 = vmatprep.subr.bf16.mxu0 0
      %1970 = vmatpush1.bf16.msra.mxu0 %v1925
      %1971 = vmatprep.subr.bf16.mxu0 0
      %1972 = vmatpush1.bf16.msra.mxu0 %v1926
      %1973 = vmatprep.subr.bf16.mxu0 0
      %1974 = vmatpush1.bf16.msra.mxu0 %v1927
      %1975 = vmatprep.subr.bf16.mxu0 0
      %1976 = vmatpush1.bf16.msra.mxu0 %v1928
      %1977 = vmatprep.mubr.bf16.mxu0 %v1122
      %1978 = vmatmul.mubr.bf16.gmra.mrb[0].mxu0 %v1121
      %v1979 = vpop.f32.mrb[0].mxu0
      %v1980 = vadd.f32 0.0, %v1979
      %v1981 = vpop.f32.mrb[0].mxu0
      %v1982 = vpop.f32.mrb[0].mxu0
      %v1983 = vpop.f32.mrb[0].mxu0
      %1984 = vdwg.mxu0
      %v1985 = vpack.c.bf16 %v1980, %v1980
      %s1986 = scalar_lea.vmem %s7, 24
      %v1987 = vld [vmem:[%s1986] sm:$0xf]
      %v1988 = vld [vmem:[%s1986 + $0x4] sm:$0xf]
      %v1991 = vunpack.c.l.b16 %v1987
      %v1992 = vunpack.c.l.b16 %v1988
      %v1993 = vpack.c.b16 %v1992, %v1991
      %v1995 = vsel %vm1301, %v1993, 0
      %v1998 = vsel %vm1305, %v1985, 0
      %2000 = vmatprep.subr.bf16.mxu0 0
      %2001 = vmatpush1.bf16.msra.mxu0 %v1998
      %2002 = vmatprep.subr.bf16.mxu0 0
      %2003 = vmatpush1.bf16.msra.mxu0 0
      %2004 = vmatprep.subr.bf16.mxu0 0
      %2005 = vmatpush1.bf16.msra.mxu0 0
      %2006 = vmatprep.subr.bf16.mxu0 0
      %2007 = vmatpush1.bf16.msra.mxu0 0
      %2008 = vmatprep.subr.bf16.mxu0 0
      %2009 = vmatpush1.bf16.msra.mxu0 0
      %2010 = vmatprep.subr.bf16.mxu0 0
      %2011 = vmatpush1.bf16.msra.mxu0 0
      %2012 = vmatprep.subr.bf16.mxu0 0
      %2013 = vmatpush1.bf16.msra.mxu0 0
      %2014 = vmatprep.subr.bf16.mxu0 0
      %2015 = vmatpush1.bf16.msra.mxu0 0
      %2016 = vmatprep.subr.bf16.mxu0 0
      %2017 = vmatpush1.bf16.msra.mxu0 0
      %2018 = vmatprep.subr.bf16.mxu0 0
      %2019 = vmatpush1.bf16.msra.mxu0 0
      %2020 = vmatprep.subr.bf16.mxu0 0
      %2021 = vmatpush1.bf16.msra.mxu0 0
      %2022 = vmatprep.subr.bf16.mxu0 0
      %2023 = vmatpush1.bf16.msra.mxu0 0
      %2024 = vmatprep.subr.bf16.mxu0 0
      %2025 = vmatpush1.bf16.msra.mxu0 0
      %2026 = vmatprep.subr.bf16.mxu0 0
      %2027 = vmatpush1.bf16.msra.mxu0 0
      %2028 = vmatprep.subr.bf16.mxu0 0
      %2029 = vmatpush1.bf16.msra.mxu0 0
      %2030 = vmatprep.subr.bf16.mxu0 0
      %2031 = vmatpush1.bf16.msra.mxu0 0
      %2032 = vmatprep.mubr.bf16.mxu0 0
      %2033 = vmatmul.mubr.bf16.gmra.mrb[0].mxu0 %v1995
      %v2034 = vpop.f32.mrb[0].mxu0
      %v2035 = vadd.f32 0.0, %v2034
      %v2036 = vpop.f32.mrb[0].mxu0
      %v2037 = vpop.f32.mrb[0].mxu0
      %v2038 = vadd.f32 0.0, %v2037
      %v2039 = vpop.f32.mrb[0].mxu0
      %2040 = vdwg.mxu0
      %v2041 = vadd.f32 %v1814, %v2035
      %v2042 = vadd.f32 %v1815, %v2038
      %s2043 = scalar_lea.vmem %s11, 512
      %v2044 = vld [vmem:[%s2043] sm:$0xf]
      %v2045 = vld [vmem:[%s2043 + $0x4] sm:$0xf]
      %v2046 = vld [vmem:[%s2043 + $0x8] sm:$0xf]
      %v2047 = vld [vmem:[%s2043 + $0xc] sm:$0xf]
      %v2048 = vld [vmem:[%s2043 + $0x10] sm:$0xf]
      %v2049 = vld [vmem:[%s2043 + $0x14] sm:$0xf]
      %v2050 = vld [vmem:[%s2043 + $0x18] sm:$0xf]
      %v2051 = vld [vmem:[%s2043 + $0x1c] sm:$0xf]
      %v2052 = vld [vmem:[%s2043 + $0x20] sm:$0xf]
      %v2053 = vld [vmem:[%s2043 + $0x24] sm:$0xf]
      %v2054 = vld [vmem:[%s2043 + $0x28] sm:$0xf]
      %v2055 = vld [vmem:[%s2043 + $0x2c] sm:$0xf]
      %v2056 = vld [vmem:[%s2043 + $0x30] sm:$0xf]
      %v2057 = vld [vmem:[%s2043 + $0x34] sm:$0xf]
      %v2058 = vld [vmem:[%s2043 + $0x38] sm:$0xf]
      %v2059 = vld [vmem:[%s2043 + $0x3c] sm:$0xf]
      %v2060 = vld [vmem:[%s2043 + $0x40] sm:$0xf]
      %v2061 = vld [vmem:[%s2043 + $0x44] sm:$0xf]
      %v2062 = vld [vmem:[%s2043 + $0x48] sm:$0xf]
      %v2063 = vld [vmem:[%s2043 + $0x4c] sm:$0xf]
      %v2064 = vld [vmem:[%s2043 + $0x50] sm:$0xf]
      %v2065 = vld [vmem:[%s2043 + $0x54] sm:$0xf]
      %v2066 = vld [vmem:[%s2043 + $0x58] sm:$0xf]
      %v2067 = vld [vmem:[%s2043 + $0x5c] sm:$0xf]
      %v2068 = vld [vmem:[%s2043 + $0x60] sm:$0xf]
      %v2069 = vld [vmem:[%s2043 + $0x64] sm:$0xf]
      %v2070 = vld [vmem:[%s2043 + $0x68] sm:$0xf]
      %v2071 = vld [vmem:[%s2043 + $0x6c] sm:$0xf]
      %v2072 = vld [vmem:[%s2043 + $0x70] sm:$0xf]
      %v2073 = vld [vmem:[%s2043 + $0x74] sm:$0xf]
      %v2074 = vld [vmem:[%s2043 + $0x78] sm:$0xf]
      %v2075 = vld [vmem:[%s2043 + $0x7c] sm:$0xf]
      %v2108 = vunpack.c.l.b16 %v2044
      %v2109 = vunpack.c.l.b16 %v2045
      %v2110 = vunpack.c.l.b16 %v2046
      %v2111 = vunpack.c.l.b16 %v2047
      %v2112 = vunpack.c.l.b16 %v2048
      %v2113 = vunpack.c.l.b16 %v2049
      %v2114 = vunpack.c.l.b16 %v2050
      %v2115 = vunpack.c.l.b16 %v2051
      %v2116 = vunpack.c.l.b16 %v2052
      %v2117 = vunpack.c.l.b16 %v2053
      %v2118 = vunpack.c.l.b16 %v2054
      %v2119 = vunpack.c.l.b16 %v2055
      %v2120 = vunpack.c.l.b16 %v2056
      %v2121 = vunpack.c.l.b16 %v2057
      %v2122 = vunpack.c.l.b16 %v2058
      %v2123 = vunpack.c.l.b16 %v2059
      %v2124 = vunpack.c.l.b16 %v2060
      %v2125 = vunpack.c.l.b16 %v2061
      %v2126 = vunpack.c.l.b16 %v2062
      %v2127 = vunpack.c.l.b16 %v2063
      %v2128 = vunpack.c.l.b16 %v2064
      %v2129 = vunpack.c.l.b16 %v2065
      %v2130 = vunpack.c.l.b16 %v2066
      %v2131 = vunpack.c.l.b16 %v2067
      %v2132 = vunpack.c.l.b16 %v2068
      %v2133 = vunpack.c.l.b16 %v2069
      %v2134 = vunpack.c.l.b16 %v2070
      %v2135 = vunpack.c.l.b16 %v2071
      %v2136 = vunpack.c.l.b16 %v2072
      %v2137 = vunpack.c.l.b16 %v2073
      %v2138 = vunpack.c.l.b16 %v2074
      %v2139 = vunpack.c.l.b16 %v2075
      %v2140 = vpack.c.b16 %v2109, %v2108
      %v2141 = vpack.c.b16 %v2111, %v2110
      %v2142 = vpack.c.b16 %v2113, %v2112
      %v2143 = vpack.c.b16 %v2115, %v2114
      %v2144 = vpack.c.b16 %v2117, %v2116
      %v2145 = vpack.c.b16 %v2119, %v2118
      %v2146 = vpack.c.b16 %v2121, %v2120
      %v2147 = vpack.c.b16 %v2123, %v2122
      %v2148 = vpack.c.b16 %v2125, %v2124
      %v2149 = vpack.c.b16 %v2127, %v2126
      %v2150 = vpack.c.b16 %v2129, %v2128
      %v2151 = vpack.c.b16 %v2131, %v2130
      %v2152 = vpack.c.b16 %v2133, %v2132
      %v2153 = vpack.c.b16 %v2135, %v2134
      %v2154 = vpack.c.b16 %v2137, %v2136
      %v2155 = vpack.c.b16 %v2139, %v2138
      %2172 = vmatprep.subr.bf16.mxu0 0
      %2173 = vmatpush1.bf16.msra.mxu0 %v2140
      %2174 = vmatprep.subr.bf16.mxu0 0
      %2175 = vmatpush1.bf16.msra.mxu0 %v2141
      %2176 = vmatprep.subr.bf16.mxu0 0
      %2177 = vmatpush1.bf16.msra.mxu0 %v2142
      %2178 = vmatprep.subr.bf16.mxu0 0
      %2179 = vmatpush1.bf16.msra.mxu0 %v2143
      %2180 = vmatprep.subr.bf16.mxu0 0
      %2181 = vmatpush1.bf16.msra.mxu0 %v2144
      %2182 = vmatprep.subr.bf16.mxu0 0
      %2183 = vmatpush1.bf16.msra.mxu0 %v2145
      %2184 = vmatprep.subr.bf16.mxu0 0
      %2185 = vmatpush1.bf16.msra.mxu0 %v2146
      %2186 = vmatprep.subr.bf16.mxu0 0
      %2187 = vmatpush1.bf16.msra.mxu0 %v2147
      %2188 = vmatprep.subr.bf16.mxu0 0
      %2189 = vmatpush1.bf16.msra.mxu0 %v2148
      %2190 = vmatprep.subr.bf16.mxu0 0
      %2191 = vmatpush1.bf16.msra.mxu0 %v2149
      %2192 = vmatprep.subr.bf16.mxu0 0
      %2193 = vmatpush1.bf16.msra.mxu0 %v2150
      %2194 = vmatprep.subr.bf16.mxu0 0
      %2195 = vmatpush1.bf16.msra.mxu0 %v2151
      %2196 = vmatprep.subr.bf16.mxu0 0
      %2197 = vmatpush1.bf16.msra.mxu0 %v2152
      %2198 = vmatprep.subr.bf16.mxu0 0
      %2199 = vmatpush1.bf16.msra.mxu0 %v2153
      %2200 = vmatprep.subr.bf16.mxu0 0
      %2201 = vmatpush1.bf16.msra.mxu0 %v2154
      %2202 = vmatprep.subr.bf16.mxu0 0
      %2203 = vmatpush1.bf16.msra.mxu0 %v2155
      %2204 = vmatprep.mubr.bf16.mxu0 %v1122
      %2205 = vmatmul.mubr.bf16.gmra.mrb[0].mxu0 %v1121
      %v2206 = vpop.f32.mrb[0].mxu0
      %v2207 = vadd.f32 0.0, %v2206
      %v2208 = vpop.f32.mrb[0].mxu0
      %v2209 = vpop.f32.mrb[0].mxu0
      %v2210 = vpop.f32.mrb[0].mxu0
      %2211 = vdwg.mxu0
      %v2212 = vpack.c.bf16 %v2207, %v2207
      %s2213 = scalar_lea.vmem %s7, 32
      %v2214 = vld [vmem:[%s2213] sm:$0xf]
      %v2215 = vld [vmem:[%s2213 + $0x4] sm:$0xf]
      %v2218 = vunpack.c.l.b16 %v2214
      %v2219 = vunpack.c.l.b16 %v2215
      %v2220 = vpack.c.b16 %v2219, %v2218
      %v2222 = vsel %vm1301, %v2220, 0
      %v2225 = vsel %vm1305, %v2212, 0
      %2227 = vmatprep.subr.bf16.mxu0 0
      %2228 = vmatpush1.bf16.msra.mxu0 %v2225
      %2229 = vmatprep.subr.bf16.mxu0 0
      %2230 = vmatpush1.bf16.msra.mxu0 0
      %2231 = vmatprep.subr.bf16.mxu0 0
      %2232 = vmatpush1.bf16.msra.mxu0 0
      %2233 = vmatprep.subr.bf16.mxu0 0
      %2234 = vmatpush1.bf16.msra.mxu0 0
      %2235 = vmatprep.subr.bf16.mxu0 0
      %2236 = vmatpush1.bf16.msra.mxu0 0
      %2237 = vmatprep.subr.bf16.mxu0 0
      %2238 = vmatpush1.bf16.msra.mxu0 0
      %2239 = vmatprep.subr.bf16.mxu0 0
      %2240 = vmatpush1.bf16.msra.mxu0 0
      %2241 = vmatprep.subr.bf16.mxu0 0
      %2242 = vmatpush1.bf16.msra.mxu0 0
      %2243 = vmatprep.subr.bf16.mxu0 0
      %2244 = vmatpush1.bf16.msra.mxu0 0
      %2245 = vmatprep.subr.bf16.mxu0 0
      %2246 = vmatpush1.bf16.msra.mxu0 0
      %2247 = vmatprep.subr.bf16.mxu0 0
      %2248 = vmatpush1.bf16.msra.mxu0 0
      %2249 = vmatprep.subr.bf16.mxu0 0
      %2250 = vmatpush1.bf16.msra.mxu0 0
      %2251 = vmatprep.subr.bf16.mxu0 0
      %2252 = vmatpush1.bf16.msra.mxu0 0
      %2253 = vmatprep.subr.bf16.mxu0 0
      %2254 = vmatpush1.bf16.msra.mxu0 0
      %2255 = vmatprep.subr.bf16.mxu0 0
      %2256 = vmatpush1.bf16.msra.mxu0 0
      %2257 = vmatprep.subr.bf16.mxu0 0
      %2258 = vmatpush1.bf16.msra.mxu0 0
      %2259 = vmatprep.mubr.bf16.mxu0 0
      %2260 = vmatmul.mubr.bf16.gmra.mrb[0].mxu0 %v2222
      %v2261 = vpop.f32.mrb[0].mxu0
      %v2262 = vadd.f32 0.0, %v2261
      %v2263 = vpop.f32.mrb[0].mxu0
      %v2264 = vpop.f32.mrb[0].mxu0
      %v2265 = vadd.f32 0.0, %v2264
      %v2266 = vpop.f32.mrb[0].mxu0
      %2267 = vdwg.mxu0
      %v2268 = vadd.f32 %v2041, %v2262
      %v2269 = vadd.f32 %v2042, %v2265
      %s2270 = scalar_lea.vmem %s11, 640
      %v2271 = vld [vmem:[%s2270] sm:$0xf]
      %v2272 = vld [vmem:[%s2270 + $0x4] sm:$0xf]
      %v2273 = vld [vmem:[%s2270 + $0x8] sm:$0xf]
      %v2274 = vld [vmem:[%s2270 + $0xc] sm:$0xf]
      %v2275 = vld [vmem:[%s2270 + $0x10] sm:$0xf]
      %v2276 = vld [vmem:[%s2270 + $0x14] sm:$0xf]
      %v2277 = vld [vmem:[%s2270 + $0x18] sm:$0xf]
      %v2278 = vld [vmem:[%s2270 + $0x1c] sm:$0xf]
      %v2279 = vld [vmem:[%s2270 + $0x20] sm:$0xf]
      %v2280 = vld [vmem:[%s2270 + $0x24] sm:$0xf]
      %v2281 = vld [vmem:[%s2270 + $0x28] sm:$0xf]
      %v2282 = vld [vmem:[%s2270 + $0x2c] sm:$0xf]
      %v2283 = vld [vmem:[%s2270 + $0x30] sm:$0xf]
      %v2284 = vld [vmem:[%s2270 + $0x34] sm:$0xf]
      %v2285 = vld [vmem:[%s2270 + $0x38] sm:$0xf]
      %v2286 = vld [vmem:[%s2270 + $0x3c] sm:$0xf]
      %v2287 = vld [vmem:[%s2270 + $0x40] sm:$0xf]
      %v2288 = vld [vmem:[%s2270 + $0x44] sm:$0xf]
      %v2289 = vld [vmem:[%s2270 + $0x48] sm:$0xf]
      %v2290 = vld [vmem:[%s2270 + $0x4c] sm:$0xf]
      %v2291 = vld [vmem:[%s2270 + $0x50] sm:$0xf]
      %v2292 = vld [vmem:[%s2270 + $0x54] sm:$0xf]
      %v2293 = vld [vmem:[%s2270 + $0x58] sm:$0xf]
      %v2294 = vld [vmem:[%s2270 + $0x5c] sm:$0xf]
      %v2295 = vld [vmem:[%s2270 + $0x60] sm:$0xf]
      %v2296 = vld [vmem:[%s2270 + $0x64] sm:$0xf]
      %v2297 = vld [vmem:[%s2270 + $0x68] sm:$0xf]
      %v2298 = vld [vmem:[%s2270 + $0x6c] sm:$0xf]
      %v2299 = vld [vmem:[%s2270 + $0x70] sm:$0xf]
      %v2300 = vld [vmem:[%s2270 + $0x74] sm:$0xf]
      %v2301 = vld [vmem:[%s2270 + $0x78] sm:$0xf]
      %v2302 = vld [vmem:[%s2270 + $0x7c] sm:$0xf]
      %v2335 = vunpack.c.l.b16 %v2271
      %v2336 = vunpack.c.l.b16 %v2272
      %v2337 = vunpack.c.l.b16 %v2273
      %v2338 = vunpack.c.l.b16 %v2274
      %v2339 = vunpack.c.l.b16 %v2275
      %v2340 = vunpack.c.l.b16 %v2276
      %v2341 = vunpack.c.l.b16 %v2277
      %v2342 = vunpack.c.l.b16 %v2278
      %v2343 = vunpack.c.l.b16 %v2279
      %v2344 = vunpack.c.l.b16 %v2280
      %v2345 = vunpack.c.l.b16 %v2281
      %v2346 = vunpack.c.l.b16 %v2282
      %v2347 = vunpack.c.l.b16 %v2283
      %v2348 = vunpack.c.l.b16 %v2284
      %v2349 = vunpack.c.l.b16 %v2285
      %v2350 = vunpack.c.l.b16 %v2286
      %v2351 = vunpack.c.l.b16 %v2287
      %v2352 = vunpack.c.l.b16 %v2288
      %v2353 = vunpack.c.l.b16 %v2289
      %v2354 = vunpack.c.l.b16 %v2290
      %v2355 = vunpack.c.l.b16 %v2291
      %v2356 = vunpack.c.l.b16 %v2292
      %v2357 = vunpack.c.l.b16 %v2293
      %v2358 = vunpack.c.l.b16 %v2294
      %v2359 = vunpack.c.l.b16 %v2295
      %v2360 = vunpack.c.l.b16 %v2296
      %v2361 = vunpack.c.l.b16 %v2297
      %v2362 = vunpack.c.l.b16 %v2298
      %v2363 = vunpack.c.l.b16 %v2299
      %v2364 = vunpack.c.l.b16 %v2300
      %v2365 = vunpack.c.l.b16 %v2301
      %v2366 = vunpack.c.l.b16 %v2302
      %v2367 = vpack.c.b16 %v2336, %v2335
      %v2368 = vpack.c.b16 %v2338, %v2337
      %v2369 = vpack.c.b16 %v2340, %v2339
      %v2370 = vpack.c.b16 %v2342, %v2341
      %v2371 = vpack.c.b16 %v2344, %v2343
      %v2372 = vpack.c.b16 %v2346, %v2345
      %v2373 = vpack.c.b16 %v2348, %v2347
      %v2374 = vpack.c.b16 %v2350, %v2349
      %v2375 = vpack.c.b16 %v2352, %v2351
      %v2376 = vpack.c.b16 %v2354, %v2353
      %v2377 = vpack.c.b16 %v2356, %v2355
      %v2378 = vpack.c.b16 %v2358, %v2357
      %v2379 = vpack.c.b16 %v2360, %v2359
      %v2380 = vpack.c.b16 %v2362, %v2361
      %v2381 = vpack.c.b16 %v2364, %v2363
      %v2382 = vpack.c.b16 %v2366, %v2365
      %2399 = vmatprep.subr.bf16.mxu0 0
      %2400 = vmatpush1.bf16.msra.mxu0 %v2367
      %2401 = vmatprep.subr.bf16.mxu0 0
      %2402 = vmatpush1.bf16.msra.mxu0 %v2368
      %2403 = vmatprep.subr.bf16.mxu0 0
      %2404 = vmatpush1.bf16.msra.mxu0 %v2369
      %2405 = vmatprep.subr.bf16.mxu0 0
      %2406 = vmatpush1.bf16.msra.mxu0 %v2370
      %2407 = vmatprep.subr.bf16.mxu0 0
      %2408 = vmatpush1.bf16.msra.mxu0 %v2371
      %2409 = vmatprep.subr.bf16.mxu0 0
      %2410 = vmatpush1.bf16.msra.mxu0 %v2372
      %2411 = vmatprep.subr.bf16.mxu0 0
      %2412 = vmatpush1.bf16.msra.mxu0 %v2373
      %2413 = vmatprep.subr.bf16.mxu0 0
      %2414 = vmatpush1.bf16.msra.mxu0 %v2374
      %2415 = vmatprep.subr.bf16.mxu0 0
      %2416 = vmatpush1.bf16.msra.mxu0 %v2375
      %2417 = vmatprep.subr.bf16.mxu0 0
      %2418 = vmatpush1.bf16.msra.mxu0 %v2376
      %2419 = vmatprep.subr.bf16.mxu0 0
      %2420 = vmatpush1.bf16.msra.mxu0 %v2377
      %2421 = vmatprep.subr.bf16.mxu0 0
      %2422 = vmatpush1.bf16.msra.mxu0 %v2378
      %2423 = vmatprep.subr.bf16.mxu0 0
      %2424 = vmatpush1.bf16.msra.mxu0 %v2379
      %2425 = vmatprep.subr.bf16.mxu0 0
      %2426 = vmatpush1.bf16.msra.mxu0 %v2380
      %2427 = vmatprep.subr.bf16.mxu0 0
      %2428 = vmatpush1.bf16.msra.mxu0 %v2381
      %2429 = vmatprep.subr.bf16.mxu0 0
      %2430 = vmatpush1.bf16.msra.mxu0 %v2382
      %2431 = vmatprep.mubr.bf16.mxu0 %v1122
      %2432 = vmatmul.mubr.bf16.gmra.mrb[0].mxu0 %v1121
      %v2433 = vpop.f32.mrb[0].mxu0
      %v2434 = vadd.f32 0.0, %v2433
      %v2435 = vpop.f32.mrb[0].mxu0
      %v2436 = vpop.f32.mrb[0].mxu0
      %v2437 = vpop.f32.mrb[0].mxu0
      %2438 = vdwg.mxu0
      %v2439 = vpack.c.bf16 %v2434, %v2434
      %s2440 = scalar_lea.vmem %s7, 40
      %v2441 = vld [vmem:[%s2440] sm:$0xf]
      %v2442 = vld [vmem:[%s2440 + $0x4] sm:$0xf]
      %v2445 = vunpack.c.l.b16 %v2441
      %v2446 = vunpack.c.l.b16 %v2442
      %v2447 = vpack.c.b16 %v2446, %v2445
      %v2449 = vsel %vm1301, %v2447, 0
      %v2452 = vsel %vm1305, %v2439, 0
      %2454 = vmatprep.subr.bf16.mxu0 0
      %2455 = vmatpush1.bf16.msra.mxu0 %v2452
      %2456 = vmatprep.subr.bf16.mxu0 0
      %2457 = vmatpush1.bf16.msra.mxu0 0
      %2458 = vmatprep.subr.bf16.mxu0 0
      %2459 = vmatpush1.bf16.msra.mxu0 0
      %2460 = vmatprep.subr.bf16.mxu0 0
      %2461 = vmatpush1.bf16.msra.mxu0 0
      %2462 = vmatprep.subr.bf16.mxu0 0
      %2463 = vmatpush1.bf16.msra.mxu0 0
      %2464 = vmatprep.subr.bf16.mxu0 0
      %2465 = vmatpush1.bf16.msra.mxu0 0
      %2466 = vmatprep.subr.bf16.mxu0 0
      %2467 = vmatpush1.bf16.msra.mxu0 0
      %2468 = vmatprep.subr.bf16.mxu0 0
      %2469 = vmatpush1.bf16.msra.mxu0 0
      %2470 = vmatprep.subr.bf16.mxu0 0
      %2471 = vmatpush1.bf16.msra.mxu0 0
      %2472 = vmatprep.subr.bf16.mxu0 0
      %2473 = vmatpush1.bf16.msra.mxu0 0
      %2474 = vmatprep.subr.bf16.mxu0 0
      %2475 = vmatpush1.bf16.msra.mxu0 0
      %2476 = vmatprep.subr.bf16.mxu0 0
      %2477 = vmatpush1.bf16.msra.mxu0 0
      %2478 = vmatprep.subr.bf16.mxu0 0
      %2479 = vmatpush1.bf16.msra.mxu0 0
      %2480 = vmatprep.subr.bf16.mxu0 0
      %2481 = vmatpush1.bf16.msra.mxu0 0
      %2482 = vmatprep.subr.bf16.mxu0 0
      %2483 = vmatpush1.bf16.msra.mxu0 0
      %2484 = vmatprep.subr.bf16.mxu0 0
      %2485 = vmatpush1.bf16.msra.mxu0 0
      %2486 = vmatprep.mubr.bf16.mxu0 0
      %2487 = vmatmul.mubr.bf16.gmra.mrb[0].mxu0 %v2449
      %v2488 = vpop.f32.mrb[0].mxu0
      %v2489 = vadd.f32 0.0, %v2488
      %v2490 = vpop.f32.mrb[0].mxu0
      %v2491 = vpop.f32.mrb[0].mxu0
      %v2492 = vadd.f32 0.0, %v2491
      %v2493 = vpop.f32.mrb[0].mxu0
      %2494 = vdwg.mxu0
      %v2495 = vadd.f32 %v2268, %v2489
      %v2496 = vadd.f32 %v2269, %v2492
      %s2497 = scalar_lea.vmem %s11, 768
      %v2498 = vld [vmem:[%s2497] sm:$0xf]
      %v2499 = vld [vmem:[%s2497 + $0x4] sm:$0xf]
      %v2500 = vld [vmem:[%s2497 + $0x8] sm:$0xf]
      %v2501 = vld [vmem:[%s2497 + $0xc] sm:$0xf]
      %v2502 = vld [vmem:[%s2497 + $0x10] sm:$0xf]
      %v2503 = vld [vmem:[%s2497 + $0x14] sm:$0xf]
      %v2504 = vld [vmem:[%s2497 + $0x18] sm:$0xf]
      %v2505 = vld [vmem:[%s2497 + $0x1c] sm:$0xf]
      %v2506 = vld [vmem:[%s2497 + $0x20] sm:$0xf]
      %v2507 = vld [vmem:[%s2497 + $0x24] sm:$0xf]
      %v2508 = vld [vmem:[%s2497 + $0x28] sm:$0xf]
      %v2509 = vld [vmem:[%s2497 + $0x2c] sm:$0xf]
      %v2510 = vld [vmem:[%s2497 + $0x30] sm:$0xf]
      %v2511 = vld [vmem:[%s2497 + $0x34] sm:$0xf]
      %v2512 = vld [vmem:[%s2497 + $0x38] sm:$0xf]
      %v2513 = vld [vmem:[%s2497 + $0x3c] sm:$0xf]
      %v2514 = vld [vmem:[%s2497 + $0x40] sm:$0xf]
      %v2515 = vld [vmem:[%s2497 + $0x44] sm:$0xf]
      %v2516 = vld [vmem:[%s2497 + $0x48] sm:$0xf]
      %v2517 = vld [vmem:[%s2497 + $0x4c] sm:$0xf]
      %v2518 = vld [vmem:[%s2497 + $0x50] sm:$0xf]
      %v2519 = vld [vmem:[%s2497 + $0x54] sm:$0xf]
      %v2520 = vld [vmem:[%s2497 + $0x58] sm:$0xf]
      %v2521 = vld [vmem:[%s2497 + $0x5c] sm:$0xf]
      %v2522 = vld [vmem:[%s2497 + $0x60] sm:$0xf]
      %v2523 = vld [vmem:[%s2497 + $0x64] sm:$0xf]
      %v2524 = vld [vmem:[%s2497 + $0x68] sm:$0xf]
      %v2525 = vld [vmem:[%s2497 + $0x6c] sm:$0xf]
      %v2526 = vld [vmem:[%s2497 + $0x70] sm:$0xf]
      %v2527 = vld [vmem:[%s2497 + $0x74] sm:$0xf]
      %v2528 = vld [vmem:[%s2497 + $0x78] sm:$0xf]
      %v2529 = vld [vmem:[%s2497 + $0x7c] sm:$0xf]
      %v2562 = vunpack.c.l.b16 %v2498
      %v2563 = vunpack.c.l.b16 %v2499
      %v2564 = vunpack.c.l.b16 %v2500
      %v2565 = vunpack.c.l.b16 %v2501
      %v2566 = vunpack.c.l.b16 %v2502
      %v2567 = vunpack.c.l.b16 %v2503
      %v2568 = vunpack.c.l.b16 %v2504
      %v2569 = vunpack.c.l.b16 %v2505
      %v2570 = vunpack.c.l.b16 %v2506
      %v2571 = vunpack.c.l.b16 %v2507
      %v2572 = vunpack.c.l.b16 %v2508
      %v2573 = vunpack.c.l.b16 %v2509
      %v2574 = vunpack.c.l.b16 %v2510
      %v2575 = vunpack.c.l.b16 %v2511
      %v2576 = vunpack.c.l.b16 %v2512
      %v2577 = vunpack.c.l.b16 %v2513
      %v2578 = vunpack.c.l.b16 %v2514
      %v2579 = vunpack.c.l.b16 %v2515
      %v2580 = vunpack.c.l.b16 %v2516
      %v2581 = vunpack.c.l.b16 %v2517
      %v2582 = vunpack.c.l.b16 %v2518
      %v2583 = vunpack.c.l.b16 %v2519
      %v2584 = vunpack.c.l.b16 %v2520
      %v2585 = vunpack.c.l.b16 %v2521
      %v2586 = vunpack.c.l.b16 %v2522
      %v2587 = vunpack.c.l.b16 %v2523
      %v2588 = vunpack.c.l.b16 %v2524
      %v2589 = vunpack.c.l.b16 %v2525
      %v2590 = vunpack.c.l.b16 %v2526
      %v2591 = vunpack.c.l.b16 %v2527
      %v2592 = vunpack.c.l.b16 %v2528
      %v2593 = vunpack.c.l.b16 %v2529
      %v2594 = vpack.c.b16 %v2563, %v2562
      %v2595 = vpack.c.b16 %v2565, %v2564
      %v2596 = vpack.c.b16 %v2567, %v2566
      %v2597 = vpack.c.b16 %v2569, %v2568
      %v2598 = vpack.c.b16 %v2571, %v2570
      %v2599 = vpack.c.b16 %v2573, %v2572
      %v2600 = vpack.c.b16 %v2575, %v2574
      %v2601 = vpack.c.b16 %v2577, %v2576
      %v2602 = vpack.c.b16 %v2579, %v2578
      %v2603 = vpack.c.b16 %v2581, %v2580
      %v2604 = vpack.c.b16 %v2583, %v2582
      %v2605 = vpack.c.b16 %v2585, %v2584
      %v2606 = vpack.c.b16 %v2587, %v2586
      %v2607 = vpack.c.b16 %v2589, %v2588
      %v2608 = vpack.c.b16 %v2591, %v2590
      %v2609 = vpack.c.b16 %v2593, %v2592
      %2626 = vmatprep.subr.bf16.mxu0 0
      %2627 = vmatpush1.bf16.msra.mxu0 %v2594
      %2628 = vmatprep.subr.bf16.mxu0 0
      %2629 = vmatpush1.bf16.msra.mxu0 %v2595
      %2630 = vmatprep.subr.bf16.mxu0 0
      %2631 = vmatpush1.bf16.msra.mxu0 %v2596
      %2632 = vmatprep.subr.bf16.mxu0 0
      %2633 = vmatpush1.bf16.msra.mxu0 %v2597
      %2634 = vmatprep.subr.bf16.mxu0 0
      %2635 = vmatpush1.bf16.msra.mxu0 %v2598
      %2636 = vmatprep.subr.bf16.mxu0 0
      %2637 = vmatpush1.bf16.msra.mxu0 %v2599
      %2638 = vmatprep.subr.bf16.mxu0 0
      %2639 = vmatpush1.bf16.msra.mxu0 %v2600
      %2640 = vmatprep.subr.bf16.mxu0 0
      %2641 = vmatpush1.bf16.msra.mxu0 %v2601
      %2642 = vmatprep.subr.bf16.mxu0 0
      %2643 = vmatpush1.bf16.msra.mxu0 %v2602
      %2644 = vmatprep.subr.bf16.mxu0 0
      %2645 = vmatpush1.bf16.msra.mxu0 %v2603
      %2646 = vmatprep.subr.bf16.mxu0 0
      %2647 = vmatpush1.bf16.msra.mxu0 %v2604
      %2648 = vmatprep.subr.bf16.mxu0 0
      %2649 = vmatpush1.bf16.msra.mxu0 %v2605
      %2650 = vmatprep.subr.bf16.mxu0 0
      %2651 = vmatpush1.bf16.msra.mxu0 %v2606
      %2652 = vmatprep.subr.bf16.mxu0 0
      %2653 = vmatpush1.bf16.msra.mxu0 %v2607
      %2654 = vmatprep.subr.bf16.mxu0 0
      %2655 = vmatpush1.bf16.msra.mxu0 %v2608
      %2656 = vmatprep.subr.bf16.mxu0 0
      %2657 = vmatpush1.bf16.msra.mxu0 %v2609
      %2658 = vmatprep.mubr.bf16.mxu0 %v1122
      %2659 = vmatmul.mubr.bf16.gmra.mrb[0].mxu0 %v1121
      %v2660 = vpop.f32.mrb[0].mxu0
      %v2661 = vadd.f32 0.0, %v2660
      %v2662 = vpop.f32.mrb[0].mxu0
      %v2663 = vpop.f32.mrb[0].mxu0
      %v2664 = vpop.f32.mrb[0].mxu0
      %2665 = vdwg.mxu0
      %v2666 = vpack.c.bf16 %v2661, %v2661
      %s2667 = scalar_lea.vmem %s7, 48
      %v2668 = vld [vmem:[%s2667] sm:$0xf]
      %v2669 = vld [vmem:[%s2667 + $0x4] sm:$0xf]
      %v2672 = vunpack.c.l.b16 %v2668
      %v2673 = vunpack.c.l.b16 %v2669
      %v2674 = vpack.c.b16 %v2673, %v2672
      %v2676 = vsel %vm1301, %v2674, 0
      %v2679 = vsel %vm1305, %v2666, 0
      %2681 = vmatprep.subr.bf16.mxu0 0
      %2682 = vmatpush1.bf16.msra.mxu0 %v2679
      %2683 = vmatprep.subr.bf16.mxu0 0
      %2684 = vmatpush1.bf16.msra.mxu0 0
      %2685 = vmatprep.subr.bf16.mxu0 0
      %2686 = vmatpush1.bf16.msra.mxu0 0
      %2687 = vmatprep.subr.bf16.mxu0 0
      %2688 = vmatpush1.bf16.msra.mxu0 0
      %2689 = vmatprep.subr.bf16.mxu0 0
      %2690 = vmatpush1.bf16.msra.mxu0 0
      %2691 = vmatprep.subr.bf16.mxu0 0
      %2692 = vmatpush1.bf16.msra.mxu0 0
      %2693 = vmatprep.subr.bf16.mxu0 0
      %2694 = vmatpush1.bf16.msra.mxu0 0
      %2695 = vmatprep.subr.bf16.mxu0 0
      %2696 = vmatpush1.bf16.msra.mxu0 0
      %2697 = vmatprep.subr.bf16.mxu0 0
      %2698 = vmatpush1.bf16.msra.mxu0 0
      %2699 = vmatprep.subr.bf16.mxu0 0
      %2700 = vmatpush1.bf16.msra.mxu0 0
      %2701 = vmatprep.subr.bf16.mxu0 0
      %2702 = vmatpush1.bf16.msra.mxu0 0
      %2703 = vmatprep.subr.bf16.mxu0 0
      %2704 = vmatpush1.bf16.msra.mxu0 0
      %2705 = vmatprep.subr.bf16.mxu0 0
      %2706 = vmatpush1.bf16.msra.mxu0 0
      %2707 = vmatprep.subr.bf16.mxu0 0
      %2708 = vmatpush1.bf16.msra.mxu0 0
      %2709 = vmatprep.subr.bf16.mxu0 0
      %2710 = vmatpush1.bf16.msra.mxu0 0
      %2711 = vmatprep.subr.bf16.mxu0 0
      %2712 = vmatpush1.bf16.msra.mxu0 0
      %2713 = vmatprep.mubr.bf16.mxu0 0
      %2714 = vmatmul.mubr.bf16.gmra.mrb[0].mxu0 %v2676
      %v2715 = vpop.f32.mrb[0].mxu0
      %v2716 = vadd.f32 0.0, %v2715
      %v2717 = vpop.f32.mrb[0].mxu0
      %v2718 = vpop.f32.mrb[0].mxu0
      %v2719 = vadd.f32 0.0, %v2718
      %v2720 = vpop.f32.mrb[0].mxu0
      %2721 = vdwg.mxu0
      %v2722 = vadd.f32 %v2495, %v2716
      %v2723 = vadd.f32 %v2496, %v2719
      %s2724 = scalar_lea.vmem %s11, 896
      %v2725 = vld [vmem:[%s2724] sm:$0xf]
      %v2726 = vld [vmem:[%s2724 + $0x4] sm:$0xf]
      %v2727 = vld [vmem:[%s2724 + $0x8] sm:$0xf]
      %v2728 = vld [vmem:[%s2724 + $0xc] sm:$0xf]
      %v2729 = vld [vmem:[%s2724 + $0x10] sm:$0xf]
      %v2730 = vld [vmem:[%s2724 + $0x14] sm:$0xf]
      %v2731 = vld [vmem:[%s2724 + $0x18] sm:$0xf]
      %v2732 = vld [vmem:[%s2724 + $0x1c] sm:$0xf]
      %v2733 = vld [vmem:[%s2724 + $0x20] sm:$0xf]
      %v2734 = vld [vmem:[%s2724 + $0x24] sm:$0xf]
      %v2735 = vld [vmem:[%s2724 + $0x28] sm:$0xf]
      %v2736 = vld [vmem:[%s2724 + $0x2c] sm:$0xf]
      %v2737 = vld [vmem:[%s2724 + $0x30] sm:$0xf]
      %v2738 = vld [vmem:[%s2724 + $0x34] sm:$0xf]
      %v2739 = vld [vmem:[%s2724 + $0x38] sm:$0xf]
      %v2740 = vld [vmem:[%s2724 + $0x3c] sm:$0xf]
      %v2741 = vld [vmem:[%s2724 + $0x40] sm:$0xf]
      %v2742 = vld [vmem:[%s2724 + $0x44] sm:$0xf]
      %v2743 = vld [vmem:[%s2724 + $0x48] sm:$0xf]
      %v2744 = vld [vmem:[%s2724 + $0x4c] sm:$0xf]
      %v2745 = vld [vmem:[%s2724 + $0x50] sm:$0xf]
      %v2746 = vld [vmem:[%s2724 + $0x54] sm:$0xf]
      %v2747 = vld [vmem:[%s2724 + $0x58] sm:$0xf]
      %v2748 = vld [vmem:[%s2724 + $0x5c] sm:$0xf]
      %v2749 = vld [vmem:[%s2724 + $0x60] sm:$0xf]
      %v2750 = vld [vmem:[%s2724 + $0x64] sm:$0xf]
      %v2751 = vld [vmem:[%s2724 + $0x68] sm:$0xf]
      %v2752 = vld [vmem:[%s2724 + $0x6c] sm:$0xf]
      %v2753 = vld [vmem:[%s2724 + $0x70] sm:$0xf]
      %v2754 = vld [vmem:[%s2724 + $0x74] sm:$0xf]
      %v2755 = vld [vmem:[%s2724 + $0x78] sm:$0xf]
      %v2756 = vld [vmem:[%s2724 + $0x7c] sm:$0xf]
      %v2789 = vunpack.c.l.b16 %v2725
      %v2790 = vunpack.c.l.b16 %v2726
      %v2791 = vunpack.c.l.b16 %v2727
      %v2792 = vunpack.c.l.b16 %v2728
      %v2793 = vunpack.c.l.b16 %v2729
      %v2794 = vunpack.c.l.b16 %v2730
      %v2795 = vunpack.c.l.b16 %v2731
      %v2796 = vunpack.c.l.b16 %v2732
      %v2797 = vunpack.c.l.b16 %v2733
      %v2798 = vunpack.c.l.b16 %v2734
      %v2799 = vunpack.c.l.b16 %v2735
      %v2800 = vunpack.c.l.b16 %v2736
      %v2801 = vunpack.c.l.b16 %v2737
      %v2802 = vunpack.c.l.b16 %v2738
      %v2803 = vunpack.c.l.b16 %v2739
      %v2804 = vunpack.c.l.b16 %v2740
      %v2805 = vunpack.c.l.b16 %v2741
      %v2806 = vunpack.c.l.b16 %v2742
      %v2807 = vunpack.c.l.b16 %v2743
      %v2808 = vunpack.c.l.b16 %v2744
      %v2809 = vunpack.c.l.b16 %v2745
      %v2810 = vunpack.c.l.b16 %v2746
      %v2811 = vunpack.c.l.b16 %v2747
      %v2812 = vunpack.c.l.b16 %v2748
      %v2813 = vunpack.c.l.b16 %v2749
      %v2814 = vunpack.c.l.b16 %v2750
      %v2815 = vunpack.c.l.b16 %v2751
      %v2816 = vunpack.c.l.b16 %v2752
      %v2817 = vunpack.c.l.b16 %v2753
      %v2818 = vunpack.c.l.b16 %v2754
      %v2819 = vunpack.c.l.b16 %v2755
      %v2820 = vunpack.c.l.b16 %v2756
      %v2821 = vpack.c.b16 %v2790, %v2789
      %v2822 = vpack.c.b16 %v2792, %v2791
      %v2823 = vpack.c.b16 %v2794, %v2793
      %v2824 = vpack.c.b16 %v2796, %v2795
      %v2825 = vpack.c.b16 %v2798, %v2797
      %v2826 = vpack.c.b16 %v2800, %v2799
      %v2827 = vpack.c.b16 %v2802, %v2801
      %v2828 = vpack.c.b16 %v2804, %v2803
      %v2829 = vpack.c.b16 %v2806, %v2805
      %v2830 = vpack.c.b16 %v2808, %v2807
      %v2831 = vpack.c.b16 %v2810, %v2809
      %v2832 = vpack.c.b16 %v2812, %v2811
      %v2833 = vpack.c.b16 %v2814, %v2813
      %v2834 = vpack.c.b16 %v2816, %v2815
      %v2835 = vpack.c.b16 %v2818, %v2817
      %v2836 = vpack.c.b16 %v2820, %v2819
      %2853 = vmatprep.subr.bf16.mxu0 0
      %2854 = vmatpush1.bf16.msra.mxu0 %v2821
      %2855 = vmatprep.subr.bf16.mxu0 0
      %2856 = vmatpush1.bf16.msra.mxu0 %v2822
      %2857 = vmatprep.subr.bf16.mxu0 0
      %2858 = vmatpush1.bf16.msra.mxu0 %v2823
      %2859 = vmatprep.subr.bf16.mxu0 0
      %2860 = vmatpush1.bf16.msra.mxu0 %v2824
      %2861 = vmatprep.subr.bf16.mxu0 0
      %2862 = vmatpush1.bf16.msra.mxu0 %v2825
      %2863 = vmatprep.subr.bf16.mxu0 0
      %2864 = vmatpush1.bf16.msra.mxu0 %v2826
      %2865 = vmatprep.subr.bf16.mxu0 0
      %2866 = vmatpush1.bf16.msra.mxu0 %v2827
      %2867 = vmatprep.subr.bf16.mxu0 0
      %2868 = vmatpush1.bf16.msra.mxu0 %v2828
      %2869 = vmatprep.subr.bf16.mxu0 0
      %2870 = vmatpush1.bf16.msra.mxu0 %v2829
      %2871 = vmatprep.subr.bf16.mxu0 0
      %2872 = vmatpush1.bf16.msra.mxu0 %v2830
      %2873 = vmatprep.subr.bf16.mxu0 0
      %2874 = vmatpush1.bf16.msra.mxu0 %v2831
      %2875 = vmatprep.subr.bf16.mxu0 0
      %2876 = vmatpush1.bf16.msra.mxu0 %v2832
      %2877 = vmatprep.subr.bf16.mxu0 0
      %2878 = vmatpush1.bf16.msra.mxu0 %v2833
      %2879 = vmatprep.subr.bf16.mxu0 0
      %2880 = vmatpush1.bf16.msra.mxu0 %v2834
      %2881 = vmatprep.subr.bf16.mxu0 0
      %2882 = vmatpush1.bf16.msra.mxu0 %v2835
      %2883 = vmatprep.subr.bf16.mxu0 0
      %2884 = vmatpush1.bf16.msra.mxu0 %v2836
      %2885 = vmatprep.mubr.bf16.mxu0 %v1122
      %2886 = vmatmul.mubr.bf16.gmra.mrb[0].mxu0 %v1121
      %v2887 = vpop.f32.mrb[0].mxu0
      %v2888 = vadd.f32 0.0, %v2887
      %v2889 = vpop.f32.mrb[0].mxu0
      %v2890 = vpop.f32.mrb[0].mxu0
      %v2891 = vpop.f32.mrb[0].mxu0
      %2892 = vdwg.mxu0
      %v2893 = vpack.c.bf16 %v2888, %v2888
      %s2894 = scalar_lea.vmem %s7, 56
      %v2895 = vld [vmem:[%s2894] sm:$0xf]
      %v2896 = vld [vmem:[%s2894 + $0x4] sm:$0xf]
      %v2899 = vunpack.c.l.b16 %v2895
      %v2900 = vunpack.c.l.b16 %v2896
      %v2901 = vpack.c.b16 %v2900, %v2899
      %v2903 = vsel %vm1301, %v2901, 0
      %v2906 = vsel %vm1305, %v2893, 0
      %2908 = vmatprep.subr.bf16.mxu0 0
      %2909 = vmatpush1.bf16.msra.mxu0 %v2906
      %2910 = vmatprep.subr.bf16.mxu0 0
      %2911 = vmatpush1.bf16.msra.mxu0 0
      %2912 = vmatprep.subr.bf16.mxu0 0
      %2913 = vmatpush1.bf16.msra.mxu0 0
      %2914 = vmatprep.subr.bf16.mxu0 0
      %2915 = vmatpush1.bf16.msra.mxu0 0
      %2916 = vmatprep.subr.bf16.mxu0 0
      %2917 = vmatpush1.bf16.msra.mxu0 0
      %2918 = vmatprep.subr.bf16.mxu0 0
      %2919 = vmatpush1.bf16.msra.mxu0 0
      %2920 = vmatprep.subr.bf16.mxu0 0
      %2921 = vmatpush1.bf16.msra.mxu0 0
      %2922 = vmatprep.subr.bf16.mxu0 0
      %2923 = vmatpush1.bf16.msra.mxu0 0
      %2924 = vmatprep.subr.bf16.mxu0 0
      %2925 = vmatpush1.bf16.msra.mxu0 0
      %2926 = vmatprep.subr.bf16.mxu0 0
      %2927 = vmatpush1.bf16.msra.mxu0 0
      %2928 = vmatprep.subr.bf16.mxu0 0
      %2929 = vmatpush1.bf16.msra.mxu0 0
      %2930 = vmatprep.subr.bf16.mxu0 0
      %2931 = vmatpush1.bf16.msra.mxu0 0
      %2932 = vmatprep.subr.bf16.mxu0 0
      %2933 = vmatpush1.bf16.msra.mxu0 0
      %2934 = vmatprep.subr.bf16.mxu0 0
      %2935 = vmatpush1.bf16.msra.mxu0 0
      %2936 = vmatprep.subr.bf16.mxu0 0
      %2937 = vmatpush1.bf16.msra.mxu0 0
      %2938 = vmatprep.subr.bf16.mxu0 0
      %2939 = vmatpush1.bf16.msra.mxu0 0
      %2940 = vmatprep.mubr.bf16.mxu0 0
      %2941 = vmatmul.mubr.bf16.gmra.mrb[0].mxu0 %v2903
      %v2942 = vpop.f32.mrb[0].mxu0
      %v2943 = vadd.f32 0.0, %v2942
      %v2944 = vpop.f32.mrb[0].mxu0
      %v2945 = vpop.f32.mrb[0].mxu0
      %v2946 = vadd.f32 0.0, %v2945
      %v2947 = vpop.f32.mrb[0].mxu0
      %2948 = vdwg.mxu0
      %v2949 = vadd.f32 %v2722, %v2943
      %v2950 = vadd.f32 %v2723, %v2946
      %s2951 = scalar_lea.vmem %s11, 1024
      %v2952 = vld [vmem:[%s2951] sm:$0xf]
      %v2953 = vld [vmem:[%s2951 + $0x4] sm:$0xf]
      %v2954 = vld [vmem:[%s2951 + $0x8] sm:$0xf]
      %v2955 = vld [vmem:[%s2951 + $0xc] sm:$0xf]
      %v2956 = vld [vmem:[%s2951 + $0x10] sm:$0xf]
      %v2957 = vld [vmem:[%s2951 + $0x14] sm:$0xf]
      %v2958 = vld [vmem:[%s2951 + $0x18] sm:$0xf]
      %v2959 = vld [vmem:[%s2951 + $0x1c] sm:$0xf]
      %v2960 = vld [vmem:[%s2951 + $0x20] sm:$0xf]
      %v2961 = vld [vmem:[%s2951 + $0x24] sm:$0xf]
      %v2962 = vld [vmem:[%s2951 + $0x28] sm:$0xf]
      %v2963 = vld [vmem:[%s2951 + $0x2c] sm:$0xf]
      %v2964 = vld [vmem:[%s2951 + $0x30] sm:$0xf]
      %v2965 = vld [vmem:[%s2951 + $0x34] sm:$0xf]
      %v2966 = vld [vmem:[%s2951 + $0x38] sm:$0xf]
      %v2967 = vld [vmem:[%s2951 + $0x3c] sm:$0xf]
      %v2968 = vld [vmem:[%s2951 + $0x40] sm:$0xf]
      %v2969 = vld [vmem:[%s2951 + $0x44] sm:$0xf]
      %v2970 = vld [vmem:[%s2951 + $0x48] sm:$0xf]
      %v2971 = vld [vmem:[%s2951 + $0x4c] sm:$0xf]
      %v2972 = vld [vmem:[%s2951 + $0x50] sm:$0xf]
      %v2973 = vld [vmem:[%s2951 + $0x54] sm:$0xf]
      %v2974 = vld [vmem:[%s2951 + $0x58] sm:$0xf]
      %v2975 = vld [vmem:[%s2951 + $0x5c] sm:$0xf]
      %v2976 = vld [vmem:[%s2951 + $0x60] sm:$0xf]
      %v2977 = vld [vmem:[%s2951 + $0x64] sm:$0xf]
      %v2978 = vld [vmem:[%s2951 + $0x68] sm:$0xf]
      %v2979 = vld [vmem:[%s2951 + $0x6c] sm:$0xf]
      %v2980 = vld [vmem:[%s2951 + $0x70] sm:$0xf]
      %v2981 = vld [vmem:[%s2951 + $0x74] sm:$0xf]
      %v2982 = vld [vmem:[%s2951 + $0x78] sm:$0xf]
      %v2983 = vld [vmem:[%s2951 + $0x7c] sm:$0xf]
      %v3016 = vunpack.c.l.b16 %v2952
      %v3017 = vunpack.c.l.b16 %v2953
      %v3018 = vunpack.c.l.b16 %v2954
      %v3019 = vunpack.c.l.b16 %v2955
      %v3020 = vunpack.c.l.b16 %v2956
      %v3021 = vunpack.c.l.b16 %v2957
      %v3022 = vunpack.c.l.b16 %v2958
      %v3023 = vunpack.c.l.b16 %v2959
      %v3024 = vunpack.c.l.b16 %v2960
      %v3025 = vunpack.c.l.b16 %v2961
      %v3026 = vunpack.c.l.b16 %v2962
      %v3027 = vunpack.c.l.b16 %v2963
      %v3028 = vunpack.c.l.b16 %v2964
      %v3029 = vunpack.c.l.b16 %v2965
      %v3030 = vunpack.c.l.b16 %v2966
      %v3031 = vunpack.c.l.b16 %v2967
      %v3032 = vunpack.c.l.b16 %v2968
      %v3033 = vunpack.c.l.b16 %v2969
      %v3034 = vunpack.c.l.b16 %v2970
      %v3035 = vunpack.c.l.b16 %v2971
      %v3036 = vunpack.c.l.b16 %v2972
      %v3037 = vunpack.c.l.b16 %v2973
      %v3038 = vunpack.c.l.b16 %v2974
      %v3039 = vunpack.c.l.b16 %v2975
      %v3040 = vunpack.c.l.b16 %v2976
      %v3041 = vunpack.c.l.b16 %v2977
      %v3042 = vunpack.c.l.b16 %v2978
      %v3043 = vunpack.c.l.b16 %v2979
      %v3044 = vunpack.c.l.b16 %v2980
      %v3045 = vunpack.c.l.b16 %v2981
      %v3046 = vunpack.c.l.b16 %v2982
      %v3047 = vunpack.c.l.b16 %v2983
      %v3048 = vpack.c.b16 %v3017, %v3016
      %v3049 = vpack.c.b16 %v3019, %v3018
      %v3050 = vpack.c.b16 %v3021, %v3020
      %v3051 = vpack.c.b16 %v3023, %v3022
      %v3052 = vpack.c.b16 %v3025, %v3024
      %v3053 = vpack.c.b16 %v3027, %v3026
      %v3054 = vpack.c.b16 %v3029, %v3028
      %v3055 = vpack.c.b16 %v3031, %v3030
      %v3056 = vpack.c.b16 %v3033, %v3032
      %v3057 = vpack.c.b16 %v3035, %v3034
      %v3058 = vpack.c.b16 %v3037, %v3036
      %v3059 = vpack.c.b16 %v3039, %v3038
      %v3060 = vpack.c.b16 %v3041, %v3040
      %v3061 = vpack.c.b16 %v3043, %v3042
      %v3062 = vpack.c.b16 %v3045, %v3044
      %v3063 = vpack.c.b16 %v3047, %v3046
      %3080 = vmatprep.subr.bf16.mxu0 0
      %3081 = vmatpush1.bf16.msra.mxu0 %v3048
      %3082 = vmatprep.subr.bf16.mxu0 0
      %3083 = vmatpush1.bf16.msra.mxu0 %v3049
      %3084 = vmatprep.subr.bf16.mxu0 0
      %3085 = vmatpush1.bf16.msra.mxu0 %v3050
      %3086 = vmatprep.subr.bf16.mxu0 0
      %3087 = vmatpush1.bf16.msra.mxu0 %v3051
      %3088 = vmatprep.subr.bf16.mxu0 0
      %3089 = vmatpush1.bf16.msra.mxu0 %v3052
      %3090 = vmatprep.subr.bf16.mxu0 0
      %3091 = vmatpush1.bf16.msra.mxu0 %v3053
      %3092 = vmatprep.subr.bf16.mxu0 0
      %3093 = vmatpush1.bf16.msra.mxu0 %v3054
      %3094 = vmatprep.subr.bf16.mxu0 0
      %3095 = vmatpush1.bf16.msra.mxu0 %v3055
      %3096 = vmatprep.subr.bf16.mxu0 0
      %3097 = vmatpush1.bf16.msra.mxu0 %v3056
      %3098 = vmatprep.subr.bf16.mxu0 0
      %3099 = vmatpush1.bf16.msra.mxu0 %v3057
      %3100 = vmatprep.subr.bf16.mxu0 0
      %3101 = vmatpush1.bf16.msra.mxu0 %v3058
      %3102 = vmatprep.subr.bf16.mxu0 0
      %3103 = vmatpush1.bf16.msra.mxu0 %v3059
      %3104 = vmatprep.subr.bf16.mxu0 0
      %3105 = vmatpush1.bf16.msra.mxu0 %v3060
      %3106 = vmatprep.subr.bf16.mxu0 0
      %3107 = vmatpush1.bf16.msra.mxu0 %v3061
      %3108 = vmatprep.subr.bf16.mxu0 0
      %3109 = vmatpush1.bf16.msra.mxu0 %v3062
      %3110 = vmatprep.subr.bf16.mxu0 0
      %3111 = vmatpush1.bf16.msra.mxu0 %v3063
      %3112 = vmatprep.mubr.bf16.mxu0 %v1122
      %3113 = vmatmul.mubr.bf16.gmra.mrb[0].mxu0 %v1121
      %v3114 = vpop.f32.mrb[0].mxu0
      %v3115 = vadd.f32 0.0, %v3114
      %v3116 = vpop.f32.mrb[0].mxu0
      %v3117 = vpop.f32.mrb[0].mxu0
      %v3118 = vpop.f32.mrb[0].mxu0
      %3119 = vdwg.mxu0
      %v3120 = vpack.c.bf16 %v3115, %v3115
      %s3121 = scalar_lea.vmem %s7, 64
      %v3122 = vld [vmem:[%s3121] sm:$0xf]
      %v3123 = vld [vmem:[%s3121 + $0x4] sm:$0xf]
      %v3126 = vunpack.c.l.b16 %v3122
      %v3127 = vunpack.c.l.b16 %v3123
      %v3128 = vpack.c.b16 %v3127, %v3126
      %v3130 = vsel %vm1301, %v3128, 0
      %v3133 = vsel %vm1305, %v3120, 0
      %3135 = vmatprep.subr.bf16.mxu0 0
      %3136 = vmatpush1.bf16.msra.mxu0 %v3133
      %3137 = vmatprep.subr.bf16.mxu0 0
      %3138 = vmatpush1.bf16.msra.mxu0 0
      %3139 = vmatprep.subr.bf16.mxu0 0
      %3140 = vmatpush1.bf16.msra.mxu0 0
      %3141 = vmatprep.subr.bf16.mxu0 0
      %3142 = vmatpush1.bf16.msra.mxu0 0
      %3143 = vmatprep.subr.bf16.mxu0 0
      %3144 = vmatpush1.bf16.msra.mxu0 0
      %3145 = vmatprep.subr.bf16.mxu0 0
      %3146 = vmatpush1.bf16.msra.mxu0 0
      %3147 = vmatprep.subr.bf16.mxu0 0
      %3148 = vmatpush1.bf16.msra.mxu0 0
      %3149 = vmatprep.subr.bf16.mxu0 0
      %3150 = vmatpush1.bf16.msra.mxu0 0
      %3151 = vmatprep.subr.bf16.mxu0 0
      %3152 = vmatpush1.bf16.msra.mxu0 0
      %3153 = vmatprep.subr.bf16.mxu0 0
      %3154 = vmatpush1.bf16.msra.mxu0 0
      %3155 = vmatprep.subr.bf16.mxu0 0
      %3156 = vmatpush1.bf16.msra.mxu0 0
      %3157 = vmatprep.subr.bf16.mxu0 0
      %3158 = vmatpush1.bf16.msra.mxu0 0
      %3159 = vmatprep.subr.bf16.mxu0 0
      %3160 = vmatpush1.bf16.msra.mxu0 0
      %3161 = vmatprep.subr.bf16.mxu0 0
      %3162 = vmatpush1.bf16.msra.mxu0 0
      %3163 = vmatprep.subr.bf16.mxu0 0
      %3164 = vmatpush1.bf16.msra.mxu0 0
      %3165 = vmatprep.subr.bf16.mxu0 0
      %3166 = vmatpush1.bf16.msra.mxu0 0
      %3167 = vmatprep.mubr.bf16.mxu0 0
      %3168 = vmatmul.mubr.bf16.gmra.mrb[0].mxu0 %v3130
      %v3169 = vpop.f32.mrb[0].mxu0
      %v3170 = vadd.f32 0.0, %v3169
      %v3171 = vpop.f32.mrb[0].mxu0
      %v3172 = vpop.f32.mrb[0].mxu0
      %v3173 = vadd.f32 0.0, %v3172
      %v3174 = vpop.f32.mrb[0].mxu0
      %3175 = vdwg.mxu0
      %v3176 = vadd.f32 %v2949, %v3170
      %v3177 = vadd.f32 %v2950, %v3173
      %v3178 = vpack.c.bf16 %v3177, %v3176
      %v3179 = vld [vmem:[%s15] sm:$0xff]
      %v3180 = vld [vmem:[%s15 + $0x8] sm:$0xff]
      %v3181 = vld [vmem:[%s15 + $0x10] sm:$0xff]
      %v3182 = vld [vmem:[%s15 + $0x18] sm:$0xff]
      %v3183 = vld [vmem:[%s17] sm:$0xf]
      %v3184 = vld [vmem:[%s17 + $0x4] sm:$0xf]
      %v3185 = vld [vmem:[%s17 + $0x8] sm:$0xf]
      %v3186 = vld [vmem:[%s17 + $0xc] sm:$0xf]
      %v3187 = vld [vmem:[%s17 + $0x10] sm:$0xf]
      %v3188 = vld [vmem:[%s17 + $0x14] sm:$0xf]
      %v3189 = vld [vmem:[%s17 + $0x18] sm:$0xf]
      %v3190 = vld [vmem:[%s17 + $0x1c] sm:$0xf]
      %v3199 = vunpack.c.l.b16 %v3183
      %v3200 = vunpack.c.l.b16 %v3184
      %v3201 = vunpack.c.l.b16 %v3185
      %v3202 = vunpack.c.l.b16 %v3186
      %v3203 = vunpack.c.l.b16 %v3187
      %v3204 = vunpack.c.l.b16 %v3188
      %v3205 = vunpack.c.l.b16 %v3189
      %v3206 = vunpack.c.l.b16 %v3190
      %v3207 = vpack.c.b16 %v3200, %v3199
      %v3208 = vpack.c.b16 %v3202, %v3201
      %v3209 = vpack.c.b16 %v3204, %v3203
      %v3210 = vpack.c.b16 %v3206, %v3205
      %vm3215 = vcmask 523264
      %v3217 = vsel %vm3215, %v3178, 0
      %3219 = vmatprep.subr.bf16.mxu0 0
      %3220 = vmatpush1.bf16.msra.mxu0 %v3207
      %3221 = vmatprep.subr.bf16.mxu0 0
      %3222 = vmatpush1.bf16.msra.mxu0 %v3208
      %3223 = vmatprep.subr.bf16.mxu0 0
      %3224 = vmatpush1.bf16.msra.mxu0 %v3209
      %3225 = vmatprep.subr.bf16.mxu0 0
      %3226 = vmatpush1.bf16.msra.mxu0 %v3210
      %3227 = vmatprep.subr.bf16.mxu0 0
      %3228 = vmatpush1.bf16.msra.mxu0 0
      %3229 = vmatprep.subr.bf16.mxu0 0
      %3230 = vmatpush1.bf16.msra.mxu0 0
      %3231 = vmatprep.subr.bf16.mxu0 0
      %3232 = vmatpush1.bf16.msra.mxu0 0
      %3233 = vmatprep.subr.bf16.mxu0 0
      %3234 = vmatpush1.bf16.msra.mxu0 0
      %3235 = vmatprep.subr.bf16.mxu0 0
      %3236 = vmatpush1.bf16.msra.mxu0 0
      %3237 = vmatprep.subr.bf16.mxu0 0
      %3238 = vmatpush1.bf16.msra.mxu0 0
      %3239 = vmatprep.subr.bf16.mxu0 0
      %3240 = vmatpush1.bf16.msra.mxu0 0
      %3241 = vmatprep.subr.bf16.mxu0 0
      %3242 = vmatpush1.bf16.msra.mxu0 0
      %3243 = vmatprep.subr.bf16.mxu0 0
      %3244 = vmatpush1.bf16.msra.mxu0 0
      %3245 = vmatprep.subr.bf16.mxu0 0
      %3246 = vmatpush1.bf16.msra.mxu0 0
      %3247 = vmatprep.subr.bf16.mxu0 0
      %3248 = vmatpush1.bf16.msra.mxu0 0
      %3249 = vmatprep.subr.bf16.mxu0 0
      %3250 = vmatpush1.bf16.msra.mxu0 0
      %3251 = vmatprep.mubr.bf16.mxu0 0
      %3252 = vmatmul.mubr.bf16.gmra.mrb[0].mxu0 %v3217
      %v3253 = vpop.f32.mrb[0].mxu0
      %v3254 = vadd.f32 0.0, %v3253
      %v3255 = vpop.f32.mrb[0].mxu0
      %v3256 = vpop.f32.mrb[0].mxu0
      %v3257 = vadd.f32 0.0, %v3256
      %v3258 = vpop.f32.mrb[0].mxu0
      %3259 = vdwg.mxu0
      %v3260 = vpack.c.bf16 %v3257, %v3254
      %v3261 = vld [vmem:[%s13] sm:$0xf]
      %v3262 = vld [vmem:[%s13 + $0x4] sm:$0xf]
      %v3263 = vld [vmem:[%s13 + $0x8] sm:$0xf]
      %v3264 = vld [vmem:[%s13 + $0xc] sm:$0xf]
      %v3269 = vunpack.c.l.b16 %v3261
      %v3270 = vunpack.c.l.b16 %v3262
      %v3271 = vunpack.c.l.b16 %v3263
      %v3272 = vunpack.c.l.b16 %v3264
      %v3273 = vpack.c.b16 %v3270, %v3269
      %v3274 = vpack.c.b16 %v3272, %v3271
      %vm3275 = vcmask 130048
      %v3277 = vsel %vm3275, %v3273, 0
      %v3280 = vsel %vm3275, %v3274, 0
      %3282 = vmatprep.subr.bf16.mxu0 0
      %3283 = vmatpush1.bf16.msra.mxu0 %v3260
      %3284 = vmatprep.subr.bf16.mxu0 0
      %3285 = vmatpush1.bf16.msra.mxu0 0
      %3286 = vmatprep.subr.bf16.mxu0 0
      %3287 = vmatpush1.bf16.msra.mxu0 0
      %3288 = vmatprep.subr.bf16.mxu0 0
      %3289 = vmatpush1.bf16.msra.mxu0 0
      %3290 = vmatprep.subr.bf16.mxu0 0
      %3291 = vmatpush1.bf16.msra.mxu0 0
      %3292 = vmatprep.subr.bf16.mxu0 0
      %3293 = vmatpush1.bf16.msra.mxu0 0
      %3294 = vmatprep.subr.bf16.mxu0 0
      %3295 = vmatpush1.bf16.msra.mxu0 0
      %3296 = vmatprep.subr.bf16.mxu0 0
      %3297 = vmatpush1.bf16.msra.mxu0 0
      %3298 = vmatprep.subr.bf16.mxu0 0
      %3299 = vmatpush1.bf16.msra.mxu0 0
      %3300 = vmatprep.subr.bf16.mxu0 0
      %3301 = vmatpush1.bf16.msra.mxu0 0
      %3302 = vmatprep.subr.bf16.mxu0 0
      %3303 = vmatpush1.bf16.msra.mxu0 0
      %3304 = vmatprep.subr.bf16.mxu0 0
      %3305 = vmatpush1.bf16.msra.mxu0 0
      %3306 = vmatprep.subr.bf16.mxu0 0
      %3307 = vmatpush1.bf16.msra.mxu0 0
      %3308 = vmatprep.subr.bf16.mxu0 0
      %3309 = vmatpush1.bf16.msra.mxu0 0
      %3310 = vmatprep.subr.bf16.mxu0 0
      %3311 = vmatpush1.bf16.msra.mxu0 0
      %3312 = vmatprep.subr.bf16.mxu0 0
      %3313 = vmatpush1.bf16.msra.mxu0 0
      %3314 = vmatprep.mubr.bf16.mxu0 0
      %3315 = vmatmul.mubr.bf16.gmra.mrb[0].mxu0 %v3277
      %v3316 = vpop.f32.mrb[0].mxu0
      %v3317 = vadd.f32 0.0, %v3316
      %v3318 = vpop.f32.mrb[0].mxu0
      %v3319 = vpop.f32.mrb[0].mxu0
      %v3320 = vadd.f32 0.0, %v3319
      %v3321 = vpop.f32.mrb[0].mxu0
      %3322 = vmatprep.mubr.bf16.mxu0 0
      %3323 = vmatmul.mubr.bf16.gmra.mrb[0].mxu0 %v3280
      %v3324 = vpop.f32.mrb[0].mxu0
      %v3325 = vadd.f32 0.0, %v3324
      %v3326 = vpop.f32.mrb[0].mxu0
      %v3327 = vpop.f32.mrb[0].mxu0
      %v3328 = vadd.f32 0.0, %v3327
      %v3329 = vpop.f32.mrb[0].mxu0
      %3330 = vdwg.mxu0
      %3332 = vset.pattern.permute.xlu0 0
      %3333 = vperm.xlu0 %3332, %v3179
      %v3334 = vpop.permute.xlu0 %3333
      %3337 = vset.pattern.permute.xlu0 0
      %3338 = vperm.xlu0 %3337, %v3180
      %v3339 = vpop.permute.xlu0 %3338
      %3342 = vset.pattern.permute.xlu0 0
      %3343 = vperm.xlu0 %3342, %v3181
      %v3344 = vpop.permute.xlu0 %3343
      %3347 = vset.pattern.permute.xlu0 0
      %3348 = vperm.xlu0 %3347, %v3182
      %v3349 = vpop.permute.xlu0 %3348
      %v3351 = vadd.f32 %v3334, %v3317
      %v3352 = vadd.f32 %v3339, %v3320
      %v3353 = vadd.f32 %v3344, %v3325
      %v3354 = vadd.f32 %v3349, %v3328
      %s3355 = scalar_lea.vmem %s17, 32
      %v3356 = vld [vmem:[%s3355] sm:$0xf]
      %v3357 = vld [vmem:[%s3355 + $0x4] sm:$0xf]
      %v3358 = vld [vmem:[%s3355 + $0x8] sm:$0xf]
      %v3359 = vld [vmem:[%s3355 + $0xc] sm:$0xf]
      %v3360 = vld [vmem:[%s3355 + $0x10] sm:$0xf]
      %v3361 = vld [vmem:[%s3355 + $0x14] sm:$0xf]
      %v3362 = vld [vmem:[%s3355 + $0x18] sm:$0xf]
      %v3363 = vld [vmem:[%s3355 + $0x1c] sm:$0xf]
      %v3372 = vunpack.c.l.b16 %v3356
      %v3373 = vunpack.c.l.b16 %v3357
      %v3374 = vunpack.c.l.b16 %v3358
      %v3375 = vunpack.c.l.b16 %v3359
      %v3376 = vunpack.c.l.b16 %v3360
      %v3377 = vunpack.c.l.b16 %v3361
      %v3378 = vunpack.c.l.b16 %v3362
      %v3379 = vunpack.c.l.b16 %v3363
      %v3380 = vpack.c.b16 %v3373, %v3372
      %v3381 = vpack.c.b16 %v3375, %v3374
      %v3382 = vpack.c.b16 %v3377, %v3376
      %v3383 = vpack.c.b16 %v3379, %v3378
      %3388 = vmatprep.subr.bf16.mxu0 0
      %3389 = vmatpush1.bf16.msra.mxu0 %v3380
      %3390 = vmatprep.subr.bf16.mxu0 0
      %3391 = vmatpush1.bf16.msra.mxu0 %v3381
      %3392 = vmatprep.subr.bf16.mxu0 0
      %3393 = vmatpush1.bf16.msra.mxu0 %v3382
      %3394 = vmatprep.subr.bf16.mxu0 0
      %3395 = vmatpush1.bf16.msra.mxu0 %v3383
      %3396 = vmatprep.subr.bf16.mxu0 0
      %3397 = vmatpush1.bf16.msra.mxu0 0
      %3398 = vmatprep.subr.bf16.mxu0 0
      %3399 = vmatpush1.bf16.msra.mxu0 0
      %3400 = vmatprep.subr.bf16.mxu0 0
      %3401 = vmatpush1.bf16.msra.mxu0 0
      %3402 = vmatprep.subr.bf16.mxu0 0
      %3403 = vmatpush1.bf16.msra.mxu0 0
      %3404 = vmatprep.subr.bf16.mxu0 0
      %3405 = vmatpush1.bf16.msra.mxu0 0
      %3406 = vmatprep.subr.bf16.mxu0 0
      %3407 = vmatpush1.bf16.msra.mxu0 0
      %3408 = vmatprep.subr.bf16.mxu0 0
      %3409 = vmatpush1.bf16.msra.mxu0 0
      %3410 = vmatprep.subr.bf16.mxu0 0
      %3411 = vmatpush1.bf16.msra.mxu0 0
      %3412 = vmatprep.subr.bf16.mxu0 0
      %3413 = vmatpush1.bf16.msra.mxu0 0
      %3414 = vmatprep.subr.bf16.mxu0 0
      %3415 = vmatpush1.bf16.msra.mxu0 0
      %3416 = vmatprep.subr.bf16.mxu0 0
      %3417 = vmatpush1.bf16.msra.mxu0 0
      %3418 = vmatprep.subr.bf16.mxu0 0
      %3419 = vmatpush1.bf16.msra.mxu0 0
      %3420 = vmatprep.mubr.bf16.mxu0 0
      %3421 = vmatmul.mubr.bf16.gmra.mrb[0].mxu0 %v3217
      %v3422 = vpop.f32.mrb[0].mxu0
      %v3423 = vadd.f32 0.0, %v3422
      %v3424 = vpop.f32.mrb[0].mxu0
      %v3425 = vpop.f32.mrb[0].mxu0
      %v3426 = vadd.f32 0.0, %v3425
      %v3427 = vpop.f32.mrb[0].mxu0
      %3428 = vdwg.mxu0
      %v3429 = vpack.c.bf16 %v3426, %v3423
      %s3430 = scalar_lea.vmem %s13, 16
      %v3431 = vld [vmem:[%s3430] sm:$0xf]
      %v3432 = vld [vmem:[%s3430 + $0x4] sm:$0xf]
      %v3433 = vld [vmem:[%s3430 + $0x8] sm:$0xf]
      %v3434 = vld [vmem:[%s3430 + $0xc] sm:$0xf]
      %v3439 = vunpack.c.l.b16 %v3431
      %v3440 = vunpack.c.l.b16 %v3432
      %v3441 = vunpack.c.l.b16 %v3433
      %v3442 = vunpack.c.l.b16 %v3434
      %v3443 = vpack.c.b16 %v3440, %v3439
      %v3444 = vpack.c.b16 %v3442, %v3441
      %v3446 = vsel %vm3275, %v3443, 0
      %v3449 = vsel %vm3275, %v3444, 0
      %3451 = vmatprep.subr.bf16.mxu0 0
      %3452 = vmatpush1.bf16.msra.mxu0 %v3429
      %3453 = vmatprep.subr.bf16.mxu0 0
      %3454 = vmatpush1.bf16.msra.mxu0 0
      %3455 = vmatprep.subr.bf16.mxu0 0
      %3456 = vmatpush1.bf16.msra.mxu0 0
      %3457 = vmatprep.subr.bf16.mxu0 0
      %3458 = vmatpush1.bf16.msra.mxu0 0
      %3459 = vmatprep.subr.bf16.mxu0 0
      %3460 = vmatpush1.bf16.msra.mxu0 0
      %3461 = vmatprep.subr.bf16.mxu0 0
      %3462 = vmatpush1.bf16.msra.mxu0 0
      %3463 = vmatprep.subr.bf16.mxu0 0
      %3464 = vmatpush1.bf16.msra.mxu0 0
      %3465 = vmatprep.subr.bf16.mxu0 0
      %3466 = vmatpush1.bf16.msra.mxu0 0
      %3467 = vmatprep.subr.bf16.mxu0 0
      %3468 = vmatpush1.bf16.msra.mxu0 0
      %3469 = vmatprep.subr.bf16.mxu0 0
      %3470 = vmatpush1.bf16.msra.mxu0 0
      %3471 = vmatprep.subr.bf16.mxu0 0
      %3472 = vmatpush1.bf16.msra.mxu0 0
      %3473 = vmatprep.subr.bf16.mxu0 0
      %3474 = vmatpush1.bf16.msra.mxu0 0
      %3475 = vmatprep.subr.bf16.mxu0 0
      %3476 = vmatpush1.bf16.msra.mxu0 0
      %3477 = vmatprep.subr.bf16.mxu0 0
      %3478 = vmatpush1.bf16.msra.mxu0 0
      %3479 = vmatprep.subr.bf16.mxu0 0
      %3480 = vmatpush1.bf16.msra.mxu0 0
      %3481 = vmatprep.subr.bf16.mxu0 0
      %3482 = vmatpush1.bf16.msra.mxu0 0
      %3483 = vmatprep.mubr.bf16.mxu0 0
      %3484 = vmatmul.mubr.bf16.gmra.mrb[0].mxu0 %v3446
      %v3485 = vpop.f32.mrb[0].mxu0
      %v3486 = vadd.f32 0.0, %v3485
      %v3487 = vpop.f32.mrb[0].mxu0
      %v3488 = vpop.f32.mrb[0].mxu0
      %v3489 = vadd.f32 0.0, %v3488
      %v3490 = vpop.f32.mrb[0].mxu0
      %3491 = vmatprep.mubr.bf16.mxu0 0
      %3492 = vmatmul.mubr.bf16.gmra.mrb[0].mxu0 %v3449
      %v3493 = vpop.f32.mrb[0].mxu0
      %v3494 = vadd.f32 0.0, %v3493
      %v3495 = vpop.f32.mrb[0].mxu0
      %v3496 = vpop.f32.mrb[0].mxu0
      %v3497 = vadd.f32 0.0, %v3496
      %v3498 = vpop.f32.mrb[0].mxu0
      %3499 = vdwg.mxu0
      %v3500 = vadd.f32 %v3351, %v3486
      %v3501 = vadd.f32 %v3352, %v3489
      %v3502 = vadd.f32 %v3353, %v3494
      %v3503 = vadd.f32 %v3354, %v3497
      %s3504 = scalar_lea.vmem %s17, 64
      %v3505 = vld [vmem:[%s3504] sm:$0xf]
      %v3506 = vld [vmem:[%s3504 + $0x4] sm:$0xf]
      %v3507 = vld [vmem:[%s3504 + $0x8] sm:$0xf]
      %v3508 = vld [vmem:[%s3504 + $0xc] sm:$0xf]
      %v3509 = vld [vmem:[%s3504 + $0x10] sm:$0xf]
      %v3510 = vld [vmem:[%s3504 + $0x14] sm:$0xf]
      %v3511 = vld [vmem:[%s3504 + $0x18] sm:$0xf]
      %v3512 = vld [vmem:[%s3504 + $0x1c] sm:$0xf]
      %v3521 = vunpack.c.l.b16 %v3505
      %v3522 = vunpack.c.l.b16 %v3506
      %v3523 = vunpack.c.l.b16 %v3507
      %v3524 = vunpack.c.l.b16 %v3508
      %v3525 = vunpack.c.l.b16 %v3509
      %v3526 = vunpack.c.l.b16 %v3510
      %v3527 = vunpack.c.l.b16 %v3511
      %v3528 = vunpack.c.l.b16 %v3512
      %v3529 = vpack.c.b16 %v3522, %v3521
      %v3530 = vpack.c.b16 %v3524, %v3523
      %v3531 = vpack.c.b16 %v3526, %v3525
      %v3532 = vpack.c.b16 %v3528, %v3527
      %3537 = vmatprep.subr.bf16.mxu0 0
      %3538 = vmatpush1.bf16.msra.mxu0 %v3529
      %3539 = vmatprep.subr.bf16.mxu0 0
      %3540 = vmatpush1.bf16.msra.mxu0 %v3530
      %3541 = vmatprep.subr.bf16.mxu0 0
      %3542 = vmatpush1.bf16.msra.mxu0 %v3531
      %3543 = vmatprep.subr.bf16.mxu0 0
      %3544 = vmatpush1.bf16.msra.mxu0 %v3532
      %3545 = vmatprep.subr.bf16.mxu0 0
      %3546 = vmatpush1.bf16.msra.mxu0 0
      %3547 = vmatprep.subr.bf16.mxu0 0
      %3548 = vmatpush1.bf16.msra.mxu0 0
      %3549 = vmatprep.subr.bf16.mxu0 0
      %3550 = vmatpush1.bf16.msra.mxu0 0
      %3551 = vmatprep.subr.bf16.mxu0 0
      %3552 = vmatpush1.bf16.msra.mxu0 0
      %3553 = vmatprep.subr.bf16.mxu0 0
      %3554 = vmatpush1.bf16.msra.mxu0 0
      %3555 = vmatprep.subr.bf16.mxu0 0
      %3556 = vmatpush1.bf16.msra.mxu0 0
      %3557 = vmatprep.subr.bf16.mxu0 0
      %3558 = vmatpush1.bf16.msra.mxu0 0
      %3559 = vmatprep.subr.bf16.mxu0 0
      %3560 = vmatpush1.bf16.msra.mxu0 0
      %3561 = vmatprep.subr.bf16.mxu0 0
      %3562 = vmatpush1.bf16.msra.mxu0 0
      %3563 = vmatprep.subr.bf16.mxu0 0
      %3564 = vmatpush1.bf16.msra.mxu0 0
      %3565 = vmatprep.subr.bf16.mxu0 0
      %3566 = vmatpush1.bf16.msra.mxu0 0
      %3567 = vmatprep.subr.bf16.mxu0 0
      %3568 = vmatpush1.bf16.msra.mxu0 0
      %3569 = vmatprep.mubr.bf16.mxu0 0
      %3570 = vmatmul.mubr.bf16.gmra.mrb[0].mxu0 %v3217
      %v3571 = vpop.f32.mrb[0].mxu0
      %v3572 = vadd.f32 0.0, %v3571
      %v3573 = vpop.f32.mrb[0].mxu0
      %v3574 = vpop.f32.mrb[0].mxu0
      %v3575 = vadd.f32 0.0, %v3574
      %v3576 = vpop.f32.mrb[0].mxu0
      %3577 = vdwg.mxu0
      %v3578 = vpack.c.bf16 %v3575, %v3572
      %s3579 = scalar_lea.vmem %s13, 32
      %v3580 = vld [vmem:[%s3579] sm:$0xf]
      %v3581 = vld [vmem:[%s3579 + $0x4] sm:$0xf]
      %v3582 = vld [vmem:[%s3579 + $0x8] sm:$0xf]
      %v3583 = vld [vmem:[%s3579 + $0xc] sm:$0xf]
      %v3588 = vunpack.c.l.b16 %v3580
      %v3589 = vunpack.c.l.b16 %v3581
      %v3590 = vunpack.c.l.b16 %v3582
      %v3591 = vunpack.c.l.b16 %v3583
      %v3592 = vpack.c.b16 %v3589, %v3588
      %v3593 = vpack.c.b16 %v3591, %v3590
      %v3595 = vsel %vm3275, %v3592, 0
      %v3598 = vsel %vm3275, %v3593, 0
      %3600 = vmatprep.subr.bf16.mxu0 0
      %3601 = vmatpush1.bf16.msra.mxu0 %v3578
      %3602 = vmatprep.subr.bf16.mxu0 0
      %3603 = vmatpush1.bf16.msra.mxu0 0
      %3604 = vmatprep.subr.bf16.mxu0 0
      %3605 = vmatpush1.bf16.msra.mxu0 0
      %3606 = vmatprep.subr.bf16.mxu0 0
      %3607 = vmatpush1.bf16.msra.mxu0 0
      %3608 = vmatprep.subr.bf16.mxu0 0
      %3609 = vmatpush1.bf16.msra.mxu0 0
      %3610 = vmatprep.subr.bf16.mxu0 0
      %3611 = vmatpush1.bf16.msra.mxu0 0
      %3612 = vmatprep.subr.bf16.mxu0 0
      %3613 = vmatpush1.bf16.msra.mxu0 0
      %3614 = vmatprep.subr.bf16.mxu0 0
      %3615 = vmatpush1.bf16.msra.mxu0 0
      %3616 = vmatprep.subr.bf16.mxu0 0
      %3617 = vmatpush1.bf16.msra.mxu0 0
      %3618 = vmatprep.subr.bf16.mxu0 0
      %3619 = vmatpush1.bf16.msra.mxu0 0
      %3620 = vmatprep.subr.bf16.mxu0 0
      %3621 = vmatpush1.bf16.msra.mxu0 0
      %3622 = vmatprep.subr.bf16.mxu0 0
      %3623 = vmatpush1.bf16.msra.mxu0 0
      %3624 = vmatprep.subr.bf16.mxu0 0
      %3625 = vmatpush1.bf16.msra.mxu0 0
      %3626 = vmatprep.subr.bf16.mxu0 0
      %3627 = vmatpush1.bf16.msra.mxu0 0
      %3628 = vmatprep.subr.bf16.mxu0 0
      %3629 = vmatpush1.bf16.msra.mxu0 0
      %3630 = vmatprep.subr.bf16.mxu0 0
      %3631 = vmatpush1.bf16.msra.mxu0 0
      %3632 = vmatprep.mubr.bf16.mxu0 0
      %3633 = vmatmul.mubr.bf16.gmra.mrb[0].mxu0 %v3595
      %v3634 = vpop.f32.mrb[0].mxu0
      %v3635 = vadd.f32 0.0, %v3634
      %v3636 = vpop.f32.mrb[0].mxu0
      %v3637 = vpop.f32.mrb[0].mxu0
      %v3638 = vadd.f32 0.0, %v3637
      %v3639 = vpop.f32.mrb[0].mxu0
      %3640 = vmatprep.mubr.bf16.mxu0 0
      %3641 = vmatmul.mubr.bf16.gmra.mrb[0].mxu0 %v3598
      %v3642 = vpop.f32.mrb[0].mxu0
      %v3643 = vadd.f32 0.0, %v3642
      %v3644 = vpop.f32.mrb[0].mxu0
      %v3645 = vpop.f32.mrb[0].mxu0
      %v3646 = vadd.f32 0.0, %v3645
      %v3647 = vpop.f32.mrb[0].mxu0
      %3648 = vdwg.mxu0
      %v3649 = vadd.f32 %v3500, %v3635
      %v3650 = vadd.f32 %v3501, %v3638
      %v3651 = vadd.f32 %v3502, %v3643
      %v3652 = vadd.f32 %v3503, %v3646
      %s3653 = scalar_lea.vmem %s17, 96
      %v3654 = vld [vmem:[%s3653] sm:$0xf]
      %v3655 = vld [vmem:[%s3653 + $0x4] sm:$0xf]
      %v3656 = vld [vmem:[%s3653 + $0x8] sm:$0xf]
      %v3657 = vld [vmem:[%s3653 + $0xc] sm:$0xf]
      %v3658 = vld [vmem:[%s3653 + $0x10] sm:$0xf]
      %v3659 = vld [vmem:[%s3653 + $0x14] sm:$0xf]
      %v3660 = vld [vmem:[%s3653 + $0x18] sm:$0xf]
      %v3661 = vld [vmem:[%s3653 + $0x1c] sm:$0xf]
      %v3670 = vunpack.c.l.b16 %v3654
      %v3671 = vunpack.c.l.b16 %v3655
      %v3672 = vunpack.c.l.b16 %v3656
      %v3673 = vunpack.c.l.b16 %v3657
      %v3674 = vunpack.c.l.b16 %v3658
      %v3675 = vunpack.c.l.b16 %v3659
      %v3676 = vunpack.c.l.b16 %v3660
      %v3677 = vunpack.c.l.b16 %v3661
      %v3678 = vpack.c.b16 %v3671, %v3670
      %v3679 = vpack.c.b16 %v3673, %v3672
      %v3680 = vpack.c.b16 %v3675, %v3674
      %v3681 = vpack.c.b16 %v3677, %v3676
      %3686 = vmatprep.subr.bf16.mxu0 0
      %3687 = vmatpush1.bf16.msra.mxu0 %v3678
      %3688 = vmatprep.subr.bf16.mxu0 0
      %3689 = vmatpush1.bf16.msra.mxu0 %v3679
      %3690 = vmatprep.subr.bf16.mxu0 0
      %3691 = vmatpush1.bf16.msra.mxu0 %v3680
      %3692 = vmatprep.subr.bf16.mxu0 0
      %3693 = vmatpush1.bf16.msra.mxu0 %v3681
      %3694 = vmatprep.subr.bf16.mxu0 0
      %3695 = vmatpush1.bf16.msra.mxu0 0
      %3696 = vmatprep.subr.bf16.mxu0 0
      %3697 = vmatpush1.bf16.msra.mxu0 0
      %3698 = vmatprep.subr.bf16.mxu0 0
      %3699 = vmatpush1.bf16.msra.mxu0 0
      %3700 = vmatprep.subr.bf16.mxu0 0
      %3701 = vmatpush1.bf16.msra.mxu0 0
      %3702 = vmatprep.subr.bf16.mxu0 0
      %3703 = vmatpush1.bf16.msra.mxu0 0
      %3704 = vmatprep.subr.bf16.mxu0 0
      %3705 = vmatpush1.bf16.msra.mxu0 0
      %3706 = vmatprep.subr.bf16.mxu0 0
      %3707 = vmatpush1.bf16.msra.mxu0 0
      %3708 = vmatprep.subr.bf16.mxu0 0
      %3709 = vmatpush1.bf16.msra.mxu0 0
      %3710 = vmatprep.subr.bf16.mxu0 0
      %3711 = vmatpush1.bf16.msra.mxu0 0
      %3712 = vmatprep.subr.bf16.mxu0 0
      %3713 = vmatpush1.bf16.msra.mxu0 0
      %3714 = vmatprep.subr.bf16.mxu0 0
      %3715 = vmatpush1.bf16.msra.mxu0 0
      %3716 = vmatprep.subr.bf16.mxu0 0
      %3717 = vmatpush1.bf16.msra.mxu0 0
      %3718 = vmatprep.mubr.bf16.mxu0 0
      %3719 = vmatmul.mubr.bf16.gmra.mrb[0].mxu0 %v3217
      %v3720 = vpop.f32.mrb[0].mxu0
      %v3721 = vadd.f32 0.0, %v3720
      %v3722 = vpop.f32.mrb[0].mxu0
      %v3723 = vpop.f32.mrb[0].mxu0
      %v3724 = vadd.f32 0.0, %v3723
      %v3725 = vpop.f32.mrb[0].mxu0
      %3726 = vdwg.mxu0
      %v3727 = vpack.c.bf16 %v3724, %v3721
      %s3728 = scalar_lea.vmem %s13, 48
      %v3729 = vld [vmem:[%s3728] sm:$0xf]
      %v3730 = vld [vmem:[%s3728 + $0x4] sm:$0xf]
      %v3731 = vld [vmem:[%s3728 + $0x8] sm:$0xf]
      %v3732 = vld [vmem:[%s3728 + $0xc] sm:$0xf]
      %v3737 = vunpack.c.l.b16 %v3729
      %v3738 = vunpack.c.l.b16 %v3730
      %v3739 = vunpack.c.l.b16 %v3731
      %v3740 = vunpack.c.l.b16 %v3732
      %v3741 = vpack.c.b16 %v3738, %v3737
      %v3742 = vpack.c.b16 %v3740, %v3739
      %v3744 = vsel %vm3275, %v3741, 0
      %v3747 = vsel %vm3275, %v3742, 0
      %3749 = vmatprep.subr.bf16.mxu0 0
      %3750 = vmatpush1.bf16.msra.mxu0 %v3727
      %3751 = vmatprep.subr.bf16.mxu0 0
      %3752 = vmatpush1.bf16.msra.mxu0 0
      %3753 = vmatprep.subr.bf16.mxu0 0
      %3754 = vmatpush1.bf16.msra.mxu0 0
      %3755 = vmatprep.subr.bf16.mxu0 0
      %3756 = vmatpush1.bf16.msra.mxu0 0
      %3757 = vmatprep.subr.bf16.mxu0 0
      %3758 = vmatpush1.bf16.msra.mxu0 0
      %3759 = vmatprep.subr.bf16.mxu0 0
      %3760 = vmatpush1.bf16.msra.mxu0 0
      %3761 = vmatprep.subr.bf16.mxu0 0
      %3762 = vmatpush1.bf16.msra.mxu0 0
      %3763 = vmatprep.subr.bf16.mxu0 0
      %3764 = vmatpush1.bf16.msra.mxu0 0
      %3765 = vmatprep.subr.bf16.mxu0 0
      %3766 = vmatpush1.bf16.msra.mxu0 0
      %3767 = vmatprep.subr.bf16.mxu0 0
      %3768 = vmatpush1.bf16.msra.mxu0 0
      %3769 = vmatprep.subr.bf16.mxu0 0
      %3770 = vmatpush1.bf16.msra.mxu0 0
      %3771 = vmatprep.subr.bf16.mxu0 0
      %3772 = vmatpush1.bf16.msra.mxu0 0
      %3773 = vmatprep.subr.bf16.mxu0 0
      %3774 = vmatpush1.bf16.msra.mxu0 0
      %3775 = vmatprep.subr.bf16.mxu0 0
      %3776 = vmatpush1.bf16.msra.mxu0 0
      %3777 = vmatprep.subr.bf16.mxu0 0
      %3778 = vmatpush1.bf16.msra.mxu0 0
      %3779 = vmatprep.subr.bf16.mxu0 0
      %3780 = vmatpush1.bf16.msra.mxu0 0
      %3781 = vmatprep.mubr.bf16.mxu0 0
      %3782 = vmatmul.mubr.bf16.gmra.mrb[0].mxu0 %v3744
      %v3783 = vpop.f32.mrb[0].mxu0
      %v3784 = vadd.f32 0.0, %v3783
      %v3785 = vpop.f32.mrb[0].mxu0
      %v3786 = vpop.f32.mrb[0].mxu0
      %v3787 = vadd.f32 0.0, %v3786
      %v3788 = vpop.f32.mrb[0].mxu0
      %3789 = vmatprep.mubr.bf16.mxu0 0
      %3790 = vmatmul.mubr.bf16.gmra.mrb[0].mxu0 %v3747
      %v3791 = vpop.f32.mrb[0].mxu0
      %v3792 = vadd.f32 0.0, %v3791
      %v3793 = vpop.f32.mrb[0].mxu0
      %v3794 = vpop.f32.mrb[0].mxu0
      %v3795 = vadd.f32 0.0, %v3794
      %v3796 = vpop.f32.mrb[0].mxu0
      %3797 = vdwg.mxu0
      %v3798 = vadd.f32 %v3649, %v3784
      %v3799 = vadd.f32 %v3650, %v3787
      %v3800 = vadd.f32 %v3651, %v3792
      %v3801 = vadd.f32 %v3652, %v3795
      %s3802 = scalar_lea.vmem %s17, 128
      %v3803 = vld [vmem:[%s3802] sm:$0xf]
      %v3804 = vld [vmem:[%s3802 + $0x4] sm:$0xf]
      %v3805 = vld [vmem:[%s3802 + $0x8] sm:$0xf]
      %v3806 = vld [vmem:[%s3802 + $0xc] sm:$0xf]
      %v3807 = vld [vmem:[%s3802 + $0x10] sm:$0xf]
      %v3808 = vld [vmem:[%s3802 + $0x14] sm:$0xf]
      %v3809 = vld [vmem:[%s3802 + $0x18] sm:$0xf]
      %v3810 = vld [vmem:[%s3802 + $0x1c] sm:$0xf]
      %v3819 = vunpack.c.l.b16 %v3803
      %v3820 = vunpack.c.l.b16 %v3804
      %v3821 = vunpack.c.l.b16 %v3805
      %v3822 = vunpack.c.l.b16 %v3806
      %v3823 = vunpack.c.l.b16 %v3807
      %v3824 = vunpack.c.l.b16 %v3808
      %v3825 = vunpack.c.l.b16 %v3809
      %v3826 = vunpack.c.l.b16 %v3810
      %v3827 = vpack.c.b16 %v3820, %v3819
      %v3828 = vpack.c.b16 %v3822, %v3821
      %v3829 = vpack.c.b16 %v3824, %v3823
      %v3830 = vpack.c.b16 %v3826, %v3825
      %3835 = vmatprep.subr.bf16.mxu0 0
      %3836 = vmatpush1.bf16.msra.mxu0 %v3827
      %3837 = vmatprep.subr.bf16.mxu0 0
      %3838 = vmatpush1.bf16.msra.mxu0 %v3828
      %3839 = vmatprep.subr.bf16.mxu0 0
      %3840 = vmatpush1.bf16.msra.mxu0 %v3829
      %3841 = vmatprep.subr.bf16.mxu0 0
      %3842 = vmatpush1.bf16.msra.mxu0 %v3830
      %3843 = vmatprep.subr.bf16.mxu0 0
      %3844 = vmatpush1.bf16.msra.mxu0 0
      %3845 = vmatprep.subr.bf16.mxu0 0
      %3846 = vmatpush1.bf16.msra.mxu0 0
      %3847 = vmatprep.subr.bf16.mxu0 0
      %3848 = vmatpush1.bf16.msra.mxu0 0
      %3849 = vmatprep.subr.bf16.mxu0 0
      %3850 = vmatpush1.bf16.msra.mxu0 0
      %3851 = vmatprep.subr.bf16.mxu0 0
      %3852 = vmatpush1.bf16.msra.mxu0 0
      %3853 = vmatprep.subr.bf16.mxu0 0
      %3854 = vmatpush1.bf16.msra.mxu0 0
      %3855 = vmatprep.subr.bf16.mxu0 0
      %3856 = vmatpush1.bf16.msra.mxu0 0
      %3857 = vmatprep.subr.bf16.mxu0 0
      %3858 = vmatpush1.bf16.msra.mxu0 0
      %3859 = vmatprep.subr.bf16.mxu0 0
      %3860 = vmatpush1.bf16.msra.mxu0 0
      %3861 = vmatprep.subr.bf16.mxu0 0
      %3862 = vmatpush1.bf16.msra.mxu0 0
      %3863 = vmatprep.subr.bf16.mxu0 0
      %3864 = vmatpush1.bf16.msra.mxu0 0
      %3865 = vmatprep.subr.bf16.mxu0 0
      %3866 = vmatpush1.bf16.msra.mxu0 0
      %3867 = vmatprep.mubr.bf16.mxu0 0
      %3868 = vmatmul.mubr.bf16.gmra.mrb[0].mxu0 %v3217
      %v3869 = vpop.f32.mrb[0].mxu0
      %v3870 = vadd.f32 0.0, %v3869
      %v3871 = vpop.f32.mrb[0].mxu0
      %v3872 = vpop.f32.mrb[0].mxu0
      %v3873 = vadd.f32 0.0, %v3872
      %v3874 = vpop.f32.mrb[0].mxu0
      %3875 = vdwg.mxu0
      %v3876 = vpack.c.bf16 %v3873, %v3870
      %s3877 = scalar_lea.vmem %s13, 64
      %v3878 = vld [vmem:[%s3877] sm:$0xf]
      %v3879 = vld [vmem:[%s3877 + $0x4] sm:$0xf]
      %v3880 = vld [vmem:[%s3877 + $0x8] sm:$0xf]
      %v3881 = vld [vmem:[%s3877 + $0xc] sm:$0xf]
      %v3886 = vunpack.c.l.b16 %v3878
      %v3887 = vunpack.c.l.b16 %v3879
      %v3888 = vunpack.c.l.b16 %v3880
      %v3889 = vunpack.c.l.b16 %v3881
      %v3890 = vpack.c.b16 %v3887, %v3886
      %v3891 = vpack.c.b16 %v3889, %v3888
      %v3893 = vsel %vm3275, %v3890, 0
      %v3896 = vsel %vm3275, %v3891, 0
      %3898 = vmatprep.subr.bf16.mxu0 0
      %3899 = vmatpush1.bf16.msra.mxu0 %v3876
      %3900 = vmatprep.subr.bf16.mxu0 0
      %3901 = vmatpush1.bf16.msra.mxu0 0
      %3902 = vmatprep.subr.bf16.mxu0 0
      %3903 = vmatpush1.bf16.msra.mxu0 0
      %3904 = vmatprep.subr.bf16.mxu0 0
      %3905 = vmatpush1.bf16.msra.mxu0 0
      %3906 = vmatprep.subr.bf16.mxu0 0
      %3907 = vmatpush1.bf16.msra.mxu0 0
      %3908 = vmatprep.subr.bf16.mxu0 0
      %3909 = vmatpush1.bf16.msra.mxu0 0
      %3910 = vmatprep.subr.bf16.mxu0 0
      %3911 = vmatpush1.bf16.msra.mxu0 0
      %3912 = vmatprep.subr.bf16.mxu0 0
      %3913 = vmatpush1.bf16.msra.mxu0 0
      %3914 = vmatprep.subr.bf16.mxu0 0
      %3915 = vmatpush1.bf16.msra.mxu0 0
      %3916 = vmatprep.subr.bf16.mxu0 0
      %3917 = vmatpush1.bf16.msra.mxu0 0
      %3918 = vmatprep.subr.bf16.mxu0 0
      %3919 = vmatpush1.bf16.msra.mxu0 0
      %3920 = vmatprep.subr.bf16.mxu0 0
      %3921 = vmatpush1.bf16.msra.mxu0 0
      %3922 = vmatprep.subr.bf16.mxu0 0
      %3923 = vmatpush1.bf16.msra.mxu0 0
      %3924 = vmatprep.subr.bf16.mxu0 0
      %3925 = vmatpush1.bf16.msra.mxu0 0
      %3926 = vmatprep.subr.bf16.mxu0 0
      %3927 = vmatpush1.bf16.msra.mxu0 0
      %3928 = vmatprep.subr.bf16.mxu0 0
      %3929 = vmatpush1.bf16.msra.mxu0 0
      %3930 = vmatprep.mubr.bf16.mxu0 0
      %3931 = vmatmul.mubr.bf16.gmra.mrb[0].mxu0 %v3893
      %v3932 = vpop.f32.mrb[0].mxu0
      %v3933 = vadd.f32 0.0, %v3932
      %v3934 = vpop.f32.mrb[0].mxu0
      %v3935 = vpop.f32.mrb[0].mxu0
      %v3936 = vadd.f32 0.0, %v3935
      %v3937 = vpop.f32.mrb[0].mxu0
      %3938 = vmatprep.mubr.bf16.mxu0 0
      %3939 = vmatmul.mubr.bf16.gmra.mrb[0].mxu0 %v3896
      %v3940 = vpop.f32.mrb[0].mxu0
      %v3941 = vadd.f32 0.0, %v3940
      %v3942 = vpop.f32.mrb[0].mxu0
      %v3943 = vpop.f32.mrb[0].mxu0
      %v3944 = vadd.f32 0.0, %v3943
      %v3945 = vpop.f32.mrb[0].mxu0
      %3946 = vdwg.mxu0
      %v3947 = vadd.f32 %v3798, %v3933
      %v3948 = vadd.f32 %v3799, %v3936
      %v3949 = vadd.f32 %v3800, %v3941
      %v3950 = vadd.f32 %v3801, %v3944
      %s3951 = scalar_lea.vmem %s17, 160
      %v3952 = vld [vmem:[%s3951] sm:$0xf]
      %v3953 = vld [vmem:[%s3951 + $0x4] sm:$0xf]
      %v3954 = vld [vmem:[%s3951 + $0x8] sm:$0xf]
      %v3955 = vld [vmem:[%s3951 + $0xc] sm:$0xf]
      %v3956 = vld [vmem:[%s3951 + $0x10] sm:$0xf]
      %v3957 = vld [vmem:[%s3951 + $0x14] sm:$0xf]
      %v3958 = vld [vmem:[%s3951 + $0x18] sm:$0xf]
      %v3959 = vld [vmem:[%s3951 + $0x1c] sm:$0xf]
      %v3968 = vunpack.c.l.b16 %v3952
      %v3969 = vunpack.c.l.b16 %v3953
      %v3970 = vunpack.c.l.b16 %v3954
      %v3971 = vunpack.c.l.b16 %v3955
      %v3972 = vunpack.c.l.b16 %v3956
      %v3973 = vunpack.c.l.b16 %v3957
      %v3974 = vunpack.c.l.b16 %v3958
      %v3975 = vunpack.c.l.b16 %v3959
      %v3976 = vpack.c.b16 %v3969, %v3968
      %v3977 = vpack.c.b16 %v3971, %v3970
      %v3978 = vpack.c.b16 %v3973, %v3972
      %v3979 = vpack.c.b16 %v3975, %v3974
      %3984 = vmatprep.subr.bf16.mxu0 0
      %3985 = vmatpush1.bf16.msra.mxu0 %v3976
      %3986 = vmatprep.subr.bf16.mxu0 0
      %3987 = vmatpush1.bf16.msra.mxu0 %v3977
      %3988 = vmatprep.subr.bf16.mxu0 0
      %3989 = vmatpush1.bf16.msra.mxu0 %v3978
      %3990 = vmatprep.subr.bf16.mxu0 0
      %3991 = vmatpush1.bf16.msra.mxu0 %v3979
      %3992 = vmatprep.subr.bf16.mxu0 0
      %3993 = vmatpush1.bf16.msra.mxu0 0
      %3994 = vmatprep.subr.bf16.mxu0 0
      %3995 = vmatpush1.bf16.msra.mxu0 0
      %3996 = vmatprep.subr.bf16.mxu0 0
      %3997 = vmatpush1.bf16.msra.mxu0 0
      %3998 = vmatprep.subr.bf16.mxu0 0
      %3999 = vmatpush1.bf16.msra.mxu0 0
      %4000 = vmatprep.subr.bf16.mxu0 0
      %4001 = vmatpush1.bf16.msra.mxu0 0
      %4002 = vmatprep.subr.bf16.mxu0 0
      %4003 = vmatpush1.bf16.msra.mxu0 0
      %4004 = vmatprep.subr.bf16.mxu0 0
      %4005 = vmatpush1.bf16.msra.mxu0 0
      %4006 = vmatprep.subr.bf16.mxu0 0
      %4007 = vmatpush1.bf16.msra.mxu0 0
      %4008 = vmatprep.subr.bf16.mxu0 0
      %4009 = vmatpush1.bf16.msra.mxu0 0
      %4010 = vmatprep.subr.bf16.mxu0 0
      %4011 = vmatpush1.bf16.msra.mxu0 0
      %4012 = vmatprep.subr.bf16.mxu0 0
      %4013 = vmatpush1.bf16.msra.mxu0 0
      %4014 = vmatprep.subr.bf16.mxu0 0
      %4015 = vmatpush1.bf16.msra.mxu0 0
      %4016 = vmatprep.mubr.bf16.mxu0 0
      %4017 = vmatmul.mubr.bf16.gmra.mrb[0].mxu0 %v3217
      %v4018 = vpop.f32.mrb[0].mxu0
      %v4019 = vadd.f32 0.0, %v4018
      %v4020 = vpop.f32.mrb[0].mxu0
      %v4021 = vpop.f32.mrb[0].mxu0
      %v4022 = vadd.f32 0.0, %v4021
      %v4023 = vpop.f32.mrb[0].mxu0
      %4024 = vdwg.mxu0
      %v4025 = vpack.c.bf16 %v4022, %v4019
      %s4026 = scalar_lea.vmem %s13, 80
      %v4027 = vld [vmem:[%s4026] sm:$0xf]
      %v4028 = vld [vmem:[%s4026 + $0x4] sm:$0xf]
      %v4029 = vld [vmem:[%s4026 + $0x8] sm:$0xf]
      %v4030 = vld [vmem:[%s4026 + $0xc] sm:$0xf]
      %v4035 = vunpack.c.l.b16 %v4027
      %v4036 = vunpack.c.l.b16 %v4028
      %v4037 = vunpack.c.l.b16 %v4029
      %v4038 = vunpack.c.l.b16 %v4030
      %v4039 = vpack.c.b16 %v4036, %v4035
      %v4040 = vpack.c.b16 %v4038, %v4037
      %v4042 = vsel %vm3275, %v4039, 0
      %v4045 = vsel %vm3275, %v4040, 0
      %4047 = vmatprep.subr.bf16.mxu0 0
      %4048 = vmatpush1.bf16.msra.mxu0 %v4025
      %4049 = vmatprep.subr.bf16.mxu0 0
      %4050 = vmatpush1.bf16.msra.mxu0 0
      %4051 = vmatprep.subr.bf16.mxu0 0
      %4052 = vmatpush1.bf16.msra.mxu0 0
      %4053 = vmatprep.subr.bf16.mxu0 0
      %4054 = vmatpush1.bf16.msra.mxu0 0
      %4055 = vmatprep.subr.bf16.mxu0 0
      %4056 = vmatpush1.bf16.msra.mxu0 0
      %4057 = vmatprep.subr.bf16.mxu0 0
      %4058 = vmatpush1.bf16.msra.mxu0 0
      %4059 = vmatprep.subr.bf16.mxu0 0
      %4060 = vmatpush1.bf16.msra.mxu0 0
      %4061 = vmatprep.subr.bf16.mxu0 0
      %4062 = vmatpush1.bf16.msra.mxu0 0
      %4063 = vmatprep.subr.bf16.mxu0 0
      %4064 = vmatpush1.bf16.msra.mxu0 0
      %4065 = vmatprep.subr.bf16.mxu0 0
      %4066 = vmatpush1.bf16.msra.mxu0 0
      %4067 = vmatprep.subr.bf16.mxu0 0
      %4068 = vmatpush1.bf16.msra.mxu0 0
      %4069 = vmatprep.subr.bf16.mxu0 0
      %4070 = vmatpush1.bf16.msra.mxu0 0
      %4071 = vmatprep.subr.bf16.mxu0 0
      %4072 = vmatpush1.bf16.msra.mxu0 0
      %4073 = vmatprep.subr.bf16.mxu0 0
      %4074 = vmatpush1.bf16.msra.mxu0 0
      %4075 = vmatprep.subr.bf16.mxu0 0
      %4076 = vmatpush1.bf16.msra.mxu0 0
      %4077 = vmatprep.subr.bf16.mxu0 0
      %4078 = vmatpush1.bf16.msra.mxu0 0
      %4079 = vmatprep.mubr.bf16.mxu0 0
      %4080 = vmatmul.mubr.bf16.gmra.mrb[0].mxu0 %v4042
      %v4081 = vpop.f32.mrb[0].mxu0
      %v4082 = vadd.f32 0.0, %v4081
      %v4083 = vpop.f32.mrb[0].mxu0
      %v4084 = vpop.f32.mrb[0].mxu0
      %v4085 = vadd.f32 0.0, %v4084
      %v4086 = vpop.f32.mrb[0].mxu0
      %4087 = vmatprep.mubr.bf16.mxu0 0
      %4088 = vmatmul.mubr.bf16.gmra.mrb[0].mxu0 %v4045
      %v4089 = vpop.f32.mrb[0].mxu0
      %v4090 = vadd.f32 0.0, %v4089
      %v4091 = vpop.f32.mrb[0].mxu0
      %v4092 = vpop.f32.mrb[0].mxu0
      %v4093 = vadd.f32 0.0, %v4092
      %v4094 = vpop.f32.mrb[0].mxu0
      %4095 = vdwg.mxu0
      %v4096 = vadd.f32 %v3947, %v4082
      %v4097 = vadd.f32 %v3948, %v4085
      %v4098 = vadd.f32 %v3949, %v4090
      %v4099 = vadd.f32 %v3950, %v4093
      %s4100 = scalar_lea.vmem %s17, 192
      %v4101 = vld [vmem:[%s4100] sm:$0xf]
      %v4102 = vld [vmem:[%s4100 + $0x4] sm:$0xf]
      %v4103 = vld [vmem:[%s4100 + $0x8] sm:$0xf]
      %v4104 = vld [vmem:[%s4100 + $0xc] sm:$0xf]
      %v4105 = vld [vmem:[%s4100 + $0x10] sm:$0xf]
      %v4106 = vld [vmem:[%s4100 + $0x14] sm:$0xf]
      %v4107 = vld [vmem:[%s4100 + $0x18] sm:$0xf]
      %v4108 = vld [vmem:[%s4100 + $0x1c] sm:$0xf]
      %v4117 = vunpack.c.l.b16 %v4101
      %v4118 = vunpack.c.l.b16 %v4102
      %v4119 = vunpack.c.l.b16 %v4103
      %v4120 = vunpack.c.l.b16 %v4104
      %v4121 = vunpack.c.l.b16 %v4105
      %v4122 = vunpack.c.l.b16 %v4106
      %v4123 = vunpack.c.l.b16 %v4107
      %v4124 = vunpack.c.l.b16 %v4108
      %v4125 = vpack.c.b16 %v4118, %v4117
      %v4126 = vpack.c.b16 %v4120, %v4119
      %v4127 = vpack.c.b16 %v4122, %v4121
      %v4128 = vpack.c.b16 %v4124, %v4123
      %4133 = vmatprep.subr.bf16.mxu0 0
      %4134 = vmatpush1.bf16.msra.mxu0 %v4125
      %4135 = vmatprep.subr.bf16.mxu0 0
      %4136 = vmatpush1.bf16.msra.mxu0 %v4126
      %4137 = vmatprep.subr.bf16.mxu0 0
      %4138 = vmatpush1.bf16.msra.mxu0 %v4127
      %4139 = vmatprep.subr.bf16.mxu0 0
      %4140 = vmatpush1.bf16.msra.mxu0 %v4128
      %4141 = vmatprep.subr.bf16.mxu0 0
      %4142 = vmatpush1.bf16.msra.mxu0 0
      %4143 = vmatprep.subr.bf16.mxu0 0
      %4144 = vmatpush1.bf16.msra.mxu0 0
      %4145 = vmatprep.subr.bf16.mxu0 0
      %4146 = vmatpush1.bf16.msra.mxu0 0
      %4147 = vmatprep.subr.bf16.mxu0 0
      %4148 = vmatpush1.bf16.msra.mxu0 0
      %4149 = vmatprep.subr.bf16.mxu0 0
      %4150 = vmatpush1.bf16.msra.mxu0 0
      %4151 = vmatprep.subr.bf16.mxu0 0
      %4152 = vmatpush1.bf16.msra.mxu0 0
      %4153 = vmatprep.subr.bf16.mxu0 0
      %4154 = vmatpush1.bf16.msra.mxu0 0
      %4155 = vmatprep.subr.bf16.mxu0 0
      %4156 = vmatpush1.bf16.msra.mxu0 0
      %4157 = vmatprep.subr.bf16.mxu0 0
      %4158 = vmatpush1.bf16.msra.mxu0 0
      %4159 = vmatprep.subr.bf16.mxu0 0
      %4160 = vmatpush1.bf16.msra.mxu0 0
      %4161 = vmatprep.subr.bf16.mxu0 0
      %4162 = vmatpush1.bf16.msra.mxu0 0
      %4163 = vmatprep.subr.bf16.mxu0 0
      %4164 = vmatpush1.bf16.msra.mxu0 0
      %4165 = vmatprep.mubr.bf16.mxu0 0
      %4166 = vmatmul.mubr.bf16.gmra.mrb[0].mxu0 %v3217
      %v4167 = vpop.f32.mrb[0].mxu0
      %v4168 = vadd.f32 0.0, %v4167
      %v4169 = vpop.f32.mrb[0].mxu0
      %v4170 = vpop.f32.mrb[0].mxu0
      %v4171 = vadd.f32 0.0, %v4170
      %v4172 = vpop.f32.mrb[0].mxu0
      %4173 = vdwg.mxu0
      %v4174 = vpack.c.bf16 %v4171, %v4168
      %s4175 = scalar_lea.vmem %s13, 96
      %v4176 = vld [vmem:[%s4175] sm:$0xf]
      %v4177 = vld [vmem:[%s4175 + $0x4] sm:$0xf]
      %v4178 = vld [vmem:[%s4175 + $0x8] sm:$0xf]
      %v4179 = vld [vmem:[%s4175 + $0xc] sm:$0xf]
      %v4184 = vunpack.c.l.b16 %v4176
      %v4185 = vunpack.c.l.b16 %v4177
      %v4186 = vunpack.c.l.b16 %v4178
      %v4187 = vunpack.c.l.b16 %v4179
      %v4188 = vpack.c.b16 %v4185, %v4184
      %v4189 = vpack.c.b16 %v4187, %v4186
      %v4191 = vsel %vm3275, %v4188, 0
      %v4194 = vsel %vm3275, %v4189, 0
      %4196 = vmatprep.subr.bf16.mxu0 0
      %4197 = vmatpush1.bf16.msra.mxu0 %v4174
      %4198 = vmatprep.subr.bf16.mxu0 0
      %4199 = vmatpush1.bf16.msra.mxu0 0
      %4200 = vmatprep.subr.bf16.mxu0 0
      %4201 = vmatpush1.bf16.msra.mxu0 0
      %4202 = vmatprep.subr.bf16.mxu0 0
      %4203 = vmatpush1.bf16.msra.mxu0 0
      %4204 = vmatprep.subr.bf16.mxu0 0
      %4205 = vmatpush1.bf16.msra.mxu0 0
      %4206 = vmatprep.subr.bf16.mxu0 0
      %4207 = vmatpush1.bf16.msra.mxu0 0
      %4208 = vmatprep.subr.bf16.mxu0 0
      %4209 = vmatpush1.bf16.msra.mxu0 0
      %4210 = vmatprep.subr.bf16.mxu0 0
      %4211 = vmatpush1.bf16.msra.mxu0 0
      %4212 = vmatprep.subr.bf16.mxu0 0
      %4213 = vmatpush1.bf16.msra.mxu0 0
      %4214 = vmatprep.subr.bf16.mxu0 0
      %4215 = vmatpush1.bf16.msra.mxu0 0
      %4216 = vmatprep.subr.bf16.mxu0 0
      %4217 = vmatpush1.bf16.msra.mxu0 0
      %4218 = vmatprep.subr.bf16.mxu0 0
      %4219 = vmatpush1.bf16.msra.mxu0 0
      %4220 = vmatprep.subr.bf16.mxu0 0
      %4221 = vmatpush1.bf16.msra.mxu0 0
      %4222 = vmatprep.subr.bf16.mxu0 0
      %4223 = vmatpush1.bf16.msra.mxu0 0
      %4224 = vmatprep.subr.bf16.mxu0 0
      %4225 = vmatpush1.bf16.msra.mxu0 0
      %4226 = vmatprep.subr.bf16.mxu0 0
      %4227 = vmatpush1.bf16.msra.mxu0 0
      %4228 = vmatprep.mubr.bf16.mxu0 0
      %4229 = vmatmul.mubr.bf16.gmra.mrb[0].mxu0 %v4191
      %v4230 = vpop.f32.mrb[0].mxu0
      %v4231 = vadd.f32 0.0, %v4230
      %v4232 = vpop.f32.mrb[0].mxu0
      %v4233 = vpop.f32.mrb[0].mxu0
      %v4234 = vadd.f32 0.0, %v4233
      %v4235 = vpop.f32.mrb[0].mxu0
      %4236 = vmatprep.mubr.bf16.mxu0 0
      %4237 = vmatmul.mubr.bf16.gmra.mrb[0].mxu0 %v4194
      %v4238 = vpop.f32.mrb[0].mxu0
      %v4239 = vadd.f32 0.0, %v4238
      %v4240 = vpop.f32.mrb[0].mxu0
      %v4241 = vpop.f32.mrb[0].mxu0
      %v4242 = vadd.f32 0.0, %v4241
      %v4243 = vpop.f32.mrb[0].mxu0
      %4244 = vdwg.mxu0
      %v4245 = vadd.f32 %v4096, %v4231
      %v4246 = vadd.f32 %v4097, %v4234
      %v4247 = vadd.f32 %v4098, %v4239
      %v4248 = vadd.f32 %v4099, %v4242
      %s4249 = scalar_lea.vmem %s17, 224
      %v4250 = vld [vmem:[%s4249] sm:$0xf]
      %v4251 = vld [vmem:[%s4249 + $0x4] sm:$0xf]
      %v4252 = vld [vmem:[%s4249 + $0x8] sm:$0xf]
      %v4253 = vld [vmem:[%s4249 + $0xc] sm:$0xf]
      %v4254 = vld [vmem:[%s4249 + $0x10] sm:$0xf]
      %v4255 = vld [vmem:[%s4249 + $0x14] sm:$0xf]
      %v4256 = vld [vmem:[%s4249 + $0x18] sm:$0xf]
      %v4257 = vld [vmem:[%s4249 + $0x1c] sm:$0xf]
      %v4266 = vunpack.c.l.b16 %v4250
      %v4267 = vunpack.c.l.b16 %v4251
      %v4268 = vunpack.c.l.b16 %v4252
      %v4269 = vunpack.c.l.b16 %v4253
      %v4270 = vunpack.c.l.b16 %v4254
      %v4271 = vunpack.c.l.b16 %v4255
      %v4272 = vunpack.c.l.b16 %v4256
      %v4273 = vunpack.c.l.b16 %v4257
      %v4274 = vpack.c.b16 %v4267, %v4266
      %v4275 = vpack.c.b16 %v4269, %v4268
      %v4276 = vpack.c.b16 %v4271, %v4270
      %v4277 = vpack.c.b16 %v4273, %v4272
      %4282 = vmatprep.subr.bf16.mxu0 0
      %4283 = vmatpush1.bf16.msra.mxu0 %v4274
      %4284 = vmatprep.subr.bf16.mxu0 0
      %4285 = vmatpush1.bf16.msra.mxu0 %v4275
      %4286 = vmatprep.subr.bf16.mxu0 0
      %4287 = vmatpush1.bf16.msra.mxu0 %v4276
      %4288 = vmatprep.subr.bf16.mxu0 0
      %4289 = vmatpush1.bf16.msra.mxu0 %v4277
      %4290 = vmatprep.subr.bf16.mxu0 0
      %4291 = vmatpush1.bf16.msra.mxu0 0
      %4292 = vmatprep.subr.bf16.mxu0 0
      %4293 = vmatpush1.bf16.msra.mxu0 0
      %4294 = vmatprep.subr.bf16.mxu0 0
      %4295 = vmatpush1.bf16.msra.mxu0 0
      %4296 = vmatprep.subr.bf16.mxu0 0
      %4297 = vmatpush1.bf16.msra.mxu0 0
      %4298 = vmatprep.subr.bf16.mxu0 0
      %4299 = vmatpush1.bf16.msra.mxu0 0
      %4300 = vmatprep.subr.bf16.mxu0 0
      %4301 = vmatpush1.bf16.msra.mxu0 0
      %4302 = vmatprep.subr.bf16.mxu0 0
      %4303 = vmatpush1.bf16.msra.mxu0 0
      %4304 = vmatprep.subr.bf16.mxu0 0
      %4305 = vmatpush1.bf16.msra.mxu0 0
      %4306 = vmatprep.subr.bf16.mxu0 0
      %4307 = vmatpush1.bf16.msra.mxu0 0
      %4308 = vmatprep.subr.bf16.mxu0 0
      %4309 = vmatpush1.bf16.msra.mxu0 0
      %4310 = vmatprep.subr.bf16.mxu0 0
      %4311 = vmatpush1.bf16.msra.mxu0 0
      %4312 = vmatprep.subr.bf16.mxu0 0
      %4313 = vmatpush1.bf16.msra.mxu0 0
      %4314 = vmatprep.mubr.bf16.mxu0 0
      %4315 = vmatmul.mubr.bf16.gmra.mrb[0].mxu0 %v3217
      %v4316 = vpop.f32.mrb[0].mxu0
      %v4317 = vadd.f32 0.0, %v4316
      %v4318 = vpop.f32.mrb[0].mxu0
      %v4319 = vpop.f32.mrb[0].mxu0
      %v4320 = vadd.f32 0.0, %v4319
      %v4321 = vpop.f32.mrb[0].mxu0
      %4322 = vdwg.mxu0
      %v4323 = vpack.c.bf16 %v4320, %v4317
      %s4324 = scalar_lea.vmem %s13, 112
      %v4325 = vld [vmem:[%s4324] sm:$0xf]
      %v4326 = vld [vmem:[%s4324 + $0x4] sm:$0xf]
      %v4327 = vld [vmem:[%s4324 + $0x8] sm:$0xf]
      %v4328 = vld [vmem:[%s4324 + $0xc] sm:$0xf]
      %v4333 = vunpack.c.l.b16 %v4325
      %v4334 = vunpack.c.l.b16 %v4326
      %v4335 = vunpack.c.l.b16 %v4327
      %v4336 = vunpack.c.l.b16 %v4328
      %v4337 = vpack.c.b16 %v4334, %v4333
      %v4338 = vpack.c.b16 %v4336, %v4335
      %v4340 = vsel %vm3275, %v4337, 0
      %v4343 = vsel %vm3275, %v4338, 0
      %4345 = vmatprep.subr.bf16.mxu0 0
      %4346 = vmatpush1.bf16.msra.mxu0 %v4323
      %4347 = vmatprep.subr.bf16.mxu0 0
      %4348 = vmatpush1.bf16.msra.mxu0 0
      %4349 = vmatprep.subr.bf16.mxu0 0
      %4350 = vmatpush1.bf16.msra.mxu0 0
      %4351 = vmatprep.subr.bf16.mxu0 0
      %4352 = vmatpush1.bf16.msra.mxu0 0
      %4353 = vmatprep.subr.bf16.mxu0 0
      %4354 = vmatpush1.bf16.msra.mxu0 0
      %4355 = vmatprep.subr.bf16.mxu0 0
      %4356 = vmatpush1.bf16.msra.mxu0 0
      %4357 = vmatprep.subr.bf16.mxu0 0
      %4358 = vmatpush1.bf16.msra.mxu0 0
      %4359 = vmatprep.subr.bf16.mxu0 0
      %4360 = vmatpush1.bf16.msra.mxu0 0
      %4361 = vmatprep.subr.bf16.mxu0 0
      %4362 = vmatpush1.bf16.msra.mxu0 0
      %4363 = vmatprep.subr.bf16.mxu0 0
      %4364 = vmatpush1.bf16.msra.mxu0 0
      %4365 = vmatprep.subr.bf16.mxu0 0
      %4366 = vmatpush1.bf16.msra.mxu0 0
      %4367 = vmatprep.subr.bf16.mxu0 0
      %4368 = vmatpush1.bf16.msra.mxu0 0
      %4369 = vmatprep.subr.bf16.mxu0 0
      %4370 = vmatpush1.bf16.msra.mxu0 0
      %4371 = vmatprep.subr.bf16.mxu0 0
      %4372 = vmatpush1.bf16.msra.mxu0 0
      %4373 = vmatprep.subr.bf16.mxu0 0
      %4374 = vmatpush1.bf16.msra.mxu0 0
      %4375 = vmatprep.subr.bf16.mxu0 0
      %4376 = vmatpush1.bf16.msra.mxu0 0
      %4377 = vmatprep.mubr.bf16.mxu0 0
      %4378 = vmatmul.mubr.bf16.gmra.mrb[0].mxu0 %v4340
      %v4379 = vpop.f32.mrb[0].mxu0
      %v4380 = vadd.f32 0.0, %v4379
      %v4381 = vpop.f32.mrb[0].mxu0
      %v4382 = vpop.f32.mrb[0].mxu0
      %v4383 = vadd.f32 0.0, %v4382
      %v4384 = vpop.f32.mrb[0].mxu0
      %4385 = vmatprep.mubr.bf16.mxu0 0
      %4386 = vmatmul.mubr.bf16.gmra.mrb[0].mxu0 %v4343
      %v4387 = vpop.f32.mrb[0].mxu0
      %v4388 = vadd.f32 0.0, %v4387
      %v4389 = vpop.f32.mrb[0].mxu0
      %v4390 = vpop.f32.mrb[0].mxu0
      %v4391 = vadd.f32 0.0, %v4390
      %v4392 = vpop.f32.mrb[0].mxu0
      %4393 = vdwg.mxu0
      %v4394 = vadd.f32 %v4245, %v4380
      %v4395 = vadd.f32 %v4246, %v4383
      %v4396 = vadd.f32 %v4247, %v4388
      %v4397 = vadd.f32 %v4248, %v4391
      %s4398 = scalar_lea.vmem %s17, 256
      %v4399 = vld [vmem:[%s4398] sm:$0xf]
      %v4400 = vld [vmem:[%s4398 + $0x4] sm:$0xf]
      %v4401 = vld [vmem:[%s4398 + $0x8] sm:$0xf]
      %v4402 = vld [vmem:[%s4398 + $0xc] sm:$0xf]
      %v4403 = vld [vmem:[%s4398 + $0x10] sm:$0xf]
      %v4404 = vld [vmem:[%s4398 + $0x14] sm:$0xf]
      %v4405 = vld [vmem:[%s4398 + $0x18] sm:$0xf]
      %v4406 = vld [vmem:[%s4398 + $0x1c] sm:$0xf]
      %v4415 = vunpack.c.l.b16 %v4399
      %v4416 = vunpack.c.l.b16 %v4400
      %v4417 = vunpack.c.l.b16 %v4401
      %v4418 = vunpack.c.l.b16 %v4402
      %v4419 = vunpack.c.l.b16 %v4403
      %v4420 = vunpack.c.l.b16 %v4404
      %v4421 = vunpack.c.l.b16 %v4405
      %v4422 = vunpack.c.l.b16 %v4406
      %v4423 = vpack.c.b16 %v4416, %v4415
      %v4424 = vpack.c.b16 %v4418, %v4417
      %v4425 = vpack.c.b16 %v4420, %v4419
      %v4426 = vpack.c.b16 %v4422, %v4421
      %4431 = vmatprep.subr.bf16.mxu0 0
      %4432 = vmatpush1.bf16.msra.mxu0 %v4423
      %4433 = vmatprep.subr.bf16.mxu0 0
      %4434 = vmatpush1.bf16.msra.mxu0 %v4424
      %4435 = vmatprep.subr.bf16.mxu0 0
      %4436 = vmatpush1.bf16.msra.mxu0 %v4425
      %4437 = vmatprep.subr.bf16.mxu0 0
      %4438 = vmatpush1.bf16.msra.mxu0 %v4426
      %4439 = vmatprep.subr.bf16.mxu0 0
      %4440 = vmatpush1.bf16.msra.mxu0 0
      %4441 = vmatprep.subr.bf16.mxu0 0
      %4442 = vmatpush1.bf16.msra.mxu0 0
      %4443 = vmatprep.subr.bf16.mxu0 0
      %4444 = vmatpush1.bf16.msra.mxu0 0
      %4445 = vmatprep.subr.bf16.mxu0 0
      %4446 = vmatpush1.bf16.msra.mxu0 0
      %4447 = vmatprep.subr.bf16.mxu0 0
      %4448 = vmatpush1.bf16.msra.mxu0 0
      %4449 = vmatprep.subr.bf16.mxu0 0
      %4450 = vmatpush1.bf16.msra.mxu0 0
      %4451 = vmatprep.subr.bf16.mxu0 0
      %4452 = vmatpush1.bf16.msra.mxu0 0
      %4453 = vmatprep.subr.bf16.mxu0 0
      %4454 = vmatpush1.bf16.msra.mxu0 0
      %4455 = vmatprep.subr.bf16.mxu0 0
      %4456 = vmatpush1.bf16.msra.mxu0 0
      %4457 = vmatprep.subr.bf16.mxu0 0
      %4458 = vmatpush1.bf16.msra.mxu0 0
      %4459 = vmatprep.subr.bf16.mxu0 0
      %4460 = vmatpush1.bf16.msra.mxu0 0
      %4461 = vmatprep.subr.bf16.mxu0 0
      %4462 = vmatpush1.bf16.msra.mxu0 0
      %4463 = vmatprep.mubr.bf16.mxu0 0
      %4464 = vmatmul.mubr.bf16.gmra.mrb[0].mxu0 %v3217
      %v4465 = vpop.f32.mrb[0].mxu0
      %v4466 = vadd.f32 0.0, %v4465
      %v4467 = vpop.f32.mrb[0].mxu0
      %v4468 = vpop.f32.mrb[0].mxu0
      %v4469 = vadd.f32 0.0, %v4468
      %v4470 = vpop.f32.mrb[0].mxu0
      %4471 = vdwg.mxu0
      %v4472 = vpack.c.bf16 %v4469, %v4466
      %s4473 = scalar_lea.vmem %s13, 128
      %v4474 = vld [vmem:[%s4473] sm:$0xf]
      %v4475 = vld [vmem:[%s4473 + $0x4] sm:$0xf]
      %v4476 = vld [vmem:[%s4473 + $0x8] sm:$0xf]
      %v4477 = vld [vmem:[%s4473 + $0xc] sm:$0xf]
      %v4482 = vunpack.c.l.b16 %v4474
      %v4483 = vunpack.c.l.b16 %v4475
      %v4484 = vunpack.c.l.b16 %v4476
      %v4485 = vunpack.c.l.b16 %v4477
      %v4486 = vpack.c.b16 %v4483, %v4482
      %v4487 = vpack.c.b16 %v4485, %v4484
      %v4489 = vsel %vm3275, %v4486, 0
      %v4492 = vsel %vm3275, %v4487, 0
      %4494 = vmatprep.subr.bf16.mxu0 0
      %4495 = vmatpush1.bf16.msra.mxu0 %v4472
      %4496 = vmatprep.subr.bf16.mxu0 0
      %4497 = vmatpush1.bf16.msra.mxu0 0
      %4498 = vmatprep.subr.bf16.mxu0 0
      %4499 = vmatpush1.bf16.msra.mxu0 0
      %4500 = vmatprep.subr.bf16.mxu0 0
      %4501 = vmatpush1.bf16.msra.mxu0 0
      %4502 = vmatprep.subr.bf16.mxu0 0
      %4503 = vmatpush1.bf16.msra.mxu0 0
      %4504 = vmatprep.subr.bf16.mxu0 0
      %4505 = vmatpush1.bf16.msra.mxu0 0
      %4506 = vmatprep.subr.bf16.mxu0 0
      %4507 = vmatpush1.bf16.msra.mxu0 0
      %4508 = vmatprep.subr.bf16.mxu0 0
      %4509 = vmatpush1.bf16.msra.mxu0 0
      %4510 = vmatprep.subr.bf16.mxu0 0
      %4511 = vmatpush1.bf16.msra.mxu0 0
      %4512 = vmatprep.subr.bf16.mxu0 0
      %4513 = vmatpush1.bf16.msra.mxu0 0
      %4514 = vmatprep.subr.bf16.mxu0 0
      %4515 = vmatpush1.bf16.msra.mxu0 0
      %4516 = vmatprep.subr.bf16.mxu0 0
      %4517 = vmatpush1.bf16.msra.mxu0 0
      %4518 = vmatprep.subr.bf16.mxu0 0
      %4519 = vmatpush1.bf16.msra.mxu0 0
      %4520 = vmatprep.subr.bf16.mxu0 0
      %4521 = vmatpush1.bf16.msra.mxu0 0
      %4522 = vmatprep.subr.bf16.mxu0 0
      %4523 = vmatpush1.bf16.msra.mxu0 0
      %4524 = vmatprep.subr.bf16.mxu0 0
      %4525 = vmatpush1.bf16.msra.mxu0 0
      %4526 = vmatprep.mubr.bf16.mxu0 0
      %4527 = vmatmul.mubr.bf16.gmra.mrb[0].mxu0 %v4489
      %v4528 = vpop.f32.mrb[0].mxu0
      %v4529 = vadd.f32 0.0, %v4528
      %v4530 = vpop.f32.mrb[0].mxu0
      %v4531 = vpop.f32.mrb[0].mxu0
      %v4532 = vadd.f32 0.0, %v4531
      %v4533 = vpop.f32.mrb[0].mxu0
      %4534 = vmatprep.mubr.bf16.mxu0 0
      %4535 = vmatmul.mubr.bf16.gmra.mrb[0].mxu0 %v4492
      %v4536 = vpop.f32.mrb[0].mxu0
      %v4537 = vadd.f32 0.0, %v4536
      %v4538 = vpop.f32.mrb[0].mxu0
      %v4539 = vpop.f32.mrb[0].mxu0
      %v4540 = vadd.f32 0.0, %v4539
      %v4541 = vpop.f32.mrb[0].mxu0
      %4542 = vdwg.mxu0
      %v4543 = vadd.f32 %v4394, %v4529
      %v4544 = vadd.f32 %v4395, %v4532
      %v4545 = vadd.f32 %v4396, %v4537
      %v4546 = vadd.f32 %v4397, %v4540
      %v4547 = vpack.c.bf16 %v4544, %v4543
      %v4548 = vpack.c.bf16 %v4546, %v4545
      %v4549 = vld [vmem:[%s19] sm:$0xf]
      %v4550 = vld [vmem:[%s19 + $0x4] sm:$0xf]
      %v4551 = vld [vmem:[%s21] sm:$0xff]
      %v4552 = vld [vmem:[%s21 + $0x8] sm:$0xff]
      %4554 = vset.pattern.permute.xlu0 0
      %4555 = vperm.xlu0 %4554, %v4551
      %v4556 = vpop.permute.xlu0 %4555
      %4559 = vset.pattern.permute.xlu0 0
      %4560 = vperm.xlu0 %4559, %v4552
      %v4561 = vpop.permute.xlu0 %4560
      %v4565 = vunpack.c.l.b16 %v4549
      %v4566 = vunpack.c.l.b16 %v4550
      %v4567 = vpack.c.b16 %v4566, %v4565
      %v4569 = vsel %vm1076, %v4567, 0
      %4571 = vmatprep.subr.bf16.mxu0 0
      %4572 = vmatpush1.bf16.msra.mxu0 %v4547
      %4573 = vmatprep.subr.bf16.mxu0 0
      %4574 = vmatpush1.bf16.msra.mxu0 %v4548
      %4575 = vmatprep.subr.bf16.mxu0 0
      %4576 = vmatpush1.bf16.msra.mxu0 0
      %4577 = vmatprep.subr.bf16.mxu0 0
      %4578 = vmatpush1.bf16.msra.mxu0 0
      %4579 = vmatprep.subr.bf16.mxu0 0
      %4580 = vmatpush1.bf16.msra.mxu0 0
      %4581 = vmatprep.subr.bf16.mxu0 0
      %4582 = vmatpush1.bf16.msra.mxu0 0
      %4583 = vmatprep.subr.bf16.mxu0 0
      %4584 = vmatpush1.bf16.msra.mxu0 0
      %4585 = vmatprep.subr.bf16.mxu0 0
      %4586 = vmatpush1.bf16.msra.mxu0 0
      %4587 = vmatprep.subr.bf16.mxu0 0
      %4588 = vmatpush1.bf16.msra.mxu0 0
      %4589 = vmatprep.subr.bf16.mxu0 0
      %4590 = vmatpush1.bf16.msra.mxu0 0
      %4591 = vmatprep.subr.bf16.mxu0 0
      %4592 = vmatpush1.bf16.msra.mxu0 0
      %4593 = vmatprep.subr.bf16.mxu0 0
      %4594 = vmatpush1.bf16.msra.mxu0 0
      %4595 = vmatprep.subr.bf16.mxu0 0
      %4596 = vmatpush1.bf16.msra.mxu0 0
      %4597 = vmatprep.subr.bf16.mxu0 0
      %4598 = vmatpush1.bf16.msra.mxu0 0
      %4599 = vmatprep.subr.bf16.mxu0 0
      %4600 = vmatpush1.bf16.msra.mxu0 0
      %4601 = vmatprep.subr.bf16.mxu0 0
      %4602 = vmatpush1.bf16.msra.mxu0 0
      %4603 = vmatprep.mubr.bf16.mxu0 0
      %4604 = vmatmul.mubr.bf16.gmra.mrb[0].mxu0 %v4569
      %v4605 = vpop.f32.mrb[0].mxu0
      %v4606 = vadd.f32 %v4556, %v4605
      %v4607 = vpop.f32.mrb[0].mxu0
      %v4608 = vpop.f32.mrb[0].mxu0
      %v4609 = vadd.f32 %v4561, %v4608
      %v4610 = vpop.f32.mrb[0].mxu0
      %4611 = vdwg.mxu0
      %v4612 = vpack.c.bf16 %v4609, %v4606
      %v4613 = vld [vmem:[%s23] sm:$0xf]
      %v4614 = vld [vmem:[%s23 + $0x4] sm:$0xf]
      %v4615 = vld [vmem:[%s23 + $0x8] sm:$0x1]
      %v4616 = vld [vmem:[%s25] sm:$0xff]
      %v4617 = vld [vmem:[%s25 + $0x8] sm:$0xff]
      %v4618 = vld [vmem:[%s25 + $0x10] sm:$0x3]
      %4620 = vset.pattern.permute.xlu0 0
      %4621 = vperm.xlu0 %4620, %v4616
      %v4622 = vpop.permute.xlu0 %4621
      %4625 = vset.pattern.permute.xlu0 0
      %4626 = vperm.xlu0 %4625, %v4617
      %v4627 = vpop.permute.xlu0 %4626
      %4630 = vset.pattern.permute.xlu0 0
      %4631 = vperm.xlu0 %4630, %v4618
      %v4632 = vpop.permute.xlu0 %4631
      %v4637 = vunpack.c.l.b16 %v4613
      %v4638 = vunpack.c.l.b16 %v4614
      %v4639 = vunpack.c.l.b16 %v4615
      %v4640 = vpack.c.b16 %v4638, %v4637
      %v4641 = vpack.c.b16 %v4639, %v4639
      %v4643 = vsel %vm3275, %v4640, 0
      %v4646 = vsel %vm3275, %v4641, 0
      %4648 = vmatprep.subr.bf16.mxu0 0
      %4649 = vmatpush1.bf16.msra.mxu0 %v3178
      %4650 = vmatprep.subr.bf16.mxu0 0
      %4651 = vmatpush1.bf16.msra.mxu0 0
      %4652 = vmatprep.subr.bf16.mxu0 0
      %4653 = vmatpush1.bf16.msra.mxu0 0
      %4654 = vmatprep.subr.bf16.mxu0 0
      %4655 = vmatpush1.bf16.msra.mxu0 0
      %4656 = vmatprep.subr.bf16.mxu0 0
      %4657 = vmatpush1.bf16.msra.mxu0 0
      %4658 = vmatprep.subr.bf16.mxu0 0
      %4659 = vmatpush1.bf16.msra.mxu0 0
      %4660 = vmatprep.subr.bf16.mxu0 0
      %4661 = vmatpush1.bf16.msra.mxu0 0
      %4662 = vmatprep.subr.bf16.mxu0 0
      %4663 = vmatpush1.bf16.msra.mxu0 0
      %4664 = vmatprep.subr.bf16.mxu0 0
      %4665 = vmatpush1.bf16.msra.mxu0 0
      %4666 = vmatprep.subr.bf16.mxu0 0
      %4667 = vmatpush1.bf16.msra.mxu0 0
      %4668 = vmatprep.subr.bf16.mxu0 0
      %4669 = vmatpush1.bf16.msra.mxu0 0
      %4670 = vmatprep.subr.bf16.mxu0 0
      %4671 = vmatpush1.bf16.msra.mxu0 0
      %4672 = vmatprep.subr.bf16.mxu0 0
      %4673 = vmatpush1.bf16.msra.mxu0 0
      %4674 = vmatprep.subr.bf16.mxu0 0
      %4675 = vmatpush1.bf16.msra.mxu0 0
      %4676 = vmatprep.subr.bf16.mxu0 0
      %4677 = vmatpush1.bf16.msra.mxu0 0
      %4678 = vmatprep.subr.bf16.mxu0 0
      %4679 = vmatpush1.bf16.msra.mxu0 0
      %4680 = vmatprep.mubr.bf16.mxu0 0
      %4681 = vmatmul.mubr.bf16.gmra.mrb[0].mxu0 %v4643
      %v4682 = vpop.f32.mrb[0].mxu0
      %v4683 = vadd.f32 %v4622, %v4682
      %v4684 = vpop.f32.mrb[0].mxu0
      %v4685 = vpop.f32.mrb[0].mxu0
      %v4686 = vadd.f32 %v4627, %v4685
      %v4687 = vpop.f32.mrb[0].mxu0
      %4688 = vmatprep.mubr.bf16.mxu0 0
      %4689 = vmatmul.mubr.bf16.gmra.mrb[0].mxu0 %v4646
      %v4690 = vpop.f32.mrb[0].mxu0
      %v4691 = vadd.f32 %v4632, %v4690
      %v4692 = vpop.f32.mrb[0].mxu0
      %v4693 = vpop.f32.mrb[0].mxu0
      %v4694 = vpop.f32.mrb[0].mxu0
      %4695 = vdwg.mxu0
      %4696 = vst.msk [vmem:[%s1020] sm:$0xff] %vm3215, %v4683
      %4697 = vst.msk [vmem:[%s1020 + $0x8] sm:$0xff] %vm3215, %v4686
      %vm4698 = vcmask 517120
      %4699 = vst.msk [vmem:[%s1020 + $0x10] sm:$0x3] %vm4698, %v4691
      %v4700 = vsub.f32 0.0, %v4683
      %v4701 = vsub.f32 0.0, %v4686
      %v4702 = vsub.f32 0.0, %v4691
      %v4703 = vmul.f32 %v4700, 1.442695
      %v4704 = vpow.pop %v4703
      %v4705 = vmul.f32 %v4701, 1.442695
      %v4706 = vpow.pop %v4705
      %v4707 = vmul.f32 %v4702, 1.442695
      %v4708 = vpow.pop %v4707
      %v4709 = vadd.f32 %v4704, 1.0
      %v4710 = vadd.f32 %v4706, 1.0
      %v4711 = vadd.f32 %v4708, 1.0
      %v4712 = vrcp.pop %v4709
      %v4713 = vrcp.pop %v4710
      %v4714 = vrcp.pop %v4711
      %v4715 = vld [vmem:[%s43] sm:$0xff]
      %v4716 = vld [vmem:[%s43 + $0x8] sm:$0xff]
      %v4717 = vld [vmem:[%s43 + $0x10] sm:$0x3]
      %v4718 = vld [vmem:[%s45] sm:$0xff]
      %v4719 = vld [vmem:[%s45 + $0x8] sm:$0xff]
      %v4720 = vld [vmem:[%s45 + $0x10] sm:$0x3]
      %v4721 = vld [vmem:[%s47] sm:$0xff]
      %v4722 = vld [vmem:[%s47 + $0x8] sm:$0xff]
      %v4723 = vld [vmem:[%s47 + $0x10] sm:$0x3]
      %4725 = vset.pattern.permute.xlu0 0
      %4726 = vperm.xlu0 %4725, %v4721
      %v4727 = vpop.permute.xlu0 %4726
      %4730 = vset.pattern.permute.xlu0 0
      %4731 = vperm.xlu0 %4730, %v4722
      %v4732 = vpop.permute.xlu0 %4731
      %4735 = vset.pattern.permute.xlu0 0
      %4736 = vperm.xlu0 %4735, %v4723
      %v4737 = vpop.permute.xlu0 %4736
      %v4739 = vmul.f32 %v4712, %v4727
      %v4740 = vmul.f32 %v4713, %v4732
      %v4741 = vmul.f32 %v4714, %v4737
      %4743 = vset.pattern.permute.xlu0 0
      %4744 = vperm.xlu0 %4743, %v4718
      %v4745 = vpop.permute.xlu0 %4744
      %4748 = vset.pattern.permute.xlu0 0
      %4749 = vperm.xlu0 %4748, %v4719
      %v4750 = vpop.permute.xlu0 %4749
      %4753 = vset.pattern.permute.xlu0 0
      %4754 = vperm.xlu0 %4753, %v4720
      %v4755 = vpop.permute.xlu0 %4754
      %v4757 = vadd.f32 %v4745, %v4739
      %v4758 = vadd.f32 %v4750, %v4740
      %v4759 = vadd.f32 %v4755, %v4741
      %v4760 = vmul.f32 %v4712, %v4757
      %v4761 = vmul.f32 %v4713, %v4758
      %v4762 = vmul.f32 %v4714, %v4759
      %v4763 = vadd.f32 %v4715, %v4760
      %v4764 = vadd.f32 %v4716, %v4761
      %v4765 = vadd.f32 %v4717, %v4762
      %4766 = vst.msk [vmem:[%s1025] sm:$0xff] %vm3215, %v4763
      %4767 = vst.msk [vmem:[%s1025 + $0x8] sm:$0xff] %vm3215, %v4764
      %4768 = vst.msk [vmem:[%s1025 + $0x10] sm:$0x3] %vm4698, %v4765
      %v4769 = vld [vmem:[%s27] sm:$0xf]
      %v4770 = vld [vmem:[%s27 + $0x4] sm:$0xf]
      %v4771 = vld [vmem:[%s27 + $0x8] sm:$0x1]
      %v4772 = vld [vmem:[%s29] sm:$0xff]
      %v4773 = vld [vmem:[%s29 + $0x8] sm:$0xff]
      %v4774 = vld [vmem:[%s29 + $0x10] sm:$0x3]
      %4776 = vset.pattern.permute.xlu0 0
      %4777 = vperm.xlu0 %4776, %v4772
      %v4778 = vpop.permute.xlu0 %4777
      %4781 = vset.pattern.permute.xlu0 0
      %4782 = vperm.xlu0 %4781, %v4773
      %v4783 = vpop.permute.xlu0 %4782
      %4786 = vset.pattern.permute.xlu0 0
      %4787 = vperm.xlu0 %4786, %v4774
      %v4788 = vpop.permute.xlu0 %4787
      %v4793 = vunpack.c.l.b16 %v4769
      %v4794 = vunpack.c.l.b16 %v4770
      %v4795 = vunpack.c.l.b16 %v4771
      %v4796 = vpack.c.b16 %v4794, %v4793
      %v4797 = vpack.c.b16 %v4795, %v4795
      %v4799 = vsel %vm3275, %v4796, 0
      %v4802 = vsel %vm3275, %v4797, 0
      %4804 = vmatprep.subr.bf16.mxu0 0
      %4805 = vmatpush1.bf16.msra.mxu0 %v4612
      %4806 = vmatprep.subr.bf16.mxu0 0
      %4807 = vmatpush1.bf16.msra.mxu0 0
      %4808 = vmatprep.subr.bf16.mxu0 0
      %4809 = vmatpush1.bf16.msra.mxu0 0
      %4810 = vmatprep.subr.bf16.mxu0 0
      %4811 = vmatpush1.bf16.msra.mxu0 0
      %4812 = vmatprep.subr.bf16.mxu0 0
      %4813 = vmatpush1.bf16.msra.mxu0 0
      %4814 = vmatprep.subr.bf16.mxu0 0
      %4815 = vmatpush1.bf16.msra.mxu0 0
      %4816 = vmatprep.subr.bf16.mxu0 0
      %4817 = vmatpush1.bf16.msra.mxu0 0
      %4818 = vmatprep.subr.bf16.mxu0 0
      %4819 = vmatpush1.bf16.msra.mxu0 0
      %4820 = vmatprep.subr.bf16.mxu0 0
      %4821 = vmatpush1.bf16.msra.mxu0 0
      %4822 = vmatprep.subr.bf16.mxu0 0
      %4823 = vmatpush1.bf16.msra.mxu0 0
      %4824 = vmatprep.subr.bf16.mxu0 0
      %4825 = vmatpush1.bf16.msra.mxu0 0
      %4826 = vmatprep.subr.bf16.mxu0 0
      %4827 = vmatpush1.bf16.msra.mxu0 0
      %4828 = vmatprep.subr.bf16.mxu0 0
      %4829 = vmatpush1.bf16.msra.mxu0 0
      %4830 = vmatprep.subr.bf16.mxu0 0
      %4831 = vmatpush1.bf16.msra.mxu0 0
      %4832 = vmatprep.subr.bf16.mxu0 0
      %4833 = vmatpush1.bf16.msra.mxu0 0
      %4834 = vmatprep.subr.bf16.mxu0 0
      %4835 = vmatpush1.bf16.msra.mxu0 0
      %4836 = vmatprep.mubr.bf16.mxu0 0
      %4837 = vmatmul.mubr.bf16.gmra.mrb[0].mxu0 %v4799
      %v4838 = vpop.f32.mrb[0].mxu0
      %v4839 = vadd.f32 %v4778, %v4838
      %v4840 = vpop.f32.mrb[0].mxu0
      %v4841 = vpop.f32.mrb[0].mxu0
      %v4842 = vadd.f32 %v4783, %v4841
      %v4843 = vpop.f32.mrb[0].mxu0
      %4844 = vmatprep.mubr.bf16.mxu0 0
      %4845 = vmatmul.mubr.bf16.gmra.mrb[0].mxu0 %v4802
      %v4846 = vpop.f32.mrb[0].mxu0
      %v4847 = vadd.f32 %v4788, %v4846
      %v4848 = vpop.f32.mrb[0].mxu0
      %v4849 = vpop.f32.mrb[0].mxu0
      %v4850 = vpop.f32.mrb[0].mxu0
      %4851 = vdwg.mxu0
      %4852 = vst.msk [vmem:[%s1030] sm:$0xff] %vm3275, %v4839
      %4853 = vst.msk [vmem:[%s1030 + $0x8] sm:$0xff] %vm3275, %v4842
      %vm4854 = vcmask 123904
      %4855 = vst.msk [vmem:[%s1030 + $0x10] sm:$0x3] %vm4854, %v4847
      %v4856 = vsub.f32 0.0, %v4839
      %v4857 = vsub.f32 0.0, %v4842
      %v4858 = vsub.f32 0.0, %v4847
      %v4859 = vmul.f32 %v4856, 1.442695
      %v4860 = vpow.pop %v4859
      %v4861 = vmul.f32 %v4857, 1.442695
      %v4862 = vpow.pop %v4861
      %v4863 = vmul.f32 %v4858, 1.442695
      %v4864 = vpow.pop %v4863
      %v4865 = vadd.f32 %v4860, 1.0
      %v4866 = vadd.f32 %v4862, 1.0
      %v4867 = vadd.f32 %v4864, 1.0
      %v4868 = vrcp.pop %v4865
      %v4869 = vrcp.pop %v4866
      %v4870 = vrcp.pop %v4867
      %v4871 = vld [vmem:[%s49] sm:$0xff]
      %v4872 = vld [vmem:[%s49 + $0x8] sm:$0xff]
      %v4873 = vld [vmem:[%s49 + $0x10] sm:$0x3]
      %v4874 = vld [vmem:[%s51] sm:$0xff]
      %v4875 = vld [vmem:[%s51 + $0x8] sm:$0xff]
      %v4876 = vld [vmem:[%s51 + $0x10] sm:$0x3]
      %v4877 = vld [vmem:[%s53] sm:$0xff]
      %v4878 = vld [vmem:[%s53 + $0x8] sm:$0xff]
      %v4879 = vld [vmem:[%s53 + $0x10] sm:$0x3]
      %4881 = vset.pattern.permute.xlu0 0
      %4882 = vperm.xlu0 %4881, %v4877
      %v4883 = vpop.permute.xlu0 %4882
      %4886 = vset.pattern.permute.xlu0 0
      %4887 = vperm.xlu0 %4886, %v4878
      %v4888 = vpop.permute.xlu0 %4887
      %4891 = vset.pattern.permute.xlu0 0
      %4892 = vperm.xlu0 %4891, %v4879
      %v4893 = vpop.permute.xlu0 %4892
      %v4895 = vmul.f32 %v4868, %v4883
      %v4896 = vmul.f32 %v4869, %v4888
      %v4897 = vmul.f32 %v4870, %v4893
      %4899 = vset.pattern.permute.xlu0 0
      %4900 = vperm.xlu0 %4899, %v4874
      %v4901 = vpop.permute.xlu0 %4900
      %4904 = vset.pattern.permute.xlu0 0
      %4905 = vperm.xlu0 %4904, %v4875
      %v4906 = vpop.permute.xlu0 %4905
      %4909 = vset.pattern.permute.xlu0 0
      %4910 = vperm.xlu0 %4909, %v4876
      %v4911 = vpop.permute.xlu0 %4910
      %v4913 = vadd.f32 %v4901, %v4895
      %v4914 = vadd.f32 %v4906, %v4896
      %v4915 = vadd.f32 %v4911, %v4897
      %v4916 = vmul.f32 %v4868, %v4913
      %v4917 = vmul.f32 %v4869, %v4914
      %v4918 = vmul.f32 %v4870, %v4915
      %v4919 = vadd.f32 %v4871, %v4916
      %v4920 = vadd.f32 %v4872, %v4917
      %v4921 = vadd.f32 %v4873, %v4918
      %4922 = vst.msk [vmem:[%s1035] sm:$0xff] %vm3275, %v4919
      %4923 = vst.msk [vmem:[%s1035 + $0x8] sm:$0xff] %vm3275, %v4920
      %4924 = vst.msk [vmem:[%s1035 + $0x10] sm:$0x3] %vm4854, %v4921
      %v4925 = vld [vmem:[%s33] sm:$0x3]
      %v4926 = vld [vmem:[%s35] sm:$0xf]
      %v4927 = vld [vmem:[%s35 + $0x4] sm:$0xf]
      %v4928 = vld [vmem:[%s35 + $0x8] sm:$0xf]
      %v4929 = vld [vmem:[%s35 + $0xc] sm:$0xf]
      %v4930 = vld [vmem:[%s35 + $0x10] sm:$0xf]
      %v4931 = vld [vmem:[%s35 + $0x14] sm:$0xf]
      %v4932 = vld [vmem:[%s35 + $0x18] sm:$0xf]
      %v4933 = vld [vmem:[%s35 + $0x1c] sm:$0xf]
      %v4942 = vunpack.c.l.b16 %v4926
      %v4943 = vunpack.c.l.b16 %v4927
      %v4944 = vunpack.c.l.b16 %v4928
      %v4945 = vunpack.c.l.b16 %v4929
      %v4946 = vunpack.c.l.b16 %v4930
      %v4947 = vunpack.c.l.b16 %v4931
      %v4948 = vunpack.c.l.b16 %v4932
      %v4949 = vunpack.c.l.b16 %v4933
      %v4950 = vpack.c.b16 %v4943, %v4942
      %v4951 = vpack.c.b16 %v4945, %v4944
      %v4952 = vpack.c.b16 %v4947, %v4946
      %v4953 = vpack.c.b16 %v4949, %v4948
      %4958 = vmatprep.subr.bf16.mxu0 0
      %4959 = vmatpush1.bf16.msra.mxu0 %v4950
      %4960 = vmatprep.subr.bf16.mxu0 0
      %4961 = vmatpush1.bf16.msra.mxu0 %v4951
      %4962 = vmatprep.subr.bf16.mxu0 0
      %4963 = vmatpush1.bf16.msra.mxu0 %v4952
      %4964 = vmatprep.subr.bf16.mxu0 0
      %4965 = vmatpush1.bf16.msra.mxu0 %v4953
      %4966 = vmatprep.subr.bf16.mxu0 0
      %4967 = vmatpush1.bf16.msra.mxu0 0
      %4968 = vmatprep.subr.bf16.mxu0 0
      %4969 = vmatpush1.bf16.msra.mxu0 0
      %4970 = vmatprep.subr.bf16.mxu0 0
      %4971 = vmatpush1.bf16.msra.mxu0 0
      %4972 = vmatprep.subr.bf16.mxu0 0
      %4973 = vmatpush1.bf16.msra.mxu0 0
      %4974 = vmatprep.subr.bf16.mxu0 0
      %4975 = vmatpush1.bf16.msra.mxu0 0
      %4976 = vmatprep.subr.bf16.mxu0 0
      %4977 = vmatpush1.bf16.msra.mxu0 0
      %4978 = vmatprep.subr.bf16.mxu0 0
      %4979 = vmatpush1.bf16.msra.mxu0 0
      %4980 = vmatprep.subr.bf16.mxu0 0
      %4981 = vmatpush1.bf16.msra.mxu0 0
      %4982 = vmatprep.subr.bf16.mxu0 0
      %4983 = vmatpush1.bf16.msra.mxu0 0
      %4984 = vmatprep.subr.bf16.mxu0 0
      %4985 = vmatpush1.bf16.msra.mxu0 0
      %4986 = vmatprep.subr.bf16.mxu0 0
      %4987 = vmatpush1.bf16.msra.mxu0 0
      %4988 = vmatprep.subr.bf16.mxu0 0
      %4989 = vmatpush1.bf16.msra.mxu0 0
      %4990 = vmatprep.mubr.bf16.mxu0 0
      %4991 = vmatmul.mubr.bf16.gmra.mrb[0].mxu0 %v3217
      %v4992 = vpop.f32.mrb[0].mxu0
      %v4993 = vadd.f32 0.0, %v4992
      %v4994 = vpop.f32.mrb[0].mxu0
      %v4995 = vpop.f32.mrb[0].mxu0
      %v4996 = vadd.f32 0.0, %v4995
      %v4997 = vpop.f32.mrb[0].mxu0
      %4998 = vdwg.mxu0
      %v4999 = vpack.c.bf16 %v4996, %v4993
      %v5000 = vld [vmem:[%s31] sm:$0x1]
      %v5002 = vsel %vm3275, %v5000, 0
      %5004 = vmatprep.subr.bf16.mxu0 0
      %5005 = vmatpush1.bf16.msra.mxu0 %v4999
      %5006 = vmatprep.subr.bf16.mxu0 0
      %5007 = vmatpush1.bf16.msra.mxu0 0
      %5008 = vmatprep.subr.bf16.mxu0 0
      %5009 = vmatpush1.bf16.msra.mxu0 0
      %5010 = vmatprep.subr.bf16.mxu0 0
      %5011 = vmatpush1.bf16.msra.mxu0 0
      %5012 = vmatprep.subr.bf16.mxu0 0
      %5013 = vmatpush1.bf16.msra.mxu0 0
      %5014 = vmatprep.subr.bf16.mxu0 0
      %5015 = vmatpush1.bf16.msra.mxu0 0
      %5016 = vmatprep.subr.bf16.mxu0 0
      %5017 = vmatpush1.bf16.msra.mxu0 0
      %5018 = vmatprep.subr.bf16.mxu0 0
      %5019 = vmatpush1.bf16.msra.mxu0 0
      %5020 = vmatprep.subr.bf16.mxu0 0
      %5021 = vmatpush1.bf16.msra.mxu0 0
      %5022 = vmatprep.subr.bf16.mxu0 0
      %5023 = vmatpush1.bf16.msra.mxu0 0
      %5024 = vmatprep.subr.bf16.mxu0 0
      %5025 = vmatpush1.bf16.msra.mxu0 0
      %5026 = vmatprep.subr.bf16.mxu0 0
      %5027 = vmatpush1.bf16.msra.mxu0 0
      %5028 = vmatprep.subr.bf16.mxu0 0
      %5029 = vmatpush1.bf16.msra.mxu0 0
      %5030 = vmatprep.subr.bf16.mxu0 0
      %5031 = vmatpush1.bf16.msra.mxu0 0
      %5032 = vmatprep.subr.bf16.mxu0 0
      %5033 = vmatpush1.bf16.msra.mxu0 0
      %5034 = vmatprep.subr.bf16.mxu0 0
      %5035 = vmatpush1.bf16.msra.mxu0 0
      %5036 = vmatprep.mubr.bf16.mxu0 0
      %5037 = vmatmul.mubr.bf16.gmra.mrb[0].mxu0 %v5002
      %v5038 = vpop.f32.mrb[0].mxu0
      %v5039 = vadd.f32 0.0, %v5038
      %v5040 = vpop.f32.mrb[0].mxu0
      %v5041 = vpop.f32.mrb[0].mxu0
      %v5042 = vpop.f32.mrb[0].mxu0
      %5043 = vdwg.mxu0
      %5045 = vset.pattern.permute.xlu0 0
      %5046 = vperm.xlu0 %5045, %v4925
      %v5047 = vpop.permute.xlu0 %5046
      %v5049 = vadd.f32 %v5047, %v5039
      %s5050 = scalar_lea.vmem %s35, 32
      %v5051 = vld [vmem:[%s5050] sm:$0xf]
      %v5052 = vld [vmem:[%s5050 + $0x4] sm:$0xf]
      %v5053 = vld [vmem:[%s5050 + $0x8] sm:$0xf]
      %v5054 = vld [vmem:[%s5050 + $0xc] sm:$0xf]
      %v5055 = vld [vmem:[%s5050 + $0x10] sm:$0xf]
      %v5056 = vld [vmem:[%s5050 + $0x14] sm:$0xf]
      %v5057 = vld [vmem:[%s5050 + $0x18] sm:$0xf]
      %v5058 = vld [vmem:[%s5050 + $0x1c] sm:$0xf]
      %v5067 = vunpack.c.l.b16 %v5051
      %v5068 = vunpack.c.l.b16 %v5052
      %v5069 = vunpack.c.l.b16 %v5053
      %v5070 = vunpack.c.l.b16 %v5054
      %v5071 = vunpack.c.l.b16 %v5055
      %v5072 = vunpack.c.l.b16 %v5056
      %v5073 = vunpack.c.l.b16 %v5057
      %v5074 = vunpack.c.l.b16 %v5058
      %v5075 = vpack.c.b16 %v5068, %v5067
      %v5076 = vpack.c.b16 %v5070, %v5069
      %v5077 = vpack.c.b16 %v5072, %v5071
      %v5078 = vpack.c.b16 %v5074, %v5073
      %5083 = vmatprep.subr.bf16.mxu0 0
      %5084 = vmatpush1.bf16.msra.mxu0 %v5075
      %5085 = vmatprep.subr.bf16.mxu0 0
      %5086 = vmatpush1.bf16.msra.mxu0 %v5076
      %5087 = vmatprep.subr.bf16.mxu0 0
      %5088 = vmatpush1.bf16.msra.mxu0 %v5077
      %5089 = vmatprep.subr.bf16.mxu0 0
      %5090 = vmatpush1.bf16.msra.mxu0 %v5078
      %5091 = vmatprep.subr.bf16.mxu0 0
      %5092 = vmatpush1.bf16.msra.mxu0 0
      %5093 = vmatprep.subr.bf16.mxu0 0
      %5094 = vmatpush1.bf16.msra.mxu0 0
      %5095 = vmatprep.subr.bf16.mxu0 0
      %5096 = vmatpush1.bf16.msra.mxu0 0
      %5097 = vmatprep.subr.bf16.mxu0 0
      %5098 = vmatpush1.bf16.msra.mxu0 0
      %5099 = vmatprep.subr.bf16.mxu0 0
      %5100 = vmatpush1.bf16.msra.mxu0 0
      %5101 = vmatprep.subr.bf16.mxu0 0
      %5102 = vmatpush1.bf16.msra.mxu0 0
      %5103 = vmatprep.subr.bf16.mxu0 0
      %5104 = vmatpush1.bf16.msra.mxu0 0
      %5105 = vmatprep.subr.bf16.mxu0 0
      %5106 = vmatpush1.bf16.msra.mxu0 0
      %5107 = vmatprep.subr.bf16.mxu0 0
      %5108 = vmatpush1.bf16.msra.mxu0 0
      %5109 = vmatprep.subr.bf16.mxu0 0
      %5110 = vmatpush1.bf16.msra.mxu0 0
      %5111 = vmatprep.subr.bf16.mxu0 0
      %5112 = vmatpush1.bf16.msra.mxu0 0
      %5113 = vmatprep.subr.bf16.mxu0 0
      %5114 = vmatpush1.bf16.msra.mxu0 0
      %5115 = vmatprep.mubr.bf16.mxu0 0
      %5116 = vmatmul.mubr.bf16.gmra.mrb[0].mxu0 %v3217
      %v5117 = vpop.f32.mrb[0].mxu0
      %v5118 = vadd.f32 0.0, %v5117
      %v5119 = vpop.f32.mrb[0].mxu0
      %v5120 = vpop.f32.mrb[0].mxu0
      %v5121 = vadd.f32 0.0, %v5120
      %v5122 = vpop.f32.mrb[0].mxu0
      %5123 = vdwg.mxu0
      %v5124 = vpack.c.bf16 %v5121, %v5118
      %s5125 = scalar_lea.vmem %s31, 1
      %v5126 = vld [vmem:[%s5125] sm:$0x1]
      %v5128 = vsel %vm3275, %v5126, 0
      %5130 = vmatprep.subr.bf16.mxu0 0
      %5131 = vmatpush1.bf16.msra.mxu0 %v5124
      %5132 = vmatprep.subr.bf16.mxu0 0
      %5133 = vmatpush1.bf16.msra.mxu0 0
      %5134 = vmatprep.subr.bf16.mxu0 0
      %5135 = vmatpush1.bf16.msra.mxu0 0
      %5136 = vmatprep.subr.bf16.mxu0 0
      %5137 = vmatpush1.bf16.msra.mxu0 0
      %5138 = vmatprep.subr.bf16.mxu0 0
      %5139 = vmatpush1.bf16.msra.mxu0 0
      %5140 = vmatprep.subr.bf16.mxu0 0
      %5141 = vmatpush1.bf16.msra.mxu0 0
      %5142 = vmatprep.subr.bf16.mxu0 0
      %5143 = vmatpush1.bf16.msra.mxu0 0
      %5144 = vmatprep.subr.bf16.mxu0 0
      %5145 = vmatpush1.bf16.msra.mxu0 0
      %5146 = vmatprep.subr.bf16.mxu0 0
      %5147 = vmatpush1.bf16.msra.mxu0 0
      %5148 = vmatprep.subr.bf16.mxu0 0
      %5149 = vmatpush1.bf16.msra.mxu0 0
      %5150 = vmatprep.subr.bf16.mxu0 0
      %5151 = vmatpush1.bf16.msra.mxu0 0
      %5152 = vmatprep.subr.bf16.mxu0 0
      %5153 = vmatpush1.bf16.msra.mxu0 0
      %5154 = vmatprep.subr.bf16.mxu0 0
      %5155 = vmatpush1.bf16.msra.mxu0 0
      %5156 = vmatprep.subr.bf16.mxu0 0
      %5157 = vmatpush1.bf16.msra.mxu0 0
      %5158 = vmatprep.subr.bf16.mxu0 0
      %5159 = vmatpush1.bf16.msra.mxu0 0
      %5160 = vmatprep.subr.bf16.mxu0 0
      %5161 = vmatpush1.bf16.msra.mxu0 0
      %5162 = vmatprep.mubr.bf16.mxu0 0
      %5163 = vmatmul.mubr.bf16.gmra.mrb[0].mxu0 %v5128
      %v5164 = vpop.f32.mrb[0].mxu0
      %v5165 = vadd.f32 0.0, %v5164
      %v5166 = vpop.f32.mrb[0].mxu0
      %v5167 = vpop.f32.mrb[0].mxu0
      %v5168 = vpop.f32.mrb[0].mxu0
      %5169 = vdwg.mxu0
      %v5170 = vadd.f32 %v5049, %v5165
      %s5171 = scalar_lea.vmem %s35, 64
      %v5172 = vld [vmem:[%s5171] sm:$0xf]
      %v5173 = vld [vmem:[%s5171 + $0x4] sm:$0xf]
      %v5174 = vld [vmem:[%s5171 + $0x8] sm:$0xf]
      %v5175 = vld [vmem:[%s5171 + $0xc] sm:$0xf]
      %v5176 = vld [vmem:[%s5171 + $0x10] sm:$0xf]
      %v5177 = vld [vmem:[%s5171 + $0x14] sm:$0xf]
      %v5178 = vld [vmem:[%s5171 + $0x18] sm:$0xf]
      %v5179 = vld [vmem:[%s5171 + $0x1c] sm:$0xf]
      %v5188 = vunpack.c.l.b16 %v5172
      %v5189 = vunpack.c.l.b16 %v5173
      %v5190 = vunpack.c.l.b16 %v5174
      %v5191 = vunpack.c.l.b16 %v5175
      %v5192 = vunpack.c.l.b16 %v5176
      %v5193 = vunpack.c.l.b16 %v5177
      %v5194 = vunpack.c.l.b16 %v5178
      %v5195 = vunpack.c.l.b16 %v5179
      %v5196 = vpack.c.b16 %v5189, %v5188
      %v5197 = vpack.c.b16 %v5191, %v5190
      %v5198 = vpack.c.b16 %v5193, %v5192
      %v5199 = vpack.c.b16 %v5195, %v5194
      %5204 = vmatprep.subr.bf16.mxu0 0
      %5205 = vmatpush1.bf16.msra.mxu0 %v5196
      %5206 = vmatprep.subr.bf16.mxu0 0
      %5207 = vmatpush1.bf16.msra.mxu0 %v5197
      %5208 = vmatprep.subr.bf16.mxu0 0
      %5209 = vmatpush1.bf16.msra.mxu0 %v5198
      %5210 = vmatprep.subr.bf16.mxu0 0
      %5211 = vmatpush1.bf16.msra.mxu0 %v5199
      %5212 = vmatprep.subr.bf16.mxu0 0
      %5213 = vmatpush1.bf16.msra.mxu0 0
      %5214 = vmatprep.subr.bf16.mxu0 0
      %5215 = vmatpush1.bf16.msra.mxu0 0
      %5216 = vmatprep.subr.bf16.mxu0 0
      %5217 = vmatpush1.bf16.msra.mxu0 0
      %5218 = vmatprep.subr.bf16.mxu0 0
      %5219 = vmatpush1.bf16.msra.mxu0 0
      %5220 = vmatprep.subr.bf16.mxu0 0
      %5221 = vmatpush1.bf16.msra.mxu0 0
      %5222 = vmatprep.subr.bf16.mxu0 0
      %5223 = vmatpush1.bf16.msra.mxu0 0
      %5224 = vmatprep.subr.bf16.mxu0 0
      %5225 = vmatpush1.bf16.msra.mxu0 0
      %5226 = vmatprep.subr.bf16.mxu0 0
      %5227 = vmatpush1.bf16.msra.mxu0 0
      %5228 = vmatprep.subr.bf16.mxu0 0
      %5229 = vmatpush1.bf16.msra.mxu0 0
      %5230 = vmatprep.subr.bf16.mxu0 0
      %5231 = vmatpush1.bf16.msra.mxu0 0
      %5232 = vmatprep.subr.bf16.mxu0 0
      %5233 = vmatpush1.bf16.msra.mxu0 0
      %5234 = vmatprep.subr.bf16.mxu0 0
      %5235 = vmatpush1.bf16.msra.mxu0 0
      %5236 = vmatprep.mubr.bf16.mxu0 0
      %5237 = vmatmul.mubr.bf16.gmra.mrb[0].mxu0 %v3217
      %v5238 = vpop.f32.mrb[0].mxu0
      %v5239 = vadd.f32 0.0, %v5238
      %v5240 = vpop.f32.mrb[0].mxu0
      %v5241 = vpop.f32.mrb[0].mxu0
      %v5242 = vadd.f32 0.0, %v5241
      %v5243 = vpop.f32.mrb[0].mxu0
      %5244 = vdwg.mxu0
      %v5245 = vpack.c.bf16 %v5242, %v5239
      %s5246 = scalar_lea.vmem %s31, 2
      %v5247 = vld [vmem:[%s5246] sm:$0x1]
      %v5249 = vsel %vm3275, %v5247, 0
      %5251 = vmatprep.subr.bf16.mxu0 0
      %5252 = vmatpush1.bf16.msra.mxu0 %v5245
      %5253 = vmatprep.subr.bf16.mxu0 0
      %5254 = vmatpush1.bf16.msra.mxu0 0
      %5255 = vmatprep.subr.bf16.mxu0 0
      %5256 = vmatpush1.bf16.msra.mxu0 0
      %5257 = vmatprep.subr.bf16.mxu0 0
      %5258 = vmatpush1.bf16.msra.mxu0 0
      %5259 = vmatprep.subr.bf16.mxu0 0
      %5260 = vmatpush1.bf16.msra.mxu0 0
      %5261 = vmatprep.subr.bf16.mxu0 0
      %5262 = vmatpush1.bf16.msra.mxu0 0
      %5263 = vmatprep.subr.bf16.mxu0 0
      %5264 = vmatpush1.bf16.msra.mxu0 0
      %5265 = vmatprep.subr.bf16.mxu0 0
      %5266 = vmatpush1.bf16.msra.mxu0 0
      %5267 = vmatprep.subr.bf16.mxu0 0
      %5268 = vmatpush1.bf16.msra.mxu0 0
      %5269 = vmatprep.subr.bf16.mxu0 0
      %5270 = vmatpush1.bf16.msra.mxu0 0
      %5271 = vmatprep.subr.bf16.mxu0 0
      %5272 = vmatpush1.bf16.msra.mxu0 0
      %5273 = vmatprep.subr.bf16.mxu0 0
      %5274 = vmatpush1.bf16.msra.mxu0 0
      %5275 = vmatprep.subr.bf16.mxu0 0
      %5276 = vmatpush1.bf16.msra.mxu0 0
      %5277 = vmatprep.subr.bf16.mxu0 0
      %5278 = vmatpush1.bf16.msra.mxu0 0
      %5279 = vmatprep.subr.bf16.mxu0 0
      %5280 = vmatpush1.bf16.msra.mxu0 0
      %5281 = vmatprep.subr.bf16.mxu0 0
      %5282 = vmatpush1.bf16.msra.mxu0 0
      %5283 = vmatprep.mubr.bf16.mxu0 0
      %5284 = vmatmul.mubr.bf16.gmra.mrb[0].mxu0 %v5249
      %v5285 = vpop.f32.mrb[0].mxu0
      %v5286 = vadd.f32 0.0, %v5285
      %v5287 = vpop.f32.mrb[0].mxu0
      %v5288 = vpop.f32.mrb[0].mxu0
      %v5289 = vpop.f32.mrb[0].mxu0
      %5290 = vdwg.mxu0
      %v5291 = vadd.f32 %v5170, %v5286
      %s5292 = scalar_lea.vmem %s35, 96
      %v5293 = vld [vmem:[%s5292] sm:$0xf]
      %v5294 = vld [vmem:[%s5292 + $0x4] sm:$0xf]
      %v5295 = vld [vmem:[%s5292 + $0x8] sm:$0xf]
      %v5296 = vld [vmem:[%s5292 + $0xc] sm:$0xf]
      %v5297 = vld [vmem:[%s5292 + $0x10] sm:$0xf]
      %v5298 = vld [vmem:[%s5292 + $0x14] sm:$0xf]
      %v5299 = vld [vmem:[%s5292 + $0x18] sm:$0xf]
      %v5300 = vld [vmem:[%s5292 + $0x1c] sm:$0xf]
      %v5309 = vunpack.c.l.b16 %v5293
      %v5310 = vunpack.c.l.b16 %v5294
      %v5311 = vunpack.c.l.b16 %v5295
      %v5312 = vunpack.c.l.b16 %v5296
      %v5313 = vunpack.c.l.b16 %v5297
      %v5314 = vunpack.c.l.b16 %v5298
      %v5315 = vunpack.c.l.b16 %v5299
      %v5316 = vunpack.c.l.b16 %v5300
      %v5317 = vpack.c.b16 %v5310, %v5309
      %v5318 = vpack.c.b16 %v5312, %v5311
      %v5319 = vpack.c.b16 %v5314, %v5313
      %v5320 = vpack.c.b16 %v5316, %v5315
      %5325 = vmatprep.subr.bf16.mxu0 0
      %5326 = vmatpush1.bf16.msra.mxu0 %v5317
      %5327 = vmatprep.subr.bf16.mxu0 0
      %5328 = vmatpush1.bf16.msra.mxu0 %v5318
      %5329 = vmatprep.subr.bf16.mxu0 0
      %5330 = vmatpush1.bf16.msra.mxu0 %v5319
      %5331 = vmatprep.subr.bf16.mxu0 0
      %5332 = vmatpush1.bf16.msra.mxu0 %v5320
      %5333 = vmatprep.subr.bf16.mxu0 0
      %5334 = vmatpush1.bf16.msra.mxu0 0
      %5335 = vmatprep.subr.bf16.mxu0 0
      %5336 = vmatpush1.bf16.msra.mxu0 0
      %5337 = vmatprep.subr.bf16.mxu0 0
      %5338 = vmatpush1.bf16.msra.mxu0 0
      %5339 = vmatprep.subr.bf16.mxu0 0
      %5340 = vmatpush1.bf16.msra.mxu0 0
      %5341 = vmatprep.subr.bf16.mxu0 0
      %5342 = vmatpush1.bf16.msra.mxu0 0
      %5343 = vmatprep.subr.bf16.mxu0 0
      %5344 = vmatpush1.bf16.msra.mxu0 0
      %5345 = vmatprep.subr.bf16.mxu0 0
      %5346 = vmatpush1.bf16.msra.mxu0 0
      %5347 = vmatprep.subr.bf16.mxu0 0
      %5348 = vmatpush1.bf16.msra.mxu0 0
      %5349 = vmatprep.subr.bf16.mxu0 0
      %5350 = vmatpush1.bf16.msra.mxu0 0
      %5351 = vmatprep.subr.bf16.mxu0 0
      %5352 = vmatpush1.bf16.msra.mxu0 0
      %5353 = vmatprep.subr.bf16.mxu0 0
      %5354 = vmatpush1.bf16.msra.mxu0 0
      %5355 = vmatprep.subr.bf16.mxu0 0
      %5356 = vmatpush1.bf16.msra.mxu0 0
      %5357 = vmatprep.mubr.bf16.mxu0 0
      %5358 = vmatmul.mubr.bf16.gmra.mrb[0].mxu0 %v3217
      %v5359 = vpop.f32.mrb[0].mxu0
      %v5360 = vadd.f32 0.0, %v5359
      %v5361 = vpop.f32.mrb[0].mxu0
      %v5362 = vpop.f32.mrb[0].mxu0
      %v5363 = vadd.f32 0.0, %v5362
      %v5364 = vpop.f32.mrb[0].mxu0
      %5365 = vdwg.mxu0
      %v5366 = vpack.c.bf16 %v5363, %v5360
      %s5367 = scalar_lea.vmem %s31, 3
      %v5368 = vld [vmem:[%s5367] sm:$0x1]
      %v5370 = vsel %vm3275, %v5368, 0
      %5372 = vmatprep.subr.bf16.mxu0 0
      %5373 = vmatpush1.bf16.msra.mxu0 %v5366
      %5374 = vmatprep.subr.bf16.mxu0 0
      %5375 = vmatpush1.bf16.msra.mxu0 0
      %5376 = vmatprep.subr.bf16.mxu0 0
      %5377 = vmatpush1.bf16.msra.mxu0 0
      %5378 = vmatprep.subr.bf16.mxu0 0
      %5379 = vmatpush1.bf16.msra.mxu0 0
      %5380 = vmatprep.subr.bf16.mxu0 0
      %5381 = vmatpush1.bf16.msra.mxu0 0
      %5382 = vmatprep.subr.bf16.mxu0 0
      %5383 = vmatpush1.bf16.msra.mxu0 0
      %5384 = vmatprep.subr.bf16.mxu0 0
      %5385 = vmatpush1.bf16.msra.mxu0 0
      %5386 = vmatprep.subr.bf16.mxu0 0
      %5387 = vmatpush1.bf16.msra.mxu0 0
      %5388 = vmatprep.subr.bf16.mxu0 0
      %5389 = vmatpush1.bf16.msra.mxu0 0
      %5390 = vmatprep.subr.bf16.mxu0 0
      %5391 = vmatpush1.bf16.msra.mxu0 0
      %5392 = vmatprep.subr.bf16.mxu0 0
      %5393 = vmatpush1.bf16.msra.mxu0 0
      %5394 = vmatprep.subr.bf16.mxu0 0
      %5395 = vmatpush1.bf16.msra.mxu0 0
      %5396 = vmatprep.subr.bf16.mxu0 0
      %5397 = vmatpush1.bf16.msra.mxu0 0
      %5398 = vmatprep.subr.bf16.mxu0 0
      %5399 = vmatpush1.bf16.msra.mxu0 0
      %5400 = vmatprep.subr.bf16.mxu0 0
      %5401 = vmatpush1.bf16.msra.mxu0 0
      %5402 = vmatprep.subr.bf16.mxu0 0
      %5403 = vmatpush1.bf16.msra.mxu0 0
      %5404 = vmatprep.mubr.bf16.mxu0 0
      %5405 = vmatmul.mubr.bf16.gmra.mrb[0].mxu0 %v5370
      %v5406 = vpop.f32.mrb[0].mxu0
      %v5407 = vadd.f32 0.0, %v5406
      %v5408 = vpop.f32.mrb[0].mxu0
      %v5409 = vpop.f32.mrb[0].mxu0
      %v5410 = vpop.f32.mrb[0].mxu0
      %5411 = vdwg.mxu0
      %v5412 = vadd.f32 %v5291, %v5407
      %s5413 = scalar_lea.vmem %s35, 128
      %v5414 = vld [vmem:[%s5413] sm:$0xf]
      %v5415 = vld [vmem:[%s5413 + $0x4] sm:$0xf]
      %v5416 = vld [vmem:[%s5413 + $0x8] sm:$0xf]
      %v5417 = vld [vmem:[%s5413 + $0xc] sm:$0xf]
      %v5418 = vld [vmem:[%s5413 + $0x10] sm:$0xf]
      %v5419 = vld [vmem:[%s5413 + $0x14] sm:$0xf]
      %v5420 = vld [vmem:[%s5413 + $0x18] sm:$0xf]
      %v5421 = vld [vmem:[%s5413 + $0x1c] sm:$0xf]
      %v5430 = vunpack.c.l.b16 %v5414
      %v5431 = vunpack.c.l.b16 %v5415
      %v5432 = vunpack.c.l.b16 %v5416
      %v5433 = vunpack.c.l.b16 %v5417
      %v5434 = vunpack.c.l.b16 %v5418
      %v5435 = vunpack.c.l.b16 %v5419
      %v5436 = vunpack.c.l.b16 %v5420
      %v5437 = vunpack.c.l.b16 %v5421
      %v5438 = vpack.c.b16 %v5431, %v5430
      %v5439 = vpack.c.b16 %v5433, %v5432
      %v5440 = vpack.c.b16 %v5435, %v5434
      %v5441 = vpack.c.b16 %v5437, %v5436
      %5446 = vmatprep.subr.bf16.mxu0 0
      %5447 = vmatpush1.bf16.msra.mxu0 %v5438
      %5448 = vmatprep.subr.bf16.mxu0 0
      %5449 = vmatpush1.bf16.msra.mxu0 %v5439
      %5450 = vmatprep.subr.bf16.mxu0 0
      %5451 = vmatpush1.bf16.msra.mxu0 %v5440
      %5452 = vmatprep.subr.bf16.mxu0 0
      %5453 = vmatpush1.bf16.msra.mxu0 %v5441
      %5454 = vmatprep.subr.bf16.mxu0 0
      %5455 = vmatpush1.bf16.msra.mxu0 0
      %5456 = vmatprep.subr.bf16.mxu0 0
      %5457 = vmatpush1.bf16.msra.mxu0 0
      %5458 = vmatprep.subr.bf16.mxu0 0
      %5459 = vmatpush1.bf16.msra.mxu0 0
      %5460 = vmatprep.subr.bf16.mxu0 0
      %5461 = vmatpush1.bf16.msra.mxu0 0
      %5462 = vmatprep.subr.bf16.mxu0 0
      %5463 = vmatpush1.bf16.msra.mxu0 0
      %5464 = vmatprep.subr.bf16.mxu0 0
      %5465 = vmatpush1.bf16.msra.mxu0 0
      %5466 = vmatprep.subr.bf16.mxu0 0
      %5467 = vmatpush1.bf16.msra.mxu0 0
      %5468 = vmatprep.subr.bf16.mxu0 0
      %5469 = vmatpush1.bf16.msra.mxu0 0
      %5470 = vmatprep.subr.bf16.mxu0 0
      %5471 = vmatpush1.bf16.msra.mxu0 0
      %5472 = vmatprep.subr.bf16.mxu0 0
      %5473 = vmatpush1.bf16.msra.mxu0 0
      %5474 = vmatprep.subr.bf16.mxu0 0
      %5475 = vmatpush1.bf16.msra.mxu0 0
      %5476 = vmatprep.subr.bf16.mxu0 0
      %5477 = vmatpush1.bf16.msra.mxu0 0
      %5478 = vmatprep.mubr.bf16.mxu0 0
      %5479 = vmatmul.mubr.bf16.gmra.mrb[0].mxu0 %v3217
      %v5480 = vpop.f32.mrb[0].mxu0
      %v5481 = vadd.f32 0.0, %v5480
      %v5482 = vpop.f32.mrb[0].mxu0
      %v5483 = vpop.f32.mrb[0].mxu0
      %v5484 = vadd.f32 0.0, %v5483
      %v5485 = vpop.f32.mrb[0].mxu0
      %5486 = vdwg.mxu0
      %v5487 = vpack.c.bf16 %v5484, %v5481
      %s5488 = scalar_lea.vmem %s31, 4
      %v5489 = vld [vmem:[%s5488] sm:$0x1]
      %v5491 = vsel %vm3275, %v5489, 0
      %5493 = vmatprep.subr.bf16.mxu0 0
      %5494 = vmatpush1.bf16.msra.mxu0 %v5487
      %5495 = vmatprep.subr.bf16.mxu0 0
      %5496 = vmatpush1.bf16.msra.mxu0 0
      %5497 = vmatprep.subr.bf16.mxu0 0
      %5498 = vmatpush1.bf16.msra.mxu0 0
      %5499 = vmatprep.subr.bf16.mxu0 0
      %5500 = vmatpush1.bf16.msra.mxu0 0
      %5501 = vmatprep.subr.bf16.mxu0 0
      %5502 = vmatpush1.bf16.msra.mxu0 0
      %5503 = vmatprep.subr.bf16.mxu0 0
      %5504 = vmatpush1.bf16.msra.mxu0 0
      %5505 = vmatprep.subr.bf16.mxu0 0
      %5506 = vmatpush1.bf16.msra.mxu0 0
      %5507 = vmatprep.subr.bf16.mxu0 0
      %5508 = vmatpush1.bf16.msra.mxu0 0
      %5509 = vmatprep.subr.bf16.mxu0 0
      %5510 = vmatpush1.bf16.msra.mxu0 0
      %5511 = vmatprep.subr.bf16.mxu0 0
      %5512 = vmatpush1.bf16.msra.mxu0 0
      %5513 = vmatprep.subr.bf16.mxu0 0
      %5514 = vmatpush1.bf16.msra.mxu0 0
      %5515 = vmatprep.subr.bf16.mxu0 0
      %5516 = vmatpush1.bf16.msra.mxu0 0
      %5517 = vmatprep.subr.bf16.mxu0 0
      %5518 = vmatpush1.bf16.msra.mxu0 0
      %5519 = vmatprep.subr.bf16.mxu0 0
      %5520 = vmatpush1.bf16.msra.mxu0 0
      %5521 = vmatprep.subr.bf16.mxu0 0
      %5522 = vmatpush1.bf16.msra.mxu0 0
      %5523 = vmatprep.subr.bf16.mxu0 0
      %5524 = vmatpush1.bf16.msra.mxu0 0
      %5525 = vmatprep.mubr.bf16.mxu0 0
      %5526 = vmatmul.mubr.bf16.gmra.mrb[0].mxu0 %v5491
      %v5527 = vpop.f32.mrb[0].mxu0
      %v5528 = vadd.f32 0.0, %v5527
      %v5529 = vpop.f32.mrb[0].mxu0
      %v5530 = vpop.f32.mrb[0].mxu0
      %v5531 = vpop.f32.mrb[0].mxu0
      %5532 = vdwg.mxu0
      %v5533 = vadd.f32 %v5412, %v5528
      %s5534 = scalar_lea.vmem %s35, 160
      %v5535 = vld [vmem:[%s5534] sm:$0xf]
      %v5536 = vld [vmem:[%s5534 + $0x4] sm:$0xf]
      %v5537 = vld [vmem:[%s5534 + $0x8] sm:$0xf]
      %v5538 = vld [vmem:[%s5534 + $0xc] sm:$0xf]
      %v5539 = vld [vmem:[%s5534 + $0x10] sm:$0xf]
      %v5540 = vld [vmem:[%s5534 + $0x14] sm:$0xf]
      %v5541 = vld [vmem:[%s5534 + $0x18] sm:$0xf]
      %v5542 = vld [vmem:[%s5534 + $0x1c] sm:$0xf]
      %v5551 = vunpack.c.l.b16 %v5535
      %v5552 = vunpack.c.l.b16 %v5536
      %v5553 = vunpack.c.l.b16 %v5537
      %v5554 = vunpack.c.l.b16 %v5538
      %v5555 = vunpack.c.l.b16 %v5539
      %v5556 = vunpack.c.l.b16 %v5540
      %v5557 = vunpack.c.l.b16 %v5541
      %v5558 = vunpack.c.l.b16 %v5542
      %v5559 = vpack.c.b16 %v5552, %v5551
      %v5560 = vpack.c.b16 %v5554, %v5553
      %v5561 = vpack.c.b16 %v5556, %v5555
      %v5562 = vpack.c.b16 %v5558, %v5557
      %5567 = vmatprep.subr.bf16.mxu0 0
      %5568 = vmatpush1.bf16.msra.mxu0 %v5559
      %5569 = vmatprep.subr.bf16.mxu0 0
      %5570 = vmatpush1.bf16.msra.mxu0 %v5560
      %5571 = vmatprep.subr.bf16.mxu0 0
      %5572 = vmatpush1.bf16.msra.mxu0 %v5561
      %5573 = vmatprep.subr.bf16.mxu0 0
      %5574 = vmatpush1.bf16.msra.mxu0 %v5562
      %5575 = vmatprep.subr.bf16.mxu0 0
      %5576 = vmatpush1.bf16.msra.mxu0 0
      %5577 = vmatprep.subr.bf16.mxu0 0
      %5578 = vmatpush1.bf16.msra.mxu0 0
      %5579 = vmatprep.subr.bf16.mxu0 0
      %5580 = vmatpush1.bf16.msra.mxu0 0
      %5581 = vmatprep.subr.bf16.mxu0 0
      %5582 = vmatpush1.bf16.msra.mxu0 0
      %5583 = vmatprep.subr.bf16.mxu0 0
      %5584 = vmatpush1.bf16.msra.mxu0 0
      %5585 = vmatprep.subr.bf16.mxu0 0
      %5586 = vmatpush1.bf16.msra.mxu0 0
      %5587 = vmatprep.subr.bf16.mxu0 0
      %5588 = vmatpush1.bf16.msra.mxu0 0
      %5589 = vmatprep.subr.bf16.mxu0 0
      %5590 = vmatpush1.bf16.msra.mxu0 0
      %5591 = vmatprep.subr.bf16.mxu0 0
      %5592 = vmatpush1.bf16.msra.mxu0 0
      %5593 = vmatprep.subr.bf16.mxu0 0
      %5594 = vmatpush1.bf16.msra.mxu0 0
      %5595 = vmatprep.subr.bf16.mxu0 0
      %5596 = vmatpush1.bf16.msra.mxu0 0
      %5597 = vmatprep.subr.bf16.mxu0 0
      %5598 = vmatpush1.bf16.msra.mxu0 0
      %5599 = vmatprep.mubr.bf16.mxu0 0
      %5600 = vmatmul.mubr.bf16.gmra.mrb[0].mxu0 %v3217
      %v5601 = vpop.f32.mrb[0].mxu0
      %v5602 = vadd.f32 0.0, %v5601
      %v5603 = vpop.f32.mrb[0].mxu0
      %v5604 = vpop.f32.mrb[0].mxu0
      %v5605 = vadd.f32 0.0, %v5604
      %v5606 = vpop.f32.mrb[0].mxu0
      %5607 = vdwg.mxu0
      %v5608 = vpack.c.bf16 %v5605, %v5602
      %s5609 = scalar_lea.vmem %s31, 5
      %v5610 = vld [vmem:[%s5609] sm:$0x1]
      %v5612 = vsel %vm3275, %v5610, 0
      %5614 = vmatprep.subr.bf16.mxu0 0
      %5615 = vmatpush1.bf16.msra.mxu0 %v5608
      %5616 = vmatprep.subr.bf16.mxu0 0
      %5617 = vmatpush1.bf16.msra.mxu0 0
      %5618 = vmatprep.subr.bf16.mxu0 0
      %5619 = vmatpush1.bf16.msra.mxu0 0
      %5620 = vmatprep.subr.bf16.mxu0 0
      %5621 = vmatpush1.bf16.msra.mxu0 0
      %5622 = vmatprep.subr.bf16.mxu0 0
      %5623 = vmatpush1.bf16.msra.mxu0 0
      %5624 = vmatprep.subr.bf16.mxu0 0
      %5625 = vmatpush1.bf16.msra.mxu0 0
      %5626 = vmatprep.subr.bf16.mxu0 0
      %5627 = vmatpush1.bf16.msra.mxu0 0
      %5628 = vmatprep.subr.bf16.mxu0 0
      %5629 = vmatpush1.bf16.msra.mxu0 0
      %5630 = vmatprep.subr.bf16.mxu0 0
      %5631 = vmatpush1.bf16.msra.mxu0 0
      %5632 = vmatprep.subr.bf16.mxu0 0
      %5633 = vmatpush1.bf16.msra.mxu0 0
      %5634 = vmatprep.subr.bf16.mxu0 0
      %5635 = vmatpush1.bf16.msra.mxu0 0
      %5636 = vmatprep.subr.bf16.mxu0 0
      %5637 = vmatpush1.bf16.msra.mxu0 0
      %5638 = vmatprep.subr.bf16.mxu0 0
      %5639 = vmatpush1.bf16.msra.mxu0 0
      %5640 = vmatprep.subr.bf16.mxu0 0
      %5641 = vmatpush1.bf16.msra.mxu0 0
      %5642 = vmatprep.subr.bf16.mxu0 0
      %5643 = vmatpush1.bf16.msra.mxu0 0
      %5644 = vmatprep.subr.bf16.mxu0 0
      %5645 = vmatpush1.bf16.msra.mxu0 0
      %5646 = vmatprep.mubr.bf16.mxu0 0
      %5647 = vmatmul.mubr.bf16.gmra.mrb[0].mxu0 %v5612
      %v5648 = vpop.f32.mrb[0].mxu0
      %v5649 = vadd.f32 0.0, %v5648
      %v5650 = vpop.f32.mrb[0].mxu0
      %v5651 = vpop.f32.mrb[0].mxu0
      %v5652 = vpop.f32.mrb[0].mxu0
      %5653 = vdwg.mxu0
      %v5654 = vadd.f32 %v5533, %v5649
      %s5655 = scalar_lea.vmem %s35, 192
      %v5656 = vld [vmem:[%s5655] sm:$0xf]
      %v5657 = vld [vmem:[%s5655 + $0x4] sm:$0xf]
      %v5658 = vld [vmem:[%s5655 + $0x8] sm:$0xf]
      %v5659 = vld [vmem:[%s5655 + $0xc] sm:$0xf]
      %v5660 = vld [vmem:[%s5655 + $0x10] sm:$0xf]
      %v5661 = vld [vmem:[%s5655 + $0x14] sm:$0xf]
      %v5662 = vld [vmem:[%s5655 + $0x18] sm:$0xf]
      %v5663 = vld [vmem:[%s5655 + $0x1c] sm:$0xf]
      %v5672 = vunpack.c.l.b16 %v5656
      %v5673 = vunpack.c.l.b16 %v5657
      %v5674 = vunpack.c.l.b16 %v5658
      %v5675 = vunpack.c.l.b16 %v5659
      %v5676 = vunpack.c.l.b16 %v5660
      %v5677 = vunpack.c.l.b16 %v5661
      %v5678 = vunpack.c.l.b16 %v5662
      %v5679 = vunpack.c.l.b16 %v5663
      %v5680 = vpack.c.b16 %v5673, %v5672
      %v5681 = vpack.c.b16 %v5675, %v5674
      %v5682 = vpack.c.b16 %v5677, %v5676
      %v5683 = vpack.c.b16 %v5679, %v5678
      %5688 = vmatprep.subr.bf16.mxu0 0
      %5689 = vmatpush1.bf16.msra.mxu0 %v5680
      %5690 = vmatprep.subr.bf16.mxu0 0
      %5691 = vmatpush1.bf16.msra.mxu0 %v5681
      %5692 = vmatprep.subr.bf16.mxu0 0
      %5693 = vmatpush1.bf16.msra.mxu0 %v5682
      %5694 = vmatprep.subr.bf16.mxu0 0
      %5695 = vmatpush1.bf16.msra.mxu0 %v5683
      %5696 = vmatprep.subr.bf16.mxu0 0
      %5697 = vmatpush1.bf16.msra.mxu0 0
      %5698 = vmatprep.subr.bf16.mxu0 0
      %5699 = vmatpush1.bf16.msra.mxu0 0
      %5700 = vmatprep.subr.bf16.mxu0 0
      %5701 = vmatpush1.bf16.msra.mxu0 0
      %5702 = vmatprep.subr.bf16.mxu0 0
      %5703 = vmatpush1.bf16.msra.mxu0 0
      %5704 = vmatprep.subr.bf16.mxu0 0
      %5705 = vmatpush1.bf16.msra.mxu0 0
      %5706 = vmatprep.subr.bf16.mxu0 0
      %5707 = vmatpush1.bf16.msra.mxu0 0
      %5708 = vmatprep.subr.bf16.mxu0 0
      %5709 = vmatpush1.bf16.msra.mxu0 0
      %5710 = vmatprep.subr.bf16.mxu0 0
      %5711 = vmatpush1.bf16.msra.mxu0 0
      %5712 = vmatprep.subr.bf16.mxu0 0
      %5713 = vmatpush1.bf16.msra.mxu0 0
      %5714 = vmatprep.subr.bf16.mxu0 0
      %5715 = vmatpush1.bf16.msra.mxu0 0
      %5716 = vmatprep.subr.bf16.mxu0 0
      %5717 = vmatpush1.bf16.msra.mxu0 0
      %5718 = vmatprep.subr.bf16.mxu0 0
      %5719 = vmatpush1.bf16.msra.mxu0 0
      %5720 = vmatprep.mubr.bf16.mxu0 0
      %5721 = vmatmul.mubr.bf16.gmra.mrb[0].mxu0 %v3217
      %v5722 = vpop.f32.mrb[0].mxu0
      %v5723 = vadd.f32 0.0, %v5722
      %v5724 = vpop.f32.mrb[0].mxu0
      %v5725 = vpop.f32.mrb[0].mxu0
      %v5726 = vadd.f32 0.0, %v5725
      %v5727 = vpop.f32.mrb[0].mxu0
      %5728 = vdwg.mxu0
      %v5729 = vpack.c.bf16 %v5726, %v5723
      %s5730 = scalar_lea.vmem %s31, 6
      %v5731 = vld [vmem:[%s5730] sm:$0x1]
      %v5733 = vsel %vm3275, %v5731, 0
      %5735 = vmatprep.subr.bf16.mxu0 0
      %5736 = vmatpush1.bf16.msra.mxu0 %v5729
      %5737 = vmatprep.subr.bf16.mxu0 0
      %5738 = vmatpush1.bf16.msra.mxu0 0
      %5739 = vmatprep.subr.bf16.mxu0 0
      %5740 = vmatpush1.bf16.msra.mxu0 0
      %5741 = vmatprep.subr.bf16.mxu0 0
      %5742 = vmatpush1.bf16.msra.mxu0 0
      %5743 = vmatprep.subr.bf16.mxu0 0
      %5744 = vmatpush1.bf16.msra.mxu0 0
      %5745 = vmatprep.subr.bf16.mxu0 0
      %5746 = vmatpush1.bf16.msra.mxu0 0
      %5747 = vmatprep.subr.bf16.mxu0 0
      %5748 = vmatpush1.bf16.msra.mxu0 0
      %5749 = vmatprep.subr.bf16.mxu0 0
      %5750 = vmatpush1.bf16.msra.mxu0 0
      %5751 = vmatprep.subr.bf16.mxu0 0
      %5752 = vmatpush1.bf16.msra.mxu0 0
      %5753 = vmatprep.subr.bf16.mxu0 0
      %5754 = vmatpush1.bf16.msra.mxu0 0
      %5755 = vmatprep.subr.bf16.mxu0 0
      %5756 = vmatpush1.bf16.msra.mxu0 0
      %5757 = vmatprep.subr.bf16.mxu0 0
      %5758 = vmatpush1.bf16.msra.mxu0 0
      %5759 = vmatprep.subr.bf16.mxu0 0
      %5760 = vmatpush1.bf16.msra.mxu0 0
      %5761 = vmatprep.subr.bf16.mxu0 0
      %5762 = vmatpush1.bf16.msra.mxu0 0
      %5763 = vmatprep.subr.bf16.mxu0 0
      %5764 = vmatpush1.bf16.msra.mxu0 0
      %5765 = vmatprep.subr.bf16.mxu0 0
      %5766 = vmatpush1.bf16.msra.mxu0 0
      %5767 = vmatprep.mubr.bf16.mxu0 0
      %5768 = vmatmul.mubr.bf16.gmra.mrb[0].mxu0 %v5733
      %v5769 = vpop.f32.mrb[0].mxu0
      %v5770 = vadd.f32 0.0, %v5769
      %v5771 = vpop.f32.mrb[0].mxu0
      %v5772 = vpop.f32.mrb[0].mxu0
      %v5773 = vpop.f32.mrb[0].mxu0
      %5774 = vdwg.mxu0
      %v5775 = vadd.f32 %v5654, %v5770
      %s5776 = scalar_lea.vmem %s35, 224
      %v5777 = vld [vmem:[%s5776] sm:$0xf]
      %v5778 = vld [vmem:[%s5776 + $0x4] sm:$0xf]
      %v5779 = vld [vmem:[%s5776 + $0x8] sm:$0xf]
      %v5780 = vld [vmem:[%s5776 + $0xc] sm:$0xf]
      %v5781 = vld [vmem:[%s5776 + $0x10] sm:$0xf]
      %v5782 = vld [vmem:[%s5776 + $0x14] sm:$0xf]
      %v5783 = vld [vmem:[%s5776 + $0x18] sm:$0xf]
      %v5784 = vld [vmem:[%s5776 + $0x1c] sm:$0xf]
      %v5793 = vunpack.c.l.b16 %v5777
      %v5794 = vunpack.c.l.b16 %v5778
      %v5795 = vunpack.c.l.b16 %v5779
      %v5796 = vunpack.c.l.b16 %v5780
      %v5797 = vunpack.c.l.b16 %v5781
      %v5798 = vunpack.c.l.b16 %v5782
      %v5799 = vunpack.c.l.b16 %v5783
      %v5800 = vunpack.c.l.b16 %v5784
      %v5801 = vpack.c.b16 %v5794, %v5793
      %v5802 = vpack.c.b16 %v5796, %v5795
      %v5803 = vpack.c.b16 %v5798, %v5797
      %v5804 = vpack.c.b16 %v5800, %v5799
      %5809 = vmatprep.subr.bf16.mxu0 0
      %5810 = vmatpush1.bf16.msra.mxu0 %v5801
      %5811 = vmatprep.subr.bf16.mxu0 0
      %5812 = vmatpush1.bf16.msra.mxu0 %v5802
      %5813 = vmatprep.subr.bf16.mxu0 0
      %5814 = vmatpush1.bf16.msra.mxu0 %v5803
      %5815 = vmatprep.subr.bf16.mxu0 0
      %5816 = vmatpush1.bf16.msra.mxu0 %v5804
      %5817 = vmatprep.subr.bf16.mxu0 0
      %5818 = vmatpush1.bf16.msra.mxu0 0
      %5819 = vmatprep.subr.bf16.mxu0 0
      %5820 = vmatpush1.bf16.msra.mxu0 0
      %5821 = vmatprep.subr.bf16.mxu0 0
      %5822 = vmatpush1.bf16.msra.mxu0 0
      %5823 = vmatprep.subr.bf16.mxu0 0
      %5824 = vmatpush1.bf16.msra.mxu0 0
      %5825 = vmatprep.subr.bf16.mxu0 0
      %5826 = vmatpush1.bf16.msra.mxu0 0
      %5827 = vmatprep.subr.bf16.mxu0 0
      %5828 = vmatpush1.bf16.msra.mxu0 0
      %5829 = vmatprep.subr.bf16.mxu0 0
      %5830 = vmatpush1.bf16.msra.mxu0 0
      %5831 = vmatprep.subr.bf16.mxu0 0
      %5832 = vmatpush1.bf16.msra.mxu0 0
      %5833 = vmatprep.subr.bf16.mxu0 0
      %5834 = vmatpush1.bf16.msra.mxu0 0
      %5835 = vmatprep.subr.bf16.mxu0 0
      %5836 = vmatpush1.bf16.msra.mxu0 0
      %5837 = vmatprep.subr.bf16.mxu0 0
      %5838 = vmatpush1.bf16.msra.mxu0 0
      %5839 = vmatprep.subr.bf16.mxu0 0
      %5840 = vmatpush1.bf16.msra.mxu0 0
      %5841 = vmatprep.mubr.bf16.mxu0 0
      %5842 = vmatmul.mubr.bf16.gmra.mrb[0].mxu0 %v3217
      %v5843 = vpop.f32.mrb[0].mxu0
      %v5844 = vadd.f32 0.0, %v5843
      %v5845 = vpop.f32.mrb[0].mxu0
      %v5846 = vpop.f32.mrb[0].mxu0
      %v5847 = vadd.f32 0.0, %v5846
      %v5848 = vpop.f32.mrb[0].mxu0
      %5849 = vdwg.mxu0
      %v5850 = vpack.c.bf16 %v5847, %v5844
      %s5851 = scalar_lea.vmem %s31, 7
      %v5852 = vld [vmem:[%s5851] sm:$0x1]
      %v5854 = vsel %vm3275, %v5852, 0
      %5856 = vmatprep.subr.bf16.mxu0 0
      %5857 = vmatpush1.bf16.msra.mxu0 %v5850
      %5858 = vmatprep.subr.bf16.mxu0 0
      %5859 = vmatpush1.bf16.msra.mxu0 0
      %5860 = vmatprep.subr.bf16.mxu0 0
      %5861 = vmatpush1.bf16.msra.mxu0 0
      %5862 = vmatprep.subr.bf16.mxu0 0
      %5863 = vmatpush1.bf16.msra.mxu0 0
      %5864 = vmatprep.subr.bf16.mxu0 0
      %5865 = vmatpush1.bf16.msra.mxu0 0
      %5866 = vmatprep.subr.bf16.mxu0 0
      %5867 = vmatpush1.bf16.msra.mxu0 0
      %5868 = vmatprep.subr.bf16.mxu0 0
      %5869 = vmatpush1.bf16.msra.mxu0 0
      %5870 = vmatprep.subr.bf16.mxu0 0
      %5871 = vmatpush1.bf16.msra.mxu0 0
      %5872 = vmatprep.subr.bf16.mxu0 0
      %5873 = vmatpush1.bf16.msra.mxu0 0
      %5874 = vmatprep.subr.bf16.mxu0 0
      %5875 = vmatpush1.bf16.msra.mxu0 0
      %5876 = vmatprep.subr.bf16.mxu0 0
      %5877 = vmatpush1.bf16.msra.mxu0 0
      %5878 = vmatprep.subr.bf16.mxu0 0
      %5879 = vmatpush1.bf16.msra.mxu0 0
      %5880 = vmatprep.subr.bf16.mxu0 0
      %5881 = vmatpush1.bf16.msra.mxu0 0
      %5882 = vmatprep.subr.bf16.mxu0 0
      %5883 = vmatpush1.bf16.msra.mxu0 0
      %5884 = vmatprep.subr.bf16.mxu0 0
      %5885 = vmatpush1.bf16.msra.mxu0 0
      %5886 = vmatprep.subr.bf16.mxu0 0
      %5887 = vmatpush1.bf16.msra.mxu0 0
      %5888 = vmatprep.mubr.bf16.mxu0 0
      %5889 = vmatmul.mubr.bf16.gmra.mrb[0].mxu0 %v5854
      %v5890 = vpop.f32.mrb[0].mxu0
      %v5891 = vadd.f32 0.0, %v5890
      %v5892 = vpop.f32.mrb[0].mxu0
      %v5893 = vpop.f32.mrb[0].mxu0
      %v5894 = vpop.f32.mrb[0].mxu0
      %5895 = vdwg.mxu0
      %v5896 = vadd.f32 %v5775, %v5891
      %s5897 = scalar_lea.vmem %s35, 256
      %v5898 = vld [vmem:[%s5897] sm:$0xf]
      %v5899 = vld [vmem:[%s5897 + $0x4] sm:$0xf]
      %v5900 = vld [vmem:[%s5897 + $0x8] sm:$0xf]
      %v5901 = vld [vmem:[%s5897 + $0xc] sm:$0xf]
      %v5902 = vld [vmem:[%s5897 + $0x10] sm:$0xf]
      %v5903 = vld [vmem:[%s5897 + $0x14] sm:$0xf]
      %v5904 = vld [vmem:[%s5897 + $0x18] sm:$0xf]
      %v5905 = vld [vmem:[%s5897 + $0x1c] sm:$0xf]
      %v5914 = vunpack.c.l.b16 %v5898
      %v5915 = vunpack.c.l.b16 %v5899
      %v5916 = vunpack.c.l.b16 %v5900
      %v5917 = vunpack.c.l.b16 %v5901
      %v5918 = vunpack.c.l.b16 %v5902
      %v5919 = vunpack.c.l.b16 %v5903
      %v5920 = vunpack.c.l.b16 %v5904
      %v5921 = vunpack.c.l.b16 %v5905
      %v5922 = vpack.c.b16 %v5915, %v5914
      %v5923 = vpack.c.b16 %v5917, %v5916
      %v5924 = vpack.c.b16 %v5919, %v5918
      %v5925 = vpack.c.b16 %v5921, %v5920
      %5930 = vmatprep.subr.bf16.mxu0 0
      %5931 = vmatpush1.bf16.msra.mxu0 %v5922
      %5932 = vmatprep.subr.bf16.mxu0 0
      %5933 = vmatpush1.bf16.msra.mxu0 %v5923
      %5934 = vmatprep.subr.bf16.mxu0 0
      %5935 = vmatpush1.bf16.msra.mxu0 %v5924
      %5936 = vmatprep.subr.bf16.mxu0 0
      %5937 = vmatpush1.bf16.msra.mxu0 %v5925
      %5938 = vmatprep.subr.bf16.mxu0 0
      %5939 = vmatpush1.bf16.msra.mxu0 0
      %5940 = vmatprep.subr.bf16.mxu0 0
      %5941 = vmatpush1.bf16.msra.mxu0 0
      %5942 = vmatprep.subr.bf16.mxu0 0
      %5943 = vmatpush1.bf16.msra.mxu0 0
      %5944 = vmatprep.subr.bf16.mxu0 0
      %5945 = vmatpush1.bf16.msra.mxu0 0
      %5946 = vmatprep.subr.bf16.mxu0 0
      %5947 = vmatpush1.bf16.msra.mxu0 0
      %5948 = vmatprep.subr.bf16.mxu0 0
      %5949 = vmatpush1.bf16.msra.mxu0 0
      %5950 = vmatprep.subr.bf16.mxu0 0
      %5951 = vmatpush1.bf16.msra.mxu0 0
      %5952 = vmatprep.subr.bf16.mxu0 0
      %5953 = vmatpush1.bf16.msra.mxu0 0
      %5954 = vmatprep.subr.bf16.mxu0 0
      %5955 = vmatpush1.bf16.msra.mxu0 0
      %5956 = vmatprep.subr.bf16.mxu0 0
      %5957 = vmatpush1.bf16.msra.mxu0 0
      %5958 = vmatprep.subr.bf16.mxu0 0
      %5959 = vmatpush1.bf16.msra.mxu0 0
      %5960 = vmatprep.subr.bf16.mxu0 0
      %5961 = vmatpush1.bf16.msra.mxu0 0
      %5962 = vmatprep.mubr.bf16.mxu0 0
      %5963 = vmatmul.mubr.bf16.gmra.mrb[0].mxu0 %v3217
      %v5964 = vpop.f32.mrb[0].mxu0
      %v5965 = vadd.f32 0.0, %v5964
      %v5966 = vpop.f32.mrb[0].mxu0
      %v5967 = vpop.f32.mrb[0].mxu0
      %v5968 = vadd.f32 0.0, %v5967
      %v5969 = vpop.f32.mrb[0].mxu0
      %5970 = vdwg.mxu0
      %v5971 = vpack.c.bf16 %v5968, %v5965
      %s5972 = scalar_lea.vmem %s31, 8
      %v5973 = vld [vmem:[%s5972] sm:$0x1]
      %v5975 = vsel %vm3275, %v5973, 0
      %5977 = vmatprep.subr.bf16.mxu0 0
      %5978 = vmatpush1.bf16.msra.mxu0 %v5971
      %5979 = vmatprep.subr.bf16.mxu0 0
      %5980 = vmatpush1.bf16.msra.mxu0 0
      %5981 = vmatprep.subr.bf16.mxu0 0
      %5982 = vmatpush1.bf16.msra.mxu0 0
      %5983 = vmatprep.subr.bf16.mxu0 0
      %5984 = vmatpush1.bf16.msra.mxu0 0
      %5985 = vmatprep.subr.bf16.mxu0 0
      %5986 = vmatpush1.bf16.msra.mxu0 0
      %5987 = vmatprep.subr.bf16.mxu0 0
      %5988 = vmatpush1.bf16.msra.mxu0 0
      %5989 = vmatprep.subr.bf16.mxu0 0
      %5990 = vmatpush1.bf16.msra.mxu0 0
      %5991 = vmatprep.subr.bf16.mxu0 0
      %5992 = vmatpush1.bf16.msra.mxu0 0
      %5993 = vmatprep.subr.bf16.mxu0 0
      %5994 = vmatpush1.bf16.msra.mxu0 0
      %5995 = vmatprep.subr.bf16.mxu0 0
      %5996 = vmatpush1.bf16.msra.mxu0 0
      %5997 = vmatprep.subr.bf16.mxu0 0
      %5998 = vmatpush1.bf16.msra.mxu0 0
      %5999 = vmatprep.subr.bf16.mxu0 0
      %6000 = vmatpush1.bf16.msra.mxu0 0
      %6001 = vmatprep.subr.bf16.mxu0 0
      %6002 = vmatpush1.bf16.msra.mxu0 0
      %6003 = vmatprep.subr.bf16.mxu0 0
      %6004 = vmatpush1.bf16.msra.mxu0 0
      %6005 = vmatprep.subr.bf16.mxu0 0
      %6006 = vmatpush1.bf16.msra.mxu0 0
      %6007 = vmatprep.subr.bf16.mxu0 0
      %6008 = vmatpush1.bf16.msra.mxu0 0
      %6009 = vmatprep.mubr.bf16.mxu0 0
      %6010 = vmatmul.mubr.bf16.gmra.mrb[0].mxu0 %v5975
      %v6011 = vpop.f32.mrb[0].mxu0
      %v6012 = vadd.f32 0.0, %v6011
      %v6013 = vpop.f32.mrb[0].mxu0
      %v6014 = vpop.f32.mrb[0].mxu0
      %v6015 = vpop.f32.mrb[0].mxu0
      %6016 = vdwg.mxu0
      %v6017 = vadd.f32 %v5896, %v6012
      %v6018 = vsub.f32 0.0, %v6017
      %v6019 = vmul.f32 %v6018, 1.442695
      %v6020 = vpow.pop %v6019
      %v6021 = vadd.f32 %v6020, 1.0
      %v6022 = vrcp.pop %v6021
      %6023 = vst.msk [vmem:[%s1039] sm:$0x3] %vm4698, %v6022
      %v6024 = vld [vmem:[%s39] sm:$0x3]
      %v6025 = vld [vmem:[%s41] sm:$0xf]
      %v6026 = vld [vmem:[%s41 + $0x4] sm:$0xf]
      %v6029 = vunpack.c.l.b16 %v6025
      %v6030 = vunpack.c.l.b16 %v6026
      %v6031 = vpack.c.b16 %v6030, %v6029
      %v6034 = vsel %vm3275, %v4612, 0
      %6036 = vmatprep.subr.bf16.mxu0 0
      %6037 = vmatpush1.bf16.msra.mxu0 %v6031
      %6038 = vmatprep.subr.bf16.mxu0 0
      %6039 = vmatpush1.bf16.msra.mxu0 0
      %6040 = vmatprep.subr.bf16.mxu0 0
      %6041 = vmatpush1.bf16.msra.mxu0 0
      %6042 = vmatprep.subr.bf16.mxu0 0
      %6043 = vmatpush1.bf16.msra.mxu0 0
      %6044 = vmatprep.subr.bf16.mxu0 0
      %6045 = vmatpush1.bf16.msra.mxu0 0
      %6046 = vmatprep.subr.bf16.mxu0 0
      %6047 = vmatpush1.bf16.msra.mxu0 0
      %6048 = vmatprep.subr.bf16.mxu0 0
      %6049 = vmatpush1.bf16.msra.mxu0 0
      %6050 = vmatprep.subr.bf16.mxu0 0
      %6051 = vmatpush1.bf16.msra.mxu0 0
      %6052 = vmatprep.subr.bf16.mxu0 0
      %6053 = vmatpush1.bf16.msra.mxu0 0
      %6054 = vmatprep.subr.bf16.mxu0 0
      %6055 = vmatpush1.bf16.msra.mxu0 0
      %6056 = vmatprep.subr.bf16.mxu0 0
      %6057 = vmatpush1.bf16.msra.mxu0 0
      %6058 = vmatprep.subr.bf16.mxu0 0
      %6059 = vmatpush1.bf16.msra.mxu0 0
      %6060 = vmatprep.subr.bf16.mxu0 0
      %6061 = vmatpush1.bf16.msra.mxu0 0
      %6062 = vmatprep.subr.bf16.mxu0 0
      %6063 = vmatpush1.bf16.msra.mxu0 0
      %6064 = vmatprep.subr.bf16.mxu0 0
      %6065 = vmatpush1.bf16.msra.mxu0 0
      %6066 = vmatprep.subr.bf16.mxu0 0
      %6067 = vmatpush1.bf16.msra.mxu0 0
      %6068 = vmatprep.mubr.bf16.mxu0 0
      %6069 = vmatmul.mubr.bf16.gmra.mrb[0].mxu0 %v6034
      %v6070 = vpop.f32.mrb[0].mxu0
      %v6071 = vadd.f32 0.0, %v6070
      %v6072 = vpop.f32.mrb[0].mxu0
      %v6073 = vpop.f32.mrb[0].mxu0
      %v6074 = vadd.f32 0.0, %v6073
      %v6075 = vpop.f32.mrb[0].mxu0
      %6076 = vdwg.mxu0
      %v6077 = vpack.c.bf16 %v6074, %v6071
      %v6078 = vld [vmem:[%s37] sm:$0x1]
      %v6080 = vsel %vm3275, %v6078, 0
      %6082 = vmatprep.subr.bf16.mxu0 0
      %6083 = vmatpush1.bf16.msra.mxu0 %v6077
      %6084 = vmatprep.subr.bf16.mxu0 0
      %6085 = vmatpush1.bf16.msra.mxu0 0
      %6086 = vmatprep.subr.bf16.mxu0 0
      %6087 = vmatpush1.bf16.msra.mxu0 0
      %6088 = vmatprep.subr.bf16.mxu0 0
      %6089 = vmatpush1.bf16.msra.mxu0 0
      %6090 = vmatprep.subr.bf16.mxu0 0
      %6091 = vmatpush1.bf16.msra.mxu0 0
      %6092 = vmatprep.subr.bf16.mxu0 0
      %6093 = vmatpush1.bf16.msra.mxu0 0
      %6094 = vmatprep.subr.bf16.mxu0 0
      %6095 = vmatpush1.bf16.msra.mxu0 0
      %6096 = vmatprep.subr.bf16.mxu0 0
      %6097 = vmatpush1.bf16.msra.mxu0 0
      %6098 = vmatprep.subr.bf16.mxu0 0
      %6099 = vmatpush1.bf16.msra.mxu0 0
      %6100 = vmatprep.subr.bf16.mxu0 0
      %6101 = vmatpush1.bf16.msra.mxu0 0
      %6102 = vmatprep.subr.bf16.mxu0 0
      %6103 = vmatpush1.bf16.msra.mxu0 0
      %6104 = vmatprep.subr.bf16.mxu0 0
      %6105 = vmatpush1.bf16.msra.mxu0 0
      %6106 = vmatprep.subr.bf16.mxu0 0
      %6107 = vmatpush1.bf16.msra.mxu0 0
      %6108 = vmatprep.subr.bf16.mxu0 0
      %6109 = vmatpush1.bf16.msra.mxu0 0
      %6110 = vmatprep.subr.bf16.mxu0 0
      %6111 = vmatpush1.bf16.msra.mxu0 0
      %6112 = vmatprep.subr.bf16.mxu0 0
      %6113 = vmatpush1.bf16.msra.mxu0 0
      %6114 = vmatprep.mubr.bf16.mxu0 0
      %6115 = vmatmul.mubr.bf16.gmra.mrb[0].mxu0 %v6080
      %v6116 = vpop.f32.mrb[0].mxu0
      %v6117 = vadd.f32 0.0, %v6116
      %v6118 = vpop.f32.mrb[0].mxu0
      %v6119 = vpop.f32.mrb[0].mxu0
      %v6120 = vpop.f32.mrb[0].mxu0
      %6121 = vdwg.mxu0
      %6123 = vset.pattern.permute.xlu0 0
      %6124 = vperm.xlu0 %6123, %v6024
      %v6125 = vpop.permute.xlu0 %6124
      %v6127 = vadd.f32 %v6125, %v6117
      %s6128 = scalar_lea.vmem %s41, 8
      %v6129 = vld [vmem:[%s6128] sm:$0xf]
      %v6130 = vld [vmem:[%s6128 + $0x4] sm:$0xf]
      %v6133 = vunpack.c.l.b16 %v6129
      %v6134 = vunpack.c.l.b16 %v6130
      %v6135 = vpack.c.b16 %v6134, %v6133
      %6137 = vmatprep.subr.bf16.mxu0 0
      %6138 = vmatpush1.bf16.msra.mxu0 %v6135
      %6139 = vmatprep.subr.bf16.mxu0 0
      %6140 = vmatpush1.bf16.msra.mxu0 0
      %6141 = vmatprep.subr.bf16.mxu0 0
      %6142 = vmatpush1.bf16.msra.mxu0 0
      %6143 = vmatprep.subr.bf16.mxu0 0
      %6144 = vmatpush1.bf16.msra.mxu0 0
      %6145 = vmatprep.subr.bf16.mxu0 0
      %6146 = vmatpush1.bf16.msra.mxu0 0
      %6147 = vmatprep.subr.bf16.mxu0 0
      %6148 = vmatpush1.bf16.msra.mxu0 0
      %6149 = vmatprep.subr.bf16.mxu0 0
      %6150 = vmatpush1.bf16.msra.mxu0 0
      %6151 = vmatprep.subr.bf16.mxu0 0
      %6152 = vmatpush1.bf16.msra.mxu0 0
      %6153 = vmatprep.subr.bf16.mxu0 0
      %6154 = vmatpush1.bf16.msra.mxu0 0
      %6155 = vmatprep.subr.bf16.mxu0 0
      %6156 = vmatpush1.bf16.msra.mxu0 0
      %6157 = vmatprep.subr.bf16.mxu0 0
      %6158 = vmatpush1.bf16.msra.mxu0 0
      %6159 = vmatprep.subr.bf16.mxu0 0
      %6160 = vmatpush1.bf16.msra.mxu0 0
      %6161 = vmatprep.subr.bf16.mxu0 0
      %6162 = vmatpush1.bf16.msra.mxu0 0
      %6163 = vmatprep.subr.bf16.mxu0 0
      %6164 = vmatpush1.bf16.msra.mxu0 0
      %6165 = vmatprep.subr.bf16.mxu0 0
      %6166 = vmatpush1.bf16.msra.mxu0 0
      %6167 = vmatprep.subr.bf16.mxu0 0
      %6168 = vmatpush1.bf16.msra.mxu0 0
      %6169 = vmatprep.mubr.bf16.mxu0 0
      %6170 = vmatmul.mubr.bf16.gmra.mrb[0].mxu0 %v6034
      %v6171 = vpop.f32.mrb[0].mxu0
      %v6172 = vadd.f32 0.0, %v6171
      %v6173 = vpop.f32.mrb[0].mxu0
      %v6174 = vpop.f32.mrb[0].mxu0
      %v6175 = vadd.f32 0.0, %v6174
      %v6176 = vpop.f32.mrb[0].mxu0
      %6177 = vdwg.mxu0
      %v6178 = vpack.c.bf16 %v6175, %v6172
      %s6179 = scalar_lea.vmem %s37, 1
      %v6180 = vld [vmem:[%s6179] sm:$0x1]
      %v6182 = vsel %vm3275, %v6180, 0
      %6184 = vmatprep.subr.bf16.mxu0 0
      %6185 = vmatpush1.bf16.msra.mxu0 %v6178
      %6186 = vmatprep.subr.bf16.mxu0 0
      %6187 = vmatpush1.bf16.msra.mxu0 0
      %6188 = vmatprep.subr.bf16.mxu0 0
      %6189 = vmatpush1.bf16.msra.mxu0 0
      %6190 = vmatprep.subr.bf16.mxu0 0
      %6191 = vmatpush1.bf16.msra.mxu0 0
      %6192 = vmatprep.subr.bf16.mxu0 0
      %6193 = vmatpush1.bf16.msra.mxu0 0
      %6194 = vmatprep.subr.bf16.mxu0 0
      %6195 = vmatpush1.bf16.msra.mxu0 0
      %6196 = vmatprep.subr.bf16.mxu0 0
      %6197 = vmatpush1.bf16.msra.mxu0 0
      %6198 = vmatprep.subr.bf16.mxu0 0
      %6199 = vmatpush1.bf16.msra.mxu0 0
      %6200 = vmatprep.subr.bf16.mxu0 0
      %6201 = vmatpush1.bf16.msra.mxu0 0
      %6202 = vmatprep.subr.bf16.mxu0 0
      %6203 = vmatpush1.bf16.msra.mxu0 0
      %6204 = vmatprep.subr.bf16.mxu0 0
      %6205 = vmatpush1.bf16.msra.mxu0 0
      %6206 = vmatprep.subr.bf16.mxu0 0
      %6207 = vmatpush1.bf16.msra.mxu0 0
      %6208 = vmatprep.subr.bf16.mxu0 0
      %6209 = vmatpush1.bf16.msra.mxu0 0
      %6210 = vmatprep.subr.bf16.mxu0 0
      %6211 = vmatpush1.bf16.msra.mxu0 0
      %6212 = vmatprep.subr.bf16.mxu0 0
      %6213 = vmatpush1.bf16.msra.mxu0 0
      %6214 = vmatprep.subr.bf16.mxu0 0
      %6215 = vmatpush1.bf16.msra.mxu0 0
      %6216 = vmatprep.mubr.bf16.mxu0 0
      %6217 = vmatmul.mubr.bf16.gmra.mrb[0].mxu0 %v6182
      %v6218 = vpop.f32.mrb[0].mxu0
      %v6219 = vadd.f32 0.0, %v6218
      %v6220 = vpop.f32.mrb[0].mxu0
      %v6221 = vpop.f32.mrb[0].mxu0
      %v6222 = vpop.f32.mrb[0].mxu0
      %6223 = vdwg.mxu0
      %v6224 = vadd.f32 %v6127, %v6219
      %s6225 = scalar_lea.vmem %s41, 16
      %v6226 = vld [vmem:[%s6225] sm:$0xf]
      %v6227 = vld [vmem:[%s6225 + $0x4] sm:$0xf]
      %v6230 = vunpack.c.l.b16 %v6226
      %v6231 = vunpack.c.l.b16 %v6227
      %v6232 = vpack.c.b16 %v6231, %v6230
      %6234 = vmatprep.subr.bf16.mxu0 0
      %6235 = vmatpush1.bf16.msra.mxu0 %v6232
      %6236 = vmatprep.subr.bf16.mxu0 0
      %6237 = vmatpush1.bf16.msra.mxu0 0
      %6238 = vmatprep.subr.bf16.mxu0 0
      %6239 = vmatpush1.bf16.msra.mxu0 0
      %6240 = vmatprep.subr.bf16.mxu0 0
      %6241 = vmatpush1.bf16.msra.mxu0 0
      %6242 = vmatprep.subr.bf16.mxu0 0
      %6243 = vmatpush1.bf16.msra.mxu0 0
      %6244 = vmatprep.subr.bf16.mxu0 0
      %6245 = vmatpush1.bf16.msra.mxu0 0
      %6246 = vmatprep.subr.bf16.mxu0 0
      %6247 = vmatpush1.bf16.msra.mxu0 0
      %6248 = vmatprep.subr.bf16.mxu0 0
      %6249 = vmatpush1.bf16.msra.mxu0 0
      %6250 = vmatprep.subr.bf16.mxu0 0
      %6251 = vmatpush1.bf16.msra.mxu0 0
      %6252 = vmatprep.subr.bf16.mxu0 0
      %6253 = vmatpush1.bf16.msra.mxu0 0
      %6254 = vmatprep.subr.bf16.mxu0 0
      %6255 = vmatpush1.bf16.msra.mxu0 0
      %6256 = vmatprep.subr.bf16.mxu0 0
      %6257 = vmatpush1.bf16.msra.mxu0 0
      %6258 = vmatprep.subr.bf16.mxu0 0
      %6259 = vmatpush1.bf16.msra.mxu0 0
      %6260 = vmatprep.subr.bf16.mxu0 0
      %6261 = vmatpush1.bf16.msra.mxu0 0
      %6262 = vmatprep.subr.bf16.mxu0 0
      %6263 = vmatpush1.bf16.msra.mxu0 0
      %6264 = vmatprep.subr.bf16.mxu0 0
      %6265 = vmatpush1.bf16.msra.mxu0 0
      %6266 = vmatprep.mubr.bf16.mxu0 0
      %6267 = vmatmul.mubr.bf16.gmra.mrb[0].mxu0 %v6034
      %v6268 = vpop.f32.mrb[0].mxu0
      %v6269 = vadd.f32 0.0, %v6268
      %v6270 = vpop.f32.mrb[0].mxu0
      %v6271 = vpop.f32.mrb[0].mxu0
      %v6272 = vadd.f32 0.0, %v6271
      %v6273 = vpop.f32.mrb[0].mxu0
      %6274 = vdwg.mxu0
      %v6275 = vpack.c.bf16 %v6272, %v6269
      %s6276 = scalar_lea.vmem %s37, 2
      %v6277 = vld [vmem:[%s6276] sm:$0x1]
      %v6279 = vsel %vm3275, %v6277, 0
      %6281 = vmatprep.subr.bf16.mxu0 0
      %6282 = vmatpush1.bf16.msra.mxu0 %v6275
      %6283 = vmatprep.subr.bf16.mxu0 0
      %6284 = vmatpush1.bf16.msra.mxu0 0
      %6285 = vmatprep.subr.bf16.mxu0 0
      %6286 = vmatpush1.bf16.msra.mxu0 0
      %6287 = vmatprep.subr.bf16.mxu0 0
      %6288 = vmatpush1.bf16.msra.mxu0 0
      %6289 = vmatprep.subr.bf16.mxu0 0
      %6290 = vmatpush1.bf16.msra.mxu0 0
      %6291 = vmatprep.subr.bf16.mxu0 0
      %6292 = vmatpush1.bf16.msra.mxu0 0
      %6293 = vmatprep.subr.bf16.mxu0 0
      %6294 = vmatpush1.bf16.msra.mxu0 0
      %6295 = vmatprep.subr.bf16.mxu0 0
      %6296 = vmatpush1.bf16.msra.mxu0 0
      %6297 = vmatprep.subr.bf16.mxu0 0
      %6298 = vmatpush1.bf16.msra.mxu0 0
      %6299 = vmatprep.subr.bf16.mxu0 0
      %6300 = vmatpush1.bf16.msra.mxu0 0
      %6301 = vmatprep.subr.bf16.mxu0 0
      %6302 = vmatpush1.bf16.msra.mxu0 0
      %6303 = vmatprep.subr.bf16.mxu0 0
      %6304 = vmatpush1.bf16.msra.mxu0 0
      %6305 = vmatprep.subr.bf16.mxu0 0
      %6306 = vmatpush1.bf16.msra.mxu0 0
      %6307 = vmatprep.subr.bf16.mxu0 0
      %6308 = vmatpush1.bf16.msra.mxu0 0
      %6309 = vmatprep.subr.bf16.mxu0 0
      %6310 = vmatpush1.bf16.msra.mxu0 0
      %6311 = vmatprep.subr.bf16.mxu0 0
      %6312 = vmatpush1.bf16.msra.mxu0 0
      %6313 = vmatprep.mubr.bf16.mxu0 0
      %6314 = vmatmul.mubr.bf16.gmra.mrb[0].mxu0 %v6279
      %v6315 = vpop.f32.mrb[0].mxu0
      %v6316 = vadd.f32 0.0, %v6315
      %v6317 = vpop.f32.mrb[0].mxu0
      %v6318 = vpop.f32.mrb[0].mxu0
      %v6319 = vpop.f32.mrb[0].mxu0
      %6320 = vdwg.mxu0
      %v6321 = vadd.f32 %v6224, %v6316
      %s6322 = scalar_lea.vmem %s41, 24
      %v6323 = vld [vmem:[%s6322] sm:$0xf]
      %v6324 = vld [vmem:[%s6322 + $0x4] sm:$0xf]
      %v6327 = vunpack.c.l.b16 %v6323
      %v6328 = vunpack.c.l.b16 %v6324
      %v6329 = vpack.c.b16 %v6328, %v6327
      %6331 = vmatprep.subr.bf16.mxu0 0
      %6332 = vmatpush1.bf16.msra.mxu0 %v6329
      %6333 = vmatprep.subr.bf16.mxu0 0
      %6334 = vmatpush1.bf16.msra.mxu0 0
      %6335 = vmatprep.subr.bf16.mxu0 0
      %6336 = vmatpush1.bf16.msra.mxu0 0
      %6337 = vmatprep.subr.bf16.mxu0 0
      %6338 = vmatpush1.bf16.msra.mxu0 0
      %6339 = vmatprep.subr.bf16.mxu0 0
      %6340 = vmatpush1.bf16.msra.mxu0 0
      %6341 = vmatprep.subr.bf16.mxu0 0
      %6342 = vmatpush1.bf16.msra.mxu0 0
      %6343 = vmatprep.subr.bf16.mxu0 0
      %6344 = vmatpush1.bf16.msra.mxu0 0
      %6345 = vmatprep.subr.bf16.mxu0 0
      %6346 = vmatpush1.bf16.msra.mxu0 0
      %6347 = vmatprep.subr.bf16.mxu0 0
      %6348 = vmatpush1.bf16.msra.mxu0 0
      %6349 = vmatprep.subr.bf16.mxu0 0
      %6350 = vmatpush1.bf16.msra.mxu0 0
      %6351 = vmatprep.subr.bf16.mxu0 0
      %6352 = vmatpush1.bf16.msra.mxu0 0
      %6353 = vmatprep.subr.bf16.mxu0 0
      %6354 = vmatpush1.bf16.msra.mxu0 0
      %6355 = vmatprep.subr.bf16.mxu0 0
      %6356 = vmatpush1.bf16.msra.mxu0 0
      %6357 = vmatprep.subr.bf16.mxu0 0
      %6358 = vmatpush1.bf16.msra.mxu0 0
      %6359 = vmatprep.subr.bf16.mxu0 0
      %6360 = vmatpush1.bf16.msra.mxu0 0
      %6361 = vmatprep.subr.bf16.mxu0 0
      %6362 = vmatpush1.bf16.msra.mxu0 0
      %6363 = vmatprep.mubr.bf16.mxu0 0
      %6364 = vmatmul.mubr.bf16.gmra.mrb[0].mxu0 %v6034
      %v6365 = vpop.f32.mrb[0].mxu0
      %v6366 = vadd.f32 0.0, %v6365
      %v6367 = vpop.f32.mrb[0].mxu0
      %v6368 = vpop.f32.mrb[0].mxu0
      %v6369 = vadd.f32 0.0, %v6368
      %v6370 = vpop.f32.mrb[0].mxu0
      %6371 = vdwg.mxu0
      %v6372 = vpack.c.bf16 %v6369, %v6366
      %s6373 = scalar_lea.vmem %s37, 3
      %v6374 = vld [vmem:[%s6373] sm:$0x1]
      %v6376 = vsel %vm3275, %v6374, 0
      %6378 = vmatprep.subr.bf16.mxu0 0
      %6379 = vmatpush1.bf16.msra.mxu0 %v6372
      %6380 = vmatprep.subr.bf16.mxu0 0
      %6381 = vmatpush1.bf16.msra.mxu0 0
      %6382 = vmatprep.subr.bf16.mxu0 0
      %6383 = vmatpush1.bf16.msra.mxu0 0
      %6384 = vmatprep.subr.bf16.mxu0 0
      %6385 = vmatpush1.bf16.msra.mxu0 0
      %6386 = vmatprep.subr.bf16.mxu0 0
      %6387 = vmatpush1.bf16.msra.mxu0 0
      %6388 = vmatprep.subr.bf16.mxu0 0
      %6389 = vmatpush1.bf16.msra.mxu0 0
      %6390 = vmatprep.subr.bf16.mxu0 0
      %6391 = vmatpush1.bf16.msra.mxu0 0
      %6392 = vmatprep.subr.bf16.mxu0 0
      %6393 = vmatpush1.bf16.msra.mxu0 0
      %6394 = vmatprep.subr.bf16.mxu0 0
      %6395 = vmatpush1.bf16.msra.mxu0 0
      %6396 = vmatprep.subr.bf16.mxu0 0
      %6397 = vmatpush1.bf16.msra.mxu0 0
      %6398 = vmatprep.subr.bf16.mxu0 0
      %6399 = vmatpush1.bf16.msra.mxu0 0
      %6400 = vmatprep.subr.bf16.mxu0 0
      %6401 = vmatpush1.bf16.msra.mxu0 0
      %6402 = vmatprep.subr.bf16.mxu0 0
      %6403 = vmatpush1.bf16.msra.mxu0 0
      %6404 = vmatprep.subr.bf16.mxu0 0
      %6405 = vmatpush1.bf16.msra.mxu0 0
      %6406 = vmatprep.subr.bf16.mxu0 0
      %6407 = vmatpush1.bf16.msra.mxu0 0
      %6408 = vmatprep.subr.bf16.mxu0 0
      %6409 = vmatpush1.bf16.msra.mxu0 0
      %6410 = vmatprep.mubr.bf16.mxu0 0
      %6411 = vmatmul.mubr.bf16.gmra.mrb[0].mxu0 %v6376
      %v6412 = vpop.f32.mrb[0].mxu0
      %v6413 = vadd.f32 0.0, %v6412
      %v6414 = vpop.f32.mrb[0].mxu0
      %v6415 = vpop.f32.mrb[0].mxu0
      %v6416 = vpop.f32.mrb[0].mxu0
      %6417 = vdwg.mxu0
      %v6418 = vadd.f32 %v6321, %v6413
      %s6419 = scalar_lea.vmem %s41, 32
      %v6420 = vld [vmem:[%s6419] sm:$0xf]
      %v6421 = vld [vmem:[%s6419 + $0x4] sm:$0xf]
      %v6424 = vunpack.c.l.b16 %v6420
      %v6425 = vunpack.c.l.b16 %v6421
      %v6426 = vpack.c.b16 %v6425, %v6424
      %6428 = vmatprep.subr.bf16.mxu0 0
      %6429 = vmatpush1.bf16.msra.mxu0 %v6426
      %6430 = vmatprep.subr.bf16.mxu0 0
      %6431 = vmatpush1.bf16.msra.mxu0 0
      %6432 = vmatprep.subr.bf16.mxu0 0
      %6433 = vmatpush1.bf16.msra.mxu0 0
      %6434 = vmatprep.subr.bf16.mxu0 0
      %6435 = vmatpush1.bf16.msra.mxu0 0
      %6436 = vmatprep.subr.bf16.mxu0 0
      %6437 = vmatpush1.bf16.msra.mxu0 0
      %6438 = vmatprep.subr.bf16.mxu0 0
      %6439 = vmatpush1.bf16.msra.mxu0 0
      %6440 = vmatprep.subr.bf16.mxu0 0
      %6441 = vmatpush1.bf16.msra.mxu0 0
      %6442 = vmatprep.subr.bf16.mxu0 0
      %6443 = vmatpush1.bf16.msra.mxu0 0
      %6444 = vmatprep.subr.bf16.mxu0 0
      %6445 = vmatpush1.bf16.msra.mxu0 0
      %6446 = vmatprep.subr.bf16.mxu0 0
      %6447 = vmatpush1.bf16.msra.mxu0 0
      %6448 = vmatprep.subr.bf16.mxu0 0
      %6449 = vmatpush1.bf16.msra.mxu0 0
      %6450 = vmatprep.subr.bf16.mxu0 0
      %6451 = vmatpush1.bf16.msra.mxu0 0
      %6452 = vmatprep.subr.bf16.mxu0 0
      %6453 = vmatpush1.bf16.msra.mxu0 0
      %6454 = vmatprep.subr.bf16.mxu0 0
      %6455 = vmatpush1.bf16.msra.mxu0 0
      %6456 = vmatprep.subr.bf16.mxu0 0
      %6457 = vmatpush1.bf16.msra.mxu0 0
      %6458 = vmatprep.subr.bf16.mxu0 0
      %6459 = vmatpush1.bf16.msra.mxu0 0
      %6460 = vmatprep.mubr.bf16.mxu0 0
      %6461 = vmatmul.mubr.bf16.gmra.mrb[0].mxu0 %v6034
      %v6462 = vpop.f32.mrb[0].mxu0
      %v6463 = vadd.f32 0.0, %v6462
      %v6464 = vpop.f32.mrb[0].mxu0
      %v6465 = vpop.f32.mrb[0].mxu0
      %v6466 = vadd.f32 0.0, %v6465
      %v6467 = vpop.f32.mrb[0].mxu0
      %6468 = vdwg.mxu0
      %v6469 = vpack.c.bf16 %v6466, %v6463
      %s6470 = scalar_lea.vmem %s37, 4
      %v6471 = vld [vmem:[%s6470] sm:$0x1]
      %v6473 = vsel %vm3275, %v6471, 0
      %6475 = vmatprep.subr.bf16.mxu0 0
      %6476 = vmatpush1.bf16.msra.mxu0 %v6469
      %6477 = vmatprep.subr.bf16.mxu0 0
      %6478 = vmatpush1.bf16.msra.mxu0 0
      %6479 = vmatprep.subr.bf16.mxu0 0
      %6480 = vmatpush1.bf16.msra.mxu0 0
      %6481 = vmatprep.subr.bf16.mxu0 0
      %6482 = vmatpush1.bf16.msra.mxu0 0
      %6483 = vmatprep.subr.bf16.mxu0 0
      %6484 = vmatpush1.bf16.msra.mxu0 0
      %6485 = vmatprep.subr.bf16.mxu0 0
      %6486 = vmatpush1.bf16.msra.mxu0 0
      %6487 = vmatprep.subr.bf16.mxu0 0
      %6488 = vmatpush1.bf16.msra.mxu0 0
      %6489 = vmatprep.subr.bf16.mxu0 0
      %6490 = vmatpush1.bf16.msra.mxu0 0
      %6491 = vmatprep.subr.bf16.mxu0 0
      %6492 = vmatpush1.bf16.msra.mxu0 0
      %6493 = vmatprep.subr.bf16.mxu0 0
      %6494 = vmatpush1.bf16.msra.mxu0 0
      %6495 = vmatprep.subr.bf16.mxu0 0
      %6496 = vmatpush1.bf16.msra.mxu0 0
      %6497 = vmatprep.subr.bf16.mxu0 0
      %6498 = vmatpush1.bf16.msra.mxu0 0
      %6499 = vmatprep.subr.bf16.mxu0 0
      %6500 = vmatpush1.bf16.msra.mxu0 0
      %6501 = vmatprep.subr.bf16.mxu0 0
      %6502 = vmatpush1.bf16.msra.mxu0 0
      %6503 = vmatprep.subr.bf16.mxu0 0
      %6504 = vmatpush1.bf16.msra.mxu0 0
      %6505 = vmatprep.subr.bf16.mxu0 0
      %6506 = vmatpush1.bf16.msra.mxu0 0
      %6507 = vmatprep.mubr.bf16.mxu0 0
      %6508 = vmatmul.mubr.bf16.gmra.mrb[0].mxu0 %v6473
      %v6509 = vpop.f32.mrb[0].mxu0
      %v6510 = vadd.f32 0.0, %v6509
      %v6511 = vpop.f32.mrb[0].mxu0
      %v6512 = vpop.f32.mrb[0].mxu0
      %v6513 = vpop.f32.mrb[0].mxu0
      %6514 = vdwg.mxu0
      %v6515 = vadd.f32 %v6418, %v6510
      %s6516 = scalar_lea.vmem %s41, 40
      %v6517 = vld [vmem:[%s6516] sm:$0xf]
      %v6518 = vld [vmem:[%s6516 + $0x4] sm:$0xf]
      %v6521 = vunpack.c.l.b16 %v6517
      %v6522 = vunpack.c.l.b16 %v6518
      %v6523 = vpack.c.b16 %v6522, %v6521
      %6525 = vmatprep.subr.bf16.mxu0 0
      %6526 = vmatpush1.bf16.msra.mxu0 %v6523
      %6527 = vmatprep.subr.bf16.mxu0 0
      %6528 = vmatpush1.bf16.msra.mxu0 0
      %6529 = vmatprep.subr.bf16.mxu0 0
      %6530 = vmatpush1.bf16.msra.mxu0 0
      %6531 = vmatprep.subr.bf16.mxu0 0
      %6532 = vmatpush1.bf16.msra.mxu0 0
      %6533 = vmatprep.subr.bf16.mxu0 0
      %6534 = vmatpush1.bf16.msra.mxu0 0
      %6535 = vmatprep.subr.bf16.mxu0 0
      %6536 = vmatpush1.bf16.msra.mxu0 0
      %6537 = vmatprep.subr.bf16.mxu0 0
      %6538 = vmatpush1.bf16.msra.mxu0 0
      %6539 = vmatprep.subr.bf16.mxu0 0
      %6540 = vmatpush1.bf16.msra.mxu0 0
      %6541 = vmatprep.subr.bf16.mxu0 0
      %6542 = vmatpush1.bf16.msra.mxu0 0
      %6543 = vmatprep.subr.bf16.mxu0 0
      %6544 = vmatpush1.bf16.msra.mxu0 0
      %6545 = vmatprep.subr.bf16.mxu0 0
      %6546 = vmatpush1.bf16.msra.mxu0 0
      %6547 = vmatprep.subr.bf16.mxu0 0
      %6548 = vmatpush1.bf16.msra.mxu0 0
      %6549 = vmatprep.subr.bf16.mxu0 0
      %6550 = vmatpush1.bf16.msra.mxu0 0
      %6551 = vmatprep.subr.bf16.mxu0 0
      %6552 = vmatpush1.bf16.msra.mxu0 0
      %6553 = vmatprep.subr.bf16.mxu0 0
      %6554 = vmatpush1.bf16.msra.mxu0 0
      %6555 = vmatprep.subr.bf16.mxu0 0
      %6556 = vmatpush1.bf16.msra.mxu0 0
      %6557 = vmatprep.mubr.bf16.mxu0 0
      %6558 = vmatmul.mubr.bf16.gmra.mrb[0].mxu0 %v6034
      %v6559 = vpop.f32.mrb[0].mxu0
      %v6560 = vadd.f32 0.0, %v6559
      %v6561 = vpop.f32.mrb[0].mxu0
      %v6562 = vpop.f32.mrb[0].mxu0
      %v6563 = vadd.f32 0.0, %v6562
      %v6564 = vpop.f32.mrb[0].mxu0
      %6565 = vdwg.mxu0
      %v6566 = vpack.c.bf16 %v6563, %v6560
      %s6567 = scalar_lea.vmem %s37, 5
      %v6568 = vld [vmem:[%s6567] sm:$0x1]
      %v6570 = vsel %vm3275, %v6568, 0
      %6572 = vmatprep.subr.bf16.mxu0 0
      %6573 = vmatpush1.bf16.msra.mxu0 %v6566
      %6574 = vmatprep.subr.bf16.mxu0 0
      %6575 = vmatpush1.bf16.msra.mxu0 0
      %6576 = vmatprep.subr.bf16.mxu0 0
      %6577 = vmatpush1.bf16.msra.mxu0 0
      %6578 = vmatprep.subr.bf16.mxu0 0
      %6579 = vmatpush1.bf16.msra.mxu0 0
      %6580 = vmatprep.subr.bf16.mxu0 0
      %6581 = vmatpush1.bf16.msra.mxu0 0
      %6582 = vmatprep.subr.bf16.mxu0 0
      %6583 = vmatpush1.bf16.msra.mxu0 0
      %6584 = vmatprep.subr.bf16.mxu0 0
      %6585 = vmatpush1.bf16.msra.mxu0 0
      %6586 = vmatprep.subr.bf16.mxu0 0
      %6587 = vmatpush1.bf16.msra.mxu0 0
      %6588 = vmatprep.subr.bf16.mxu0 0
      %6589 = vmatpush1.bf16.msra.mxu0 0
      %6590 = vmatprep.subr.bf16.mxu0 0
      %6591 = vmatpush1.bf16.msra.mxu0 0
      %6592 = vmatprep.subr.bf16.mxu0 0
      %6593 = vmatpush1.bf16.msra.mxu0 0
      %6594 = vmatprep.subr.bf16.mxu0 0
      %6595 = vmatpush1.bf16.msra.mxu0 0
      %6596 = vmatprep.subr.bf16.mxu0 0
      %6597 = vmatpush1.bf16.msra.mxu0 0
      %6598 = vmatprep.subr.bf16.mxu0 0
      %6599 = vmatpush1.bf16.msra.mxu0 0
      %6600 = vmatprep.subr.bf16.mxu0 0
      %6601 = vmatpush1.bf16.msra.mxu0 0
      %6602 = vmatprep.subr.bf16.mxu0 0
      %6603 = vmatpush1.bf16.msra.mxu0 0
      %6604 = vmatprep.mubr.bf16.mxu0 0
      %6605 = vmatmul.mubr.bf16.gmra.mrb[0].mxu0 %v6570
      %v6606 = vpop.f32.mrb[0].mxu0
      %v6607 = vadd.f32 0.0, %v6606
      %v6608 = vpop.f32.mrb[0].mxu0
      %v6609 = vpop.f32.mrb[0].mxu0
      %v6610 = vpop.f32.mrb[0].mxu0
      %6611 = vdwg.mxu0
      %v6612 = vadd.f32 %v6515, %v6607
      %s6613 = scalar_lea.vmem %s41, 48
      %v6614 = vld [vmem:[%s6613] sm:$0xf]
      %v6615 = vld [vmem:[%s6613 + $0x4] sm:$0xf]
      %v6618 = vunpack.c.l.b16 %v6614
      %v6619 = vunpack.c.l.b16 %v6615
      %v6620 = vpack.c.b16 %v6619, %v6618
      %6622 = vmatprep.subr.bf16.mxu0 0
      %6623 = vmatpush1.bf16.msra.mxu0 %v6620
      %6624 = vmatprep.subr.bf16.mxu0 0
      %6625 = vmatpush1.bf16.msra.mxu0 0
      %6626 = vmatprep.subr.bf16.mxu0 0
      %6627 = vmatpush1.bf16.msra.mxu0 0
      %6628 = vmatprep.subr.bf16.mxu0 0
      %6629 = vmatpush1.bf16.msra.mxu0 0
      %6630 = vmatprep.subr.bf16.mxu0 0
      %6631 = vmatpush1.bf16.msra.mxu0 0
      %6632 = vmatprep.subr.bf16.mxu0 0
      %6633 = vmatpush1.bf16.msra.mxu0 0
      %6634 = vmatprep.subr.bf16.mxu0 0
      %6635 = vmatpush1.bf16.msra.mxu0 0
      %6636 = vmatprep.subr.bf16.mxu0 0
      %6637 = vmatpush1.bf16.msra.mxu0 0
      %6638 = vmatprep.subr.bf16.mxu0 0
      %6639 = vmatpush1.bf16.msra.mxu0 0
      %6640 = vmatprep.subr.bf16.mxu0 0
      %6641 = vmatpush1.bf16.msra.mxu0 0
      %6642 = vmatprep.subr.bf16.mxu0 0
      %6643 = vmatpush1.bf16.msra.mxu0 0
      %6644 = vmatprep.subr.bf16.mxu0 0
      %6645 = vmatpush1.bf16.msra.mxu0 0
      %6646 = vmatprep.subr.bf16.mxu0 0
      %6647 = vmatpush1.bf16.msra.mxu0 0
      %6648 = vmatprep.subr.bf16.mxu0 0
      %6649 = vmatpush1.bf16.msra.mxu0 0
      %6650 = vmatprep.subr.bf16.mxu0 0
      %6651 = vmatpush1.bf16.msra.mxu0 0
      %6652 = vmatprep.subr.bf16.mxu0 0
      %6653 = vmatpush1.bf16.msra.mxu0 0
      %6654 = vmatprep.mubr.bf16.mxu0 0
      %6655 = vmatmul.mubr.bf16.gmra.mrb[0].mxu0 %v6034
      %v6656 = vpop.f32.mrb[0].mxu0
      %v6657 = vadd.f32 0.0, %v6656
      %v6658 = vpop.f32.mrb[0].mxu0
      %v6659 = vpop.f32.mrb[0].mxu0
      %v6660 = vadd.f32 0.0, %v6659
      %v6661 = vpop.f32.mrb[0].mxu0
      %6662 = vdwg.mxu0
      %v6663 = vpack.c.bf16 %v6660, %v6657
      %s6664 = scalar_lea.vmem %s37, 6
      %v6665 = vld [vmem:[%s6664] sm:$0x1]
      %v6667 = vsel %vm3275, %v6665, 0
      %6669 = vmatprep.subr.bf16.mxu0 0
      %6670 = vmatpush1.bf16.msra.mxu0 %v6663
      %6671 = vmatprep.subr.bf16.mxu0 0
      %6672 = vmatpush1.bf16.msra.mxu0 0
      %6673 = vmatprep.subr.bf16.mxu0 0
      %6674 = vmatpush1.bf16.msra.mxu0 0
      %6675 = vmatprep.subr.bf16.mxu0 0
      %6676 = vmatpush1.bf16.msra.mxu0 0
      %6677 = vmatprep.subr.bf16.mxu0 0
      %6678 = vmatpush1.bf16.msra.mxu0 0
      %6679 = vmatprep.subr.bf16.mxu0 0
      %6680 = vmatpush1.bf16.msra.mxu0 0
      %6681 = vmatprep.subr.bf16.mxu0 0
      %6682 = vmatpush1.bf16.msra.mxu0 0
      %6683 = vmatprep.subr.bf16.mxu0 0
      %6684 = vmatpush1.bf16.msra.mxu0 0
      %6685 = vmatprep.subr.bf16.mxu0 0
      %6686 = vmatpush1.bf16.msra.mxu0 0
      %6687 = vmatprep.subr.bf16.mxu0 0
      %6688 = vmatpush1.bf16.msra.mxu0 0
      %6689 = vmatprep.subr.bf16.mxu0 0
      %6690 = vmatpush1.bf16.msra.mxu0 0
      %6691 = vmatprep.subr.bf16.mxu0 0
      %6692 = vmatpush1.bf16.msra.mxu0 0
      %6693 = vmatprep.subr.bf16.mxu0 0
      %6694 = vmatpush1.bf16.msra.mxu0 0
      %6695 = vmatprep.subr.bf16.mxu0 0
      %6696 = vmatpush1.bf16.msra.mxu0 0
      %6697 = vmatprep.subr.bf16.mxu0 0
      %6698 = vmatpush1.bf16.msra.mxu0 0
      %6699 = vmatprep.subr.bf16.mxu0 0
      %6700 = vmatpush1.bf16.msra.mxu0 0
      %6701 = vmatprep.mubr.bf16.mxu0 0
      %6702 = vmatmul.mubr.bf16.gmra.mrb[0].mxu0 %v6667
      %v6703 = vpop.f32.mrb[0].mxu0
      %v6704 = vadd.f32 0.0, %v6703
      %v6705 = vpop.f32.mrb[0].mxu0
      %v6706 = vpop.f32.mrb[0].mxu0
      %v6707 = vpop.f32.mrb[0].mxu0
      %6708 = vdwg.mxu0
      %v6709 = vadd.f32 %v6612, %v6704
      %s6710 = scalar_lea.vmem %s41, 56
      %v6711 = vld [vmem:[%s6710] sm:$0xf]
      %v6712 = vld [vmem:[%s6710 + $0x4] sm:$0xf]
      %v6715 = vunpack.c.l.b16 %v6711
      %v6716 = vunpack.c.l.b16 %v6712
      %v6717 = vpack.c.b16 %v6716, %v6715
      %6719 = vmatprep.subr.bf16.mxu0 0
      %6720 = vmatpush1.bf16.msra.mxu0 %v6717
      %6721 = vmatprep.subr.bf16.mxu0 0
      %6722 = vmatpush1.bf16.msra.mxu0 0
      %6723 = vmatprep.subr.bf16.mxu0 0
      %6724 = vmatpush1.bf16.msra.mxu0 0
      %6725 = vmatprep.subr.bf16.mxu0 0
      %6726 = vmatpush1.bf16.msra.mxu0 0
      %6727 = vmatprep.subr.bf16.mxu0 0
      %6728 = vmatpush1.bf16.msra.mxu0 0
      %6729 = vmatprep.subr.bf16.mxu0 0
      %6730 = vmatpush1.bf16.msra.mxu0 0
      %6731 = vmatprep.subr.bf16.mxu0 0
      %6732 = vmatpush1.bf16.msra.mxu0 0
      %6733 = vmatprep.subr.bf16.mxu0 0
      %6734 = vmatpush1.bf16.msra.mxu0 0
      %6735 = vmatprep.subr.bf16.mxu0 0
      %6736 = vmatpush1.bf16.msra.mxu0 0
      %6737 = vmatprep.subr.bf16.mxu0 0
      %6738 = vmatpush1.bf16.msra.mxu0 0
      %6739 = vmatprep.subr.bf16.mxu0 0
      %6740 = vmatpush1.bf16.msra.mxu0 0
      %6741 = vmatprep.subr.bf16.mxu0 0
      %6742 = vmatpush1.bf16.msra.mxu0 0
      %6743 = vmatprep.subr.bf16.mxu0 0
      %6744 = vmatpush1.bf16.msra.mxu0 0
      %6745 = vmatprep.subr.bf16.mxu0 0
      %6746 = vmatpush1.bf16.msra.mxu0 0
      %6747 = vmatprep.subr.bf16.mxu0 0
      %6748 = vmatpush1.bf16.msra.mxu0 0
      %6749 = vmatprep.subr.bf16.mxu0 0
      %6750 = vmatpush1.bf16.msra.mxu0 0
      %6751 = vmatprep.mubr.bf16.mxu0 0
      %6752 = vmatmul.mubr.bf16.gmra.mrb[0].mxu0 %v6034
      %v6753 = vpop.f32.mrb[0].mxu0
      %v6754 = vadd.f32 0.0, %v6753
      %v6755 = vpop.f32.mrb[0].mxu0
      %v6756 = vpop.f32.mrb[0].mxu0
      %v6757 = vadd.f32 0.0, %v6756
      %v6758 = vpop.f32.mrb[0].mxu0
      %6759 = vdwg.mxu0
      %v6760 = vpack.c.bf16 %v6757, %v6754
      %s6761 = scalar_lea.vmem %s37, 7
      %v6762 = vld [vmem:[%s6761] sm:$0x1]
      %v6764 = vsel %vm3275, %v6762, 0
      %6766 = vmatprep.subr.bf16.mxu0 0
      %6767 = vmatpush1.bf16.msra.mxu0 %v6760
      %6768 = vmatprep.subr.bf16.mxu0 0
      %6769 = vmatpush1.bf16.msra.mxu0 0
      %6770 = vmatprep.subr.bf16.mxu0 0
      %6771 = vmatpush1.bf16.msra.mxu0 0
      %6772 = vmatprep.subr.bf16.mxu0 0
      %6773 = vmatpush1.bf16.msra.mxu0 0
      %6774 = vmatprep.subr.bf16.mxu0 0
      %6775 = vmatpush1.bf16.msra.mxu0 0
      %6776 = vmatprep.subr.bf16.mxu0 0
      %6777 = vmatpush1.bf16.msra.mxu0 0
      %6778 = vmatprep.subr.bf16.mxu0 0
      %6779 = vmatpush1.bf16.msra.mxu0 0
      %6780 = vmatprep.subr.bf16.mxu0 0
      %6781 = vmatpush1.bf16.msra.mxu0 0
      %6782 = vmatprep.subr.bf16.mxu0 0
      %6783 = vmatpush1.bf16.msra.mxu0 0
      %6784 = vmatprep.subr.bf16.mxu0 0
      %6785 = vmatpush1.bf16.msra.mxu0 0
      %6786 = vmatprep.subr.bf16.mxu0 0
      %6787 = vmatpush1.bf16.msra.mxu0 0
      %6788 = vmatprep.subr.bf16.mxu0 0
      %6789 = vmatpush1.bf16.msra.mxu0 0
      %6790 = vmatprep.subr.bf16.mxu0 0
      %6791 = vmatpush1.bf16.msra.mxu0 0
      %6792 = vmatprep.subr.bf16.mxu0 0
      %6793 = vmatpush1.bf16.msra.mxu0 0
      %6794 = vmatprep.subr.bf16.mxu0 0
      %6795 = vmatpush1.bf16.msra.mxu0 0
      %6796 = vmatprep.subr.bf16.mxu0 0
      %6797 = vmatpush1.bf16.msra.mxu0 0
      %6798 = vmatprep.mubr.bf16.mxu0 0
      %6799 = vmatmul.mubr.bf16.gmra.mrb[0].mxu0 %v6764
      %v6800 = vpop.f32.mrb[0].mxu0
      %v6801 = vadd.f32 0.0, %v6800
      %v6802 = vpop.f32.mrb[0].mxu0
      %v6803 = vpop.f32.mrb[0].mxu0
      %v6804 = vpop.f32.mrb[0].mxu0
      %6805 = vdwg.mxu0
      %v6806 = vadd.f32 %v6709, %v6801
      %s6807 = scalar_lea.vmem %s41, 64
      %v6808 = vld [vmem:[%s6807] sm:$0xf]
      %v6809 = vld [vmem:[%s6807 + $0x4] sm:$0xf]
      %v6812 = vunpack.c.l.b16 %v6808
      %v6813 = vunpack.c.l.b16 %v6809
      %v6814 = vpack.c.b16 %v6813, %v6812
      %6816 = vmatprep.subr.bf16.mxu0 0
      %6817 = vmatpush1.bf16.msra.mxu0 %v6814
      %6818 = vmatprep.subr.bf16.mxu0 0
      %6819 = vmatpush1.bf16.msra.mxu0 0
      %6820 = vmatprep.subr.bf16.mxu0 0
      %6821 = vmatpush1.bf16.msra.mxu0 0
      %6822 = vmatprep.subr.bf16.mxu0 0
      %6823 = vmatpush1.bf16.msra.mxu0 0
      %6824 = vmatprep.subr.bf16.mxu0 0
      %6825 = vmatpush1.bf16.msra.mxu0 0
      %6826 = vmatprep.subr.bf16.mxu0 0
      %6827 = vmatpush1.bf16.msra.mxu0 0
      %6828 = vmatprep.subr.bf16.mxu0 0
      %6829 = vmatpush1.bf16.msra.mxu0 0
      %6830 = vmatprep.subr.bf16.mxu0 0
      %6831 = vmatpush1.bf16.msra.mxu0 0
      %6832 = vmatprep.subr.bf16.mxu0 0
      %6833 = vmatpush1.bf16.msra.mxu0 0
      %6834 = vmatprep.subr.bf16.mxu0 0
      %6835 = vmatpush1.bf16.msra.mxu0 0
      %6836 = vmatprep.subr.bf16.mxu0 0
      %6837 = vmatpush1.bf16.msra.mxu0 0
      %6838 = vmatprep.subr.bf16.mxu0 0
      %6839 = vmatpush1.bf16.msra.mxu0 0
      %6840 = vmatprep.subr.bf16.mxu0 0
      %6841 = vmatpush1.bf16.msra.mxu0 0
      %6842 = vmatprep.subr.bf16.mxu0 0
      %6843 = vmatpush1.bf16.msra.mxu0 0
      %6844 = vmatprep.subr.bf16.mxu0 0
      %6845 = vmatpush1.bf16.msra.mxu0 0
      %6846 = vmatprep.subr.bf16.mxu0 0
      %6847 = vmatpush1.bf16.msra.mxu0 0
      %6848 = vmatprep.mubr.bf16.mxu0 0
      %6849 = vmatmul.mubr.bf16.gmra.mrb[0].mxu0 %v6034
      %v6850 = vpop.f32.mrb[0].mxu0
      %v6851 = vadd.f32 0.0, %v6850
      %v6852 = vpop.f32.mrb[0].mxu0
      %v6853 = vpop.f32.mrb[0].mxu0
      %v6854 = vadd.f32 0.0, %v6853
      %v6855 = vpop.f32.mrb[0].mxu0
      %6856 = vdwg.mxu0
      %v6857 = vpack.c.bf16 %v6854, %v6851
      %s6858 = scalar_lea.vmem %s37, 8
      %v6859 = vld [vmem:[%s6858] sm:$0x1]
      %v6861 = vsel %vm3275, %v6859, 0
      %6863 = vmatprep.subr.bf16.mxu0 0
      %6864 = vmatpush1.bf16.msra.mxu0 %v6857
      %6865 = vmatprep.subr.bf16.mxu0 0
      %6866 = vmatpush1.bf16.msra.mxu0 0
      %6867 = vmatprep.subr.bf16.mxu0 0
      %6868 = vmatpush1.bf16.msra.mxu0 0
      %6869 = vmatprep.subr.bf16.mxu0 0
      %6870 = vmatpush1.bf16.msra.mxu0 0
      %6871 = vmatprep.subr.bf16.mxu0 0
      %6872 = vmatpush1.bf16.msra.mxu0 0
      %6873 = vmatprep.subr.bf16.mxu0 0
      %6874 = vmatpush1.bf16.msra.mxu0 0
      %6875 = vmatprep.subr.bf16.mxu0 0
      %6876 = vmatpush1.bf16.msra.mxu0 0
      %6877 = vmatprep.subr.bf16.mxu0 0
      %6878 = vmatpush1.bf16.msra.mxu0 0
      %6879 = vmatprep.subr.bf16.mxu0 0
      %6880 = vmatpush1.bf16.msra.mxu0 0
      %6881 = vmatprep.subr.bf16.mxu0 0
      %6882 = vmatpush1.bf16.msra.mxu0 0
      %6883 = vmatprep.subr.bf16.mxu0 0
      %6884 = vmatpush1.bf16.msra.mxu0 0
      %6885 = vmatprep.subr.bf16.mxu0 0
      %6886 = vmatpush1.bf16.msra.mxu0 0
      %6887 = vmatprep.subr.bf16.mxu0 0
      %6888 = vmatpush1.bf16.msra.mxu0 0
      %6889 = vmatprep.subr.bf16.mxu0 0
      %6890 = vmatpush1.bf16.msra.mxu0 0
      %6891 = vmatprep.subr.bf16.mxu0 0
      %6892 = vmatpush1.bf16.msra.mxu0 0
      %6893 = vmatprep.subr.bf16.mxu0 0
      %6894 = vmatpush1.bf16.msra.mxu0 0
      %6895 = vmatprep.mubr.bf16.mxu0 0
      %6896 = vmatmul.mubr.bf16.gmra.mrb[0].mxu0 %v6861
      %v6897 = vpop.f32.mrb[0].mxu0
      %v6898 = vadd.f32 0.0, %v6897
      %v6899 = vpop.f32.mrb[0].mxu0
      %v6900 = vpop.f32.mrb[0].mxu0
      %v6901 = vpop.f32.mrb[0].mxu0
      %6902 = vdwg.mxu0
      %v6903 = vadd.f32 %v6806, %v6898
      %v6904 = vsub.f32 0.0, %v6903
      %v6905 = vmul.f32 %v6904, 1.442695
      %v6906 = vpow.pop %v6905
      %v6907 = vadd.f32 %v6906, 1.0
      %v6908 = vrcp.pop %v6907
      %6909 = vst.msk [vmem:[%s1043] sm:$0x3] %vm4854, %v6908
      %p6910 = scmp.lt.s32.totalorder %s77, 1
      %s6911 = scalar_select %p6910, %s77, 1
      %s6912 = smul.addr %s6911, 3
      %s6913 = smul.addr %s6912, 8
      %s6914 = scalar_lea.vmem %s55, %s6913
      %p6915 = scmp.lt.s32.totalorder %s77, 1
      %s6916 = scalar_select %p6915, %s77, 1
      %s6917 = smul.addr %s6916, 3
      %s6918 = smul.addr %s6917, 8
      %s6919 = scalar_lea.vmem %s57, %s6918
      %p6920 = scmp.lt.s32.totalorder %s77, 1
      %s6921 = scalar_select %p6920, %s77, 1
      %s6922 = smul.addr %s6921, 3
      %s6923 = smul.addr %s6922, 8
      %s6924 = scalar_lea.vmem %s59, %s6923
      %p6925 = scmp.lt.s32.totalorder %s77, 1
      %s6926 = scalar_select %p6925, %s77, 1
      %s6927 = smul.addr %s6926, 3
      %s6928 = smul.addr %s6927, 8
      %s6929 = scalar_lea.vmem %s61, %s6928
      %p6930 = scmp.lt.s32.totalorder %s77, 1
      %s6931 = scalar_select %p6930, %s77, 1
      %s6932 = smul.addr %s6931, 2
      %s6933 = scalar_lea.vmem %s63, %s6932
      %p6934 = scmp.lt.s32.totalorder %s77, 1
      %s6935 = scalar_select %p6934, %s77, 1
      %s6936 = smul.addr %s6935, 2
      %s6937 = scalar_lea.vmem %s65, %s6936
      // Predicated region
      $region129: #{mcnet_forward.1} parent=127 // pred_check
        %p6938 = pneg %p667
      $region130: #{mcnet_forward.1} parent=127 // pred_check_branch
        %6940 = sbr.rel (%p6938) target = $region132
      $region131: #{mcnet_forward.1} parent=127 // pred_region
        _
      $region132: #{mcnet_forward.1} parent=127 // pred_fallthru
        _
      // Predicated region
      $region133: #{mcnet_forward.1} parent=127 // pred_check
        %p6941 = pneg %p693
      $region134: #{mcnet_forward.1} parent=127 // pred_check_branch
        %6943 = sbr.rel (%p6941) target = $region136
      $region135: #{mcnet_forward.1} parent=127 // pred_region
        _
      $region136: #{mcnet_forward.1} parent=127 // pred_fallthru
        _
      // Predicated region
      $region137: #{mcnet_forward.1} parent=127 // pred_check
        %p6944 = pneg %p719
      $region138: #{mcnet_forward.1} parent=127 // pred_check_branch
        %6946 = sbr.rel (%p6944) target = $region140
      $region139: #{mcnet_forward.1} parent=127 // pred_region
        _
      $region140: #{mcnet_forward.1} parent=127 // pred_fallthru
        _
      // Predicated region
      $region141: #{mcnet_forward.1} parent=127 // pred_check
        %p6947 = pneg %p745
      $region142: #{mcnet_forward.1} parent=127 // pred_check_branch
        %6949 = sbr.rel (%p6947) target = $region144
      $region143: #{mcnet_forward.1} parent=127 // pred_region
        _
      $region144: #{mcnet_forward.1} parent=127 // pred_fallthru
        _
      // Predicated region
      $region145: #{mcnet_forward.1} parent=127 // pred_check
        %p6950 = pneg %p771
      $region146: #{mcnet_forward.1} parent=127 // pred_check_branch
        %6952 = sbr.rel (%p6950) target = $region148
      $region147: #{mcnet_forward.1} parent=127 // pred_region
        _
      $region148: #{mcnet_forward.1} parent=127 // pred_fallthru
        _
      // Predicated region
      $region149: #{mcnet_forward.1} parent=127 // pred_check
        %p6953 = pneg %p797
      $region150: #{mcnet_forward.1} parent=127 // pred_check_branch
        %6955 = sbr.rel (%p6953) target = $region152
      $region151: #{mcnet_forward.1} parent=127 // pred_region
        _
      $region152: #{mcnet_forward.1} parent=127 // pred_fallthru
        _
    $region128: #{mcnet_forward.1} parent=5 // pred_fallthru
      _
    %p6956 = scmp.le.s32.totalorder 2, %s72
    // Predicated region
    $region153: #{mcnet_forward.1} parent=5 // pred_check
      %p6957 = pneg %p6956
    $region154: #{mcnet_forward.1} parent=5 // pred_check_branch
      %6959 = sbr.rel (%p6957) target = $region156
    $region155: #{mcnet_forward.1} parent=5 // pred_region
      %s6960 = ssub.s32 %s72, 2
      // Predicated region
      $region157: #{mcnet_forward.1} parent=155 // pred_check
        %p6961 = pneg %p673
      $region158: #{mcnet_forward.1} parent=155 // pred_check_branch
        %6963 = sbr.rel (%p6961) target = $region160
      $region159: #{mcnet_forward.1} parent=155 // pred_region
        %p6964 = scmp.lt.s32.totalorder %s78, 1
        %s6965 = scalar_select %p6964, %s78, 1
        %s6966 = smul.addr %s6965, 3
        %s6967 = smul.addr %s6966, 8
        %s6968 = scalar_lea.vmem %s55, %s6967
      $region160: #{mcnet_forward.1} parent=155 // pred_fallthru
        _
      // Predicated region
      $region161: #{mcnet_forward.1} parent=155 // pred_check
        %p6969 = pneg %p699
      $region162: #{mcnet_forward.1} parent=155 // pred_check_branch
        %6971 = sbr.rel (%p6969) target = $region164
      $region163: #{mcnet_forward.1} parent=155 // pred_region
        %p6972 = scmp.lt.s32.totalorder %s78, 1
        %s6973 = scalar_select %p6972, %s78, 1
        %s6974 = smul.addr %s6973, 3
        %s6975 = smul.addr %s6974, 8
        %s6976 = scalar_lea.vmem %s57, %s6975
      $region164: #{mcnet_forward.1} parent=155 // pred_fallthru
        _
      // Predicated region
      $region165: #{mcnet_forward.1} parent=155 // pred_check
        %p6977 = pneg %p725
      $region166: #{mcnet_forward.1} parent=155 // pred_check_branch
        %6979 = sbr.rel (%p6977) target = $region168
      $region167: #{mcnet_forward.1} parent=155 // pred_region
        %p6980 = scmp.lt.s32.totalorder %s78, 1
        %s6981 = scalar_select %p6980, %s78, 1
        %s6982 = smul.addr %s6981, 3
        %s6983 = smul.addr %s6982, 8
        %s6984 = scalar_lea.vmem %s59, %s6983
      $region168: #{mcnet_forward.1} parent=155 // pred_fallthru
        _
      // Predicated region
      $region169: #{mcnet_forward.1} parent=155 // pred_check
        %p6985 = pneg %p751
      $region170: #{mcnet_forward.1} parent=155 // pred_check_branch
        %6987 = sbr.rel (%p6985) target = $region172
      $region171: #{mcnet_forward.1} parent=155 // pred_region
        %p6988 = scmp.lt.s32.totalorder %s78, 1
        %s6989 = scalar_select %p6988, %s78, 1
        %s6990 = smul.addr %s6989, 3
        %s6991 = smul.addr %s6990, 8
        %s6992 = scalar_lea.vmem %s61, %s6991
      $region172: #{mcnet_forward.1} parent=155 // pred_fallthru
        _
      // Predicated region
      $region173: #{mcnet_forward.1} parent=155 // pred_check
        %p6993 = pneg %p777
      $region174: #{mcnet_forward.1} parent=155 // pred_check_branch
        %6995 = sbr.rel (%p6993) target = $region176
      $region175: #{mcnet_forward.1} parent=155 // pred_region
        %p6996 = scmp.lt.s32.totalorder %s78, 1
        %s6997 = scalar_select %p6996, %s78, 1
        %s6998 = smul.addr %s6997, 2
        %s6999 = scalar_lea.vmem %s63, %s6998
      $region176: #{mcnet_forward.1} parent=155 // pred_fallthru
        _
      // Predicated region
      $region177: #{mcnet_forward.1} parent=155 // pred_check
        %p7000 = pneg %p803
      $region178: #{mcnet_forward.1} parent=155 // pred_check_branch
        %7002 = sbr.rel (%p7000) target = $region180
      $region179: #{mcnet_forward.1} parent=155 // pred_region
        %p7003 = scmp.lt.s32.totalorder %s78, 1
        %s7004 = scalar_select %p7003, %s78, 1
        %s7005 = smul.addr %s7004, 2
        %s7006 = scalar_lea.vmem %s65, %s7005
      $region180: #{mcnet_forward.1} parent=155 // pred_fallthru
        _
    $region156: #{mcnet_forward.1} parent=5 // pred_fallthru
      _
  $region6: #{mcnet_forward.1} parent=0 // loop_footer
    %s76 = sadd.s32 1, %s72
  $region7: #{mcnet_forward.1} parent=0 // loop_footer_branch
    %71 = sbr.rel target = $region3
  $region8: #{mcnet_forward.1} parent=0 // loop_exit
    _

</llo_original>
